<compile_context>
chip_gen: v7x
topology: tpu7x:2x2x1
jax: 0.10.0
libtpu: 0.0.40
codegen_flags: <defaults>
</compile_context>

<pallas_src>
import functools

import jax
import jax.numpy as jnp
from jax.experimental import pallas as pl
from jax.experimental.pallas import tpu as pltpu


# ----------------------------- config ---------------------------------------
class Cfg:
    num_channels = 3
    image_size = 16
    patch_size = 4
    hidden_size = 64
    intermediate_size = 128
    num_attention_heads = 4
    num_hidden_layers = 2
    layer_norm_eps = 1e-6
    attention_dropout = 0.0  # eval mode -> dropout is a no-op


CFG = Cfg()
NUM_PATCHES = (CFG.image_size // CFG.patch_size) ** 2      # S = 16
HEAD_DIM = CFG.hidden_size // CFG.num_attention_heads      # 16
PATCH_K = CFG.num_channels * CFG.patch_size ** 2           # 48
PATCH_KP = ((PATCH_K + 127) // 128) * 128                  # 128 (lane aligned)
VEC_W = max(CFG.hidden_size, CFG.intermediate_size)        # packed-vector slab width


# ----------------------------- helpers ---------------------------------------
def _layer_norm(x, gamma, beta, eps):
    """Single-pass layernorm: one sweep yields sum(x) and sum(x*x)."""
    n = x.shape[-1]
    s1 = jnp.sum(x, axis=-1, keepdims=True)
    s2 = jnp.sum(x * x, axis=-1, keepdims=True)
    mean = s1 * (1.0 / n)
    var = jnp.maximum(s2 * (1.0 / n) - mean * mean, 0.0)
    return (x - mean) * jax.lax.rsqrt(var + eps) * gamma + beta


def _images_per_block(batch, seq):
    """Images per grid step.  Generation-aware row target (v5e MXU is 128 rows
    wide, v6e/v7x 256); never force extra grid steps at small batches — blocks
    only split when every block keeps >= 128 rows, which is the only case a
    cross-TensorCore (v7x) split pays off."""
    try:
        kind = jax.devices()[0].device_kind.lower()
    except Exception:  # pragma: no cover
        kind = ""
    rows_target = 128 if ("v5 lite" in kind or "v5e" in kind) else 256
    bt = max(1, min(batch, max(1, rows_target // seq)))
    while bt > 1 and batch % bt != 0:
        bt -= 1
    return bt


def _weight_spec(shape, buffered):
    """Full-array BlockSpec with a constant index map (weights never change
    across grid steps).  buffered=True requests a single pipeline buffer so
    resident weights are not pointlessly double-buffered."""
    nd = len(shape)
    idx = lambda b, _nd=nd: (0,) * _nd
    if buffered:
        return pl.BlockSpec(shape, idx, pipeline_mode=pl.Buffered(1))
    return pl.BlockSpec(shape, idx)


# ----------------------------- fused kernel ----------------------------------
def fused_vit_kernel(patch_ref,   # (BT, S, Kp)      bf16 (zero-padded K)
                     wp_ref,      # (Kp, H)          bf16 (zero-padded rows)
                     pos_ref,     # (S, H)           f32  (pos + conv bias)
                     wqkv_ref,    # (L, H, 3H)       bf16 (scale folded into q)
                     bqkv_ref,    # (L, 1, 3H)       f32  (scale folded into q)
                     wo_ref,      # (L, nH, dh, H)   bf16
                     w1_ref,      # (L, H, I)        bf16
                     w2_ref,      # (L, I, H)        bf16
                     lnb_ref,     # (L, 7, VEC_W)    f32
                     post_ref,    # (2, H)           f32
                     out_ref,     # (BT, S, H)       f32
                     *, num_layers, num_heads, head_dim, hidden, inter,
                     seq, eps):
    BT = patch_ref.shape[0]
    Kp = patch_ref.shape[2]
    rows = BT * seq

    # ---- patch embedding:  x = patches @ Wp + (pos_emb + conv_bias) ----
    patches = patch_ref[...].reshape(rows, Kp)                       # bf16
    x = jnp.dot(patches, wp_ref[...], preferred_element_type=jnp.float32)
    x = (x.reshape(BT, seq, hidden) + pos_ref[...]).reshape(rows, hidden)

    def split_heads(mat, off):
        # (rows, 3H) bf16 -> (nH*BT, S, dh): static 16-lane slices per head,
        # stacked on a new leading axis, then a free sublane split of rows.
        parts = [mat[:, off + n * head_dim: off + (n + 1) * head_dim]
                 for n in range(num_heads)]
        return jnp.stack(parts, axis=0).reshape(num_heads * BT, seq, head_dim)

    # ---- encoder layers (unrolled; weights stay VMEM-resident) ----
    for layer in range(num_layers):
        lnb = lnb_ref[layer]                                         # (7, VEC_W)
        ln1_g = lnb[0:1, :hidden]
        ln1_b = lnb[1:2, :hidden]
        ln2_g = lnb[2:3, :hidden]
        ln2_b = lnb[3:4, :hidden]
        b_out = lnb[4:5, :hidden]
        b_fc2 = lnb[5:6, :hidden]
        b_fc1 = lnb[6:7, :inter]

        # ---------------- attention ----------------
        h = _layer_norm(x, ln1_g, ln1_b, eps)                        # f32 (rows,H)
        # ONE fused, lane-dense QKV projection: (rows, H) @ (H, 3H)
        qkv = jnp.dot(h.astype(jnp.bfloat16), wqkv_ref[layer],
                      preferred_element_type=jnp.float32)
        qkv = (qkv + bqkv_ref[layer]).astype(jnp.bfloat16)           # (rows, 3H)

        q = split_heads(qkv, 0)                                      # (nH*BT,S,dh)
        k = split_heads(qkv, hidden)
        v = split_heads(qkv, 2 * hidden)

        # scores batched over (head, image); scale already folded into Wq/bq
        s = jnp.einsum('gqd,gkd->gqk', q, k,
                       preferred_element_type=jnp.float32)           # (nH*BT,S,S)
        s = s - jnp.max(s, axis=-1, keepdims=True)
        p = jnp.exp(s)
        p = p * pl.reciprocal(jnp.sum(p, axis=-1, keepdims=True),
                              approx=True)                           # f32 softmax
        ctx = jnp.einsum('gqk,gkd->gqd', p.astype(jnp.bfloat16), v,
                         preferred_element_type=jnp.float32)         # (nH*BT,S,dh)

        # heads-batched out-projection contributions, summed over heads
        ctx_h = ctx.reshape(num_heads, rows, head_dim).astype(jnp.bfloat16)
        contrib = jnp.einsum('nrd,ndh->nrh', ctx_h, wo_ref[layer],
                             preferred_element_type=jnp.float32)     # (nH,rows,H)
        attn = jnp.sum(contrib, axis=0)                              # (rows, H)
        x = x + attn + b_out

        # ---------------- MLP ----------------
        h = _layer_norm(x, ln2_g, ln2_b, eps)
        f = jnp.dot(h.astype(jnp.bfloat16), w1_ref[layer],
                    preferred_element_type=jnp.float32) + b_fc1
        f = jax.nn.gelu(f, approximate=True)                         # tanh approx
        g = jnp.dot(f.astype(jnp.bfloat16), w2_ref[layer],
                    preferred_element_type=jnp.float32) + b_fc2
        x = x + g

    # ---- post layernorm ----
    y = _layer_norm(x, post_ref[0:1, :], post_ref[1:2, :], eps)
    # TODO(synk): a lane-dense flattened (BT, S*H) output store would avoid the
    # masked 64-lane vst's, but needs a lane-merge relayout in-kernel; at this
    # size the writeback is negligible so keep the natural (BT, S, H) layout.
    out_ref[...] = y.reshape(BT, seq, hidden)


# ----------------------------- wrapper ----------------------------------------
def siglip_vision_transformer(pixel_values, packed):
    """pixel_values: (B, C, Himg, Wimg) NCHW float32. `packed` = pack_params(...)."""
    B, C, Himg, Wimg = pixel_values.shape
    P = CFG.patch_size
    Gh, Gw = Himg // P, Wimg // P
    S, K, H = Gh * Gw, C * P * P, CFG.hidden_size

    # stride==kernel "valid" conv == patch extraction; flatten (C, kh, kw) and
    # zero-pad the feature dim to 128 for full-lane loads / aligned contraction.
    patches = pixel_values.reshape(B, C, Gh, P, Gw, P)
    patches = patches.transpose(0, 2, 4, 1, 3, 5).reshape(B, S, K)
    patches = jnp.pad(patches, ((0, 0), (0, 0), (0, PATCH_KP - K)))
    patches = patches.astype(jnp.bfloat16)

    BT = _images_per_block(B, S)
    nblk = B // BT

    kern = functools.partial(
        fused_vit_kernel,
        num_layers=CFG.num_hidden_layers,
        num_heads=CFG.num_attention_heads,
        head_dim=HEAD_DIM,
        hidden=H,
        inter=CFG.intermediate_size,
        seq=S,
        eps=CFG.layer_norm_eps,
    )

    weight_args = (packed["patch_w"], packed["pos"], packed["wqkv"],
                   packed["bqkv"], packed["wo"], packed["w1"],
                   packed["w2"], packed["lnb"], packed["post"])

    # TODO(synk): at real SigLIP sizes (H~1152, L~27) add an innermost layer
    # grid axis, stream wqkv/wo/w1/w2 per layer with pl.Buffered(2), carry the
    # residual in a VMEM scratch accumulator and set vmem_limit_bytes
    # (~48-56 MiB on v7x's 64 MiB VMEM) instead of keeping all layers resident.
    def _call(use_buffered):
        in_specs = [pl.BlockSpec((BT, S, PATCH_KP), lambda b: (b, 0, 0))]
        in_specs += [_weight_spec(w.shape, use_buffered) for w in weight_args]
        return pl.pallas_call(
            kern,
            out_shape=jax.ShapeDtypeStruct((B, S, H), jnp.float32),
            grid=(nblk,),
            in_specs=in_specs,
            out_specs=pl.BlockSpec((BT, S, H), lambda b: (b, 0, 0)),
            compiler_params=pltpu.CompilerParams(
                dimension_semantics=("parallel",)),
        )(patches, *weight_args)

    try:
        return _call(True)
    except Exception:  # pragma: no cover — fall back if Buffered(1) rejected
        return _call(False)


# ----------------------------- parameter packing ------------------------------
def pack_params(params):
    """Repack logical (PyTorch-like) params into kernel-ready stacked arrays."""
    H, I = CFG.hidden_size, CFG.intermediate_size
    nH, dh = CFG.num_attention_heads, HEAD_DIM
    scale = dh ** -0.5

    def pad_row(v, width):
        v = v.reshape(-1)
        return jnp.pad(v, (0, width - v.shape[0]))

    wqkv_l, bqkv_l, wo_l, w1_l, w2_l, lnb_l = [], [], [], [], [], []
    for (ln1_g, ln1_b, wq, bq, wk, bk, wv, bv, wo, bo,
         ln2_g, ln2_b, w1, b1, w2, b2) in params["layers"]:
        wqkv_l.append(jnp.concatenate([wq * scale, wk, wv], axis=1))    # (H, 3H)
        bqkv_l.append(jnp.concatenate([bq * scale, bk, bv], axis=1))    # (1, 3H)
        wo_l.append(wo.reshape(nH, dh, H))                              # (nH,dh,H)
        w1_l.append(w1)
        w2_l.append(w2)
        lnb_l.append(jnp.stack([pad_row(ln1_g, VEC_W), pad_row(ln1_b, VEC_W),
                                pad_row(ln2_g, VEC_W), pad_row(ln2_b, VEC_W),
                                pad_row(bo, VEC_W), pad_row(b2, VEC_W),
                                pad_row(b1, VEC_W)], axis=0))           # (7,VEC_W)

    patch_w = jnp.pad(params["wp"], ((0, PATCH_KP - PATCH_K), (0, 0)))  # (Kp, H)

    return {
        "patch_w": patch_w.astype(jnp.bfloat16),                        # (Kp,H)
        "pos": (params["pos"] + params["bp"]).astype(jnp.float32),      # (S,H)
        "wqkv": jnp.stack(wqkv_l).astype(jnp.bfloat16),                 # (L,H,3H)
        "bqkv": jnp.stack(bqkv_l).astype(jnp.float32),                  # (L,1,3H)
        "wo": jnp.stack(wo_l).astype(jnp.bfloat16),                     # (L,nH,dh,H)
        "w1": jnp.stack(w1_l).astype(jnp.bfloat16),                     # (L,H,I)
        "w2": jnp.stack(w2_l).astype(jnp.bfloat16),                     # (L,I,H)
        "lnb": jnp.stack(lnb_l).astype(jnp.float32),                    # (L,7,VEC_W)
        "post": jnp.concatenate([params["post_g"], params["post_b"]], 0),  # (2,H)
    }


# ----------------------------- reference (plain JAX, f32) ---------------------
def siglip_reference(pixel_values, params):
    B, C, Himg, Wimg = pixel_values.shape
    P = CFG.patch_size
    Gh, Gw = Himg // P, Wimg // P
    patches = pixel_values.reshape(B, C, Gh, P, Gw, P)
    patches = patches.transpose(0, 2, 4, 1, 3, 5).reshape(B, Gh * Gw, C * P * P)
    x = patches @ params["wp"] + params["bp"] + params["pos"]

    eps = CFG.layer_norm_eps
    nH, dH = CFG.num_attention_heads, HEAD_DIM
    scale = dH ** -0.5
    for (ln1_g, ln1_b, wq, bq, wk, bk, wv, bv, wo, bo,
         ln2_g, ln2_b, w1, b1, w2, b2) in params["layers"]:
        h = _layer_norm(x, ln1_g, ln1_b, eps)
        q = (h @ wq + bq).reshape(B, -1, nH, dH).transpose(0, 2, 1, 3)
        k = (h @ wk + bk).reshape(B, -1, nH, dH).transpose(0, 2, 1, 3)
        v = (h @ wv + bv).reshape(B, -1, nH, dH).transpose(0, 2, 1, 3)
        s = jnp.einsum("bhqd,bhkd->bhqk", q, k) * scale
        p = jax.nn.softmax(s.astype(jnp.float32), axis=-1)
        o = jnp.einsum("bhqk,bhkd->bhqd", p, v)
        o = o.transpose(0, 2, 1, 3).reshape(B, -1, CFG.hidden_size)
        x = x + (o @ wo + bo)
        h = _layer_norm(x, ln2_g, ln2_b, eps)
        h = jax.nn.gelu(h @ w1 + b1, approximate=True) @ w2 + b2
        x = x + h
    return _layer_norm(x, params["post_g"], params["post_b"], eps)


# ----------------------------- param init ------------------------------------
def init_params(key):
    H, I = CFG.hidden_size, CFG.intermediate_size
    K = CFG.num_channels * CFG.patch_size * CFG.patch_size

    def nrm(k, shape, s=0.02):
        return jax.random.normal(k, shape, dtype=jnp.float32) * s

    keys = iter(jax.random.split(key, 8 + 16 * CFG.num_hidden_layers))
    params = {
        # conv weight (hidden, C, P, P) -> (K, H) for x @ W
        "wp": nrm(next(keys), (CFG.hidden_size, CFG.num_channels,
                               CFG.patch_size, CFG.patch_size)).reshape(H, K).T,
        "bp": nrm(next(keys), (1, H)),
        "pos": nrm(next(keys), (NUM_PATCHES, H)),
        "post_g": jnp.ones((1, H), jnp.float32),
        "post_b": jnp.zeros((1, H), jnp.float32),
        "layers": [],
    }
    for _ in range(CFG.num_hidden_layers):
        layer = (
            jnp.ones((1, H), jnp.float32), jnp.zeros((1, H), jnp.float32),   # ln1
            nrm(next(keys), (H, H)), nrm(next(keys), (1, H)),                # q
            nrm(next(keys), (H, H)), nrm(next(keys), (1, H)),                # k
            nrm(next(keys), (H, H)), nrm(next(keys), (1, H)),                # v
            nrm(next(keys), (H, H)), nrm(next(keys), (1, H)),                # out
            jnp.ones((1, H), jnp.float32), jnp.zeros((1, H), jnp.float32),   # ln2
            nrm(next(keys), (H, I)), nrm(next(keys), (1, I)),                # fc1
            nrm(next(keys), (I, H)), nrm(next(keys), (1, H)),                # fc2
        )
        params["layers"].append(layer)
    return params


# ----------------------------- main -------------------------------------------
if __name__ == "__main__":
    key = jax.random.PRNGKey(0)
    kp, kx = jax.random.split(key)
    params = init_params(kp)
    packed = pack_params(params)

    B = 2
    pixel_values = jax.random.normal(
        kx, (B, CFG.num_channels, CFG.image_size, CFG.image_size),
        dtype=jnp.float32)

    out = siglip_vision_transformer(pixel_values, packed)
    out = jax.block_until_ready(out)

    ref = siglip_reference(pixel_values, params)
    assert out.shape == (B, NUM_PATCHES, CFG.hidden_size)
    # bf16 matmul inputs + approx reciprocal softmax -> loosened tolerance
    assert jnp.allclose(out, ref, atol=3e-2, rtol=3e-2), "mismatch vs reference"

    print("KERNEL_OK")
</pallas_src>

<mosaic_0001>
module attributes {stable_mosaic.version = 11 : i64} {
  func.func @fused_vit_kernel(%arg0: i32, %arg1: memref<2x16x128xbf16, #tpu.memory_space<vmem>>, %arg2: memref<128x64xbf16, #tpu.memory_space<vmem>>, %arg3: memref<16x64xf32, #tpu.memory_space<vmem>>, %arg4: memref<2x64x192xbf16, #tpu.memory_space<vmem>>, %arg5: memref<2x1x192xf32, #tpu.memory_space<vmem>>, %arg6: memref<2x4x16x64xbf16, #tpu.memory_space<vmem>>, %arg7: memref<2x64x128xbf16, #tpu.memory_space<vmem>>, %arg8: memref<2x128x64xbf16, #tpu.memory_space<vmem>>, %arg9: memref<2x7x128xf32, #tpu.memory_space<vmem>>, %arg10: memref<2x64xf32, #tpu.memory_space<vmem>>, %arg11: memref<2x16x64xf32, #tpu.memory_space<vmem>>) attributes {dimension_semantics = [#tpu.dimension_semantics<parallel>], iteration_bounds = array<i64: 1>, scalar_prefetch = 0 : i64, scratch_operands = 0 : i64, tpu.core_type = #tpu.core_type<tc>, window_params = [{transform_indices = @transform_0, window_bounds = array<i64: 2, 16, 128>}, {pipeline_mode = #tpu.pipeline_mode<synchronous>, transform_indices = @transform_1, window_bounds = array<i64: 128, 64>}, {pipeline_mode = #tpu.pipeline_mode<synchronous>, transform_indices = @transform_2, window_bounds = array<i64: 16, 64>}, {pipeline_mode = #tpu.pipeline_mode<synchronous>, transform_indices = @transform_3, window_bounds = array<i64: 2, 64, 192>}, {pipeline_mode = #tpu.pipeline_mode<synchronous>, transform_indices = @transform_4, window_bounds = array<i64: 2, 1, 192>}, {pipeline_mode = #tpu.pipeline_mode<synchronous>, transform_indices = @transform_5, window_bounds = array<i64: 2, 4, 16, 64>}, {pipeline_mode = #tpu.pipeline_mode<synchronous>, transform_indices = @transform_6, window_bounds = array<i64: 2, 64, 128>}, {pipeline_mode = #tpu.pipeline_mode<synchronous>, transform_indices = @transform_7, window_bounds = array<i64: 2, 128, 64>}, {pipeline_mode = #tpu.pipeline_mode<synchronous>, transform_indices = @transform_8, window_bounds = array<i64: 2, 7, 128>}, {pipeline_mode = #tpu.pipeline_mode<synchronous>, transform_indices = @transform_9, window_bounds = array<i64: 2, 64>}, {transform_indices = @transform_10, window_bounds = array<i64: 2, 16, 64>}]} {
    %c0 = arith.constant 0 : index
    %c0_0 = arith.constant 0 : index
    %c0_1 = arith.constant 0 : index
    %0 = vector.load %arg1[%c0, %c0_0, %c0_1] : memref<2x16x128xbf16, #tpu.memory_space<vmem>>, vector<2x16x128xbf16>
    %1 = vector.shape_cast %0 : vector<2x16x128xbf16> to vector<32x128xbf16>
    %c0_2 = arith.constant 0 : index
    %c0_3 = arith.constant 0 : index
    %2 = vector.load %arg2[%c0_2, %c0_3] : memref<128x64xbf16, #tpu.memory_space<vmem>>, vector<128x64xbf16>
    %cst = arith.constant dense<0.000000e+00> : vector<32x64xf32>
    %3 = tpu.matmul %1, %2, %cst {dimension_numbers = #tpu.dot_dimension_numbers<[1], [0], [0], [1], [0, 0, 1, 1], [], []>} : vector<32x128xbf16>, vector<128x64xbf16>, vector<32x64xf32> -> vector<32x64xf32>
    %4 = vector.shape_cast %3 : vector<32x64xf32> to vector<2x16x64xf32>
    %c0_4 = arith.constant 0 : index
    %c0_5 = arith.constant 0 : index
    %5 = vector.load %arg3[%c0_4, %c0_5] : memref<16x64xf32, #tpu.memory_space<vmem>>, vector<16x64xf32>
    %6 = vector.shape_cast %5 : vector<16x64xf32> to vector<1x16x64xf32>
    %7 = vector.broadcast %6 : vector<1x16x64xf32> to vector<2x16x64xf32>
    %8 = arith.addf %4, %7 : vector<2x16x64xf32>
    %9 = vector.shape_cast %8 : vector<2x16x64xf32> to vector<32x64xf32>
    %c0_6 = arith.constant 0 : index
    %c0_7 = arith.constant 0 : index
    %c0_8 = arith.constant 0 : index
    %10 = vector.load %arg9[%c0_6, %c0_7, %c0_8] : memref<2x7x128xf32, #tpu.memory_space<vmem>>, vector<1x7x128xf32>
    %11 = vector.shape_cast %10 : vector<1x7x128xf32> to vector<7x128xf32>
    %12 = vector.extract_strided_slice %11 {offsets = [0, 0], sizes = [1, 64], strides = [1, 1]} : vector<7x128xf32> to vector<1x64xf32>
    %13 = vector.extract_strided_slice %11 {offsets = [1, 0], sizes = [1, 64], strides = [1, 1]} : vector<7x128xf32> to vector<1x64xf32>
    %14 = vector.extract_strided_slice %11 {offsets = [2, 0], sizes = [1, 64], strides = [1, 1]} : vector<7x128xf32> to vector<1x64xf32>
    %15 = vector.extract_strided_slice %11 {offsets = [3, 0], sizes = [1, 64], strides = [1, 1]} : vector<7x128xf32> to vector<1x64xf32>
    %16 = vector.extract_strided_slice %11 {offsets = [4, 0], sizes = [1, 64], strides = [1, 1]} : vector<7x128xf32> to vector<1x64xf32>
    %17 = vector.extract_strided_slice %11 {offsets = [5, 0], sizes = [1, 64], strides = [1, 1]} : vector<7x128xf32> to vector<1x64xf32>
    %18 = vector.extract_strided_slice %11 {offsets = [6, 0], sizes = [1, 128], strides = [1, 1]} : vector<7x128xf32> to vector<1x128xf32>
    %cst_9 = arith.constant dense<0.000000e+00> : vector<32xf32>
    %19 = vector.multi_reduction <add>, %9, %cst_9 [1] : vector<32x64xf32> to vector<32xf32>
    %20 = vector.shape_cast %19 : vector<32xf32> to vector<32x1xf32>
    %21 = arith.mulf %9, %9 : vector<32x64xf32>
    %cst_10 = arith.constant dense<0.000000e+00> : vector<32xf32>
    %22 = vector.multi_reduction <add>, %21, %cst_10 [1] : vector<32x64xf32> to vector<32xf32>
    %23 = vector.shape_cast %22 : vector<32xf32> to vector<32x1xf32>
    %cst_11 = arith.constant 1.562500e-02 : f32
    %24 = vector.broadcast %cst_11 : f32 to vector<32x1xf32>
    %25 = arith.mulf %20, %24 : vector<32x1xf32>
    %cst_12 = arith.constant 1.562500e-02 : f32
    %26 = vector.broadcast %cst_12 : f32 to vector<32x1xf32>
    %27 = arith.mulf %23, %26 : vector<32x1xf32>
    %28 = arith.mulf %25, %25 : vector<32x1xf32>
    %29 = arith.subf %27, %28 : vector<32x1xf32>
    %cst_13 = arith.constant 0.000000e+00 : f32
    %30 = vector.broadcast %cst_13 : f32 to vector<32x1xf32>
    %31 = arith.maximumf %29, %30 : vector<32x1xf32>
    %32 = vector.broadcast %25 : vector<32x1xf32> to vector<32x64xf32>
    %33 = arith.subf %9, %32 : vector<32x64xf32>
    %cst_14 = arith.constant 9.99999997E-7 : f32
    %34 = vector.broadcast %cst_14 : f32 to vector<32x1xf32>
    %35 = arith.addf %31, %34 : vector<32x1xf32>
    %36 = math.rsqrt %35 : vector<32x1xf32>
    %37 = vector.broadcast %36 : vector<32x1xf32> to vector<32x64xf32>
    %38 = arith.mulf %33, %37 : vector<32x64xf32>
    %39 = vector.broadcast %12 : vector<1x64xf32> to vector<32x64xf32>
    %40 = arith.mulf %38, %39 : vector<32x64xf32>
    %41 = vector.broadcast %13 : vector<1x64xf32> to vector<32x64xf32>
    %42 = arith.addf %40, %41 : vector<32x64xf32>
    %43 = arith.truncf %42 : vector<32x64xf32> to vector<32x64xbf16>
    %c0_15 = arith.constant 0 : index
    %c0_16 = arith.constant 0 : index
    %c0_17 = arith.constant 0 : index
    %44 = vector.load %arg4[%c0_15, %c0_16, %c0_17] : memref<2x64x192xbf16, #tpu.memory_space<vmem>>, vector<1x64x192xbf16>
    %45 = vector.shape_cast %44 : vector<1x64x192xbf16> to vector<64x192xbf16>
    %cst_18 = arith.constant dense<0.000000e+00> : vector<32x192xf32>
    %46 = tpu.matmul %43, %45, %cst_18 {dimension_numbers = #tpu.dot_dimension_numbers<[1], [0], [0], [1], [0, 0, 1, 1], [], []>} : vector<32x64xbf16>, vector<64x192xbf16>, vector<32x192xf32> -> vector<32x192xf32>
    %c0_19 = arith.constant 0 : index
    %c0_20 = arith.constant 0 : index
    %c0_21 = arith.constant 0 : index
    %47 = vector.load %arg5[%c0_19, %c0_20, %c0_21] : memref<2x1x192xf32, #tpu.memory_space<vmem>>, vector<1x1x192xf32>
    %48 = vector.shape_cast %47 : vector<1x1x192xf32> to vector<1x192xf32>
    %49 = vector.broadcast %48 : vector<1x192xf32> to vector<32x192xf32>
    %50 = arith.addf %46, %49 : vector<32x192xf32>
    %51 = arith.truncf %50 : vector<32x192xf32> to vector<32x192xbf16>
    %52 = vector.extract_strided_slice %51 {offsets = [0, 0], sizes = [32, 16], strides = [1, 1]} : vector<32x192xbf16> to vector<32x16xbf16>
    %53 = vector.extract_strided_slice %51 {offsets = [0, 16], sizes = [32, 16], strides = [1, 1]} : vector<32x192xbf16> to vector<32x16xbf16>
    %54 = vector.extract_strided_slice %51 {offsets = [0, 32], sizes = [32, 16], strides = [1, 1]} : vector<32x192xbf16> to vector<32x16xbf16>
    %55 = vector.extract_strided_slice %51 {offsets = [0, 48], sizes = [32, 16], strides = [1, 1]} : vector<32x192xbf16> to vector<32x16xbf16>
    %56 = vector.shape_cast %52 : vector<32x16xbf16> to vector<1x32x16xbf16>
    %57 = vector.shape_cast %53 : vector<32x16xbf16> to vector<1x32x16xbf16>
    %58 = vector.shape_cast %54 : vector<32x16xbf16> to vector<1x32x16xbf16>
    %59 = vector.shape_cast %55 : vector<32x16xbf16> to vector<1x32x16xbf16>
    %60 = tpu.concatenate %56, %57, %58, %59 in 0 : vector<1x32x16xbf16>, vector<1x32x16xbf16>, vector<1x32x16xbf16>, vector<1x32x16xbf16> -> vector<4x32x16xbf16>
    %61 = vector.shape_cast %60 : vector<4x32x16xbf16> to vector<8x16x16xbf16>
    %62 = vector.extract_strided_slice %51 {offsets = [0, 64], sizes = [32, 16], strides = [1, 1]} : vector<32x192xbf16> to vector<32x16xbf16>
    %63 = vector.extract_strided_slice %51 {offsets = [0, 80], sizes = [32, 16], strides = [1, 1]} : vector<32x192xbf16> to vector<32x16xbf16>
    %64 = vector.extract_strided_slice %51 {offsets = [0, 96], sizes = [32, 16], strides = [1, 1]} : vector<32x192xbf16> to vector<32x16xbf16>
    %65 = vector.extract_strided_slice %51 {offsets = [0, 112], sizes = [32, 16], strides = [1, 1]} : vector<32x192xbf16> to vector<32x16xbf16>
    %66 = vector.shape_cast %62 : vector<32x16xbf16> to vector<1x32x16xbf16>
    %67 = vector.shape_cast %63 : vector<32x16xbf16> to vector<1x32x16xbf16>
    %68 = vector.shape_cast %64 : vector<32x16xbf16> to vector<1x32x16xbf16>
    %69 = vector.shape_cast %65 : vector<32x16xbf16> to vector<1x32x16xbf16>
    %70 = tpu.concatenate %66, %67, %68, %69 in 0 : vector<1x32x16xbf16>, vector<1x32x16xbf16>, vector<1x32x16xbf16>, vector<1x32x16xbf16> -> vector<4x32x16xbf16>
    %71 = vector.shape_cast %70 : vector<4x32x16xbf16> to vector<8x16x16xbf16>
    %72 = vector.extract_strided_slice %51 {offsets = [0, 128], sizes = [32, 16], strides = [1, 1]} : vector<32x192xbf16> to vector<32x16xbf16>
    %73 = vector.extract_strided_slice %51 {offsets = [0, 144], sizes = [32, 16], strides = [1, 1]} : vector<32x192xbf16> to vector<32x16xbf16>
    %74 = vector.extract_strided_slice %51 {offsets = [0, 160], sizes = [32, 16], strides = [1, 1]} : vector<32x192xbf16> to vector<32x16xbf16>
    %75 = vector.extract_strided_slice %51 {offsets = [0, 176], sizes = [32, 16], strides = [1, 1]} : vector<32x192xbf16> to vector<32x16xbf16>
    %76 = vector.shape_cast %72 : vector<32x16xbf16> to vector<1x32x16xbf16>
    %77 = vector.shape_cast %73 : vector<32x16xbf16> to vector<1x32x16xbf16>
    %78 = vector.shape_cast %74 : vector<32x16xbf16> to vector<1x32x16xbf16>
    %79 = vector.shape_cast %75 : vector<32x16xbf16> to vector<1x32x16xbf16>
    %80 = tpu.concatenate %76, %77, %78, %79 in 0 : vector<1x32x16xbf16>, vector<1x32x16xbf16>, vector<1x32x16xbf16>, vector<1x32x16xbf16> -> vector<4x32x16xbf16>
    %81 = vector.shape_cast %80 : vector<4x32x16xbf16> to vector<8x16x16xbf16>
    "tpu.trace_start"() <{level = 10 : i32, message = "gqd,gkd->gqk"}> : () -> ()
    %cst_22 = arith.constant dense<0.000000e+00> : vector<8x16x16xf32>
    %82 = tpu.matmul %61, %71, %cst_22 {dimension_numbers = #tpu.dot_dimension_numbers<[2], [2], [1], [1], [0, 0, 0, 1, 1, 1], [0], [0]>} : vector<8x16x16xbf16>, vector<8x16x16xbf16>, vector<8x16x16xf32> -> vector<8x16x16xf32>
    "tpu.trace_stop"() : () -> ()
    %cst_23 = arith.constant dense<0xFF800000> : vector<8x16xf32>
    %83 = vector.multi_reduction <maximumf>, %82, %cst_23 [2] : vector<8x16x16xf32> to vector<8x16xf32>
    %84 = vector.shape_cast %83 : vector<8x16xf32> to vector<8x16x1xf32>
    %85 = vector.broadcast %84 : vector<8x16x1xf32> to vector<8x16x16xf32>
    %86 = arith.subf %82, %85 : vector<8x16x16xf32>
    %87 = math.exp %86 : vector<8x16x16xf32>
    %cst_24 = arith.constant dense<0.000000e+00> : vector<8x16xf32>
    %88 = vector.multi_reduction <add>, %87, %cst_24 [2] : vector<8x16x16xf32> to vector<8x16xf32>
    %89 = vector.shape_cast %88 : vector<8x16xf32> to vector<8x16x1xf32>
    %90 = tpu.reciprocal %89 {approx = true} : vector<8x16x1xf32> -> vector<8x16x1xf32>
    %91 = vector.broadcast %90 : vector<8x16x1xf32> to vector<8x16x16xf32>
    %92 = arith.mulf %87, %91 : vector<8x16x16xf32>
    %93 = arith.truncf %92 : vector<8x16x16xf32> to vector<8x16x16xbf16>
    "tpu.trace_start"() <{level = 10 : i32, message = "gqk,gkd->gqd"}> : () -> ()
    %cst_25 = arith.constant dense<0.000000e+00> : vector<8x16x16xf32>
    %94 = tpu.matmul %93, %81, %cst_25 {dimension_numbers = #tpu.dot_dimension_numbers<[2], [1], [1], [2], [0, 0, 0, 1, 1, 2], [0], [0]>} : vector<8x16x16xbf16>, vector<8x16x16xbf16>, vector<8x16x16xf32> -> vector<8x16x16xf32>
    "tpu.trace_stop"() : () -> ()
    %95 = vector.shape_cast %94 : vector<8x16x16xf32> to vector<4x32x16xf32>
    %96 = arith.truncf %95 : vector<4x32x16xf32> to vector<4x32x16xbf16>
    %c0_26 = arith.constant 0 : index
    %c0_27 = arith.constant 0 : index
    %c0_28 = arith.constant 0 : index
    %c0_29 = arith.constant 0 : index
    %97 = vector.load %arg6[%c0_26, %c0_27, %c0_28, %c0_29] : memref<2x4x16x64xbf16, #tpu.memory_space<vmem>>, vector<1x4x16x64xbf16>
    %98 = vector.shape_cast %97 : vector<1x4x16x64xbf16> to vector<4x16x64xbf16>
    "tpu.trace_start"() <{level = 10 : i32, message = "nrd,ndh->nrh"}> : () -> ()
    %cst_30 = arith.constant dense<0.000000e+00> : vector<4x32x64xf32>
    %99 = tpu.matmul %96, %98, %cst_30 {dimension_numbers = #tpu.dot_dimension_numbers<[2], [1], [1], [2], [0, 0, 0, 1, 1, 2], [0], [0]>} : vector<4x32x16xbf16>, vector<4x16x64xbf16>, vector<4x32x64xf32> -> vector<4x32x64xf32>
    "tpu.trace_stop"() : () -> ()
    %cst_31 = arith.constant dense<0.000000e+00> : vector<32x64xf32>
    %100 = vector.multi_reduction <add>, %99, %cst_31 [0] : vector<4x32x64xf32> to vector<32x64xf32>
    %101 = arith.addf %9, %100 : vector<32x64xf32>
    %102 = vector.broadcast %16 : vector<1x64xf32> to vector<32x64xf32>
    %103 = arith.addf %101, %102 : vector<32x64xf32>
    %cst_32 = arith.constant dense<0.000000e+00> : vector<32xf32>
    %104 = vector.multi_reduction <add>, %103, %cst_32 [1] : vector<32x64xf32> to vector<32xf32>
    %105 = vector.shape_cast %104 : vector<32xf32> to vector<32x1xf32>
    %106 = arith.mulf %103, %103 : vector<32x64xf32>
    %cst_33 = arith.constant dense<0.000000e+00> : vector<32xf32>
    %107 = vector.multi_reduction <add>, %106, %cst_33 [1] : vector<32x64xf32> to vector<32xf32>
    %108 = vector.shape_cast %107 : vector<32xf32> to vector<32x1xf32>
    %cst_34 = arith.constant 1.562500e-02 : f32
    %109 = vector.broadcast %cst_34 : f32 to vector<32x1xf32>
    %110 = arith.mulf %105, %109 : vector<32x1xf32>
    %cst_35 = arith.constant 1.562500e-02 : f32
    %111 = vector.broadcast %cst_35 : f32 to vector<32x1xf32>
    %112 = arith.mulf %108, %111 : vector<32x1xf32>
    %113 = arith.mulf %110, %110 : vector<32x1xf32>
    %114 = arith.subf %112, %113 : vector<32x1xf32>
    %cst_36 = arith.constant 0.000000e+00 : f32
    %115 = vector.broadcast %cst_36 : f32 to vector<32x1xf32>
    %116 = arith.maximumf %114, %115 : vector<32x1xf32>
    %117 = vector.broadcast %110 : vector<32x1xf32> to vector<32x64xf32>
    %118 = arith.subf %103, %117 : vector<32x64xf32>
    %cst_37 = arith.constant 9.99999997E-7 : f32
    %119 = vector.broadcast %cst_37 : f32 to vector<32x1xf32>
    %120 = arith.addf %116, %119 : vector<32x1xf32>
    %121 = math.rsqrt %120 : vector<32x1xf32>
    %122 = vector.broadcast %121 : vector<32x1xf32> to vector<32x64xf32>
    %123 = arith.mulf %118, %122 : vector<32x64xf32>
    %124 = vector.broadcast %14 : vector<1x64xf32> to vector<32x64xf32>
    %125 = arith.mulf %123, %124 : vector<32x64xf32>
    %126 = vector.broadcast %15 : vector<1x64xf32> to vector<32x64xf32>
    %127 = arith.addf %125, %126 : vector<32x64xf32>
    %128 = arith.truncf %127 : vector<32x64xf32> to vector<32x64xbf16>
    %c0_38 = arith.constant 0 : index
    %c0_39 = arith.constant 0 : index
    %c0_40 = arith.constant 0 : index
    %129 = vector.load %arg7[%c0_38, %c0_39, %c0_40] : memref<2x64x128xbf16, #tpu.memory_space<vmem>>, vector<1x64x128xbf16>
    %130 = vector.shape_cast %129 : vector<1x64x128xbf16> to vector<64x128xbf16>
    %cst_41 = arith.constant dense<0.000000e+00> : vector<32x128xf32>
    %131 = tpu.matmul %128, %130, %cst_41 {dimension_numbers = #tpu.dot_dimension_numbers<[1], [0], [0], [1], [0, 0, 1, 1], [], []>} : vector<32x64xbf16>, vector<64x128xbf16>, vector<32x128xf32> -> vector<32x128xf32>
    %132 = vector.broadcast %18 : vector<1x128xf32> to vector<32x128xf32>
    %133 = arith.addf %131, %132 : vector<32x128xf32>
    %134 = arith.mulf %133, %133 : vector<32x128xf32>
    %135 = arith.mulf %133, %134 : vector<32x128xf32>
    %cst_42 = arith.constant 4.471500e-02 : f32
    %136 = vector.broadcast %cst_42 : f32 to vector<32x128xf32>
    %137 = arith.mulf %136, %135 : vector<32x128xf32>
    %138 = arith.addf %133, %137 : vector<32x128xf32>
    %cst_43 = arith.constant 0.797884583 : f32
    %139 = vector.broadcast %cst_43 : f32 to vector<32x128xf32>
    %140 = arith.mulf %139, %138 : vector<32x128xf32>
    %141 = math.tanh %140 : vector<32x128xf32>
    %cst_44 = arith.constant 1.000000e+00 : f32
    %142 = vector.broadcast %cst_44 : f32 to vector<32x128xf32>
    %143 = arith.addf %142, %141 : vector<32x128xf32>
    %cst_45 = arith.constant 5.000000e-01 : f32
    %144 = vector.broadcast %cst_45 : f32 to vector<32x128xf32>
    %145 = arith.mulf %144, %143 : vector<32x128xf32>
    %146 = arith.mulf %133, %145 : vector<32x128xf32>
    %147 = arith.truncf %146 : vector<32x128xf32> to vector<32x128xbf16>
    %c0_46 = arith.constant 0 : index
    %c0_47 = arith.constant 0 : index
    %c0_48 = arith.constant 0 : index
    %148 = vector.load %arg8[%c0_46, %c0_47, %c0_48] : memref<2x128x64xbf16, #tpu.memory_space<vmem>>, vector<1x128x64xbf16>
    %149 = vector.shape_cast %148 : vector<1x128x64xbf16> to vector<128x64xbf16>
    %cst_49 = arith.constant dense<0.000000e+00> : vector<32x64xf32>
    %150 = tpu.matmul %147, %149, %cst_49 {dimension_numbers = #tpu.dot_dimension_numbers<[1], [0], [0], [1], [0, 0, 1, 1], [], []>} : vector<32x128xbf16>, vector<128x64xbf16>, vector<32x64xf32> -> vector<32x64xf32>
    %151 = vector.broadcast %17 : vector<1x64xf32> to vector<32x64xf32>
    %152 = arith.addf %150, %151 : vector<32x64xf32>
    %153 = arith.addf %103, %152 : vector<32x64xf32>
    %c1 = arith.constant 1 : index
    %c0_50 = arith.constant 0 : index
    %c0_51 = arith.constant 0 : index
    %154 = vector.load %arg9[%c1, %c0_50, %c0_51] : memref<2x7x128xf32, #tpu.memory_space<vmem>>, vector<1x7x128xf32>
    %155 = vector.shape_cast %154 : vector<1x7x128xf32> to vector<7x128xf32>
    %156 = vector.extract_strided_slice %155 {offsets = [0, 0], sizes = [1, 64], strides = [1, 1]} : vector<7x128xf32> to vector<1x64xf32>
    %157 = vector.extract_strided_slice %155 {offsets = [1, 0], sizes = [1, 64], strides = [1, 1]} : vector<7x128xf32> to vector<1x64xf32>
    %158 = vector.extract_strided_slice %155 {offsets = [2, 0], sizes = [1, 64], strides = [1, 1]} : vector<7x128xf32> to vector<1x64xf32>
    %159 = vector.extract_strided_slice %155 {offsets = [3, 0], sizes = [1, 64], strides = [1, 1]} : vector<7x128xf32> to vector<1x64xf32>
    %160 = vector.extract_strided_slice %155 {offsets = [4, 0], sizes = [1, 64], strides = [1, 1]} : vector<7x128xf32> to vector<1x64xf32>
    %161 = vector.extract_strided_slice %155 {offsets = [5, 0], sizes = [1, 64], strides = [1, 1]} : vector<7x128xf32> to vector<1x64xf32>
    %162 = vector.extract_strided_slice %155 {offsets = [6, 0], sizes = [1, 128], strides = [1, 1]} : vector<7x128xf32> to vector<1x128xf32>
    %cst_52 = arith.constant dense<0.000000e+00> : vector<32xf32>
    %163 = vector.multi_reduction <add>, %153, %cst_52 [1] : vector<32x64xf32> to vector<32xf32>
    %164 = vector.shape_cast %163 : vector<32xf32> to vector<32x1xf32>
    %165 = arith.mulf %153, %153 : vector<32x64xf32>
    %cst_53 = arith.constant dense<0.000000e+00> : vector<32xf32>
    %166 = vector.multi_reduction <add>, %165, %cst_53 [1] : vector<32x64xf32> to vector<32xf32>
    %167 = vector.shape_cast %166 : vector<32xf32> to vector<32x1xf32>
    %cst_54 = arith.constant 1.562500e-02 : f32
    %168 = vector.broadcast %cst_54 : f32 to vector<32x1xf32>
    %169 = arith.mulf %164, %168 : vector<32x1xf32>
    %cst_55 = arith.constant 1.562500e-02 : f32
    %170 = vector.broadcast %cst_55 : f32 to vector<32x1xf32>
    %171 = arith.mulf %167, %170 : vector<32x1xf32>
    %172 = arith.mulf %169, %169 : vector<32x1xf32>
    %173 = arith.subf %171, %172 : vector<32x1xf32>
    %cst_56 = arith.constant 0.000000e+00 : f32
    %174 = vector.broadcast %cst_56 : f32 to vector<32x1xf32>
    %175 = arith.maximumf %173, %174 : vector<32x1xf32>
    %176 = vector.broadcast %169 : vector<32x1xf32> to vector<32x64xf32>
    %177 = arith.subf %153, %176 : vector<32x64xf32>
    %cst_57 = arith.constant 9.99999997E-7 : f32
    %178 = vector.broadcast %cst_57 : f32 to vector<32x1xf32>
    %179 = arith.addf %175, %178 : vector<32x1xf32>
    %180 = math.rsqrt %179 : vector<32x1xf32>
    %181 = vector.broadcast %180 : vector<32x1xf32> to vector<32x64xf32>
    %182 = arith.mulf %177, %181 : vector<32x64xf32>
    %183 = vector.broadcast %156 : vector<1x64xf32> to vector<32x64xf32>
    %184 = arith.mulf %182, %183 : vector<32x64xf32>
    %185 = vector.broadcast %157 : vector<1x64xf32> to vector<32x64xf32>
    %186 = arith.addf %184, %185 : vector<32x64xf32>
    %187 = arith.truncf %186 : vector<32x64xf32> to vector<32x64xbf16>
    %c1_58 = arith.constant 1 : index
    %c0_59 = arith.constant 0 : index
    %c0_60 = arith.constant 0 : index
    %188 = vector.load %arg4[%c1_58, %c0_59, %c0_60] : memref<2x64x192xbf16, #tpu.memory_space<vmem>>, vector<1x64x192xbf16>
    %189 = vector.shape_cast %188 : vector<1x64x192xbf16> to vector<64x192xbf16>
    %cst_61 = arith.constant dense<0.000000e+00> : vector<32x192xf32>
    %190 = tpu.matmul %187, %189, %cst_61 {dimension_numbers = #tpu.dot_dimension_numbers<[1], [0], [0], [1], [0, 0, 1, 1], [], []>} : vector<32x64xbf16>, vector<64x192xbf16>, vector<32x192xf32> -> vector<32x192xf32>
    %c1_62 = arith.constant 1 : index
    %c0_63 = arith.constant 0 : index
    %c0_64 = arith.constant 0 : index
    %191 = vector.load %arg5[%c1_62, %c0_63, %c0_64] : memref<2x1x192xf32, #tpu.memory_space<vmem>>, vector<1x1x192xf32>
    %192 = vector.shape_cast %191 : vector<1x1x192xf32> to vector<1x192xf32>
    %193 = vector.broadcast %192 : vector<1x192xf32> to vector<32x192xf32>
    %194 = arith.addf %190, %193 : vector<32x192xf32>
    %195 = arith.truncf %194 : vector<32x192xf32> to vector<32x192xbf16>
    %196 = vector.extract_strided_slice %195 {offsets = [0, 0], sizes = [32, 16], strides = [1, 1]} : vector<32x192xbf16> to vector<32x16xbf16>
    %197 = vector.extract_strided_slice %195 {offsets = [0, 16], sizes = [32, 16], strides = [1, 1]} : vector<32x192xbf16> to vector<32x16xbf16>
    %198 = vector.extract_strided_slice %195 {offsets = [0, 32], sizes = [32, 16], strides = [1, 1]} : vector<32x192xbf16> to vector<32x16xbf16>
    %199 = vector.extract_strided_slice %195 {offsets = [0, 48], sizes = [32, 16], strides = [1, 1]} : vector<32x192xbf16> to vector<32x16xbf16>
    %200 = vector.shape_cast %196 : vector<32x16xbf16> to vector<1x32x16xbf16>
    %201 = vector.shape_cast %197 : vector<32x16xbf16> to vector<1x32x16xbf16>
    %202 = vector.shape_cast %198 : vector<32x16xbf16> to vector<1x32x16xbf16>
    %203 = vector.shape_cast %199 : vector<32x16xbf16> to vector<1x32x16xbf16>
    %204 = tpu.concatenate %200, %201, %202, %203 in 0 : vector<1x32x16xbf16>, vector<1x32x16xbf16>, vector<1x32x16xbf16>, vector<1x32x16xbf16> -> vector<4x32x16xbf16>
    %205 = vector.shape_cast %204 : vector<4x32x16xbf16> to vector<8x16x16xbf16>
    %206 = vector.extract_strided_slice %195 {offsets = [0, 64], sizes = [32, 16], strides = [1, 1]} : vector<32x192xbf16> to vector<32x16xbf16>
    %207 = vector.extract_strided_slice %195 {offsets = [0, 80], sizes = [32, 16], strides = [1, 1]} : vector<32x192xbf16> to vector<32x16xbf16>
    %208 = vector.extract_strided_slice %195 {offsets = [0, 96], sizes = [32, 16], strides = [1, 1]} : vector<32x192xbf16> to vector<32x16xbf16>
    %209 = vector.extract_strided_slice %195 {offsets = [0, 112], sizes = [32, 16], strides = [1, 1]} : vector<32x192xbf16> to vector<32x16xbf16>
    %210 = vector.shape_cast %206 : vector<32x16xbf16> to vector<1x32x16xbf16>
    %211 = vector.shape_cast %207 : vector<32x16xbf16> to vector<1x32x16xbf16>
    %212 = vector.shape_cast %208 : vector<32x16xbf16> to vector<1x32x16xbf16>
    %213 = vector.shape_cast %209 : vector<32x16xbf16> to vector<1x32x16xbf16>
    %214 = tpu.concatenate %210, %211, %212, %213 in 0 : vector<1x32x16xbf16>, vector<1x32x16xbf16>, vector<1x32x16xbf16>, vector<1x32x16xbf16> -> vector<4x32x16xbf16>
    %215 = vector.shape_cast %214 : vector<4x32x16xbf16> to vector<8x16x16xbf16>
    %216 = vector.extract_strided_slice %195 {offsets = [0, 128], sizes = [32, 16], strides = [1, 1]} : vector<32x192xbf16> to vector<32x16xbf16>
    %217 = vector.extract_strided_slice %195 {offsets = [0, 144], sizes = [32, 16], strides = [1, 1]} : vector<32x192xbf16> to vector<32x16xbf16>
    %218 = vector.extract_strided_slice %195 {offsets = [0, 160], sizes = [32, 16], strides = [1, 1]} : vector<32x192xbf16> to vector<32x16xbf16>
    %219 = vector.extract_strided_slice %195 {offsets = [0, 176], sizes = [32, 16], strides = [1, 1]} : vector<32x192xbf16> to vector<32x16xbf16>
    %220 = vector.shape_cast %216 : vector<32x16xbf16> to vector<1x32x16xbf16>
    %221 = vector.shape_cast %217 : vector<32x16xbf16> to vector<1x32x16xbf16>
    %222 = vector.shape_cast %218 : vector<32x16xbf16> to vector<1x32x16xbf16>
    %223 = vector.shape_cast %219 : vector<32x16xbf16> to vector<1x32x16xbf16>
    %224 = tpu.concatenate %220, %221, %222, %223 in 0 : vector<1x32x16xbf16>, vector<1x32x16xbf16>, vector<1x32x16xbf16>, vector<1x32x16xbf16> -> vector<4x32x16xbf16>
    %225 = vector.shape_cast %224 : vector<4x32x16xbf16> to vector<8x16x16xbf16>
    "tpu.trace_start"() <{level = 10 : i32, message = "gqd,gkd->gqk"}> : () -> ()
    %cst_65 = arith.constant dense<0.000000e+00> : vector<8x16x16xf32>
    %226 = tpu.matmul %205, %215, %cst_65 {dimension_numbers = #tpu.dot_dimension_numbers<[2], [2], [1], [1], [0, 0, 0, 1, 1, 1], [0], [0]>} : vector<8x16x16xbf16>, vector<8x16x16xbf16>, vector<8x16x16xf32> -> vector<8x16x16xf32>
    "tpu.trace_stop"() : () -> ()
    %cst_66 = arith.constant dense<0xFF800000> : vector<8x16xf32>
    %227 = vector.multi_reduction <maximumf>, %226, %cst_66 [2] : vector<8x16x16xf32> to vector<8x16xf32>
    %228 = vector.shape_cast %227 : vector<8x16xf32> to vector<8x16x1xf32>
    %229 = vector.broadcast %228 : vector<8x16x1xf32> to vector<8x16x16xf32>
    %230 = arith.subf %226, %229 : vector<8x16x16xf32>
    %231 = math.exp %230 : vector<8x16x16xf32>
    %cst_67 = arith.constant dense<0.000000e+00> : vector<8x16xf32>
    %232 = vector.multi_reduction <add>, %231, %cst_67 [2] : vector<8x16x16xf32> to vector<8x16xf32>
    %233 = vector.shape_cast %232 : vector<8x16xf32> to vector<8x16x1xf32>
    %234 = tpu.reciprocal %233 {approx = true} : vector<8x16x1xf32> -> vector<8x16x1xf32>
    %235 = vector.broadcast %234 : vector<8x16x1xf32> to vector<8x16x16xf32>
    %236 = arith.mulf %231, %235 : vector<8x16x16xf32>
    %237 = arith.truncf %236 : vector<8x16x16xf32> to vector<8x16x16xbf16>
    "tpu.trace_start"() <{level = 10 : i32, message = "gqk,gkd->gqd"}> : () -> ()
    %cst_68 = arith.constant dense<0.000000e+00> : vector<8x16x16xf32>
    %238 = tpu.matmul %237, %225, %cst_68 {dimension_numbers = #tpu.dot_dimension_numbers<[2], [1], [1], [2], [0, 0, 0, 1, 1, 2], [0], [0]>} : vector<8x16x16xbf16>, vector<8x16x16xbf16>, vector<8x16x16xf32> -> vector<8x16x16xf32>
    "tpu.trace_stop"() : () -> ()
    %239 = vector.shape_cast %238 : vector<8x16x16xf32> to vector<4x32x16xf32>
    %240 = arith.truncf %239 : vector<4x32x16xf32> to vector<4x32x16xbf16>
    %c1_69 = arith.constant 1 : index
    %c0_70 = arith.constant 0 : index
    %c0_71 = arith.constant 0 : index
    %c0_72 = arith.constant 0 : index
    %241 = vector.load %arg6[%c1_69, %c0_70, %c0_71, %c0_72] : memref<2x4x16x64xbf16, #tpu.memory_space<vmem>>, vector<1x4x16x64xbf16>
    %242 = vector.shape_cast %241 : vector<1x4x16x64xbf16> to vector<4x16x64xbf16>
    "tpu.trace_start"() <{level = 10 : i32, message = "nrd,ndh->nrh"}> : () -> ()
    %cst_73 = arith.constant dense<0.000000e+00> : vector<4x32x64xf32>
    %243 = tpu.matmul %240, %242, %cst_73 {dimension_numbers = #tpu.dot_dimension_numbers<[2], [1], [1], [2], [0, 0, 0, 1, 1, 2], [0], [0]>} : vector<4x32x16xbf16>, vector<4x16x64xbf16>, vector<4x32x64xf32> -> vector<4x32x64xf32>
    "tpu.trace_stop"() : () -> ()
    %cst_74 = arith.constant dense<0.000000e+00> : vector<32x64xf32>
    %244 = vector.multi_reduction <add>, %243, %cst_74 [0] : vector<4x32x64xf32> to vector<32x64xf32>
    %245 = arith.addf %153, %244 : vector<32x64xf32>
    %246 = vector.broadcast %160 : vector<1x64xf32> to vector<32x64xf32>
    %247 = arith.addf %245, %246 : vector<32x64xf32>
    %cst_75 = arith.constant dense<0.000000e+00> : vector<32xf32>
    %248 = vector.multi_reduction <add>, %247, %cst_75 [1] : vector<32x64xf32> to vector<32xf32>
    %249 = vector.shape_cast %248 : vector<32xf32> to vector<32x1xf32>
    %250 = arith.mulf %247, %247 : vector<32x64xf32>
    %cst_76 = arith.constant dense<0.000000e+00> : vector<32xf32>
    %251 = vector.multi_reduction <add>, %250, %cst_76 [1] : vector<32x64xf32> to vector<32xf32>
    %252 = vector.shape_cast %251 : vector<32xf32> to vector<32x1xf32>
    %cst_77 = arith.constant 1.562500e-02 : f32
    %253 = vector.broadcast %cst_77 : f32 to vector<32x1xf32>
    %254 = arith.mulf %249, %253 : vector<32x1xf32>
    %cst_78 = arith.constant 1.562500e-02 : f32
    %255 = vector.broadcast %cst_78 : f32 to vector<32x1xf32>
    %256 = arith.mulf %252, %255 : vector<32x1xf32>
    %257 = arith.mulf %254, %254 : vector<32x1xf32>
    %258 = arith.subf %256, %257 : vector<32x1xf32>
    %cst_79 = arith.constant 0.000000e+00 : f32
    %259 = vector.broadcast %cst_79 : f32 to vector<32x1xf32>
    %260 = arith.maximumf %258, %259 : vector<32x1xf32>
    %261 = vector.broadcast %254 : vector<32x1xf32> to vector<32x64xf32>
    %262 = arith.subf %247, %261 : vector<32x64xf32>
    %cst_80 = arith.constant 9.99999997E-7 : f32
    %263 = vector.broadcast %cst_80 : f32 to vector<32x1xf32>
    %264 = arith.addf %260, %263 : vector<32x1xf32>
    %265 = math.rsqrt %264 : vector<32x1xf32>
    %266 = vector.broadcast %265 : vector<32x1xf32> to vector<32x64xf32>
    %267 = arith.mulf %262, %266 : vector<32x64xf32>
    %268 = vector.broadcast %158 : vector<1x64xf32> to vector<32x64xf32>
    %269 = arith.mulf %267, %268 : vector<32x64xf32>
    %270 = vector.broadcast %159 : vector<1x64xf32> to vector<32x64xf32>
    %271 = arith.addf %269, %270 : vector<32x64xf32>
    %272 = arith.truncf %271 : vector<32x64xf32> to vector<32x64xbf16>
    %c1_81 = arith.constant 1 : index
    %c0_82 = arith.constant 0 : index
    %c0_83 = arith.constant 0 : index
    %273 = vector.load %arg7[%c1_81, %c0_82, %c0_83] : memref<2x64x128xbf16, #tpu.memory_space<vmem>>, vector<1x64x128xbf16>
    %274 = vector.shape_cast %273 : vector<1x64x128xbf16> to vector<64x128xbf16>
    %cst_84 = arith.constant dense<0.000000e+00> : vector<32x128xf32>
    %275 = tpu.matmul %272, %274, %cst_84 {dimension_numbers = #tpu.dot_dimension_numbers<[1], [0], [0], [1], [0, 0, 1, 1], [], []>} : vector<32x64xbf16>, vector<64x128xbf16>, vector<32x128xf32> -> vector<32x128xf32>
    %276 = vector.broadcast %162 : vector<1x128xf32> to vector<32x128xf32>
    %277 = arith.addf %275, %276 : vector<32x128xf32>
    %278 = arith.mulf %277, %277 : vector<32x128xf32>
    %279 = arith.mulf %277, %278 : vector<32x128xf32>
    %cst_85 = arith.constant 4.471500e-02 : f32
    %280 = vector.broadcast %cst_85 : f32 to vector<32x128xf32>
    %281 = arith.mulf %280, %279 : vector<32x128xf32>
    %282 = arith.addf %277, %281 : vector<32x128xf32>
    %cst_86 = arith.constant 0.797884583 : f32
    %283 = vector.broadcast %cst_86 : f32 to vector<32x128xf32>
    %284 = arith.mulf %283, %282 : vector<32x128xf32>
    %285 = math.tanh %284 : vector<32x128xf32>
    %cst_87 = arith.constant 1.000000e+00 : f32
    %286 = vector.broadcast %cst_87 : f32 to vector<32x128xf32>
    %287 = arith.addf %286, %285 : vector<32x128xf32>
    %cst_88 = arith.constant 5.000000e-01 : f32
    %288 = vector.broadcast %cst_88 : f32 to vector<32x128xf32>
    %289 = arith.mulf %288, %287 : vector<32x128xf32>
    %290 = arith.mulf %277, %289 : vector<32x128xf32>
    %291 = arith.truncf %290 : vector<32x128xf32> to vector<32x128xbf16>
    %c1_89 = arith.constant 1 : index
    %c0_90 = arith.constant 0 : index
    %c0_91 = arith.constant 0 : index
    %292 = vector.load %arg8[%c1_89, %c0_90, %c0_91] : memref<2x128x64xbf16, #tpu.memory_space<vmem>>, vector<1x128x64xbf16>
    %293 = vector.shape_cast %292 : vector<1x128x64xbf16> to vector<128x64xbf16>
    %cst_92 = arith.constant dense<0.000000e+00> : vector<32x64xf32>
    %294 = tpu.matmul %291, %293, %cst_92 {dimension_numbers = #tpu.dot_dimension_numbers<[1], [0], [0], [1], [0, 0, 1, 1], [], []>} : vector<32x128xbf16>, vector<128x64xbf16>, vector<32x64xf32> -> vector<32x64xf32>
    %295 = vector.broadcast %161 : vector<1x64xf32> to vector<32x64xf32>
    %296 = arith.addf %294, %295 : vector<32x64xf32>
    %297 = arith.addf %247, %296 : vector<32x64xf32>
    %c0_93 = arith.constant 0 : index
    %c0_94 = arith.constant 0 : index
    %298 = vector.load %arg10[%c0_93, %c0_94] : memref<2x64xf32, #tpu.memory_space<vmem>>, vector<1x64xf32>
    %c1_95 = arith.constant 1 : index
    %c0_96 = arith.constant 0 : index
    %299 = vector.load %arg10[%c1_95, %c0_96] : memref<2x64xf32, #tpu.memory_space<vmem>>, vector<1x64xf32>
    %cst_97 = arith.constant dense<0.000000e+00> : vector<32xf32>
    %300 = vector.multi_reduction <add>, %297, %cst_97 [1] : vector<32x64xf32> to vector<32xf32>
    %301 = vector.shape_cast %300 : vector<32xf32> to vector<32x1xf32>
    %302 = arith.mulf %297, %297 : vector<32x64xf32>
    %cst_98 = arith.constant dense<0.000000e+00> : vector<32xf32>
    %303 = vector.multi_reduction <add>, %302, %cst_98 [1] : vector<32x64xf32> to vector<32xf32>
    %304 = vector.shape_cast %303 : vector<32xf32> to vector<32x1xf32>
    %cst_99 = arith.constant 1.562500e-02 : f32
    %305 = vector.broadcast %cst_99 : f32 to vector<32x1xf32>
    %306 = arith.mulf %301, %305 : vector<32x1xf32>
    %cst_100 = arith.constant 1.562500e-02 : f32
    %307 = vector.broadcast %cst_100 : f32 to vector<32x1xf32>
    %308 = arith.mulf %304, %307 : vector<32x1xf32>
    %309 = arith.mulf %306, %306 : vector<32x1xf32>
    %310 = arith.subf %308, %309 : vector<32x1xf32>
    %cst_101 = arith.constant 0.000000e+00 : f32
    %311 = vector.broadcast %cst_101 : f32 to vector<32x1xf32>
    %312 = arith.maximumf %310, %311 : vector<32x1xf32>
    %313 = vector.broadcast %306 : vector<32x1xf32> to vector<32x64xf32>
    %314 = arith.subf %297, %313 : vector<32x64xf32>
    %cst_102 = arith.constant 9.99999997E-7 : f32
    %315 = vector.broadcast %cst_102 : f32 to vector<32x1xf32>
    %316 = arith.addf %312, %315 : vector<32x1xf32>
    %317 = math.rsqrt %316 : vector<32x1xf32>
    %318 = vector.broadcast %317 : vector<32x1xf32> to vector<32x64xf32>
    %319 = arith.mulf %314, %318 : vector<32x64xf32>
    %320 = vector.broadcast %298 : vector<1x64xf32> to vector<32x64xf32>
    %321 = arith.mulf %319, %320 : vector<32x64xf32>
    %322 = vector.broadcast %299 : vector<1x64xf32> to vector<32x64xf32>
    %323 = arith.addf %321, %322 : vector<32x64xf32>
    %324 = vector.shape_cast %323 : vector<32x64xf32> to vector<2x16x64xf32>
    %c0_103 = arith.constant 0 : index
    %c0_104 = arith.constant 0 : index
    %c0_105 = arith.constant 0 : index
    %325 = vector.load %arg11[%c0_103, %c0_104, %c0_105] : memref<2x16x64xf32, #tpu.memory_space<vmem>>, vector<2x16x64xf32>
    tpu.vector_store %arg11[%c0_103, %c0_104, %c0_105], %324 {strides = array<i32>} : memref<2x16x64xf32, #tpu.memory_space<vmem>>, vector<2x16x64xf32>,
    return
  }
  func.func @transform_0(%arg0: i32) -> (i32, i32, i32) {
    %c0_i32 = arith.constant 0 : i32
    %c0_i32_0 = arith.constant 0 : i32
    %c0_i32_1 = arith.constant 0 : i32
    return %arg0, %c0_i32, %c0_i32_0 : i32, i32, i32
  }
  func.func @transform_1(%arg0: i32) -> (i32, i32) {
    %c0_i32 = arith.constant 0 : i32
    %c0_i32_0 = arith.constant 0 : i32
    %c0_i32_1 = arith.constant 0 : i32
    return %c0_i32, %c0_i32_0 : i32, i32
  }
  func.func @transform_2(%arg0: i32) -> (i32, i32) {
    %c0_i32 = arith.constant 0 : i32
    %c0_i32_0 = arith.constant 0 : i32
    %c0_i32_1 = arith.constant 0 : i32
    return %c0_i32, %c0_i32_0 : i32, i32
  }
  func.func @transform_3(%arg0: i32) -> (i32, i32, i32) {
    %c0_i32 = arith.constant 0 : i32
    %c0_i32_0 = arith.constant 0 : i32
    %c0_i32_1 = arith.constant 0 : i32
    %c0_i32_2 = arith.constant 0 : i32
    return %c0_i32, %c0_i32_0, %c0_i32_1 : i32, i32, i32
  }
  func.func @transform_4(%arg0: i32) -> (i32, i32, i32) {
    %c0_i32 = arith.constant 0 : i32
    %c0_i32_0 = arith.constant 0 : i32
    %c0_i32_1 = arith.constant 0 : i32
    %c0_i32_2 = arith.constant 0 : i32
    return %c0_i32, %c0_i32_0, %c0_i32_1 : i32, i32, i32
  }
  func.func @transform_5(%arg0: i32) -> (i32, i32, i32, i32) {
    %c0_i32 = arith.constant 0 : i32
    %c0_i32_0 = arith.constant 0 : i32
    %c0_i32_1 = arith.constant 0 : i32
    %c0_i32_2 = arith.constant 0 : i32
    %c0_i32_3 = arith.constant 0 : i32
    return %c0_i32, %c0_i32_0, %c0_i32_1, %c0_i32_2 : i32, i32, i32, i32
  }
  func.func @transform_6(%arg0: i32) -> (i32, i32, i32) {
    %c0_i32 = arith.constant 0 : i32
    %c0_i32_0 = arith.constant 0 : i32
    %c0_i32_1 = arith.constant 0 : i32
    %c0_i32_2 = arith.constant 0 : i32
    return %c0_i32, %c0_i32_0, %c0_i32_1 : i32, i32, i32
  }
  func.func @transform_7(%arg0: i32) -> (i32, i32, i32) {
    %c0_i32 = arith.constant 0 : i32
    %c0_i32_0 = arith.constant 0 : i32
    %c0_i32_1 = arith.constant 0 : i32
    %c0_i32_2 = arith.constant 0 : i32
    return %c0_i32, %c0_i32_0, %c0_i32_1 : i32, i32, i32
  }
  func.func @transform_8(%arg0: i32) -> (i32, i32, i32) {
    %c0_i32 = arith.constant 0 : i32
    %c0_i32_0 = arith.constant 0 : i32
    %c0_i32_1 = arith.constant 0 : i32
    %c0_i32_2 = arith.constant 0 : i32
    return %c0_i32, %c0_i32_0, %c0_i32_1 : i32, i32, i32
  }
  func.func @transform_9(%arg0: i32) -> (i32, i32) {
    %c0_i32 = arith.constant 0 : i32
    %c0_i32_0 = arith.constant 0 : i32
    %c0_i32_1 = arith.constant 0 : i32
    return %c0_i32, %c0_i32_0 : i32, i32
  }
  func.func @transform_10(%arg0: i32) -> (i32, i32, i32) {
    %c0_i32 = arith.constant 0 : i32
    %c0_i32_0 = arith.constant 0 : i32
    %c0_i32_1 = arith.constant 0 : i32
    return %arg0, %c0_i32, %c0_i32_0 : i32, i32, i32
  }
}

module attributes {stable_mosaic.version = 11 : i64} {
  func.func @fused_vit_kernel(%arg0: i32, %arg1: memref<2x16x128xbf16, #tpu.memory_space<vmem>>, %arg2: memref<128x64xbf16, #tpu.memory_space<vmem>>, %arg3: memref<16x64xf32, #tpu.memory_space<vmem>>, %arg4: memref<2x64x192xbf16, #tpu.memory_space<vmem>>, %arg5: memref<2x1x192xf32, #tpu.memory_space<vmem>>, %arg6: memref<2x4x16x64xbf16, #tpu.memory_space<vmem>>, %arg7: memref<2x64x128xbf16, #tpu.memory_space<vmem>>, %arg8: memref<2x128x64xbf16, #tpu.memory_space<vmem>>, %arg9: memref<2x7x128xf32, #tpu.memory_space<vmem>>, %arg10: memref<2x64xf32, #tpu.memory_space<vmem>>, %arg11: memref<2x16x64xf32, #tpu.memory_space<vmem>>) attributes {dimension_semantics = [#tpu.dimension_semantics<parallel>], iteration_bounds = array<i64: 1>, scalar_prefetch = 0 : i64, scratch_operands = 0 : i64, tpu.core_type = #tpu.core_type<tc>, window_params = [{transform_indices = @transform_0, window_bounds = array<i64: 2, 16, 128>}, {pipeline_mode = #tpu.pipeline_mode<synchronous>, transform_indices = @transform_1, window_bounds = array<i64: 128, 64>}, {pipeline_mode = #tpu.pipeline_mode<synchronous>, transform_indices = @transform_2, window_bounds = array<i64: 16, 64>}, {pipeline_mode = #tpu.pipeline_mode<synchronous>, transform_indices = @transform_3, window_bounds = array<i64: 2, 64, 192>}, {pipeline_mode = #tpu.pipeline_mode<synchronous>, transform_indices = @transform_4, window_bounds = array<i64: 2, 1, 192>}, {pipeline_mode = #tpu.pipeline_mode<synchronous>, transform_indices = @transform_5, window_bounds = array<i64: 2, 4, 16, 64>}, {pipeline_mode = #tpu.pipeline_mode<synchronous>, transform_indices = @transform_6, window_bounds = array<i64: 2, 64, 128>}, {pipeline_mode = #tpu.pipeline_mode<synchronous>, transform_indices = @transform_7, window_bounds = array<i64: 2, 128, 64>}, {pipeline_mode = #tpu.pipeline_mode<synchronous>, transform_indices = @transform_8, window_bounds = array<i64: 2, 7, 128>}, {pipeline_mode = #tpu.pipeline_mode<synchronous>, transform_indices = @transform_9, window_bounds = array<i64: 2, 64>}, {transform_indices = @transform_10, window_bounds = array<i64: 2, 16, 64>}]} {
    %c0 = arith.constant 0 : index
    %c0_0 = arith.constant 0 : index
    %c0_1 = arith.constant 0 : index
    %0 = vector.load %arg1[%c0, %c0_0, %c0_1] : memref<2x16x128xbf16, #tpu.memory_space<vmem>>, vector<2x16x128xbf16>
    %1 = vector.shape_cast %0 : vector<2x16x128xbf16> to vector<32x128xbf16>
    %c0_2 = arith.constant 0 : index
    %c0_3 = arith.constant 0 : index
    %2 = vector.load %arg2[%c0_2, %c0_3] : memref<128x64xbf16, #tpu.memory_space<vmem>>, vector<128x64xbf16>
    %cst = arith.constant dense<0.000000e+00> : vector<32x64xf32>
    %3 = tpu.matmul %1, %2, %cst {dimension_numbers = #tpu.dot_dimension_numbers<[1], [0], [0], [1], [0, 0, 1, 1], [], []>} : vector<32x128xbf16>, vector<128x64xbf16>, vector<32x64xf32> -> vector<32x64xf32>
    %4 = vector.shape_cast %3 : vector<32x64xf32> to vector<2x16x64xf32>
    %c0_4 = arith.constant 0 : index
    %c0_5 = arith.constant 0 : index
    %5 = vector.load %arg3[%c0_4, %c0_5] : memref<16x64xf32, #tpu.memory_space<vmem>>, vector<16x64xf32>
    %6 = vector.shape_cast %5 : vector<16x64xf32> to vector<1x16x64xf32>
    %7 = vector.broadcast %6 : vector<1x16x64xf32> to vector<2x16x64xf32>
    %8 = arith.addf %4, %7 : vector<2x16x64xf32>
    %9 = vector.shape_cast %8 : vector<2x16x64xf32> to vector<32x64xf32>
    %c0_6 = arith.constant 0 : index
    %c0_7 = arith.constant 0 : index
    %c0_8 = arith.constant 0 : index
    %10 = vector.load %arg9[%c0_6, %c0_7, %c0_8] : memref<2x7x128xf32, #tpu.memory_space<vmem>>, vector<1x7x128xf32>
    %11 = vector.shape_cast %10 : vector<1x7x128xf32> to vector<7x128xf32>
    %12 = vector.extract_strided_slice %11 {offsets = [0, 0], sizes = [1, 64], strides = [1, 1]} : vector<7x128xf32> to vector<1x64xf32>
    %13 = vector.extract_strided_slice %11 {offsets = [1, 0], sizes = [1, 64], strides = [1, 1]} : vector<7x128xf32> to vector<1x64xf32>
    %14 = vector.extract_strided_slice %11 {offsets = [2, 0], sizes = [1, 64], strides = [1, 1]} : vector<7x128xf32> to vector<1x64xf32>
    %15 = vector.extract_strided_slice %11 {offsets = [3, 0], sizes = [1, 64], strides = [1, 1]} : vector<7x128xf32> to vector<1x64xf32>
    %16 = vector.extract_strided_slice %11 {offsets = [4, 0], sizes = [1, 64], strides = [1, 1]} : vector<7x128xf32> to vector<1x64xf32>
    %17 = vector.extract_strided_slice %11 {offsets = [5, 0], sizes = [1, 64], strides = [1, 1]} : vector<7x128xf32> to vector<1x64xf32>
    %18 = vector.extract_strided_slice %11 {offsets = [6, 0], sizes = [1, 128], strides = [1, 1]} : vector<7x128xf32> to vector<1x128xf32>
    %cst_9 = arith.constant dense<0.000000e+00> : vector<32xf32>
    %19 = vector.multi_reduction <add>, %9, %cst_9 [1] : vector<32x64xf32> to vector<32xf32>
    %20 = vector.shape_cast %19 : vector<32xf32> to vector<32x1xf32>
    %21 = arith.mulf %9, %9 : vector<32x64xf32>
    %cst_10 = arith.constant dense<0.000000e+00> : vector<32xf32>
    %22 = vector.multi_reduction <add>, %21, %cst_10 [1] : vector<32x64xf32> to vector<32xf32>
    %23 = vector.shape_cast %22 : vector<32xf32> to vector<32x1xf32>
    %cst_11 = arith.constant 1.562500e-02 : f32
    %24 = vector.broadcast %cst_11 : f32 to vector<32x1xf32>
    %25 = arith.mulf %20, %24 : vector<32x1xf32>
    %cst_12 = arith.constant 1.562500e-02 : f32
    %26 = vector.broadcast %cst_12 : f32 to vector<32x1xf32>
    %27 = arith.mulf %23, %26 : vector<32x1xf32>
    %28 = arith.mulf %25, %25 : vector<32x1xf32>
    %29 = arith.subf %27, %28 : vector<32x1xf32>
    %cst_13 = arith.constant 0.000000e+00 : f32
    %30 = vector.broadcast %cst_13 : f32 to vector<32x1xf32>
    %31 = arith.maximumf %29, %30 : vector<32x1xf32>
    %32 = vector.broadcast %25 : vector<32x1xf32> to vector<32x64xf32>
    %33 = arith.subf %9, %32 : vector<32x64xf32>
    %cst_14 = arith.constant 9.99999997E-7 : f32
    %34 = vector.broadcast %cst_14 : f32 to vector<32x1xf32>
    %35 = arith.addf %31, %34 : vector<32x1xf32>
    %36 = math.rsqrt %35 : vector<32x1xf32>
    %37 = vector.broadcast %36 : vector<32x1xf32> to vector<32x64xf32>
    %38 = arith.mulf %33, %37 : vector<32x64xf32>
    %39 = vector.broadcast %12 : vector<1x64xf32> to vector<32x64xf32>
    %40 = arith.mulf %38, %39 : vector<32x64xf32>
    %41 = vector.broadcast %13 : vector<1x64xf32> to vector<32x64xf32>
    %42 = arith.addf %40, %41 : vector<32x64xf32>
    %43 = arith.truncf %42 : vector<32x64xf32> to vector<32x64xbf16>
    %c0_15 = arith.constant 0 : index
    %c0_16 = arith.constant 0 : index
    %c0_17 = arith.constant 0 : index
    %44 = vector.load %arg4[%c0_15, %c0_16, %c0_17] : memref<2x64x192xbf16, #tpu.memory_space<vmem>>, vector<1x64x192xbf16>
    %45 = vector.shape_cast %44 : vector<1x64x192xbf16> to vector<64x192xbf16>
    %cst_18 = arith.constant dense<0.000000e+00> : vector<32x192xf32>
    %46 = tpu.matmul %43, %45, %cst_18 {dimension_numbers = #tpu.dot_dimension_numbers<[1], [0], [0], [1], [0, 0, 1, 1], [], []>} : vector<32x64xbf16>, vector<64x192xbf16>, vector<32x192xf32> -> vector<32x192xf32>
    %c0_19 = arith.constant 0 : index
    %c0_20 = arith.constant 0 : index
    %c0_21 = arith.constant 0 : index
    %47 = vector.load %arg5[%c0_19, %c0_20, %c0_21] : memref<2x1x192xf32, #tpu.memory_space<vmem>>, vector<1x1x192xf32>
    %48 = vector.shape_cast %47 : vector<1x1x192xf32> to vector<1x192xf32>
    %49 = vector.broadcast %48 : vector<1x192xf32> to vector<32x192xf32>
    %50 = arith.addf %46, %49 : vector<32x192xf32>
    %51 = arith.truncf %50 : vector<32x192xf32> to vector<32x192xbf16>
    %52 = vector.extract_strided_slice %51 {offsets = [0, 0], sizes = [32, 16], strides = [1, 1]} : vector<32x192xbf16> to vector<32x16xbf16>
    %53 = vector.extract_strided_slice %51 {offsets = [0, 16], sizes = [32, 16], strides = [1, 1]} : vector<32x192xbf16> to vector<32x16xbf16>
    %54 = vector.extract_strided_slice %51 {offsets = [0, 32], sizes = [32, 16], strides = [1, 1]} : vector<32x192xbf16> to vector<32x16xbf16>
    %55 = vector.extract_strided_slice %51 {offsets = [0, 48], sizes = [32, 16], strides = [1, 1]} : vector<32x192xbf16> to vector<32x16xbf16>
    %56 = vector.shape_cast %52 : vector<32x16xbf16> to vector<1x32x16xbf16>
    %57 = vector.shape_cast %53 : vector<32x16xbf16> to vector<1x32x16xbf16>
    %58 = vector.shape_cast %54 : vector<32x16xbf16> to vector<1x32x16xbf16>
    %59 = vector.shape_cast %55 : vector<32x16xbf16> to vector<1x32x16xbf16>
    %60 = tpu.concatenate %56, %57, %58, %59 in 0 : vector<1x32x16xbf16>, vector<1x32x16xbf16>, vector<1x32x16xbf16>, vector<1x32x16xbf16> -> vector<4x32x16xbf16>
    %61 = vector.shape_cast %60 : vector<4x32x16xbf16> to vector<8x16x16xbf16>
    %62 = vector.extract_strided_slice %51 {offsets = [0, 64], sizes = [32, 16], strides = [1, 1]} : vector<32x192xbf16> to vector<32x16xbf16>
    %63 = vector.extract_strided_slice %51 {offsets = [0, 80], sizes = [32, 16], strides = [1, 1]} : vector<32x192xbf16> to vector<32x16xbf16>
    %64 = vector.extract_strided_slice %51 {offsets = [0, 96], sizes = [32, 16], strides = [1, 1]} : vector<32x192xbf16> to vector<32x16xbf16>
    %65 = vector.extract_strided_slice %51 {offsets = [0, 112], sizes = [32, 16], strides = [1, 1]} : vector<32x192xbf16> to vector<32x16xbf16>
    %66 = vector.shape_cast %62 : vector<32x16xbf16> to vector<1x32x16xbf16>
    %67 = vector.shape_cast %63 : vector<32x16xbf16> to vector<1x32x16xbf16>
    %68 = vector.shape_cast %64 : vector<32x16xbf16> to vector<1x32x16xbf16>
    %69 = vector.shape_cast %65 : vector<32x16xbf16> to vector<1x32x16xbf16>
    %70 = tpu.concatenate %66, %67, %68, %69 in 0 : vector<1x32x16xbf16>, vector<1x32x16xbf16>, vector<1x32x16xbf16>, vector<1x32x16xbf16> -> vector<4x32x16xbf16>
    %71 = vector.shape_cast %70 : vector<4x32x16xbf16> to vector<8x16x16xbf16>
    %72 = vector.extract_strided_slice %51 {offsets = [0, 128], sizes = [32, 16], strides = [1, 1]} : vector<32x192xbf16> to vector<32x16xbf16>
    %73 = vector.extract_strided_slice %51 {offsets = [0, 144], sizes = [32, 16], strides = [1, 1]} : vector<32x192xbf16> to vector<32x16xbf16>
    %74 = vector.extract_strided_slice %51 {offsets = [0, 160], sizes = [32, 16], strides = [1, 1]} : vector<32x192xbf16> to vector<32x16xbf16>
    %75 = vector.extract_strided_slice %51 {offsets = [0, 176], sizes = [32, 16], strides = [1, 1]} : vector<32x192xbf16> to vector<32x16xbf16>
    %76 = vector.shape_cast %72 : vector<32x16xbf16> to vector<1x32x16xbf16>
    %77 = vector.shape_cast %73 : vector<32x16xbf16> to vector<1x32x16xbf16>
    %78 = vector.shape_cast %74 : vector<32x16xbf16> to vector<1x32x16xbf16>
    %79 = vector.shape_cast %75 : vector<32x16xbf16> to vector<1x32x16xbf16>
    %80 = tpu.concatenate %76, %77, %78, %79 in 0 : vector<1x32x16xbf16>, vector<1x32x16xbf16>, vector<1x32x16xbf16>, vector<1x32x16xbf16> -> vector<4x32x16xbf16>
    %81 = vector.shape_cast %80 : vector<4x32x16xbf16> to vector<8x16x16xbf16>
    "tpu.trace_start"() <{level = 10 : i32, message = "gqd,gkd->gqk"}> : () -> ()
    %cst_22 = arith.constant dense<0.000000e+00> : vector<8x16x16xf32>
    %82 = tpu.matmul %61, %71, %cst_22 {dimension_numbers = #tpu.dot_dimension_numbers<[2], [2], [1], [1], [0, 0, 0, 1, 1, 1], [0], [0]>} : vector<8x16x16xbf16>, vector<8x16x16xbf16>, vector<8x16x16xf32> -> vector<8x16x16xf32>
    "tpu.trace_stop"() : () -> ()
    %cst_23 = arith.constant dense<0xFF800000> : vector<8x16xf32>
    %83 = vector.multi_reduction <maximumf>, %82, %cst_23 [2] : vector<8x16x16xf32> to vector<8x16xf32>
    %84 = vector.shape_cast %83 : vector<8x16xf32> to vector<8x16x1xf32>
    %85 = vector.broadcast %84 : vector<8x16x1xf32> to vector<8x16x16xf32>
    %86 = arith.subf %82, %85 : vector<8x16x16xf32>
    %87 = math.exp %86 : vector<8x16x16xf32>
    %cst_24 = arith.constant dense<0.000000e+00> : vector<8x16xf32>
    %88 = vector.multi_reduction <add>, %87, %cst_24 [2] : vector<8x16x16xf32> to vector<8x16xf32>
    %89 = vector.shape_cast %88 : vector<8x16xf32> to vector<8x16x1xf32>
    %90 = tpu.reciprocal %89 {approx = true} : vector<8x16x1xf32> -> vector<8x16x1xf32>
    %91 = vector.broadcast %90 : vector<8x16x1xf32> to vector<8x16x16xf32>
    %92 = arith.mulf %87, %91 : vector<8x16x16xf32>
    %93 = arith.truncf %92 : vector<8x16x16xf32> to vector<8x16x16xbf16>
    "tpu.trace_start"() <{level = 10 : i32, message = "gqk,gkd->gqd"}> : () -> ()
    %cst_25 = arith.constant dense<0.000000e+00> : vector<8x16x16xf32>
    %94 = tpu.matmul %93, %81, %cst_25 {dimension_numbers = #tpu.dot_dimension_numbers<[2], [1], [1], [2], [0, 0, 0, 1, 1, 2], [0], [0]>} : vector<8x16x16xbf16>, vector<8x16x16xbf16>, vector<8x16x16xf32> -> vector<8x16x16xf32>
    "tpu.trace_stop"() : () -> ()
    %95 = vector.shape_cast %94 : vector<8x16x16xf32> to vector<4x32x16xf32>
    %96 = arith.truncf %95 : vector<4x32x16xf32> to vector<4x32x16xbf16>
    %c0_26 = arith.constant 0 : index
    %c0_27 = arith.constant 0 : index
    %c0_28 = arith.constant 0 : index
    %c0_29 = arith.constant 0 : index
    %97 = vector.load %arg6[%c0_26, %c0_27, %c0_28, %c0_29] : memref<2x4x16x64xbf16, #tpu.memory_space<vmem>>, vector<1x4x16x64xbf16>
    %98 = vector.shape_cast %97 : vector<1x4x16x64xbf16> to vector<4x16x64xbf16>
    "tpu.trace_start"() <{level = 10 : i32, message = "nrd,ndh->nrh"}> : () -> ()
    %cst_30 = arith.constant dense<0.000000e+00> : vector<4x32x64xf32>
    %99 = tpu.matmul %96, %98, %cst_30 {dimension_numbers = #tpu.dot_dimension_numbers<[2], [1], [1], [2], [0, 0, 0, 1, 1, 2], [0], [0]>} : vector<4x32x16xbf16>, vector<4x16x64xbf16>, vector<4x32x64xf32> -> vector<4x32x64xf32>
    "tpu.trace_stop"() : () -> ()
    %cst_31 = arith.constant dense<0.000000e+00> : vector<32x64xf32>
    %100 = vector.multi_reduction <add>, %99, %cst_31 [0] : vector<4x32x64xf32> to vector<32x64xf32>
    %101 = arith.addf %9, %100 : vector<32x64xf32>
    %102 = vector.broadcast %16 : vector<1x64xf32> to vector<32x64xf32>
    %103 = arith.addf %101, %102 : vector<32x64xf32>
    %cst_32 = arith.constant dense<0.000000e+00> : vector<32xf32>
    %104 = vector.multi_reduction <add>, %103, %cst_32 [1] : vector<32x64xf32> to vector<32xf32>
    %105 = vector.shape_cast %104 : vector<32xf32> to vector<32x1xf32>
    %106 = arith.mulf %103, %103 : vector<32x64xf32>
    %cst_33 = arith.constant dense<0.000000e+00> : vector<32xf32>
    %107 = vector.multi_reduction <add>, %106, %cst_33 [1] : vector<32x64xf32> to vector<32xf32>
    %108 = vector.shape_cast %107 : vector<32xf32> to vector<32x1xf32>
    %cst_34 = arith.constant 1.562500e-02 : f32
    %109 = vector.broadcast %cst_34 : f32 to vector<32x1xf32>
    %110 = arith.mulf %105, %109 : vector<32x1xf32>
    %cst_35 = arith.constant 1.562500e-02 : f32
    %111 = vector.broadcast %cst_35 : f32 to vector<32x1xf32>
    %112 = arith.mulf %108, %111 : vector<32x1xf32>
    %113 = arith.mulf %110, %110 : vector<32x1xf32>
    %114 = arith.subf %112, %113 : vector<32x1xf32>
    %cst_36 = arith.constant 0.000000e+00 : f32
    %115 = vector.broadcast %cst_36 : f32 to vector<32x1xf32>
    %116 = arith.maximumf %114, %115 : vector<32x1xf32>
    %117 = vector.broadcast %110 : vector<32x1xf32> to vector<32x64xf32>
    %118 = arith.subf %103, %117 : vector<32x64xf32>
    %cst_37 = arith.constant 9.99999997E-7 : f32
    %119 = vector.broadcast %cst_37 : f32 to vector<32x1xf32>
    %120 = arith.addf %116, %119 : vector<32x1xf32>
    %121 = math.rsqrt %120 : vector<32x1xf32>
    %122 = vector.broadcast %121 : vector<32x1xf32> to vector<32x64xf32>
    %123 = arith.mulf %118, %122 : vector<32x64xf32>
    %124 = vector.broadcast %14 : vector<1x64xf32> to vector<32x64xf32>
    %125 = arith.mulf %123, %124 : vector<32x64xf32>
    %126 = vector.broadcast %15 : vector<1x64xf32> to vector<32x64xf32>
    %127 = arith.addf %125, %126 : vector<32x64xf32>
    %128 = arith.truncf %127 : vector<32x64xf32> to vector<32x64xbf16>
    %c0_38 = arith.constant 0 : index
    %c0_39 = arith.constant 0 : index
    %c0_40 = arith.constant 0 : index
    %129 = vector.load %arg7[%c0_38, %c0_39, %c0_40] : memref<2x64x128xbf16, #tpu.memory_space<vmem>>, vector<1x64x128xbf16>
    %130 = vector.shape_cast %129 : vector<1x64x128xbf16> to vector<64x128xbf16>
    %cst_41 = arith.constant dense<0.000000e+00> : vector<32x128xf32>
    %131 = tpu.matmul %128, %130, %cst_41 {dimension_numbers = #tpu.dot_dimension_numbers<[1], [0], [0], [1], [0, 0, 1, 1], [], []>} : vector<32x64xbf16>, vector<64x128xbf16>, vector<32x128xf32> -> vector<32x128xf32>
    %132 = vector.broadcast %18 : vector<1x128xf32> to vector<32x128xf32>
    %133 = arith.addf %131, %132 : vector<32x128xf32>
    %134 = arith.mulf %133, %133 : vector<32x128xf32>
    %135 = arith.mulf %133, %134 : vector<32x128xf32>
    %cst_42 = arith.constant 4.471500e-02 : f32
    %136 = vector.broadcast %cst_42 : f32 to vector<32x128xf32>
    %137 = arith.mulf %136, %135 : vector<32x128xf32>
    %138 = arith.addf %133, %137 : vector<32x128xf32>
    %cst_43 = arith.constant 0.797884583 : f32
    %139 = vector.broadcast %cst_43 : f32 to vector<32x128xf32>
    %140 = arith.mulf %139, %138 : vector<32x128xf32>
    %141 = math.tanh %140 : vector<32x128xf32>
    %cst_44 = arith.constant 1.000000e+00 : f32
    %142 = vector.broadcast %cst_44 : f32 to vector<32x128xf32>
    %143 = arith.addf %142, %141 : vector<32x128xf32>
    %cst_45 = arith.constant 5.000000e-01 : f32
    %144 = vector.broadcast %cst_45 : f32 to vector<32x128xf32>
    %145 = arith.mulf %144, %143 : vector<32x128xf32>
    %146 = arith.mulf %133, %145 : vector<32x128xf32>
    %147 = arith.truncf %146 : vector<32x128xf32> to vector<32x128xbf16>
    %c0_46 = arith.constant 0 : index
    %c0_47 = arith.constant 0 : index
    %c0_48 = arith.constant 0 : index
    %148 = vector.load %arg8[%c0_46, %c0_47, %c0_48] : memref<2x128x64xbf16, #tpu.memory_space<vmem>>, vector<1x128x64xbf16>
    %149 = vector.shape_cast %148 : vector<1x128x64xbf16> to vector<128x64xbf16>
    %cst_49 = arith.constant dense<0.000000e+00> : vector<32x64xf32>
    %150 = tpu.matmul %147, %149, %cst_49 {dimension_numbers = #tpu.dot_dimension_numbers<[1], [0], [0], [1], [0, 0, 1, 1], [], []>} : vector<32x128xbf16>, vector<128x64xbf16>, vector<32x64xf32> -> vector<32x64xf32>
    %151 = vector.broadcast %17 : vector<1x64xf32> to vector<32x64xf32>
    %152 = arith.addf %150, %151 : vector<32x64xf32>
    %153 = arith.addf %103, %152 : vector<32x64xf32>
    %c1 = arith.constant 1 : index
    %c0_50 = arith.constant 0 : index
    %c0_51 = arith.constant 0 : index
    %154 = vector.load %arg9[%c1, %c0_50, %c0_51] : memref<2x7x128xf32, #tpu.memory_space<vmem>>, vector<1x7x128xf32>
    %155 = vector.shape_cast %154 : vector<1x7x128xf32> to vector<7x128xf32>
    %156 = vector.extract_strided_slice %155 {offsets = [0, 0], sizes = [1, 64], strides = [1, 1]} : vector<7x128xf32> to vector<1x64xf32>
    %157 = vector.extract_strided_slice %155 {offsets = [1, 0], sizes = [1, 64], strides = [1, 1]} : vector<7x128xf32> to vector<1x64xf32>
    %158 = vector.extract_strided_slice %155 {offsets = [2, 0], sizes = [1, 64], strides = [1, 1]} : vector<7x128xf32> to vector<1x64xf32>
    %159 = vector.extract_strided_slice %155 {offsets = [3, 0], sizes = [1, 64], strides = [1, 1]} : vector<7x128xf32> to vector<1x64xf32>
    %160 = vector.extract_strided_slice %155 {offsets = [4, 0], sizes = [1, 64], strides = [1, 1]} : vector<7x128xf32> to vector<1x64xf32>
    %161 = vector.extract_strided_slice %155 {offsets = [5, 0], sizes = [1, 64], strides = [1, 1]} : vector<7x128xf32> to vector<1x64xf32>
    %162 = vector.extract_strided_slice %155 {offsets = [6, 0], sizes = [1, 128], strides = [1, 1]} : vector<7x128xf32> to vector<1x128xf32>
    %cst_52 = arith.constant dense<0.000000e+00> : vector<32xf32>
    %163 = vector.multi_reduction <add>, %153, %cst_52 [1] : vector<32x64xf32> to vector<32xf32>
    %164 = vector.shape_cast %163 : vector<32xf32> to vector<32x1xf32>
    %165 = arith.mulf %153, %153 : vector<32x64xf32>
    %cst_53 = arith.constant dense<0.000000e+00> : vector<32xf32>
    %166 = vector.multi_reduction <add>, %165, %cst_53 [1] : vector<32x64xf32> to vector<32xf32>
    %167 = vector.shape_cast %166 : vector<32xf32> to vector<32x1xf32>
    %cst_54 = arith.constant 1.562500e-02 : f32
    %168 = vector.broadcast %cst_54 : f32 to vector<32x1xf32>
    %169 = arith.mulf %164, %168 : vector<32x1xf32>
    %cst_55 = arith.constant 1.562500e-02 : f32
    %170 = vector.broadcast %cst_55 : f32 to vector<32x1xf32>
    %171 = arith.mulf %167, %170 : vector<32x1xf32>
    %172 = arith.mulf %169, %169 : vector<32x1xf32>
    %173 = arith.subf %171, %172 : vector<32x1xf32>
    %cst_56 = arith.constant 0.000000e+00 : f32
    %174 = vector.broadcast %cst_56 : f32 to vector<32x1xf32>
    %175 = arith.maximumf %173, %174 : vector<32x1xf32>
    %176 = vector.broadcast %169 : vector<32x1xf32> to vector<32x64xf32>
    %177 = arith.subf %153, %176 : vector<32x64xf32>
    %cst_57 = arith.constant 9.99999997E-7 : f32
    %178 = vector.broadcast %cst_57 : f32 to vector<32x1xf32>
    %179 = arith.addf %175, %178 : vector<32x1xf32>
    %180 = math.rsqrt %179 : vector<32x1xf32>
    %181 = vector.broadcast %180 : vector<32x1xf32> to vector<32x64xf32>
    %182 = arith.mulf %177, %181 : vector<32x64xf32>
    %183 = vector.broadcast %156 : vector<1x64xf32> to vector<32x64xf32>
    %184 = arith.mulf %182, %183 : vector<32x64xf32>
    %185 = vector.broadcast %157 : vector<1x64xf32> to vector<32x64xf32>
    %186 = arith.addf %184, %185 : vector<32x64xf32>
    %187 = arith.truncf %186 : vector<32x64xf32> to vector<32x64xbf16>
    %c1_58 = arith.constant 1 : index
    %c0_59 = arith.constant 0 : index
    %c0_60 = arith.constant 0 : index
    %188 = vector.load %arg4[%c1_58, %c0_59, %c0_60] : memref<2x64x192xbf16, #tpu.memory_space<vmem>>, vector<1x64x192xbf16>
    %189 = vector.shape_cast %188 : vector<1x64x192xbf16> to vector<64x192xbf16>
    %cst_61 = arith.constant dense<0.000000e+00> : vector<32x192xf32>
    %190 = tpu.matmul %187, %189, %cst_61 {dimension_numbers = #tpu.dot_dimension_numbers<[1], [0], [0], [1], [0, 0, 1, 1], [], []>} : vector<32x64xbf16>, vector<64x192xbf16>, vector<32x192xf32> -> vector<32x192xf32>
    %c1_62 = arith.constant 1 : index
    %c0_63 = arith.constant 0 : index
    %c0_64 = arith.constant 0 : index
    %191 = vector.load %arg5[%c1_62, %c0_63, %c0_64] : memref<2x1x192xf32, #tpu.memory_space<vmem>>, vector<1x1x192xf32>
    %192 = vector.shape_cast %191 : vector<1x1x192xf32> to vector<1x192xf32>
    %193 = vector.broadcast %192 : vector<1x192xf32> to vector<32x192xf32>
    %194 = arith.addf %190, %193 : vector<32x192xf32>
    %195 = arith.truncf %194 : vector<32x192xf32> to vector<32x192xbf16>
    %196 = vector.extract_strided_slice %195 {offsets = [0, 0], sizes = [32, 16], strides = [1, 1]} : vector<32x192xbf16> to vector<32x16xbf16>
    %197 = vector.extract_strided_slice %195 {offsets = [0, 16], sizes = [32, 16], strides = [1, 1]} : vector<32x192xbf16> to vector<32x16xbf16>
    %198 = vector.extract_strided_slice %195 {offsets = [0, 32], sizes = [32, 16], strides = [1, 1]} : vector<32x192xbf16> to vector<32x16xbf16>
    %199 = vector.extract_strided_slice %195 {offsets = [0, 48], sizes = [32, 16], strides = [1, 1]} : vector<32x192xbf16> to vector<32x16xbf16>
    %200 = vector.shape_cast %196 : vector<32x16xbf16> to vector<1x32x16xbf16>
    %201 = vector.shape_cast %197 : vector<32x16xbf16> to vector<1x32x16xbf16>
    %202 = vector.shape_cast %198 : vector<32x16xbf16> to vector<1x32x16xbf16>
    %203 = vector.shape_cast %199 : vector<32x16xbf16> to vector<1x32x16xbf16>
    %204 = tpu.concatenate %200, %201, %202, %203 in 0 : vector<1x32x16xbf16>, vector<1x32x16xbf16>, vector<1x32x16xbf16>, vector<1x32x16xbf16> -> vector<4x32x16xbf16>
    %205 = vector.shape_cast %204 : vector<4x32x16xbf16> to vector<8x16x16xbf16>
    %206 = vector.extract_strided_slice %195 {offsets = [0, 64], sizes = [32, 16], strides = [1, 1]} : vector<32x192xbf16> to vector<32x16xbf16>
    %207 = vector.extract_strided_slice %195 {offsets = [0, 80], sizes = [32, 16], strides = [1, 1]} : vector<32x192xbf16> to vector<32x16xbf16>
    %208 = vector.extract_strided_slice %195 {offsets = [0, 96], sizes = [32, 16], strides = [1, 1]} : vector<32x192xbf16> to vector<32x16xbf16>
    %209 = vector.extract_strided_slice %195 {offsets = [0, 112], sizes = [32, 16], strides = [1, 1]} : vector<32x192xbf16> to vector<32x16xbf16>
    %210 = vector.shape_cast %206 : vector<32x16xbf16> to vector<1x32x16xbf16>
    %211 = vector.shape_cast %207 : vector<32x16xbf16> to vector<1x32x16xbf16>
    %212 = vector.shape_cast %208 : vector<32x16xbf16> to vector<1x32x16xbf16>
    %213 = vector.shape_cast %209 : vector<32x16xbf16> to vector<1x32x16xbf16>
    %214 = tpu.concatenate %210, %211, %212, %213 in 0 : vector<1x32x16xbf16>, vector<1x32x16xbf16>, vector<1x32x16xbf16>, vector<1x32x16xbf16> -> vector<4x32x16xbf16>
    %215 = vector.shape_cast %214 : vector<4x32x16xbf16> to vector<8x16x16xbf16>
    %216 = vector.extract_strided_slice %195 {offsets = [0, 128], sizes = [32, 16], strides = [1, 1]} : vector<32x192xbf16> to vector<32x16xbf16>
    %217 = vector.extract_strided_slice %195 {offsets = [0, 144], sizes = [32, 16], strides = [1, 1]} : vector<32x192xbf16> to vector<32x16xbf16>
    %218 = vector.extract_strided_slice %195 {offsets = [0, 160], sizes = [32, 16], strides = [1, 1]} : vector<32x192xbf16> to vector<32x16xbf16>
    %219 = vector.extract_strided_slice %195 {offsets = [0, 176], sizes = [32, 16], strides = [1, 1]} : vector<32x192xbf16> to vector<32x16xbf16>
    %220 = vector.shape_cast %216 : vector<32x16xbf16> to vector<1x32x16xbf16>
    %221 = vector.shape_cast %217 : vector<32x16xbf16> to vector<1x32x16xbf16>
    %222 = vector.shape_cast %218 : vector<32x16xbf16> to vector<1x32x16xbf16>
    %223 = vector.shape_cast %219 : vector<32x16xbf16> to vector<1x32x16xbf16>
    %224 = tpu.concatenate %220, %221, %222, %223 in 0 : vector<1x32x16xbf16>, vector<1x32x16xbf16>, vector<1x32x16xbf16>, vector<1x32x16xbf16> -> vector<4x32x16xbf16>
    %225 = vector.shape_cast %224 : vector<4x32x16xbf16> to vector<8x16x16xbf16>
    "tpu.trace_start"() <{level = 10 : i32, message = "gqd,gkd->gqk"}> : () -> ()
    %cst_65 = arith.constant dense<0.000000e+00> : vector<8x16x16xf32>
    %226 = tpu.matmul %205, %215, %cst_65 {dimension_numbers = #tpu.dot_dimension_numbers<[2], [2], [1], [1], [0, 0, 0, 1, 1, 1], [0], [0]>} : vector<8x16x16xbf16>, vector<8x16x16xbf16>, vector<8x16x16xf32> -> vector<8x16x16xf32>
    "tpu.trace_stop"() : () -> ()
    %cst_66 = arith.constant dense<0xFF800000> : vector<8x16xf32>
    %227 = vector.multi_reduction <maximumf>, %226, %cst_66 [2] : vector<8x16x16xf32> to vector<8x16xf32>
    %228 = vector.shape_cast %227 : vector<8x16xf32> to vector<8x16x1xf32>
    %229 = vector.broadcast %228 : vector<8x16x1xf32> to vector<8x16x16xf32>
    %230 = arith.subf %226, %229 : vector<8x16x16xf32>
    %231 = math.exp %230 : vector<8x16x16xf32>
    %cst_67 = arith.constant dense<0.000000e+00> : vector<8x16xf32>
    %232 = vector.multi_reduction <add>, %231, %cst_67 [2] : vector<8x16x16xf32> to vector<8x16xf32>
    %233 = vector.shape_cast %232 : vector<8x16xf32> to vector<8x16x1xf32>
    %234 = tpu.reciprocal %233 {approx = true} : vector<8x16x1xf32> -> vector<8x16x1xf32>
    %235 = vector.broadcast %234 : vector<8x16x1xf32> to vector<8x16x16xf32>
    %236 = arith.mulf %231, %235 : vector<8x16x16xf32>
    %237 = arith.truncf %236 : vector<8x16x16xf32> to vector<8x16x16xbf16>
    "tpu.trace_start"() <{level = 10 : i32, message = "gqk,gkd->gqd"}> : () -> ()
    %cst_68 = arith.constant dense<0.000000e+00> : vector<8x16x16xf32>
    %238 = tpu.matmul %237, %225, %cst_68 {dimension_numbers = #tpu.dot_dimension_numbers<[2], [1], [1], [2], [0, 0, 0, 1, 1, 2], [0], [0]>} : vector<8x16x16xbf16>, vector<8x16x16xbf16>, vector<8x16x16xf32> -> vector<8x16x16xf32>
    "tpu.trace_stop"() : () -> ()
    %239 = vector.shape_cast %238 : vector<8x16x16xf32> to vector<4x32x16xf32>
    %240 = arith.truncf %239 : vector<4x32x16xf32> to vector<4x32x16xbf16>
    %c1_69 = arith.constant 1 : index
    %c0_70 = arith.constant 0 : index
    %c0_71 = arith.constant 0 : index
    %c0_72 = arith.constant 0 : index
    %241 = vector.load %arg6[%c1_69, %c0_70, %c0_71, %c0_72] : memref<2x4x16x64xbf16, #tpu.memory_space<vmem>>, vector<1x4x16x64xbf16>
    %242 = vector.shape_cast %241 : vector<1x4x16x64xbf16> to vector<4x16x64xbf16>
    "tpu.trace_start"() <{level = 10 : i32, message = "nrd,ndh->nrh"}> : () -> ()
    %cst_73 = arith.constant dense<0.000000e+00> : vector<4x32x64xf32>
    %243 = tpu.matmul %240, %242, %cst_73 {dimension_numbers = #tpu.dot_dimension_numbers<[2], [1], [1], [2], [0, 0, 0, 1, 1, 2], [0], [0]>} : vector<4x32x16xbf16>, vector<4x16x64xbf16>, vector<4x32x64xf32> -> vector<4x32x64xf32>
    "tpu.trace_stop"() : () -> ()
    %cst_74 = arith.constant dense<0.000000e+00> : vector<32x64xf32>
    %244 = vector.multi_reduction <add>, %243, %cst_74 [0] : vector<4x32x64xf32> to vector<32x64xf32>
    %245 = arith.addf %153, %244 : vector<32x64xf32>
    %246 = vector.broadcast %160 : vector<1x64xf32> to vector<32x64xf32>
    %247 = arith.addf %245, %246 : vector<32x64xf32>
    %cst_75 = arith.constant dense<0.000000e+00> : vector<32xf32>
    %248 = vector.multi_reduction <add>, %247, %cst_75 [1] : vector<32x64xf32> to vector<32xf32>
    %249 = vector.shape_cast %248 : vector<32xf32> to vector<32x1xf32>
    %250 = arith.mulf %247, %247 : vector<32x64xf32>
    %cst_76 = arith.constant dense<0.000000e+00> : vector<32xf32>
    %251 = vector.multi_reduction <add>, %250, %cst_76 [1] : vector<32x64xf32> to vector<32xf32>
    %252 = vector.shape_cast %251 : vector<32xf32> to vector<32x1xf32>
    %cst_77 = arith.constant 1.562500e-02 : f32
    %253 = vector.broadcast %cst_77 : f32 to vector<32x1xf32>
    %254 = arith.mulf %249, %253 : vector<32x1xf32>
    %cst_78 = arith.constant 1.562500e-02 : f32
    %255 = vector.broadcast %cst_78 : f32 to vector<32x1xf32>
    %256 = arith.mulf %252, %255 : vector<32x1xf32>
    %257 = arith.mulf %254, %254 : vector<32x1xf32>
    %258 = arith.subf %256, %257 : vector<32x1xf32>
    %cst_79 = arith.constant 0.000000e+00 : f32
    %259 = vector.broadcast %cst_79 : f32 to vector<32x1xf32>
    %260 = arith.maximumf %258, %259 : vector<32x1xf32>
    %261 = vector.broadcast %254 : vector<32x1xf32> to vector<32x64xf32>
    %262 = arith.subf %247, %261 : vector<32x64xf32>
    %cst_80 = arith.constant 9.99999997E-7 : f32
    %263 = vector.broadcast %cst_80 : f32 to vector<32x1xf32>
    %264 = arith.addf %260, %263 : vector<32x1xf32>
    %265 = math.rsqrt %264 : vector<32x1xf32>
    %266 = vector.broadcast %265 : vector<32x1xf32> to vector<32x64xf32>
    %267 = arith.mulf %262, %266 : vector<32x64xf32>
    %268 = vector.broadcast %158 : vector<1x64xf32> to vector<32x64xf32>
    %269 = arith.mulf %267, %268 : vector<32x64xf32>
    %270 = vector.broadcast %159 : vector<1x64xf32> to vector<32x64xf32>
    %271 = arith.addf %269, %270 : vector<32x64xf32>
    %272 = arith.truncf %271 : vector<32x64xf32> to vector<32x64xbf16>
    %c1_81 = arith.constant 1 : index
    %c0_82 = arith.constant 0 : index
    %c0_83 = arith.constant 0 : index
    %273 = vector.load %arg7[%c1_81, %c0_82, %c0_83] : memref<2x64x128xbf16, #tpu.memory_space<vmem>>, vector<1x64x128xbf16>
    %274 = vector.shape_cast %273 : vector<1x64x128xbf16> to vector<64x128xbf16>
    %cst_84 = arith.constant dense<0.000000e+00> : vector<32x128xf32>
    %275 = tpu.matmul %272, %274, %cst_84 {dimension_numbers = #tpu.dot_dimension_numbers<[1], [0], [0], [1], [0, 0, 1, 1], [], []>} : vector<32x64xbf16>, vector<64x128xbf16>, vector<32x128xf32> -> vector<32x128xf32>
    %276 = vector.broadcast %162 : vector<1x128xf32> to vector<32x128xf32>
    %277 = arith.addf %275, %276 : vector<32x128xf32>
    %278 = arith.mulf %277, %277 : vector<32x128xf32>
    %279 = arith.mulf %277, %278 : vector<32x128xf32>
    %cst_85 = arith.constant 4.471500e-02 : f32
    %280 = vector.broadcast %cst_85 : f32 to vector<32x128xf32>
    %281 = arith.mulf %280, %279 : vector<32x128xf32>
    %282 = arith.addf %277, %281 : vector<32x128xf32>
    %cst_86 = arith.constant 0.797884583 : f32
    %283 = vector.broadcast %cst_86 : f32 to vector<32x128xf32>
    %284 = arith.mulf %283, %282 : vector<32x128xf32>
    %285 = math.tanh %284 : vector<32x128xf32>
    %cst_87 = arith.constant 1.000000e+00 : f32
    %286 = vector.broadcast %cst_87 : f32 to vector<32x128xf32>
    %287 = arith.addf %286, %285 : vector<32x128xf32>
    %cst_88 = arith.constant 5.000000e-01 : f32
    %288 = vector.broadcast %cst_88 : f32 to vector<32x128xf32>
    %289 = arith.mulf %288, %287 : vector<32x128xf32>
    %290 = arith.mulf %277, %289 : vector<32x128xf32>
    %291 = arith.truncf %290 : vector<32x128xf32> to vector<32x128xbf16>
    %c1_89 = arith.constant 1 : index
    %c0_90 = arith.constant 0 : index
    %c0_91 = arith.constant 0 : index
    %292 = vector.load %arg8[%c1_89, %c0_90, %c0_91] : memref<2x128x64xbf16, #tpu.memory_space<vmem>>, vector<1x128x64xbf16>
    %293 = vector.shape_cast %292 : vector<1x128x64xbf16> to vector<128x64xbf16>
    %cst_92 = arith.constant dense<0.000000e+00> : vector<32x64xf32>
    %294 = tpu.matmul %291, %293, %cst_92 {dimension_numbers = #tpu.dot_dimension_numbers<[1], [0], [0], [1], [0, 0, 1, 1], [], []>} : vector<32x128xbf16>, vector<128x64xbf16>, vector<32x64xf32> -> vector<32x64xf32>
    %295 = vector.broadcast %161 : vector<1x64xf32> to vector<32x64xf32>
    %296 = arith.addf %294, %295 : vector<32x64xf32>
    %297 = arith.addf %247, %296 : vector<32x64xf32>
    %c0_93 = arith.constant 0 : index
    %c0_94 = arith.constant 0 : index
    %298 = vector.load %arg10[%c0_93, %c0_94] : memref<2x64xf32, #tpu.memory_space<vmem>>, vector<1x64xf32>
    %c1_95 = arith.constant 1 : index
    %c0_96 = arith.constant 0 : index
    %299 = vector.load %arg10[%c1_95, %c0_96] : memref<2x64xf32, #tpu.memory_space<vmem>>, vector<1x64xf32>
    %cst_97 = arith.constant dense<0.000000e+00> : vector<32xf32>
    %300 = vector.multi_reduction <add>, %297, %cst_97 [1] : vector<32x64xf32> to vector<32xf32>
    %301 = vector.shape_cast %300 : vector<32xf32> to vector<32x1xf32>
    %302 = arith.mulf %297, %297 : vector<32x64xf32>
    %cst_98 = arith.constant dense<0.000000e+00> : vector<32xf32>
    %303 = vector.multi_reduction <add>, %302, %cst_98 [1] : vector<32x64xf32> to vector<32xf32>
    %304 = vector.shape_cast %303 : vector<32xf32> to vector<32x1xf32>
    %cst_99 = arith.constant 1.562500e-02 : f32
    %305 = vector.broadcast %cst_99 : f32 to vector<32x1xf32>
    %306 = arith.mulf %301, %305 : vector<32x1xf32>
    %cst_100 = arith.constant 1.562500e-02 : f32
    %307 = vector.broadcast %cst_100 : f32 to vector<32x1xf32>
    %308 = arith.mulf %304, %307 : vector<32x1xf32>
    %309 = arith.mulf %306, %306 : vector<32x1xf32>
    %310 = arith.subf %308, %309 : vector<32x1xf32>
    %cst_101 = arith.constant 0.000000e+00 : f32
    %311 = vector.broadcast %cst_101 : f32 to vector<32x1xf32>
    %312 = arith.maximumf %310, %311 : vector<32x1xf32>
    %313 = vector.broadcast %306 : vector<32x1xf32> to vector<32x64xf32>
    %314 = arith.subf %297, %313 : vector<32x64xf32>
    %cst_102 = arith.constant 9.99999997E-7 : f32
    %315 = vector.broadcast %cst_102 : f32 to vector<32x1xf32>
    %316 = arith.addf %312, %315 : vector<32x1xf32>
    %317 = math.rsqrt %316 : vector<32x1xf32>
    %318 = vector.broadcast %317 : vector<32x1xf32> to vector<32x64xf32>
    %319 = arith.mulf %314, %318 : vector<32x64xf32>
    %320 = vector.broadcast %298 : vector<1x64xf32> to vector<32x64xf32>
    %321 = arith.mulf %319, %320 : vector<32x64xf32>
    %322 = vector.broadcast %299 : vector<1x64xf32> to vector<32x64xf32>
    %323 = arith.addf %321, %322 : vector<32x64xf32>
    %324 = vector.shape_cast %323 : vector<32x64xf32> to vector<2x16x64xf32>
    %c0_103 = arith.constant 0 : index
    %c0_104 = arith.constant 0 : index
    %c0_105 = arith.constant 0 : index
    %325 = vector.load %arg11[%c0_103, %c0_104, %c0_105] : memref<2x16x64xf32, #tpu.memory_space<vmem>>, vector<2x16x64xf32>
    tpu.vector_store %arg11[%c0_103, %c0_104, %c0_105], %324 {strides = array<i32>} : memref<2x16x64xf32, #tpu.memory_space<vmem>>, vector<2x16x64xf32>,
    return
  }
  func.func @transform_0(%arg0: i32) -> (i32, i32, i32) {
    %c0_i32 = arith.constant 0 : i32
    %c0_i32_0 = arith.constant 0 : i32
    %c0_i32_1 = arith.constant 0 : i32
    return %arg0, %c0_i32, %c0_i32_0 : i32, i32, i32
  }
  func.func @transform_1(%arg0: i32) -> (i32, i32) {
    %c0_i32 = arith.constant 0 : i32
    %c0_i32_0 = arith.constant 0 : i32
    %c0_i32_1 = arith.constant 0 : i32
    return %c0_i32, %c0_i32_0 : i32, i32
  }
  func.func @transform_2(%arg0: i32) -> (i32, i32) {
    %c0_i32 = arith.constant 0 : i32
    %c0_i32_0 = arith.constant 0 : i32
    %c0_i32_1 = arith.constant 0 : i32
    return %c0_i32, %c0_i32_0 : i32, i32
  }
  func.func @transform_3(%arg0: i32) -> (i32, i32, i32) {
    %c0_i32 = arith.constant 0 : i32
    %c0_i32_0 = arith.constant 0 : i32
    %c0_i32_1 = arith.constant 0 : i32
    %c0_i32_2 = arith.constant 0 : i32
    return %c0_i32, %c0_i32_0, %c0_i32_1 : i32, i32, i32
  }
  func.func @transform_4(%arg0: i32) -> (i32, i32, i32) {
    %c0_i32 = arith.constant 0 : i32
    %c0_i32_0 = arith.constant 0 : i32
    %c0_i32_1 = arith.constant 0 : i32
    %c0_i32_2 = arith.constant 0 : i32
    return %c0_i32, %c0_i32_0, %c0_i32_1 : i32, i32, i32
  }
  func.func @transform_5(%arg0: i32) -> (i32, i32, i32, i32) {
    %c0_i32 = arith.constant 0 : i32
    %c0_i32_0 = arith.constant 0 : i32
    %c0_i32_1 = arith.constant 0 : i32
    %c0_i32_2 = arith.constant 0 : i32
    %c0_i32_3 = arith.constant 0 : i32
    return %c0_i32, %c0_i32_0, %c0_i32_1, %c0_i32_2 : i32, i32, i32, i32
  }
  func.func @transform_6(%arg0: i32) -> (i32, i32, i32) {
    %c0_i32 = arith.constant 0 : i32
    %c0_i32_0 = arith.constant 0 : i32
    %c0_i32_1 = arith.constant 0 : i32
    %c0_i32_2 = arith.constant 0 : i32
    return %c0_i32, %c0_i32_0, %c0_i32_1 : i32, i32, i32
  }
  func.func @transform_7(%arg0: i32) -> (i32, i32, i32) {
    %c0_i32 = arith.constant 0 : i32
    %c0_i32_0 = arith.constant 0 : i32
    %c0_i32_1 = arith.constant 0 : i32
    %c0_i32_2 = arith.constant 0 : i32
    return %c0_i32, %c0_i32_0, %c0_i32_1 : i32, i32, i32
  }
  func.func @transform_8(%arg0: i32) -> (i32, i32, i32) {
    %c0_i32 = arith.constant 0 : i32
    %c0_i32_0 = arith.constant 0 : i32
    %c0_i32_1 = arith.constant 0 : i32
    %c0_i32_2 = arith.constant 0 : i32
    return %c0_i32, %c0_i32_0, %c0_i32_1 : i32, i32, i32
  }
  func.func @transform_9(%arg0: i32) -> (i32, i32) {
    %c0_i32 = arith.constant 0 : i32
    %c0_i32_0 = arith.constant 0 : i32
    %c0_i32_1 = arith.constant 0 : i32
    return %c0_i32, %c0_i32_0 : i32, i32
  }
  func.func @transform_10(%arg0: i32) -> (i32, i32, i32) {
    %c0_i32 = arith.constant 0 : i32
    %c0_i32_0 = arith.constant 0 : i32
    %c0_i32_1 = arith.constant 0 : i32
    return %arg0, %c0_i32, %c0_i32_0 : i32, i32, i32
  }
}

</mosaic_0001>

<llo_original>
// kernel: tpu_custom_call.1
$region0: #{tpu_custom_call.1}
  #allocation0 [shape = 'u32[]', space=smem, size = 0x4, offset = 0x4, fixed_abs, tag = 'smem constant byte address 0x4 - core index']
  #allocation1 [shape = 'u32[144,128]{1,0:T(1,128)}', space=vmem, size = 0x12000, scoped, tag = 'internal scratch']
  %s0 = inlined_call_operand.hbm [shape: bf16[2,16,128], index: 0, kind: input, shape index: {}]
  %s1 = inlined_call_operand.vmem [shape: bf16[128,64], index: 1, kind: input, shape index: {}]
  %s2 = inlined_call_operand.hbm [shape: f32[16,64], index: 2, kind: input, shape index: {}]
  %s3 = inlined_call_operand.vmem [shape: bf16[2,64,192], index: 3, kind: input, shape index: {}]
  %s4 = inlined_call_operand.vmem [shape: f32[2,1,192], index: 4, kind: input, shape index: {}]
  %s5 = inlined_call_operand.vmem [shape: bf16[2,4,16,64], index: 5, kind: input, shape index: {}]
  %s6 = inlined_call_operand.vmem [shape: bf16[2,64,128], index: 6, kind: input, shape index: {}]
  %s7 = inlined_call_operand.vmem [shape: bf16[2,128,64], index: 7, kind: input, shape index: {}]
  %s8 = inlined_call_operand.vmem [shape: f32[2,7,128], index: 8, kind: input, shape index: {}]
  %s9 = inlined_call_operand.vmem [shape: f32[2,64], index: 9, kind: input, shape index: {}]
  %s10 = inlined_call_operand.hbm [shape: f32[2,16,64], index: 10, kind: output, shape index: {}]
  %s11 = sld [smem:[#allocation0]]
  $region58: #{tpu_custom_call.1} parent=0
    _
  %s13 = ssub.s32 1, %s11
  %s14 = scalar_select 0, %s13, %s11
  $region1: #{tpu_custom_call.1} parent=0
    #allocation2 [shape = 'u8[8192]{0}', space=vmem, size = 0x2000, scoped, tag = 'input window, operand 0, single buffered']
    #allocation3 [shape = 's32[1]{0}', space=sflag, size = 0x4, scoped, tag = 'scoped memory for tpu_custom_call.1']
    #allocation4 [shape = 's32[1]{0}', space=sflag, size = 0x4, scoped, tag = 'scoped memory for tpu_custom_call.1']
    #allocation5 [shape = 'u8[8192]{0}', space=vmem, size = 0x2000, scoped, tag = 'input window, operand 2, single buffered']
    #allocation6 [shape = 's32[1]{0}', space=sflag, size = 0x4, scoped, tag = 'scoped memory for tpu_custom_call.1']
    #allocation7 [shape = 'u8[16384]{0}', space=vmem, size = 0x4000, scoped, tag = 'output window, operand 0, single buffered']
    %15 = vsyncpa [#allocation3], 0
    %16 = vsyncpa [#allocation6], 0
    %17 = vsyncpa [#allocation4], 0
    // Predicated region
    $region2: #{tpu_custom_call.1} parent=1 // pred_check
      _
    $region3: #{tpu_custom_call.1} parent=1 // pred_check_branch
      %19 = sbr.rel (0) target = $region5
    $region4: #{tpu_custom_call.1} parent=1 // pred_region
      %s21 = ssub.s32 256, 256
      %22 = vsyncadd [#allocation3], %s21
      %s23 = sshll.u32 [#allocation2], 4
      %s24 = int_to_ptr.vmem [resolvable:$true] %s23
      %29 = dma.hbm_to_vmem [thread:$0]  %s0, 256, %s24, [#allocation3], 64, 64, 4
    $region5: #{tpu_custom_call.1} parent=1 // pred_fallthru
      _
    // Predicated region
    $region6: #{tpu_custom_call.1} parent=1 // pred_check
      _
    $region7: #{tpu_custom_call.1} parent=1 // pred_check_branch
      %31 = sbr.rel (0) target = $region9
    $region8: #{tpu_custom_call.1} parent=1 // pred_region
      _
    $region9: #{tpu_custom_call.1} parent=1 // pred_fallthru
      _
    // Predicated region
    $region10: #{tpu_custom_call.1} parent=1 // pred_check
      _
    $region11: #{tpu_custom_call.1} parent=1 // pred_check_branch
      %33 = sbr.rel (0) target = $region13
    $region12: #{tpu_custom_call.1} parent=1 // pred_region
      %s35 = ssub.s32 256, 256
      %36 = vsyncadd [#allocation6], %s35
      %s37 = sshll.u32 [#allocation5], 4
      %s38 = int_to_ptr.vmem [resolvable:$true] %s37
      %43 = dma.hbm_to_vmem [thread:$0]  %s2, 256, %s38, [#allocation6], 128, 128, 8
    $region13: #{tpu_custom_call.1} parent=1 // pred_fallthru
      _
    // Predicated region
    $region14: #{tpu_custom_call.1} parent=1 // pred_check
      _
    $region15: #{tpu_custom_call.1} parent=1 // pred_check_branch
      %45 = sbr.rel (0) target = $region17
    $region16: #{tpu_custom_call.1} parent=1 // pred_region
      _
    $region17: #{tpu_custom_call.1} parent=1 // pred_fallthru
      _
    // Predicated region
    $region18: #{tpu_custom_call.1} parent=1 // pred_check
      _
    $region19: #{tpu_custom_call.1} parent=1 // pred_check_branch
      %47 = sbr.rel (0) target = $region21
    $region20: #{tpu_custom_call.1} parent=1 // pred_region
      _
    $region21: #{tpu_custom_call.1} parent=1 // pred_fallthru
      _
    // Predicated region
    $region22: #{tpu_custom_call.1} parent=1 // pred_check
      _
    $region23: #{tpu_custom_call.1} parent=1 // pred_check_branch
      %49 = sbr.rel (0) target = $region25
    $region24: #{tpu_custom_call.1} parent=1 // pred_region
      _
    $region25: #{tpu_custom_call.1} parent=1 // pred_fallthru
      _
    // Predicated region
    $region26: #{tpu_custom_call.1} parent=1 // pred_check
      _
    $region27: #{tpu_custom_call.1} parent=1 // pred_check_branch
      %51 = sbr.rel (0) target = $region29
    $region28: #{tpu_custom_call.1} parent=1 // pred_region
      _
    $region29: #{tpu_custom_call.1} parent=1 // pred_fallthru
      _
    // Predicated region
    $region30: #{tpu_custom_call.1} parent=1 // pred_check
      _
    $region31: #{tpu_custom_call.1} parent=1 // pred_check_branch
      %53 = sbr.rel (0) target = $region33
    $region32: #{tpu_custom_call.1} parent=1 // pred_region
      _
    $region33: #{tpu_custom_call.1} parent=1 // pred_fallthru
      _
    // Predicated region
    $region34: #{tpu_custom_call.1} parent=1 // pred_check
      _
    $region35: #{tpu_custom_call.1} parent=1 // pred_check_branch
      %55 = sbr.rel (0) target = $region37
    $region36: #{tpu_custom_call.1} parent=1 // pred_region
      _
    $region37: #{tpu_custom_call.1} parent=1 // pred_fallthru
      _
    // Predicated region
    $region38: #{tpu_custom_call.1} parent=1 // pred_check
      _
    $region39: #{tpu_custom_call.1} parent=1 // pred_check_branch
      %57 = sbr.rel (0) target = $region41
    $region40: #{tpu_custom_call.1} parent=1 // pred_region
      _
    $region41: #{tpu_custom_call.1} parent=1 // pred_fallthru
      _
    // Predicated region
    $region42: #{tpu_custom_call.1} parent=1 // pred_check
      _
    $region43: #{tpu_custom_call.1} parent=1 // pred_check_branch
      %59 = sbr.rel (0) target = $region45
    $region44: #{tpu_custom_call.1} parent=1 // pred_region
      %60 = dma.done [#allocation3], 256
    $region45: #{tpu_custom_call.1} parent=1 // pred_fallthru
      _
    // Predicated region
    $region46: #{tpu_custom_call.1} parent=1 // pred_check
      _
    $region47: #{tpu_custom_call.1} parent=1 // pred_check_branch
      %62 = sbr.rel (0) target = $region49
    $region48: #{tpu_custom_call.1} parent=1 // pred_region
      %63 = dma.done [#allocation6], 256
    $region49: #{tpu_custom_call.1} parent=1 // pred_fallthru
      _
    %v65 = vld [vmem:[#allocation2] sm:$0xf]
    %v66 = vld [vmem:[#allocation2 + $0x4] sm:$0xf]
    %v67 = vld [vmem:[#allocation2 + $0x8] sm:$0xf]
    %v68 = vld [vmem:[#allocation2 + $0xc] sm:$0xf]
    %v69 = vld [vmem:[%s1] sm:$0xf]
    %v70 = vld [vmem:[%s1 + $0x4] sm:$0xf]
    %v71 = vld [vmem:[%s1 + $0x8] sm:$0xf]
    %v72 = vld [vmem:[%s1 + $0xc] sm:$0xf]
    %v73 = vld [vmem:[%s1 + $0x10] sm:$0xf]
    %v74 = vld [vmem:[%s1 + $0x14] sm:$0xf]
    %v75 = vld [vmem:[%s1 + $0x18] sm:$0xf]
    %v76 = vld [vmem:[%s1 + $0x1c] sm:$0xf]
    %v77 = vld [vmem:[%s1 + $0x20] sm:$0xf]
    %v78 = vld [vmem:[%s1 + $0x24] sm:$0xf]
    %v79 = vld [vmem:[%s1 + $0x28] sm:$0xf]
    %v80 = vld [vmem:[%s1 + $0x2c] sm:$0xf]
    %v81 = vld [vmem:[%s1 + $0x30] sm:$0xf]
    %v82 = vld [vmem:[%s1 + $0x34] sm:$0xf]
    %v83 = vld [vmem:[%s1 + $0x38] sm:$0xf]
    %v84 = vld [vmem:[%s1 + $0x3c] sm:$0xf]
    %v89 = vunpack.c.l.b16 %v65
    %v90 = vunpack.c.l.b16 %v66
    %v91 = vunpack.c.l.b16 %v67
    %v92 = vunpack.c.l.b16 %v68
    %v93 = vpack.c.b16 %v90, %v89
    %v94 = vpack.c.b16 %v92, %v91
    %v113 = vunpack.c.l.b16 %v69
    %v114 = vunpack.c.l.b16 %v70
    %v115 = vunpack.c.l.b16 %v71
    %v116 = vunpack.c.l.b16 %v72
    %v117 = vunpack.c.l.b16 %v73
    %v118 = vunpack.c.l.b16 %v74
    %v119 = vunpack.c.l.b16 %v75
    %v120 = vunpack.c.l.b16 %v76
    %v121 = vunpack.c.l.b16 %v77
    %v122 = vunpack.c.l.b16 %v78
    %v123 = vunpack.c.l.b16 %v79
    %v124 = vunpack.c.l.b16 %v80
    %v125 = vunpack.c.l.b16 %v81
    %v126 = vunpack.c.l.b16 %v82
    %v127 = vunpack.c.l.b16 %v83
    %v128 = vunpack.c.l.b16 %v84
    %v129 = vpack.c.b16 %v114, %v113
    %v130 = vpack.c.b16 %v116, %v115
    %v131 = vpack.c.b16 %v118, %v117
    %v132 = vpack.c.b16 %v120, %v119
    %v133 = vpack.c.b16 %v122, %v121
    %v134 = vpack.c.b16 %v124, %v123
    %v135 = vpack.c.b16 %v126, %v125
    %v136 = vpack.c.b16 %v128, %v127
    %145 = vmatprep.subr.bf16.mxu0 0
    %146 = vmatpush1.bf16.msra.mxu0 %v129
    %147 = vmatprep.subr.bf16.mxu0 0
    %148 = vmatpush1.bf16.msra.mxu0 %v130
    %149 = vmatprep.subr.bf16.mxu0 0
    %150 = vmatpush1.bf16.msra.mxu0 %v131
    %151 = vmatprep.subr.bf16.mxu0 0
    %152 = vmatpush1.bf16.msra.mxu0 %v132
    %153 = vmatprep.subr.bf16.mxu0 0
    %154 = vmatpush1.bf16.msra.mxu0 %v133
    %155 = vmatprep.subr.bf16.mxu0 0
    %156 = vmatpush1.bf16.msra.mxu0 %v134
    %157 = vmatprep.subr.bf16.mxu0 0
    %158 = vmatpush1.bf16.msra.mxu0 %v135
    %159 = vmatprep.subr.bf16.mxu0 0
    %160 = vmatpush1.bf16.msra.mxu0 %v136
    %161 = vmatprep.subr.bf16.mxu0 0
    %162 = vmatpush1.bf16.msra.mxu0 0
    %163 = vmatprep.subr.bf16.mxu0 0
    %164 = vmatpush1.bf16.msra.mxu0 0
    %165 = vmatprep.subr.bf16.mxu0 0
    %166 = vmatpush1.bf16.msra.mxu0 0
    %167 = vmatprep.subr.bf16.mxu0 0
    %168 = vmatpush1.bf16.msra.mxu0 0
    %169 = vmatprep.subr.bf16.mxu0 0
    %170 = vmatpush1.bf16.msra.mxu0 0
    %171 = vmatprep.subr.bf16.mxu0 0
    %172 = vmatpush1.bf16.msra.mxu0 0
    %173 = vmatprep.subr.bf16.mxu0 0
    %174 = vmatpush1.bf16.msra.mxu0 0
    %175 = vmatprep.subr.bf16.mxu0 0
    %176 = vmatpush1.bf16.msra.mxu0 0
    %177 = vmatprep.mubr.bf16.mxu0 0
    %178 = vmatmul.mubr.bf16.gmra.mrb[0].mxu0 %v93
    %v179 = vpop.f32.mrb[0].mxu0
    %v180 = vadd.f32 0.0, %v179
    %v181 = vpop.f32.mrb[0].mxu0
    %v182 = vpop.f32.mrb[0].mxu0
    %v183 = vadd.f32 0.0, %v182
    %v184 = vpop.f32.mrb[0].mxu0
    %185 = vmatprep.mubr.bf16.mxu0 0
    %186 = vmatmul.mubr.bf16.gmra.mrb[0].mxu0 %v94
    %v187 = vpop.f32.mrb[0].mxu0
    %v188 = vadd.f32 0.0, %v187
    %v189 = vpop.f32.mrb[0].mxu0
    %v190 = vpop.f32.mrb[0].mxu0
    %v191 = vadd.f32 0.0, %v190
    %v192 = vpop.f32.mrb[0].mxu0
    %193 = vdwg.mxu0
    %v194 = vld [vmem:[#allocation5] sm:$0xff]
    %v195 = vld [vmem:[#allocation5 + $0x8] sm:$0xff]
    %v196 = vadd.f32 %v180, %v194
    %v197 = vadd.f32 %v183, %v195
    %v198 = vadd.f32 %v188, %v194
    %v199 = vadd.f32 %v191, %v195
    %v200 = vld [vmem:[%s8] sm:$0x7f]
    %vm201 = vcmask 523264
    %v202 = vsel %vm201, %v196, 0.0
    %203 = vadd.xlane.f32.xlu0 %v202
    %v204 = vpop.xlane.xlu0 %203
    %v205 = vsel %vm201, %v197, 0.0
    %206 = vadd.xlane.f32.xlu0 %v205
    %v207 = vpop.xlane.xlu0 %206
    %v208 = vsel %vm201, %v198, 0.0
    %209 = vadd.xlane.f32.xlu0 %v208
    %v210 = vpop.xlane.xlu0 %209
    %v211 = vsel %vm201, %v199, 0.0
    %212 = vadd.xlane.f32.xlu0 %v211
    %v213 = vpop.xlane.xlu0 %212
    %v214 = vmul.f32 %v196, %v196
    %v215 = vmul.f32 %v197, %v197
    %v216 = vmul.f32 %v198, %v198
    %v217 = vmul.f32 %v199, %v199
    %v218 = vsel %vm201, %v214, 0.0
    %219 = vadd.xlane.f32.xlu0 %v218
    %v220 = vpop.xlane.xlu0 %219
    %v221 = vsel %vm201, %v215, 0.0
    %222 = vadd.xlane.f32.xlu0 %v221
    %v223 = vpop.xlane.xlu0 %222
    %v224 = vsel %vm201, %v216, 0.0
    %225 = vadd.xlane.f32.xlu0 %v224
    %v226 = vpop.xlane.xlu0 %225
    %v227 = vsel %vm201, %v217, 0.0
    %228 = vadd.xlane.f32.xlu0 %v227
    %v229 = vpop.xlane.xlu0 %228
    %v230 = vmul.f32 %v204, 0.015625
    %v231 = vmul.f32 %v207, 0.015625
    %v232 = vmul.f32 %v210, 0.015625
    %v233 = vmul.f32 %v213, 0.015625
    %v234 = vmul.f32 %v220, 0.015625
    %v235 = vmul.f32 %v223, 0.015625
    %v236 = vmul.f32 %v226, 0.015625
    %v237 = vmul.f32 %v229, 0.015625
    %v238 = vmul.f32 %v230, %v230
    %v239 = vmul.f32 %v231, %v231
    %v240 = vmul.f32 %v232, %v232
    %v241 = vmul.f32 %v233, %v233
    %v242 = vsub.f32 %v234, %v238
    %v243 = vsub.f32 %v235, %v239
    %v244 = vsub.f32 %v236, %v240
    %v245 = vsub.f32 %v237, %v241
    %v246 = vmax.f32 %v242, 0.0
    %v247 = vmax.f32 %v243, 0.0
    %v248 = vmax.f32 %v244, 0.0
    %v249 = vmax.f32 %v245, 0.0
    %v250 = vsub.f32 %v196, %v230
    %v251 = vsub.f32 %v197, %v231
    %v252 = vsub.f32 %v198, %v232
    %v253 = vsub.f32 %v199, %v233
    %v254 = vadd.f32 %v246, 1e-06
    %v255 = vadd.f32 %v247, 1e-06
    %v256 = vadd.f32 %v248, 1e-06
    %v257 = vadd.f32 %v249, 1e-06
    %v258 = vrsqrt.pop %v254
    %v259 = vrsqrt.pop %v255
    %v260 = vrsqrt.pop %v256
    %v261 = vrsqrt.pop %v257
    %v262 = vmul.f32 %v250, %v258
    %v263 = vmul.f32 %v251, %v259
    %v264 = vmul.f32 %v252, %v260
    %v265 = vmul.f32 %v253, %v261
    %v266 = vlaneseq
    %v267 = vshrl.u32 %v266, 7
    %v268 = vsub.s32 0, %v267
    %v269 = vrot.slane %v200, %v268
    %v270 = vmul.f32 %v262, %v269
    %v271 = vmul.f32 %v263, %v269
    %v272 = vmul.f32 %v264, %v269
    %v273 = vmul.f32 %v265, %v269
    %v274 = vlaneseq
    %v275 = vshrl.u32 %v274, 7
    %v276 = vsub.s32 1, %v275
    %v277 = vrot.slane %v200, %v276
    %v278 = vadd.f32 %v270, %v277
    %v279 = vadd.f32 %v271, %v277
    %v280 = vadd.f32 %v272, %v277
    %v281 = vadd.f32 %v273, %v277
    %v282 = vpack.c.bf16 %v279, %v278
    %v283 = vpack.c.bf16 %v281, %v280
    %v284 = vld [vmem:[%s3] sm:$0xff]
    %v285 = vld [vmem:[%s3 + $0x8] sm:$0xff]
    %v286 = vld [vmem:[%s3 + $0x10] sm:$0xff]
    %v287 = vld [vmem:[%s3 + $0x18] sm:$0xff]
    %v288 = vld [vmem:[%s3 + $0x20] sm:$0xff]
    %v289 = vld [vmem:[%s3 + $0x28] sm:$0xff]
    %v290 = vld [vmem:[%s3 + $0x30] sm:$0xff]
    %v291 = vld [vmem:[%s3 + $0x38] sm:$0xff]
    %v292 = vld [vmem:[%s4] sm:$0x3]
    %v294 = vlaneseq
    %v295 = vshrl.u32 %v294, 7
    %v296 = vsub.s32 0, %v295
    %v297 = vrot.slane %v292, %v296
    %v298 = vlaneseq
    %v299 = vshrl.u32 %v298, 7
    %v300 = vsub.s32 1, %v299
    %v301 = vrot.slane %v292, %v300
    %v312 = vunpack.c.l.b16 %v284
    %v313 = vunpack.c.h.b16 %v284
    %v314 = vunpack.c.l.b16 %v285
    %v315 = vunpack.c.h.b16 %v285
    %v316 = vunpack.c.l.b16 %v286
    %v317 = vunpack.c.h.b16 %v286
    %v318 = vunpack.c.l.b16 %v287
    %v319 = vunpack.c.h.b16 %v287
    %v320 = vunpack.c.l.b16 %v288
    %v321 = vunpack.c.h.b16 %v288
    %v322 = vunpack.c.l.b16 %v289
    %v323 = vunpack.c.h.b16 %v289
    %v324 = vunpack.c.l.b16 %v290
    %v325 = vunpack.c.h.b16 %v290
    %v326 = vunpack.c.l.b16 %v291
    %v327 = vunpack.c.h.b16 %v291
    %v328 = vpack.c.b16 %v314, %v312
    %v329 = vpack.c.b16 %v315, %v313
    %v330 = vpack.c.b16 %v318, %v316
    %v331 = vpack.c.b16 %v319, %v317
    %v332 = vpack.c.b16 %v322, %v320
    %v333 = vpack.c.b16 %v323, %v321
    %v334 = vpack.c.b16 %v326, %v324
    %v335 = vpack.c.b16 %v327, %v325
    %v345 = vsel %vm201, %v282, 0
    %v348 = vsel %vm201, %v283, 0
    %350 = vmatprep.subr.bf16.mxu0 %v329
    %351 = vmatpush1.bf16.msra.mxu0 %v328
    %352 = vmatprep.subr.bf16.mxu0 %v331
    %353 = vmatpush1.bf16.msra.mxu0 %v330
    %354 = vmatprep.subr.bf16.mxu0 %v333
    %355 = vmatpush1.bf16.msra.mxu0 %v332
    %356 = vmatprep.subr.bf16.mxu0 %v335
    %357 = vmatpush1.bf16.msra.mxu0 %v334
    %358 = vmatprep.subr.bf16.mxu0 0
    %359 = vmatpush1.bf16.msra.mxu0 0
    %360 = vmatprep.subr.bf16.mxu0 0
    %361 = vmatpush1.bf16.msra.mxu0 0
    %362 = vmatprep.subr.bf16.mxu0 0
    %363 = vmatpush1.bf16.msra.mxu0 0
    %364 = vmatprep.subr.bf16.mxu0 0
    %365 = vmatpush1.bf16.msra.mxu0 0
    %366 = vmatprep.subr.bf16.mxu0 0
    %367 = vmatpush1.bf16.msra.mxu0 0
    %368 = vmatprep.subr.bf16.mxu0 0
    %369 = vmatpush1.bf16.msra.mxu0 0
    %370 = vmatprep.subr.bf16.mxu0 0
    %371 = vmatpush1.bf16.msra.mxu0 0
    %372 = vmatprep.subr.bf16.mxu0 0
    %373 = vmatpush1.bf16.msra.mxu0 0
    %374 = vmatprep.subr.bf16.mxu0 0
    %375 = vmatpush1.bf16.msra.mxu0 0
    %376 = vmatprep.subr.bf16.mxu0 0
    %377 = vmatpush1.bf16.msra.mxu0 0
    %378 = vmatprep.subr.bf16.mxu0 0
    %379 = vmatpush1.bf16.msra.mxu0 0
    %380 = vmatprep.subr.bf16.mxu0 0
    %381 = vmatpush1.bf16.msra.mxu0 0
    %382 = vmatprep.mubr.bf16.mxu0 0
    %383 = vmatmul.mubr.bf16.gmra.mrb[0].mxu0 %v345
    %v384 = vpop.f32.mrb[0].mxu0
    %v385 = vadd.f32 %v297, %v384
    %v386 = vpop.f32.mrb[0].mxu0
    %v387 = vadd.f32 %v301, %v386
    %v388 = vpop.f32.mrb[0].mxu0
    %v389 = vadd.f32 %v297, %v388
    %v390 = vpop.f32.mrb[0].mxu0
    %v391 = vadd.f32 %v301, %v390
    %392 = vmatprep.mubr.bf16.mxu0 0
    %393 = vmatmul.mubr.bf16.gmra.mrb[0].mxu0 %v348
    %v394 = vpop.f32.mrb[0].mxu0
    %v395 = vadd.f32 %v297, %v394
    %v396 = vpop.f32.mrb[0].mxu0
    %v397 = vadd.f32 %v301, %v396
    %v398 = vpop.f32.mrb[0].mxu0
    %v399 = vadd.f32 %v297, %v398
    %v400 = vpop.f32.mrb[0].mxu0
    %v401 = vadd.f32 %v301, %v400
    %402 = vdwg.mxu0
    %v403 = vpack.c.bf16 %v389, %v385
    %v404 = vpack.c.bf16 %v391, %v387
    %v405 = vpack.c.bf16 %v399, %v395
    %v406 = vpack.c.bf16 %v401, %v397
    %409 = vrot.lane.b32.xlu0 %v403, 112
    %v410 = vpop.permute.xlu0 %409
    %411 = vrot.lane.b32.xlu0 %v405, 112
    %v412 = vpop.permute.xlu0 %411
    %413 = vrot.lane.b32.xlu0 %v403, 96
    %v414 = vpop.permute.xlu0 %413
    %415 = vrot.lane.b32.xlu0 %v405, 96
    %v416 = vpop.permute.xlu0 %415
    %417 = vrot.lane.b32.xlu0 %v403, 80
    %v418 = vpop.permute.xlu0 %417
    %419 = vrot.lane.b32.xlu0 %v405, 80
    %v420 = vpop.permute.xlu0 %419
    %423 = vrot.lane.b32.xlu0 %v404, 112
    %v424 = vpop.permute.xlu0 %423
    %425 = vrot.lane.b32.xlu0 %v406, 112
    %v426 = vpop.permute.xlu0 %425
    %429 = vrot.lane.b32.xlu0 %v404, 96
    %v430 = vpop.permute.xlu0 %429
    %431 = vrot.lane.b32.xlu0 %v406, 96
    %v432 = vpop.permute.xlu0 %431
    %435 = vrot.lane.b32.xlu0 %v404, 80
    %v436 = vpop.permute.xlu0 %435
    %437 = vrot.lane.b32.xlu0 %v406, 80
    %v438 = vpop.permute.xlu0 %437
    %441 = vrot.lane.b32.xlu0 %v403, 64
    %v442 = vpop.permute.xlu0 %441
    %vm443 = vcmask 130048
    %v445 = vsel %vm443, %v403, 0
    %v448 = vsel %vm443, %v442, 0
    %450 = vmatprep.subr.bf16.mxu0 0
    %451 = vmatpush1.bf16.xpose.msra.mxu0 %v448
    %452 = vmatprep.subr.bf16.mxu0 0
    %453 = vmatpush1.bf16.xpose.msra.mxu0 0
    %454 = vmatprep.subr.bf16.mxu0 0
    %455 = vmatpush1.bf16.xpose.msra.mxu0 0
    %456 = vmatprep.subr.bf16.mxu0 0
    %457 = vmatpush1.bf16.xpose.msra.mxu0 0
    %458 = vmatprep.subr.bf16.mxu0 0
    %459 = vmatpush1.bf16.xpose.msra.mxu0 0
    %460 = vmatprep.subr.bf16.mxu0 0
    %461 = vmatpush1.bf16.xpose.msra.mxu0 0
    %462 = vmatprep.subr.bf16.mxu0 0
    %463 = vmatpush1.bf16.xpose.msra.mxu0 0
    %464 = vmatprep.subr.bf16.mxu0 0
    %465 = vmatpush1.bf16.xpose.msra.mxu0 0
    %466 = vmatprep.subr.bf16.mxu0 0
    %467 = vmatpush1.bf16.xpose.msra.mxu0 0
    %468 = vmatprep.subr.bf16.mxu0 0
    %469 = vmatpush1.bf16.xpose.msra.mxu0 0
    %470 = vmatprep.subr.bf16.mxu0 0
    %471 = vmatpush1.bf16.xpose.msra.mxu0 0
    %472 = vmatprep.subr.bf16.mxu0 0
    %473 = vmatpush1.bf16.xpose.msra.mxu0 0
    %474 = vmatprep.subr.bf16.mxu0 0
    %475 = vmatpush1.bf16.xpose.msra.mxu0 0
    %476 = vmatprep.subr.bf16.mxu0 0
    %477 = vmatpush1.bf16.xpose.msra.mxu0 0
    %478 = vmatprep.subr.bf16.mxu0 0
    %479 = vmatpush1.bf16.xpose.msra.mxu0 0
    %480 = vmatprep.subr.bf16.mxu0 0
    %481 = vmatpush1.bf16.xpose.msra.mxu0 0
    %482 = vmatprep.mubr.bf16.mxu0 0
    %483 = vmatmul.mubr.bf16.gmra.mrb[0].mxu0 %v445
    %v484 = vpop.f32.mrb[0].mxu0
    %v485 = vadd.f32 0.0, %v484
    %v486 = vpop.f32.mrb[0].mxu0
    %v487 = vpop.f32.mrb[0].mxu0
    %v488 = vadd.f32 0.0, %v487
    %v489 = vpop.f32.mrb[0].mxu0
    %490 = vdwg.mxu0
    %491 = vrot.lane.b32.xlu0 %v405, 64
    %v492 = vpop.permute.xlu0 %491
    %v494 = vsel %vm443, %v405, 0
    %v497 = vsel %vm443, %v492, 0
    %499 = vmatprep.subr.bf16.mxu0 0
    %500 = vmatpush1.bf16.xpose.msra.mxu0 %v497
    %501 = vmatprep.subr.bf16.mxu0 0
    %502 = vmatpush1.bf16.xpose.msra.mxu0 0
    %503 = vmatprep.subr.bf16.mxu0 0
    %504 = vmatpush1.bf16.xpose.msra.mxu0 0
    %505 = vmatprep.subr.bf16.mxu0 0
    %506 = vmatpush1.bf16.xpose.msra.mxu0 0
    %507 = vmatprep.subr.bf16.mxu0 0
    %508 = vmatpush1.bf16.xpose.msra.mxu0 0
    %509 = vmatprep.subr.bf16.mxu0 0
    %510 = vmatpush1.bf16.xpose.msra.mxu0 0
    %511 = vmatprep.subr.bf16.mxu0 0
    %512 = vmatpush1.bf16.xpose.msra.mxu0 0
    %513 = vmatprep.subr.bf16.mxu0 0
    %514 = vmatpush1.bf16.xpose.msra.mxu0 0
    %515 = vmatprep.subr.bf16.mxu0 0
    %516 = vmatpush1.bf16.xpose.msra.mxu0 0
    %517 = vmatprep.subr.bf16.mxu0 0
    %518 = vmatpush1.bf16.xpose.msra.mxu0 0
    %519 = vmatprep.subr.bf16.mxu0 0
    %520 = vmatpush1.bf16.xpose.msra.mxu0 0
    %521 = vmatprep.subr.bf16.mxu0 0
    %522 = vmatpush1.bf16.xpose.msra.mxu0 0
    %523 = vmatprep.subr.bf16.mxu0 0
    %524 = vmatpush1.bf16.xpose.msra.mxu0 0
    %525 = vmatprep.subr.bf16.mxu0 0
    %526 = vmatpush1.bf16.xpose.msra.mxu0 0
    %527 = vmatprep.subr.bf16.mxu0 0
    %528 = vmatpush1.bf16.xpose.msra.mxu0 0
    %529 = vmatprep.subr.bf16.mxu0 0
    %530 = vmatpush1.bf16.xpose.msra.mxu0 0
    %531 = vmatprep.mubr.bf16.mxu0 0
    %532 = vmatmul.mubr.bf16.gmra.mrb[0].mxu0 %v494
    %v533 = vpop.f32.mrb[0].mxu0
    %v534 = vadd.f32 0.0, %v533
    %v535 = vpop.f32.mrb[0].mxu0
    %v536 = vpop.f32.mrb[0].mxu0
    %v537 = vadd.f32 0.0, %v536
    %v538 = vpop.f32.mrb[0].mxu0
    %539 = vdwg.mxu0
    %540 = vrot.lane.b32.xlu0 %v410, 64
    %v541 = vpop.permute.xlu0 %540
    %v543 = vsel %vm443, %v410, 0
    %v546 = vsel %vm443, %v541, 0
    %548 = vmatprep.subr.bf16.mxu0 0
    %549 = vmatpush1.bf16.xpose.msra.mxu0 %v546
    %550 = vmatprep.subr.bf16.mxu0 0
    %551 = vmatpush1.bf16.xpose.msra.mxu0 0
    %552 = vmatprep.subr.bf16.mxu0 0
    %553 = vmatpush1.bf16.xpose.msra.mxu0 0
    %554 = vmatprep.subr.bf16.mxu0 0
    %555 = vmatpush1.bf16.xpose.msra.mxu0 0
    %556 = vmatprep.subr.bf16.mxu0 0
    %557 = vmatpush1.bf16.xpose.msra.mxu0 0
    %558 = vmatprep.subr.bf16.mxu0 0
    %559 = vmatpush1.bf16.xpose.msra.mxu0 0
    %560 = vmatprep.subr.bf16.mxu0 0
    %561 = vmatpush1.bf16.xpose.msra.mxu0 0
    %562 = vmatprep.subr.bf16.mxu0 0
    %563 = vmatpush1.bf16.xpose.msra.mxu0 0
    %564 = vmatprep.subr.bf16.mxu0 0
    %565 = vmatpush1.bf16.xpose.msra.mxu0 0
    %566 = vmatprep.subr.bf16.mxu0 0
    %567 = vmatpush1.bf16.xpose.msra.mxu0 0
    %568 = vmatprep.subr.bf16.mxu0 0
    %569 = vmatpush1.bf16.xpose.msra.mxu0 0
    %570 = vmatprep.subr.bf16.mxu0 0
    %571 = vmatpush1.bf16.xpose.msra.mxu0 0
    %572 = vmatprep.subr.bf16.mxu0 0
    %573 = vmatpush1.bf16.xpose.msra.mxu0 0
    %574 = vmatprep.subr.bf16.mxu0 0
    %575 = vmatpush1.bf16.xpose.msra.mxu0 0
    %576 = vmatprep.subr.bf16.mxu0 0
    %577 = vmatpush1.bf16.xpose.msra.mxu0 0
    %578 = vmatprep.subr.bf16.mxu0 0
    %579 = vmatpush1.bf16.xpose.msra.mxu0 0
    %580 = vmatprep.mubr.bf16.mxu0 0
    %581 = vmatmul.mubr.bf16.gmra.mrb[0].mxu0 %v543
    %v582 = vpop.f32.mrb[0].mxu0
    %v583 = vadd.f32 0.0, %v582
    %v584 = vpop.f32.mrb[0].mxu0
    %v585 = vpop.f32.mrb[0].mxu0
    %v586 = vadd.f32 0.0, %v585
    %v587 = vpop.f32.mrb[0].mxu0
    %588 = vdwg.mxu0
    %589 = vrot.lane.b32.xlu0 %v412, 64
    %v590 = vpop.permute.xlu0 %589
    %v592 = vsel %vm443, %v412, 0
    %v595 = vsel %vm443, %v590, 0
    %597 = vmatprep.subr.bf16.mxu0 0
    %598 = vmatpush1.bf16.xpose.msra.mxu0 %v595
    %599 = vmatprep.subr.bf16.mxu0 0
    %600 = vmatpush1.bf16.xpose.msra.mxu0 0
    %601 = vmatprep.subr.bf16.mxu0 0
    %602 = vmatpush1.bf16.xpose.msra.mxu0 0
    %603 = vmatprep.subr.bf16.mxu0 0
    %604 = vmatpush1.bf16.xpose.msra.mxu0 0
    %605 = vmatprep.subr.bf16.mxu0 0
    %606 = vmatpush1.bf16.xpose.msra.mxu0 0
    %607 = vmatprep.subr.bf16.mxu0 0
    %608 = vmatpush1.bf16.xpose.msra.mxu0 0
    %609 = vmatprep.subr.bf16.mxu0 0
    %610 = vmatpush1.bf16.xpose.msra.mxu0 0
    %611 = vmatprep.subr.bf16.mxu0 0
    %612 = vmatpush1.bf16.xpose.msra.mxu0 0
    %613 = vmatprep.subr.bf16.mxu0 0
    %614 = vmatpush1.bf16.xpose.msra.mxu0 0
    %615 = vmatprep.subr.bf16.mxu0 0
    %616 = vmatpush1.bf16.xpose.msra.mxu0 0
    %617 = vmatprep.subr.bf16.mxu0 0
    %618 = vmatpush1.bf16.xpose.msra.mxu0 0
    %619 = vmatprep.subr.bf16.mxu0 0
    %620 = vmatpush1.bf16.xpose.msra.mxu0 0
    %621 = vmatprep.subr.bf16.mxu0 0
    %622 = vmatpush1.bf16.xpose.msra.mxu0 0
    %623 = vmatprep.subr.bf16.mxu0 0
    %624 = vmatpush1.bf16.xpose.msra.mxu0 0
    %625 = vmatprep.subr.bf16.mxu0 0
    %626 = vmatpush1.bf16.xpose.msra.mxu0 0
    %627 = vmatprep.subr.bf16.mxu0 0
    %628 = vmatpush1.bf16.xpose.msra.mxu0 0
    %629 = vmatprep.mubr.bf16.mxu0 0
    %630 = vmatmul.mubr.bf16.gmra.mrb[0].mxu0 %v592
    %v631 = vpop.f32.mrb[0].mxu0
    %v632 = vadd.f32 0.0, %v631
    %v633 = vpop.f32.mrb[0].mxu0
    %v634 = vpop.f32.mrb[0].mxu0
    %v635 = vadd.f32 0.0, %v634
    %v636 = vpop.f32.mrb[0].mxu0
    %637 = vdwg.mxu0
    %638 = vrot.lane.b32.xlu0 %v414, 64
    %v639 = vpop.permute.xlu0 %638
    %v641 = vsel %vm443, %v414, 0
    %v644 = vsel %vm443, %v639, 0
    %646 = vmatprep.subr.bf16.mxu0 0
    %647 = vmatpush1.bf16.xpose.msra.mxu0 %v644
    %648 = vmatprep.subr.bf16.mxu0 0
    %649 = vmatpush1.bf16.xpose.msra.mxu0 0
    %650 = vmatprep.subr.bf16.mxu0 0
    %651 = vmatpush1.bf16.xpose.msra.mxu0 0
    %652 = vmatprep.subr.bf16.mxu0 0
    %653 = vmatpush1.bf16.xpose.msra.mxu0 0
    %654 = vmatprep.subr.bf16.mxu0 0
    %655 = vmatpush1.bf16.xpose.msra.mxu0 0
    %656 = vmatprep.subr.bf16.mxu0 0
    %657 = vmatpush1.bf16.xpose.msra.mxu0 0
    %658 = vmatprep.subr.bf16.mxu0 0
    %659 = vmatpush1.bf16.xpose.msra.mxu0 0
    %660 = vmatprep.subr.bf16.mxu0 0
    %661 = vmatpush1.bf16.xpose.msra.mxu0 0
    %662 = vmatprep.subr.bf16.mxu0 0
    %663 = vmatpush1.bf16.xpose.msra.mxu0 0
    %664 = vmatprep.subr.bf16.mxu0 0
    %665 = vmatpush1.bf16.xpose.msra.mxu0 0
    %666 = vmatprep.subr.bf16.mxu0 0
    %667 = vmatpush1.bf16.xpose.msra.mxu0 0
    %668 = vmatprep.subr.bf16.mxu0 0
    %669 = vmatpush1.bf16.xpose.msra.mxu0 0
    %670 = vmatprep.subr.bf16.mxu0 0
    %671 = vmatpush1.bf16.xpose.msra.mxu0 0
    %672 = vmatprep.subr.bf16.mxu0 0
    %673 = vmatpush1.bf16.xpose.msra.mxu0 0
    %674 = vmatprep.subr.bf16.mxu0 0
    %675 = vmatpush1.bf16.xpose.msra.mxu0 0
    %676 = vmatprep.subr.bf16.mxu0 0
    %677 = vmatpush1.bf16.xpose.msra.mxu0 0
    %678 = vmatprep.mubr.bf16.mxu0 0
    %679 = vmatmul.mubr.bf16.gmra.mrb[0].mxu0 %v641
    %v680 = vpop.f32.mrb[0].mxu0
    %v681 = vadd.f32 0.0, %v680
    %v682 = vpop.f32.mrb[0].mxu0
    %v683 = vpop.f32.mrb[0].mxu0
    %v684 = vadd.f32 0.0, %v683
    %v685 = vpop.f32.mrb[0].mxu0
    %686 = vdwg.mxu0
    %687 = vrot.lane.b32.xlu0 %v416, 64
    %v688 = vpop.permute.xlu0 %687
    %v690 = vsel %vm443, %v416, 0
    %v693 = vsel %vm443, %v688, 0
    %695 = vmatprep.subr.bf16.mxu0 0
    %696 = vmatpush1.bf16.xpose.msra.mxu0 %v693
    %697 = vmatprep.subr.bf16.mxu0 0
    %698 = vmatpush1.bf16.xpose.msra.mxu0 0
    %699 = vmatprep.subr.bf16.mxu0 0
    %700 = vmatpush1.bf16.xpose.msra.mxu0 0
    %701 = vmatprep.subr.bf16.mxu0 0
    %702 = vmatpush1.bf16.xpose.msra.mxu0 0
    %703 = vmatprep.subr.bf16.mxu0 0
    %704 = vmatpush1.bf16.xpose.msra.mxu0 0
    %705 = vmatprep.subr.bf16.mxu0 0
    %706 = vmatpush1.bf16.xpose.msra.mxu0 0
    %707 = vmatprep.subr.bf16.mxu0 0
    %708 = vmatpush1.bf16.xpose.msra.mxu0 0
    %709 = vmatprep.subr.bf16.mxu0 0
    %710 = vmatpush1.bf16.xpose.msra.mxu0 0
    %711 = vmatprep.subr.bf16.mxu0 0
    %712 = vmatpush1.bf16.xpose.msra.mxu0 0
    %713 = vmatprep.subr.bf16.mxu0 0
    %714 = vmatpush1.bf16.xpose.msra.mxu0 0
    %715 = vmatprep.subr.bf16.mxu0 0
    %716 = vmatpush1.bf16.xpose.msra.mxu0 0
    %717 = vmatprep.subr.bf16.mxu0 0
    %718 = vmatpush1.bf16.xpose.msra.mxu0 0
    %719 = vmatprep.subr.bf16.mxu0 0
    %720 = vmatpush1.bf16.xpose.msra.mxu0 0
    %721 = vmatprep.subr.bf16.mxu0 0
    %722 = vmatpush1.bf16.xpose.msra.mxu0 0
    %723 = vmatprep.subr.bf16.mxu0 0
    %724 = vmatpush1.bf16.xpose.msra.mxu0 0
    %725 = vmatprep.subr.bf16.mxu0 0
    %726 = vmatpush1.bf16.xpose.msra.mxu0 0
    %727 = vmatprep.mubr.bf16.mxu0 0
    %728 = vmatmul.mubr.bf16.gmra.mrb[0].mxu0 %v690
    %v729 = vpop.f32.mrb[0].mxu0
    %v730 = vadd.f32 0.0, %v729
    %v731 = vpop.f32.mrb[0].mxu0
    %v732 = vpop.f32.mrb[0].mxu0
    %v733 = vadd.f32 0.0, %v732
    %v734 = vpop.f32.mrb[0].mxu0
    %735 = vdwg.mxu0
    %736 = vrot.lane.b32.xlu0 %v418, 64
    %v737 = vpop.permute.xlu0 %736
    %v739 = vsel %vm443, %v418, 0
    %v742 = vsel %vm443, %v737, 0
    %744 = vmatprep.subr.bf16.mxu0 0
    %745 = vmatpush1.bf16.xpose.msra.mxu0 %v742
    %746 = vmatprep.subr.bf16.mxu0 0
    %747 = vmatpush1.bf16.xpose.msra.mxu0 0
    %748 = vmatprep.subr.bf16.mxu0 0
    %749 = vmatpush1.bf16.xpose.msra.mxu0 0
    %750 = vmatprep.subr.bf16.mxu0 0
    %751 = vmatpush1.bf16.xpose.msra.mxu0 0
    %752 = vmatprep.subr.bf16.mxu0 0
    %753 = vmatpush1.bf16.xpose.msra.mxu0 0
    %754 = vmatprep.subr.bf16.mxu0 0
    %755 = vmatpush1.bf16.xpose.msra.mxu0 0
    %756 = vmatprep.subr.bf16.mxu0 0
    %757 = vmatpush1.bf16.xpose.msra.mxu0 0
    %758 = vmatprep.subr.bf16.mxu0 0
    %759 = vmatpush1.bf16.xpose.msra.mxu0 0
    %760 = vmatprep.subr.bf16.mxu0 0
    %761 = vmatpush1.bf16.xpose.msra.mxu0 0
    %762 = vmatprep.subr.bf16.mxu0 0
    %763 = vmatpush1.bf16.xpose.msra.mxu0 0
    %764 = vmatprep.subr.bf16.mxu0 0
    %765 = vmatpush1.bf16.xpose.msra.mxu0 0
    %766 = vmatprep.subr.bf16.mxu0 0
    %767 = vmatpush1.bf16.xpose.msra.mxu0 0
    %768 = vmatprep.subr.bf16.mxu0 0
    %769 = vmatpush1.bf16.xpose.msra.mxu0 0
    %770 = vmatprep.subr.bf16.mxu0 0
    %771 = vmatpush1.bf16.xpose.msra.mxu0 0
    %772 = vmatprep.subr.bf16.mxu0 0
    %773 = vmatpush1.bf16.xpose.msra.mxu0 0
    %774 = vmatprep.subr.bf16.mxu0 0
    %775 = vmatpush1.bf16.xpose.msra.mxu0 0
    %776 = vmatprep.mubr.bf16.mxu0 0
    %777 = vmatmul.mubr.bf16.gmra.mrb[0].mxu0 %v739
    %v778 = vpop.f32.mrb[0].mxu0
    %v779 = vadd.f32 0.0, %v778
    %v780 = vpop.f32.mrb[0].mxu0
    %v781 = vpop.f32.mrb[0].mxu0
    %v782 = vadd.f32 0.0, %v781
    %v783 = vpop.f32.mrb[0].mxu0
    %784 = vdwg.mxu0
    %785 = vrot.lane.b32.xlu0 %v420, 64
    %v786 = vpop.permute.xlu0 %785
    %v788 = vsel %vm443, %v420, 0
    %v791 = vsel %vm443, %v786, 0
    %793 = vmatprep.subr.bf16.mxu0 0
    %794 = vmatpush1.bf16.xpose.msra.mxu0 %v791
    %795 = vmatprep.subr.bf16.mxu0 0
    %796 = vmatpush1.bf16.xpose.msra.mxu0 0
    %797 = vmatprep.subr.bf16.mxu0 0
    %798 = vmatpush1.bf16.xpose.msra.mxu0 0
    %799 = vmatprep.subr.bf16.mxu0 0
    %800 = vmatpush1.bf16.xpose.msra.mxu0 0
    %801 = vmatprep.subr.bf16.mxu0 0
    %802 = vmatpush1.bf16.xpose.msra.mxu0 0
    %803 = vmatprep.subr.bf16.mxu0 0
    %804 = vmatpush1.bf16.xpose.msra.mxu0 0
    %805 = vmatprep.subr.bf16.mxu0 0
    %806 = vmatpush1.bf16.xpose.msra.mxu0 0
    %807 = vmatprep.subr.bf16.mxu0 0
    %808 = vmatpush1.bf16.xpose.msra.mxu0 0
    %809 = vmatprep.subr.bf16.mxu0 0
    %810 = vmatpush1.bf16.xpose.msra.mxu0 0
    %811 = vmatprep.subr.bf16.mxu0 0
    %812 = vmatpush1.bf16.xpose.msra.mxu0 0
    %813 = vmatprep.subr.bf16.mxu0 0
    %814 = vmatpush1.bf16.xpose.msra.mxu0 0
    %815 = vmatprep.subr.bf16.mxu0 0
    %816 = vmatpush1.bf16.xpose.msra.mxu0 0
    %817 = vmatprep.subr.bf16.mxu0 0
    %818 = vmatpush1.bf16.xpose.msra.mxu0 0
    %819 = vmatprep.subr.bf16.mxu0 0
    %820 = vmatpush1.bf16.xpose.msra.mxu0 0
    %821 = vmatprep.subr.bf16.mxu0 0
    %822 = vmatpush1.bf16.xpose.msra.mxu0 0
    %823 = vmatprep.subr.bf16.mxu0 0
    %824 = vmatpush1.bf16.xpose.msra.mxu0 0
    %825 = vmatprep.mubr.bf16.mxu0 0
    %826 = vmatmul.mubr.bf16.gmra.mrb[0].mxu0 %v788
    %v827 = vpop.f32.mrb[0].mxu0
    %v828 = vadd.f32 0.0, %v827
    %v829 = vpop.f32.mrb[0].mxu0
    %v830 = vpop.f32.mrb[0].mxu0
    %v831 = vadd.f32 0.0, %v830
    %v832 = vpop.f32.mrb[0].mxu0
    %833 = vdwg.mxu0
    %v834 = vsel %vm443, %v485, -inf
    %835 = vmax.xlane.f32.xlu0 %v834
    %v836 = vpop.xlane.xlu0 %835
    %v837 = vsel %vm443, %v488, -inf
    %838 = vmax.xlane.f32.xlu0 %v837
    %v839 = vpop.xlane.xlu0 %838
    %v840 = vsel %vm443, %v534, -inf
    %841 = vmax.xlane.f32.xlu0 %v840
    %v842 = vpop.xlane.xlu0 %841
    %v843 = vsel %vm443, %v537, -inf
    %844 = vmax.xlane.f32.xlu0 %v843
    %v845 = vpop.xlane.xlu0 %844
    %v846 = vsel %vm443, %v583, -inf
    %847 = vmax.xlane.f32.xlu0 %v846
    %v848 = vpop.xlane.xlu0 %847
    %v849 = vsel %vm443, %v586, -inf
    %850 = vmax.xlane.f32.xlu0 %v849
    %v851 = vpop.xlane.xlu0 %850
    %v852 = vsel %vm443, %v632, -inf
    %853 = vmax.xlane.f32.xlu0 %v852
    %v854 = vpop.xlane.xlu0 %853
    %v855 = vsel %vm443, %v635, -inf
    %856 = vmax.xlane.f32.xlu0 %v855
    %v857 = vpop.xlane.xlu0 %856
    %v858 = vsel %vm443, %v681, -inf
    %859 = vmax.xlane.f32.xlu0 %v858
    %v860 = vpop.xlane.xlu0 %859
    %v861 = vsel %vm443, %v684, -inf
    %862 = vmax.xlane.f32.xlu0 %v861
    %v863 = vpop.xlane.xlu0 %862
    %v864 = vsel %vm443, %v730, -inf
    %865 = vmax.xlane.f32.xlu0 %v864
    %v866 = vpop.xlane.xlu0 %865
    %v867 = vsel %vm443, %v733, -inf
    %868 = vmax.xlane.f32.xlu0 %v867
    %v869 = vpop.xlane.xlu0 %868
    %v870 = vsel %vm443, %v779, -inf
    %871 = vmax.xlane.f32.xlu0 %v870
    %v872 = vpop.xlane.xlu0 %871
    %v873 = vsel %vm443, %v782, -inf
    %874 = vmax.xlane.f32.xlu0 %v873
    %v875 = vpop.xlane.xlu0 %874
    %v876 = vsel %vm443, %v828, -inf
    %877 = vmax.xlane.f32.xlu0 %v876
    %v878 = vpop.xlane.xlu0 %877
    %v879 = vsel %vm443, %v831, -inf
    %880 = vmax.xlane.f32.xlu0 %v879
    %v881 = vpop.xlane.xlu0 %880
    %v882 = vsub.f32 %v485, %v836
    %v883 = vsub.f32 %v488, %v839
    %v884 = vsub.f32 %v534, %v842
    %v885 = vsub.f32 %v537, %v845
    %v886 = vsub.f32 %v583, %v848
    %v887 = vsub.f32 %v586, %v851
    %v888 = vsub.f32 %v632, %v854
    %v889 = vsub.f32 %v635, %v857
    %v890 = vsub.f32 %v681, %v860
    %v891 = vsub.f32 %v684, %v863
    %v892 = vsub.f32 %v730, %v866
    %v893 = vsub.f32 %v733, %v869
    %v894 = vsub.f32 %v779, %v872
    %v895 = vsub.f32 %v782, %v875
    %v896 = vsub.f32 %v828, %v878
    %v897 = vsub.f32 %v831, %v881
    %v898 = vmul.f32 %v882, 1.442695
    %v899 = vpow.pop %v898
    %v900 = vmul.f32 %v883, 1.442695
    %v901 = vpow.pop %v900
    %v902 = vmul.f32 %v884, 1.442695
    %v903 = vpow.pop %v902
    %v904 = vmul.f32 %v885, 1.442695
    %v905 = vpow.pop %v904
    %v906 = vmul.f32 %v886, 1.442695
    %v907 = vpow.pop %v906
    %v908 = vmul.f32 %v887, 1.442695
    %v909 = vpow.pop %v908
    %v910 = vmul.f32 %v888, 1.442695
    %v911 = vpow.pop %v910
    %v912 = vmul.f32 %v889, 1.442695
    %v913 = vpow.pop %v912
    %v914 = vmul.f32 %v890, 1.442695
    %v915 = vpow.pop %v914
    %v916 = vmul.f32 %v891, 1.442695
    %v917 = vpow.pop %v916
    %v918 = vmul.f32 %v892, 1.442695
    %v919 = vpow.pop %v918
    %v920 = vmul.f32 %v893, 1.442695
    %v921 = vpow.pop %v920
    %v922 = vmul.f32 %v894, 1.442695
    %v923 = vpow.pop %v922
    %v924 = vmul.f32 %v895, 1.442695
    %v925 = vpow.pop %v924
    %v926 = vmul.f32 %v896, 1.442695
    %v927 = vpow.pop %v926
    %v928 = vmul.f32 %v897, 1.442695
    %v929 = vpow.pop %v928
    %v930 = vsel %vm443, %v899, 0.0
    %931 = vadd.xlane.f32.xlu0 %v930
    %v932 = vpop.xlane.xlu0 %931
    %v933 = vsel %vm443, %v901, 0.0
    %934 = vadd.xlane.f32.xlu0 %v933
    %v935 = vpop.xlane.xlu0 %934
    %v936 = vsel %vm443, %v903, 0.0
    %937 = vadd.xlane.f32.xlu0 %v936
    %v938 = vpop.xlane.xlu0 %937
    %v939 = vsel %vm443, %v905, 0.0
    %940 = vadd.xlane.f32.xlu0 %v939
    %v941 = vpop.xlane.xlu0 %940
    %v942 = vsel %vm443, %v907, 0.0
    %943 = vadd.xlane.f32.xlu0 %v942
    %v944 = vpop.xlane.xlu0 %943
    %v945 = vsel %vm443, %v909, 0.0
    %946 = vadd.xlane.f32.xlu0 %v945
    %v947 = vpop.xlane.xlu0 %946
    %v948 = vsel %vm443, %v911, 0.0
    %949 = vadd.xlane.f32.xlu0 %v948
    %v950 = vpop.xlane.xlu0 %949
    %v951 = vsel %vm443, %v913, 0.0
    %952 = vadd.xlane.f32.xlu0 %v951
    %v953 = vpop.xlane.xlu0 %952
    %v954 = vsel %vm443, %v915, 0.0
    %955 = vadd.xlane.f32.xlu0 %v954
    %v956 = vpop.xlane.xlu0 %955
    %v957 = vsel %vm443, %v917, 0.0
    %958 = vadd.xlane.f32.xlu0 %v957
    %v959 = vpop.xlane.xlu0 %958
    %v960 = vsel %vm443, %v919, 0.0
    %961 = vadd.xlane.f32.xlu0 %v960
    %v962 = vpop.xlane.xlu0 %961
    %v963 = vsel %vm443, %v921, 0.0
    %964 = vadd.xlane.f32.xlu0 %v963
    %v965 = vpop.xlane.xlu0 %964
    %v966 = vsel %vm443, %v923, 0.0
    %967 = vadd.xlane.f32.xlu0 %v966
    %v968 = vpop.xlane.xlu0 %967
    %v969 = vsel %vm443, %v925, 0.0
    %970 = vadd.xlane.f32.xlu0 %v969
    %v971 = vpop.xlane.xlu0 %970
    %v972 = vsel %vm443, %v927, 0.0
    %973 = vadd.xlane.f32.xlu0 %v972
    %v974 = vpop.xlane.xlu0 %973
    %v975 = vsel %vm443, %v929, 0.0
    %976 = vadd.xlane.f32.xlu0 %v975
    %v977 = vpop.xlane.xlu0 %976
    %v978 = vrcp.pop %v932
    %v979 = vrcp.pop %v935
    %v980 = vrcp.pop %v938
    %v981 = vrcp.pop %v941
    %v982 = vrcp.pop %v944
    %v983 = vrcp.pop %v947
    %v984 = vrcp.pop %v950
    %v985 = vrcp.pop %v953
    %v986 = vrcp.pop %v956
    %v987 = vrcp.pop %v959
    %v988 = vrcp.pop %v962
    %v989 = vrcp.pop %v965
    %v990 = vrcp.pop %v968
    %v991 = vrcp.pop %v971
    %v992 = vrcp.pop %v974
    %v993 = vrcp.pop %v977
    %v994 = vmul.f32 %v899, %v978
    %v995 = vmul.f32 %v901, %v979
    %v996 = vmul.f32 %v903, %v980
    %v997 = vmul.f32 %v905, %v981
    %v998 = vmul.f32 %v907, %v982
    %v999 = vmul.f32 %v909, %v983
    %v1000 = vmul.f32 %v911, %v984
    %v1001 = vmul.f32 %v913, %v985
    %v1002 = vmul.f32 %v915, %v986
    %v1003 = vmul.f32 %v917, %v987
    %v1004 = vmul.f32 %v919, %v988
    %v1005 = vmul.f32 %v921, %v989
    %v1006 = vmul.f32 %v923, %v990
    %v1007 = vmul.f32 %v925, %v991
    %v1008 = vmul.f32 %v927, %v992
    %v1009 = vmul.f32 %v929, %v993
    %v1010 = vpack.c.bf16 %v995, %v994
    %v1011 = vpack.c.bf16 %v997, %v996
    %v1012 = vpack.c.bf16 %v999, %v998
    %v1013 = vpack.c.bf16 %v1001, %v1000
    %v1014 = vpack.c.bf16 %v1003, %v1002
    %v1015 = vpack.c.bf16 %v1005, %v1004
    %v1016 = vpack.c.bf16 %v1007, %v1006
    %v1017 = vpack.c.bf16 %v1009, %v1008
    %v1019 = vsel %vm443, %v1010, 0
    %1021 = vmatprep.subr.bf16.mxu0 0
    %1022 = vmatpush1.bf16.msra.mxu0 %v404
    %1023 = vmatprep.subr.bf16.mxu0 0
    %1024 = vmatpush1.bf16.msra.mxu0 0
    %1025 = vmatprep.subr.bf16.mxu0 0
    %1026 = vmatpush1.bf16.msra.mxu0 0
    %1027 = vmatprep.subr.bf16.mxu0 0
    %1028 = vmatpush1.bf16.msra.mxu0 0
    %1029 = vmatprep.subr.bf16.mxu0 0
    %1030 = vmatpush1.bf16.msra.mxu0 0
    %1031 = vmatprep.subr.bf16.mxu0 0
    %1032 = vmatpush1.bf16.msra.mxu0 0
    %1033 = vmatprep.subr.bf16.mxu0 0
    %1034 = vmatpush1.bf16.msra.mxu0 0
    %1035 = vmatprep.subr.bf16.mxu0 0
    %1036 = vmatpush1.bf16.msra.mxu0 0
    %1037 = vmatprep.subr.bf16.mxu0 0
    %1038 = vmatpush1.bf16.msra.mxu0 0
    %1039 = vmatprep.subr.bf16.mxu0 0
    %1040 = vmatpush1.bf16.msra.mxu0 0
    %1041 = vmatprep.subr.bf16.mxu0 0
    %1042 = vmatpush1.bf16.msra.mxu0 0
    %1043 = vmatprep.subr.bf16.mxu0 0
    %1044 = vmatpush1.bf16.msra.mxu0 0
    %1045 = vmatprep.subr.bf16.mxu0 0
    %1046 = vmatpush1.bf16.msra.mxu0 0
    %1047 = vmatprep.subr.bf16.mxu0 0
    %1048 = vmatpush1.bf16.msra.mxu0 0
    %1049 = vmatprep.subr.bf16.mxu0 0
    %1050 = vmatpush1.bf16.msra.mxu0 0
    %1051 = vmatprep.subr.bf16.mxu0 0
    %1052 = vmatpush1.bf16.msra.mxu0 0
    %1053 = vmatprep.mubr.bf16.mxu0 0
    %1054 = vmatmul.mubr.bf16.gmra.mrb[0].mxu0 %v1019
    %v1055 = vpop.f32.mrb[0].mxu0
    %v1056 = vadd.f32 0.0, %v1055
    %v1057 = vpop.f32.mrb[0].mxu0
    %v1058 = vpop.f32.mrb[0].mxu0
    %v1059 = vadd.f32 0.0, %v1058
    %v1060 = vpop.f32.mrb[0].mxu0
    %1061 = vdwg.mxu0
    %v1063 = vsel %vm443, %v1011, 0
    %1065 = vmatprep.subr.bf16.mxu0 0
    %1066 = vmatpush1.bf16.msra.mxu0 %v406
    %1067 = vmatprep.subr.bf16.mxu0 0
    %1068 = vmatpush1.bf16.msra.mxu0 0
    %1069 = vmatprep.subr.bf16.mxu0 0
    %1070 = vmatpush1.bf16.msra.mxu0 0
    %1071 = vmatprep.subr.bf16.mxu0 0
    %1072 = vmatpush1.bf16.msra.mxu0 0
    %1073 = vmatprep.subr.bf16.mxu0 0
    %1074 = vmatpush1.bf16.msra.mxu0 0
    %1075 = vmatprep.subr.bf16.mxu0 0
    %1076 = vmatpush1.bf16.msra.mxu0 0
    %1077 = vmatprep.subr.bf16.mxu0 0
    %1078 = vmatpush1.bf16.msra.mxu0 0
    %1079 = vmatprep.subr.bf16.mxu0 0
    %1080 = vmatpush1.bf16.msra.mxu0 0
    %1081 = vmatprep.subr.bf16.mxu0 0
    %1082 = vmatpush1.bf16.msra.mxu0 0
    %1083 = vmatprep.subr.bf16.mxu0 0
    %1084 = vmatpush1.bf16.msra.mxu0 0
    %1085 = vmatprep.subr.bf16.mxu0 0
    %1086 = vmatpush1.bf16.msra.mxu0 0
    %1087 = vmatprep.subr.bf16.mxu0 0
    %1088 = vmatpush1.bf16.msra.mxu0 0
    %1089 = vmatprep.subr.bf16.mxu0 0
    %1090 = vmatpush1.bf16.msra.mxu0 0
    %1091 = vmatprep.subr.bf16.mxu0 0
    %1092 = vmatpush1.bf16.msra.mxu0 0
    %1093 = vmatprep.subr.bf16.mxu0 0
    %1094 = vmatpush1.bf16.msra.mxu0 0
    %1095 = vmatprep.subr.bf16.mxu0 0
    %1096 = vmatpush1.bf16.msra.mxu0 0
    %1097 = vmatprep.mubr.bf16.mxu0 0
    %1098 = vmatmul.mubr.bf16.gmra.mrb[0].mxu0 %v1063
    %v1099 = vpop.f32.mrb[0].mxu0
    %v1100 = vadd.f32 0.0, %v1099
    %v1101 = vpop.f32.mrb[0].mxu0
    %v1102 = vpop.f32.mrb[0].mxu0
    %v1103 = vadd.f32 0.0, %v1102
    %v1104 = vpop.f32.mrb[0].mxu0
    %1105 = vdwg.mxu0
    %v1107 = vsel %vm443, %v1012, 0
    %1109 = vmatprep.subr.bf16.mxu0 0
    %1110 = vmatpush1.bf16.msra.mxu0 %v424
    %1111 = vmatprep.subr.bf16.mxu0 0
    %1112 = vmatpush1.bf16.msra.mxu0 0
    %1113 = vmatprep.subr.bf16.mxu0 0
    %1114 = vmatpush1.bf16.msra.mxu0 0
    %1115 = vmatprep.subr.bf16.mxu0 0
    %1116 = vmatpush1.bf16.msra.mxu0 0
    %1117 = vmatprep.subr.bf16.mxu0 0
    %1118 = vmatpush1.bf16.msra.mxu0 0
    %1119 = vmatprep.subr.bf16.mxu0 0
    %1120 = vmatpush1.bf16.msra.mxu0 0
    %1121 = vmatprep.subr.bf16.mxu0 0
    %1122 = vmatpush1.bf16.msra.mxu0 0
    %1123 = vmatprep.subr.bf16.mxu0 0
    %1124 = vmatpush1.bf16.msra.mxu0 0
    %1125 = vmatprep.subr.bf16.mxu0 0
    %1126 = vmatpush1.bf16.msra.mxu0 0
    %1127 = vmatprep.subr.bf16.mxu0 0
    %1128 = vmatpush1.bf16.msra.mxu0 0
    %1129 = vmatprep.subr.bf16.mxu0 0
    %1130 = vmatpush1.bf16.msra.mxu0 0
    %1131 = vmatprep.subr.bf16.mxu0 0
    %1132 = vmatpush1.bf16.msra.mxu0 0
    %1133 = vmatprep.subr.bf16.mxu0 0
    %1134 = vmatpush1.bf16.msra.mxu0 0
    %1135 = vmatprep.subr.bf16.mxu0 0
    %1136 = vmatpush1.bf16.msra.mxu0 0
    %1137 = vmatprep.subr.bf16.mxu0 0
    %1138 = vmatpush1.bf16.msra.mxu0 0
    %1139 = vmatprep.subr.bf16.mxu0 0
    %1140 = vmatpush1.bf16.msra.mxu0 0
    %1141 = vmatprep.mubr.bf16.mxu0 0
    %1142 = vmatmul.mubr.bf16.gmra.mrb[0].mxu0 %v1107
    %v1143 = vpop.f32.mrb[0].mxu0
    %v1144 = vadd.f32 0.0, %v1143
    %v1145 = vpop.f32.mrb[0].mxu0
    %v1146 = vpop.f32.mrb[0].mxu0
    %v1147 = vadd.f32 0.0, %v1146
    %v1148 = vpop.f32.mrb[0].mxu0
    %1149 = vdwg.mxu0
    %v1151 = vsel %vm443, %v1013, 0
    %1153 = vmatprep.subr.bf16.mxu0 0
    %1154 = vmatpush1.bf16.msra.mxu0 %v426
    %1155 = vmatprep.subr.bf16.mxu0 0
    %1156 = vmatpush1.bf16.msra.mxu0 0
    %1157 = vmatprep.subr.bf16.mxu0 0
    %1158 = vmatpush1.bf16.msra.mxu0 0
    %1159 = vmatprep.subr.bf16.mxu0 0
    %1160 = vmatpush1.bf16.msra.mxu0 0
    %1161 = vmatprep.subr.bf16.mxu0 0
    %1162 = vmatpush1.bf16.msra.mxu0 0
    %1163 = vmatprep.subr.bf16.mxu0 0
    %1164 = vmatpush1.bf16.msra.mxu0 0
    %1165 = vmatprep.subr.bf16.mxu0 0
    %1166 = vmatpush1.bf16.msra.mxu0 0
    %1167 = vmatprep.subr.bf16.mxu0 0
    %1168 = vmatpush1.bf16.msra.mxu0 0
    %1169 = vmatprep.subr.bf16.mxu0 0
    %1170 = vmatpush1.bf16.msra.mxu0 0
    %1171 = vmatprep.subr.bf16.mxu0 0
    %1172 = vmatpush1.bf16.msra.mxu0 0
    %1173 = vmatprep.subr.bf16.mxu0 0
    %1174 = vmatpush1.bf16.msra.mxu0 0
    %1175 = vmatprep.subr.bf16.mxu0 0
    %1176 = vmatpush1.bf16.msra.mxu0 0
    %1177 = vmatprep.subr.bf16.mxu0 0
    %1178 = vmatpush1.bf16.msra.mxu0 0
    %1179 = vmatprep.subr.bf16.mxu0 0
    %1180 = vmatpush1.bf16.msra.mxu0 0
    %1181 = vmatprep.subr.bf16.mxu0 0
    %1182 = vmatpush1.bf16.msra.mxu0 0
    %1183 = vmatprep.subr.bf16.mxu0 0
    %1184 = vmatpush1.bf16.msra.mxu0 0
    %1185 = vmatprep.mubr.bf16.mxu0 0
    %1186 = vmatmul.mubr.bf16.gmra.mrb[0].mxu0 %v1151
    %v1187 = vpop.f32.mrb[0].mxu0
    %v1188 = vadd.f32 0.0, %v1187
    %v1189 = vpop.f32.mrb[0].mxu0
    %v1190 = vpop.f32.mrb[0].mxu0
    %v1191 = vadd.f32 0.0, %v1190
    %v1192 = vpop.f32.mrb[0].mxu0
    %1193 = vdwg.mxu0
    %v1195 = vsel %vm443, %v1014, 0
    %1197 = vmatprep.subr.bf16.mxu0 0
    %1198 = vmatpush1.bf16.msra.mxu0 %v430
    %1199 = vmatprep.subr.bf16.mxu0 0
    %1200 = vmatpush1.bf16.msra.mxu0 0
    %1201 = vmatprep.subr.bf16.mxu0 0
    %1202 = vmatpush1.bf16.msra.mxu0 0
    %1203 = vmatprep.subr.bf16.mxu0 0
    %1204 = vmatpush1.bf16.msra.mxu0 0
    %1205 = vmatprep.subr.bf16.mxu0 0
    %1206 = vmatpush1.bf16.msra.mxu0 0
    %1207 = vmatprep.subr.bf16.mxu0 0
    %1208 = vmatpush1.bf16.msra.mxu0 0
    %1209 = vmatprep.subr.bf16.mxu0 0
    %1210 = vmatpush1.bf16.msra.mxu0 0
    %1211 = vmatprep.subr.bf16.mxu0 0
    %1212 = vmatpush1.bf16.msra.mxu0 0
    %1213 = vmatprep.subr.bf16.mxu0 0
    %1214 = vmatpush1.bf16.msra.mxu0 0
    %1215 = vmatprep.subr.bf16.mxu0 0
    %1216 = vmatpush1.bf16.msra.mxu0 0
    %1217 = vmatprep.subr.bf16.mxu0 0
    %1218 = vmatpush1.bf16.msra.mxu0 0
    %1219 = vmatprep.subr.bf16.mxu0 0
    %1220 = vmatpush1.bf16.msra.mxu0 0
    %1221 = vmatprep.subr.bf16.mxu0 0
    %1222 = vmatpush1.bf16.msra.mxu0 0
    %1223 = vmatprep.subr.bf16.mxu0 0
    %1224 = vmatpush1.bf16.msra.mxu0 0
    %1225 = vmatprep.subr.bf16.mxu0 0
    %1226 = vmatpush1.bf16.msra.mxu0 0
    %1227 = vmatprep.subr.bf16.mxu0 0
    %1228 = vmatpush1.bf16.msra.mxu0 0
    %1229 = vmatprep.mubr.bf16.mxu0 0
    %1230 = vmatmul.mubr.bf16.gmra.mrb[0].mxu0 %v1195
    %v1231 = vpop.f32.mrb[0].mxu0
    %v1232 = vadd.f32 0.0, %v1231
    %v1233 = vpop.f32.mrb[0].mxu0
    %v1234 = vpop.f32.mrb[0].mxu0
    %v1235 = vadd.f32 0.0, %v1234
    %v1236 = vpop.f32.mrb[0].mxu0
    %1237 = vdwg.mxu0
    %v1239 = vsel %vm443, %v1015, 0
    %1241 = vmatprep.subr.bf16.mxu0 0
    %1242 = vmatpush1.bf16.msra.mxu0 %v432
    %1243 = vmatprep.subr.bf16.mxu0 0
    %1244 = vmatpush1.bf16.msra.mxu0 0
    %1245 = vmatprep.subr.bf16.mxu0 0
    %1246 = vmatpush1.bf16.msra.mxu0 0
    %1247 = vmatprep.subr.bf16.mxu0 0
    %1248 = vmatpush1.bf16.msra.mxu0 0
    %1249 = vmatprep.subr.bf16.mxu0 0
    %1250 = vmatpush1.bf16.msra.mxu0 0
    %1251 = vmatprep.subr.bf16.mxu0 0
    %1252 = vmatpush1.bf16.msra.mxu0 0
    %1253 = vmatprep.subr.bf16.mxu0 0
    %1254 = vmatpush1.bf16.msra.mxu0 0
    %1255 = vmatprep.subr.bf16.mxu0 0
    %1256 = vmatpush1.bf16.msra.mxu0 0
    %1257 = vmatprep.subr.bf16.mxu0 0
    %1258 = vmatpush1.bf16.msra.mxu0 0
    %1259 = vmatprep.subr.bf16.mxu0 0
    %1260 = vmatpush1.bf16.msra.mxu0 0
    %1261 = vmatprep.subr.bf16.mxu0 0
    %1262 = vmatpush1.bf16.msra.mxu0 0
    %1263 = vmatprep.subr.bf16.mxu0 0
    %1264 = vmatpush1.bf16.msra.mxu0 0
    %1265 = vmatprep.subr.bf16.mxu0 0
    %1266 = vmatpush1.bf16.msra.mxu0 0
    %1267 = vmatprep.subr.bf16.mxu0 0
    %1268 = vmatpush1.bf16.msra.mxu0 0
    %1269 = vmatprep.subr.bf16.mxu0 0
    %1270 = vmatpush1.bf16.msra.mxu0 0
    %1271 = vmatprep.subr.bf16.mxu0 0
    %1272 = vmatpush1.bf16.msra.mxu0 0
    %1273 = vmatprep.mubr.bf16.mxu0 0
    %1274 = vmatmul.mubr.bf16.gmra.mrb[0].mxu0 %v1239
    %v1275 = vpop.f32.mrb[0].mxu0
    %v1276 = vadd.f32 0.0, %v1275
    %v1277 = vpop.f32.mrb[0].mxu0
    %v1278 = vpop.f32.mrb[0].mxu0
    %v1279 = vadd.f32 0.0, %v1278
    %v1280 = vpop.f32.mrb[0].mxu0
    %1281 = vdwg.mxu0
    %v1283 = vsel %vm443, %v1016, 0
    %1285 = vmatprep.subr.bf16.mxu0 0
    %1286 = vmatpush1.bf16.msra.mxu0 %v436
    %1287 = vmatprep.subr.bf16.mxu0 0
    %1288 = vmatpush1.bf16.msra.mxu0 0
    %1289 = vmatprep.subr.bf16.mxu0 0
    %1290 = vmatpush1.bf16.msra.mxu0 0
    %1291 = vmatprep.subr.bf16.mxu0 0
    %1292 = vmatpush1.bf16.msra.mxu0 0
    %1293 = vmatprep.subr.bf16.mxu0 0
    %1294 = vmatpush1.bf16.msra.mxu0 0
    %1295 = vmatprep.subr.bf16.mxu0 0
    %1296 = vmatpush1.bf16.msra.mxu0 0
    %1297 = vmatprep.subr.bf16.mxu0 0
    %1298 = vmatpush1.bf16.msra.mxu0 0
    %1299 = vmatprep.subr.bf16.mxu0 0
    %1300 = vmatpush1.bf16.msra.mxu0 0
    %1301 = vmatprep.subr.bf16.mxu0 0
    %1302 = vmatpush1.bf16.msra.mxu0 0
    %1303 = vmatprep.subr.bf16.mxu0 0
    %1304 = vmatpush1.bf16.msra.mxu0 0
    %1305 = vmatprep.subr.bf16.mxu0 0
    %1306 = vmatpush1.bf16.msra.mxu0 0
    %1307 = vmatprep.subr.bf16.mxu0 0
    %1308 = vmatpush1.bf16.msra.mxu0 0
    %1309 = vmatprep.subr.bf16.mxu0 0
    %1310 = vmatpush1.bf16.msra.mxu0 0
    %1311 = vmatprep.subr.bf16.mxu0 0
    %1312 = vmatpush1.bf16.msra.mxu0 0
    %1313 = vmatprep.subr.bf16.mxu0 0
    %1314 = vmatpush1.bf16.msra.mxu0 0
    %1315 = vmatprep.subr.bf16.mxu0 0
    %1316 = vmatpush1.bf16.msra.mxu0 0
    %1317 = vmatprep.mubr.bf16.mxu0 0
    %1318 = vmatmul.mubr.bf16.gmra.mrb[0].mxu0 %v1283
    %v1319 = vpop.f32.mrb[0].mxu0
    %v1320 = vadd.f32 0.0, %v1319
    %v1321 = vpop.f32.mrb[0].mxu0
    %v1322 = vpop.f32.mrb[0].mxu0
    %v1323 = vadd.f32 0.0, %v1322
    %v1324 = vpop.f32.mrb[0].mxu0
    %1325 = vdwg.mxu0
    %v1327 = vsel %vm443, %v1017, 0
    %1329 = vmatprep.subr.bf16.mxu0 0
    %1330 = vmatpush1.bf16.msra.mxu0 %v438
    %1331 = vmatprep.subr.bf16.mxu0 0
    %1332 = vmatpush1.bf16.msra.mxu0 0
    %1333 = vmatprep.subr.bf16.mxu0 0
    %1334 = vmatpush1.bf16.msra.mxu0 0
    %1335 = vmatprep.subr.bf16.mxu0 0
    %1336 = vmatpush1.bf16.msra.mxu0 0
    %1337 = vmatprep.subr.bf16.mxu0 0
    %1338 = vmatpush1.bf16.msra.mxu0 0
    %1339 = vmatprep.subr.bf16.mxu0 0
    %1340 = vmatpush1.bf16.msra.mxu0 0
    %1341 = vmatprep.subr.bf16.mxu0 0
    %1342 = vmatpush1.bf16.msra.mxu0 0
    %1343 = vmatprep.subr.bf16.mxu0 0
    %1344 = vmatpush1.bf16.msra.mxu0 0
    %1345 = vmatprep.subr.bf16.mxu0 0
    %1346 = vmatpush1.bf16.msra.mxu0 0
    %1347 = vmatprep.subr.bf16.mxu0 0
    %1348 = vmatpush1.bf16.msra.mxu0 0
    %1349 = vmatprep.subr.bf16.mxu0 0
    %1350 = vmatpush1.bf16.msra.mxu0 0
    %1351 = vmatprep.subr.bf16.mxu0 0
    %1352 = vmatpush1.bf16.msra.mxu0 0
    %1353 = vmatprep.subr.bf16.mxu0 0
    %1354 = vmatpush1.bf16.msra.mxu0 0
    %1355 = vmatprep.subr.bf16.mxu0 0
    %1356 = vmatpush1.bf16.msra.mxu0 0
    %1357 = vmatprep.subr.bf16.mxu0 0
    %1358 = vmatpush1.bf16.msra.mxu0 0
    %1359 = vmatprep.subr.bf16.mxu0 0
    %1360 = vmatpush1.bf16.msra.mxu0 0
    %1361 = vmatprep.mubr.bf16.mxu0 0
    %1362 = vmatmul.mubr.bf16.gmra.mrb[0].mxu0 %v1327
    %v1363 = vpop.f32.mrb[0].mxu0
    %v1364 = vadd.f32 0.0, %v1363
    %v1365 = vpop.f32.mrb[0].mxu0
    %v1366 = vpop.f32.mrb[0].mxu0
    %v1367 = vadd.f32 0.0, %v1366
    %v1368 = vpop.f32.mrb[0].mxu0
    %1369 = vdwg.mxu0
    %v1370 = vpack.c.bf16 %v1059, %v1056
    %v1371 = vpack.c.bf16 %v1103, %v1100
    %v1372 = vpack.c.bf16 %v1147, %v1144
    %v1373 = vpack.c.bf16 %v1191, %v1188
    %v1374 = vpack.c.bf16 %v1235, %v1232
    %v1375 = vpack.c.bf16 %v1279, %v1276
    %v1376 = vpack.c.bf16 %v1323, %v1320
    %v1377 = vpack.c.bf16 %v1367, %v1364
    %v1378 = vld [vmem:[%s5] sm:$0xf]
    %v1379 = vld [vmem:[%s5 + $0x4] sm:$0xf]
    %v1380 = vld [vmem:[%s5 + $0x8] sm:$0xf]
    %v1381 = vld [vmem:[%s5 + $0xc] sm:$0xf]
    %v1382 = vld [vmem:[%s5 + $0x10] sm:$0xf]
    %v1383 = vld [vmem:[%s5 + $0x14] sm:$0xf]
    %v1384 = vld [vmem:[%s5 + $0x18] sm:$0xf]
    %v1385 = vld [vmem:[%s5 + $0x1c] sm:$0xf]
    %v1388 = vunpack.c.l.b16 %v1378
    %v1389 = vunpack.c.l.b16 %v1379
    %v1390 = vpack.c.b16 %v1389, %v1388
    %v1393 = vsel %vm443, %v1370, 0
    %v1396 = vsel %vm443, %v1371, 0
    %1398 = vmatprep.subr.bf16.mxu0 0
    %1399 = vmatpush1.bf16.msra.mxu0 %v1390
    %1400 = vmatprep.subr.bf16.mxu0 0
    %1401 = vmatpush1.bf16.msra.mxu0 0
    %1402 = vmatprep.subr.bf16.mxu0 0
    %1403 = vmatpush1.bf16.msra.mxu0 0
    %1404 = vmatprep.subr.bf16.mxu0 0
    %1405 = vmatpush1.bf16.msra.mxu0 0
    %1406 = vmatprep.subr.bf16.mxu0 0
    %1407 = vmatpush1.bf16.msra.mxu0 0
    %1408 = vmatprep.subr.bf16.mxu0 0
    %1409 = vmatpush1.bf16.msra.mxu0 0
    %1410 = vmatprep.subr.bf16.mxu0 0
    %1411 = vmatpush1.bf16.msra.mxu0 0
    %1412 = vmatprep.subr.bf16.mxu0 0
    %1413 = vmatpush1.bf16.msra.mxu0 0
    %1414 = vmatprep.subr.bf16.mxu0 0
    %1415 = vmatpush1.bf16.msra.mxu0 0
    %1416 = vmatprep.subr.bf16.mxu0 0
    %1417 = vmatpush1.bf16.msra.mxu0 0
    %1418 = vmatprep.subr.bf16.mxu0 0
    %1419 = vmatpush1.bf16.msra.mxu0 0
    %1420 = vmatprep.subr.bf16.mxu0 0
    %1421 = vmatpush1.bf16.msra.mxu0 0
    %1422 = vmatprep.subr.bf16.mxu0 0
    %1423 = vmatpush1.bf16.msra.mxu0 0
    %1424 = vmatprep.subr.bf16.mxu0 0
    %1425 = vmatpush1.bf16.msra.mxu0 0
    %1426 = vmatprep.subr.bf16.mxu0 0
    %1427 = vmatpush1.bf16.msra.mxu0 0
    %1428 = vmatprep.subr.bf16.mxu0 0
    %1429 = vmatpush1.bf16.msra.mxu0 0
    %1430 = vmatprep.mubr.bf16.mxu0 0
    %1431 = vmatmul.mubr.bf16.gmra.mrb[0].mxu0 %v1393
    %v1432 = vpop.f32.mrb[0].mxu0
    %v1433 = vadd.f32 0.0, %v1432
    %v1434 = vpop.f32.mrb[0].mxu0
    %v1435 = vpop.f32.mrb[0].mxu0
    %v1436 = vadd.f32 0.0, %v1435
    %v1437 = vpop.f32.mrb[0].mxu0
    %1438 = vmatprep.mubr.bf16.mxu0 0
    %1439 = vmatmul.mubr.bf16.gmra.mrb[0].mxu0 %v1396
    %v1440 = vpop.f32.mrb[0].mxu0
    %v1441 = vadd.f32 0.0, %v1440
    %v1442 = vpop.f32.mrb[0].mxu0
    %v1443 = vpop.f32.mrb[0].mxu0
    %v1444 = vadd.f32 0.0, %v1443
    %v1445 = vpop.f32.mrb[0].mxu0
    %1446 = vdwg.mxu0
    %v1449 = vunpack.c.l.b16 %v1380
    %v1450 = vunpack.c.l.b16 %v1381
    %v1451 = vpack.c.b16 %v1450, %v1449
    %v1454 = vsel %vm443, %v1372, 0
    %v1457 = vsel %vm443, %v1373, 0
    %1459 = vmatprep.subr.bf16.mxu0 0
    %1460 = vmatpush1.bf16.msra.mxu0 %v1451
    %1461 = vmatprep.subr.bf16.mxu0 0
    %1462 = vmatpush1.bf16.msra.mxu0 0
    %1463 = vmatprep.subr.bf16.mxu0 0
    %1464 = vmatpush1.bf16.msra.mxu0 0
    %1465 = vmatprep.subr.bf16.mxu0 0
    %1466 = vmatpush1.bf16.msra.mxu0 0
    %1467 = vmatprep.subr.bf16.mxu0 0
    %1468 = vmatpush1.bf16.msra.mxu0 0
    %1469 = vmatprep.subr.bf16.mxu0 0
    %1470 = vmatpush1.bf16.msra.mxu0 0
    %1471 = vmatprep.subr.bf16.mxu0 0
    %1472 = vmatpush1.bf16.msra.mxu0 0
    %1473 = vmatprep.subr.bf16.mxu0 0
    %1474 = vmatpush1.bf16.msra.mxu0 0
    %1475 = vmatprep.subr.bf16.mxu0 0
    %1476 = vmatpush1.bf16.msra.mxu0 0
    %1477 = vmatprep.subr.bf16.mxu0 0
    %1478 = vmatpush1.bf16.msra.mxu0 0
    %1479 = vmatprep.subr.bf16.mxu0 0
    %1480 = vmatpush1.bf16.msra.mxu0 0
    %1481 = vmatprep.subr.bf16.mxu0 0
    %1482 = vmatpush1.bf16.msra.mxu0 0
    %1483 = vmatprep.subr.bf16.mxu0 0
    %1484 = vmatpush1.bf16.msra.mxu0 0
    %1485 = vmatprep.subr.bf16.mxu0 0
    %1486 = vmatpush1.bf16.msra.mxu0 0
    %1487 = vmatprep.subr.bf16.mxu0 0
    %1488 = vmatpush1.bf16.msra.mxu0 0
    %1489 = vmatprep.subr.bf16.mxu0 0
    %1490 = vmatpush1.bf16.msra.mxu0 0
    %1491 = vmatprep.mubr.bf16.mxu0 0
    %1492 = vmatmul.mubr.bf16.gmra.mrb[0].mxu0 %v1454
    %v1493 = vpop.f32.mrb[0].mxu0
    %v1494 = vadd.f32 0.0, %v1493
    %v1495 = vpop.f32.mrb[0].mxu0
    %v1496 = vpop.f32.mrb[0].mxu0
    %v1497 = vadd.f32 0.0, %v1496
    %v1498 = vpop.f32.mrb[0].mxu0
    %1499 = vmatprep.mubr.bf16.mxu0 0
    %1500 = vmatmul.mubr.bf16.gmra.mrb[0].mxu0 %v1457
    %v1501 = vpop.f32.mrb[0].mxu0
    %v1502 = vadd.f32 0.0, %v1501
    %v1503 = vpop.f32.mrb[0].mxu0
    %v1504 = vpop.f32.mrb[0].mxu0
    %v1505 = vadd.f32 0.0, %v1504
    %v1506 = vpop.f32.mrb[0].mxu0
    %1507 = vdwg.mxu0
    %v1510 = vunpack.c.l.b16 %v1382
    %v1511 = vunpack.c.l.b16 %v1383
    %v1512 = vpack.c.b16 %v1511, %v1510
    %v1515 = vsel %vm443, %v1374, 0
    %v1518 = vsel %vm443, %v1375, 0
    %1520 = vmatprep.subr.bf16.mxu0 0
    %1521 = vmatpush1.bf16.msra.mxu0 %v1512
    %1522 = vmatprep.subr.bf16.mxu0 0
    %1523 = vmatpush1.bf16.msra.mxu0 0
    %1524 = vmatprep.subr.bf16.mxu0 0
    %1525 = vmatpush1.bf16.msra.mxu0 0
    %1526 = vmatprep.subr.bf16.mxu0 0
    %1527 = vmatpush1.bf16.msra.mxu0 0
    %1528 = vmatprep.subr.bf16.mxu0 0
    %1529 = vmatpush1.bf16.msra.mxu0 0
    %1530 = vmatprep.subr.bf16.mxu0 0
    %1531 = vmatpush1.bf16.msra.mxu0 0
    %1532 = vmatprep.subr.bf16.mxu0 0
    %1533 = vmatpush1.bf16.msra.mxu0 0
    %1534 = vmatprep.subr.bf16.mxu0 0
    %1535 = vmatpush1.bf16.msra.mxu0 0
    %1536 = vmatprep.subr.bf16.mxu0 0
    %1537 = vmatpush1.bf16.msra.mxu0 0
    %1538 = vmatprep.subr.bf16.mxu0 0
    %1539 = vmatpush1.bf16.msra.mxu0 0
    %1540 = vmatprep.subr.bf16.mxu0 0
    %1541 = vmatpush1.bf16.msra.mxu0 0
    %1542 = vmatprep.subr.bf16.mxu0 0
    %1543 = vmatpush1.bf16.msra.mxu0 0
    %1544 = vmatprep.subr.bf16.mxu0 0
    %1545 = vmatpush1.bf16.msra.mxu0 0
    %1546 = vmatprep.subr.bf16.mxu0 0
    %1547 = vmatpush1.bf16.msra.mxu0 0
    %1548 = vmatprep.subr.bf16.mxu0 0
    %1549 = vmatpush1.bf16.msra.mxu0 0
    %1550 = vmatprep.subr.bf16.mxu0 0
    %1551 = vmatpush1.bf16.msra.mxu0 0
    %1552 = vmatprep.mubr.bf16.mxu0 0
    %1553 = vmatmul.mubr.bf16.gmra.mrb[0].mxu0 %v1515
    %v1554 = vpop.f32.mrb[0].mxu0
    %v1555 = vadd.f32 0.0, %v1554
    %v1556 = vpop.f32.mrb[0].mxu0
    %v1557 = vpop.f32.mrb[0].mxu0
    %v1558 = vadd.f32 0.0, %v1557
    %v1559 = vpop.f32.mrb[0].mxu0
    %1560 = vmatprep.mubr.bf16.mxu0 0
    %1561 = vmatmul.mubr.bf16.gmra.mrb[0].mxu0 %v1518
    %v1562 = vpop.f32.mrb[0].mxu0
    %v1563 = vadd.f32 0.0, %v1562
    %v1564 = vpop.f32.mrb[0].mxu0
    %v1565 = vpop.f32.mrb[0].mxu0
    %v1566 = vadd.f32 0.0, %v1565
    %v1567 = vpop.f32.mrb[0].mxu0
    %1568 = vdwg.mxu0
    %v1571 = vunpack.c.l.b16 %v1384
    %v1572 = vunpack.c.l.b16 %v1385
    %v1573 = vpack.c.b16 %v1572, %v1571
    %v1576 = vsel %vm443, %v1376, 0
    %v1579 = vsel %vm443, %v1377, 0
    %1581 = vmatprep.subr.bf16.mxu0 0
    %1582 = vmatpush1.bf16.msra.mxu0 %v1573
    %1583 = vmatprep.subr.bf16.mxu0 0
    %1584 = vmatpush1.bf16.msra.mxu0 0
    %1585 = vmatprep.subr.bf16.mxu0 0
    %1586 = vmatpush1.bf16.msra.mxu0 0
    %1587 = vmatprep.subr.bf16.mxu0 0
    %1588 = vmatpush1.bf16.msra.mxu0 0
    %1589 = vmatprep.subr.bf16.mxu0 0
    %1590 = vmatpush1.bf16.msra.mxu0 0
    %1591 = vmatprep.subr.bf16.mxu0 0
    %1592 = vmatpush1.bf16.msra.mxu0 0
    %1593 = vmatprep.subr.bf16.mxu0 0
    %1594 = vmatpush1.bf16.msra.mxu0 0
    %1595 = vmatprep.subr.bf16.mxu0 0
    %1596 = vmatpush1.bf16.msra.mxu0 0
    %1597 = vmatprep.subr.bf16.mxu0 0
    %1598 = vmatpush1.bf16.msra.mxu0 0
    %1599 = vmatprep.subr.bf16.mxu0 0
    %1600 = vmatpush1.bf16.msra.mxu0 0
    %1601 = vmatprep.subr.bf16.mxu0 0
    %1602 = vmatpush1.bf16.msra.mxu0 0
    %1603 = vmatprep.subr.bf16.mxu0 0
    %1604 = vmatpush1.bf16.msra.mxu0 0
    %1605 = vmatprep.subr.bf16.mxu0 0
    %1606 = vmatpush1.bf16.msra.mxu0 0
    %1607 = vmatprep.subr.bf16.mxu0 0
    %1608 = vmatpush1.bf16.msra.mxu0 0
    %1609 = vmatprep.subr.bf16.mxu0 0
    %1610 = vmatpush1.bf16.msra.mxu0 0
    %1611 = vmatprep.subr.bf16.mxu0 0
    %1612 = vmatpush1.bf16.msra.mxu0 0
    %1613 = vmatprep.mubr.bf16.mxu0 0
    %1614 = vmatmul.mubr.bf16.gmra.mrb[0].mxu0 %v1576
    %v1615 = vpop.f32.mrb[0].mxu0
    %v1616 = vadd.f32 0.0, %v1615
    %v1617 = vpop.f32.mrb[0].mxu0
    %v1618 = vpop.f32.mrb[0].mxu0
    %v1619 = vadd.f32 0.0, %v1618
    %v1620 = vpop.f32.mrb[0].mxu0
    %1621 = vmatprep.mubr.bf16.mxu0 0
    %1622 = vmatmul.mubr.bf16.gmra.mrb[0].mxu0 %v1579
    %v1623 = vpop.f32.mrb[0].mxu0
    %v1624 = vadd.f32 0.0, %v1623
    %v1625 = vpop.f32.mrb[0].mxu0
    %v1626 = vpop.f32.mrb[0].mxu0
    %v1627 = vadd.f32 0.0, %v1626
    %v1628 = vpop.f32.mrb[0].mxu0
    %1629 = vdwg.mxu0
    %v1630 = vsel %vm201, %v1433, 0.0
    %v1631 = vsel %vm201, %v1494, 0.0
    %v1632 = vadd.f32 %v1630, %v1631
    %v1633 = vsel %vm201, %v1555, 0.0
    %v1634 = vadd.f32 %v1632, %v1633
    %v1635 = vsel %vm201, %v1616, 0.0
    %v1636 = vadd.f32 %v1634, %v1635
    %v1637 = vsel %vm201, %v1436, 0.0
    %v1638 = vsel %vm201, %v1497, 0.0
    %v1639 = vadd.f32 %v1637, %v1638
    %v1640 = vsel %vm201, %v1558, 0.0
    %v1641 = vadd.f32 %v1639, %v1640
    %v1642 = vsel %vm201, %v1619, 0.0
    %v1643 = vadd.f32 %v1641, %v1642
    %v1644 = vsel %vm201, %v1441, 0.0
    %v1645 = vsel %vm201, %v1502, 0.0
    %v1646 = vadd.f32 %v1644, %v1645
    %v1647 = vsel %vm201, %v1563, 0.0
    %v1648 = vadd.f32 %v1646, %v1647
    %v1649 = vsel %vm201, %v1624, 0.0
    %v1650 = vadd.f32 %v1648, %v1649
    %v1651 = vsel %vm201, %v1444, 0.0
    %v1652 = vsel %vm201, %v1505, 0.0
    %v1653 = vadd.f32 %v1651, %v1652
    %v1654 = vsel %vm201, %v1566, 0.0
    %v1655 = vadd.f32 %v1653, %v1654
    %v1656 = vsel %vm201, %v1627, 0.0
    %v1657 = vadd.f32 %v1655, %v1656
    %v1658 = vadd.f32 %v196, %v1636
    %v1659 = vadd.f32 %v197, %v1643
    %v1660 = vadd.f32 %v198, %v1650
    %v1661 = vadd.f32 %v199, %v1657
    %v1662 = vlaneseq
    %v1663 = vshrl.u32 %v1662, 7
    %v1664 = vsub.s32 4, %v1663
    %v1665 = vrot.slane %v200, %v1664
    %v1666 = vadd.f32 %v1658, %v1665
    %v1667 = vadd.f32 %v1659, %v1665
    %v1668 = vadd.f32 %v1660, %v1665
    %v1669 = vadd.f32 %v1661, %v1665
    %v1670 = vsel %vm201, %v1666, 0.0
    %1671 = vadd.xlane.f32.xlu0 %v1670
    %v1672 = vpop.xlane.xlu0 %1671
    %v1673 = vsel %vm201, %v1667, 0.0
    %1674 = vadd.xlane.f32.xlu0 %v1673
    %v1675 = vpop.xlane.xlu0 %1674
    %v1676 = vsel %vm201, %v1668, 0.0
    %1677 = vadd.xlane.f32.xlu0 %v1676
    %v1678 = vpop.xlane.xlu0 %1677
    %v1679 = vsel %vm201, %v1669, 0.0
    %1680 = vadd.xlane.f32.xlu0 %v1679
    %v1681 = vpop.xlane.xlu0 %1680
    %v1682 = vmul.f32 %v1666, %v1666
    %v1683 = vmul.f32 %v1667, %v1667
    %v1684 = vmul.f32 %v1668, %v1668
    %v1685 = vmul.f32 %v1669, %v1669
    %v1686 = vsel %vm201, %v1682, 0.0
    %1687 = vadd.xlane.f32.xlu0 %v1686
    %v1688 = vpop.xlane.xlu0 %1687
    %v1689 = vsel %vm201, %v1683, 0.0
    %1690 = vadd.xlane.f32.xlu0 %v1689
    %v1691 = vpop.xlane.xlu0 %1690
    %v1692 = vsel %vm201, %v1684, 0.0
    %1693 = vadd.xlane.f32.xlu0 %v1692
    %v1694 = vpop.xlane.xlu0 %1693
    %v1695 = vsel %vm201, %v1685, 0.0
    %1696 = vadd.xlane.f32.xlu0 %v1695
    %v1697 = vpop.xlane.xlu0 %1696
    %v1698 = vmul.f32 %v1672, 0.015625
    %v1699 = vmul.f32 %v1675, 0.015625
    %v1700 = vmul.f32 %v1678, 0.015625
    %v1701 = vmul.f32 %v1681, 0.015625
    %v1702 = vmul.f32 %v1688, 0.015625
    %v1703 = vmul.f32 %v1691, 0.015625
    %v1704 = vmul.f32 %v1694, 0.015625
    %v1705 = vmul.f32 %v1697, 0.015625
    %v1706 = vmul.f32 %v1698, %v1698
    %v1707 = vmul.f32 %v1699, %v1699
    %v1708 = vmul.f32 %v1700, %v1700
    %v1709 = vmul.f32 %v1701, %v1701
    %v1710 = vsub.f32 %v1702, %v1706
    %v1711 = vsub.f32 %v1703, %v1707
    %v1712 = vsub.f32 %v1704, %v1708
    %v1713 = vsub.f32 %v1705, %v1709
    %v1714 = vmax.f32 %v1710, 0.0
    %v1715 = vmax.f32 %v1711, 0.0
    %v1716 = vmax.f32 %v1712, 0.0
    %v1717 = vmax.f32 %v1713, 0.0
    %v1718 = vsub.f32 %v1666, %v1698
    %v1719 = vsub.f32 %v1667, %v1699
    %v1720 = vsub.f32 %v1668, %v1700
    %v1721 = vsub.f32 %v1669, %v1701
    %v1722 = vadd.f32 %v1714, 1e-06
    %v1723 = vadd.f32 %v1715, 1e-06
    %v1724 = vadd.f32 %v1716, 1e-06
    %v1725 = vadd.f32 %v1717, 1e-06
    %v1726 = vrsqrt.pop %v1722
    %v1727 = vrsqrt.pop %v1723
    %v1728 = vrsqrt.pop %v1724
    %v1729 = vrsqrt.pop %v1725
    %v1730 = vmul.f32 %v1718, %v1726
    %v1731 = vmul.f32 %v1719, %v1727
    %v1732 = vmul.f32 %v1720, %v1728
    %v1733 = vmul.f32 %v1721, %v1729
    %v1734 = vlaneseq
    %v1735 = vshrl.u32 %v1734, 7
    %v1736 = vsub.s32 2, %v1735
    %v1737 = vrot.slane %v200, %v1736
    %v1738 = vmul.f32 %v1730, %v1737
    %v1739 = vmul.f32 %v1731, %v1737
    %v1740 = vmul.f32 %v1732, %v1737
    %v1741 = vmul.f32 %v1733, %v1737
    %v1742 = vlaneseq
    %v1743 = vshrl.u32 %v1742, 7
    %v1744 = vsub.s32 3, %v1743
    %v1745 = vrot.slane %v200, %v1744
    %v1746 = vadd.f32 %v1738, %v1745
    %v1747 = vadd.f32 %v1739, %v1745
    %v1748 = vadd.f32 %v1740, %v1745
    %v1749 = vadd.f32 %v1741, %v1745
    %v1750 = vpack.c.bf16 %v1747, %v1746
    %v1751 = vpack.c.bf16 %v1749, %v1748
    %v1752 = vld [vmem:[%s6] sm:$0xf]
    %v1753 = vld [vmem:[%s6 + $0x4] sm:$0xf]
    %v1754 = vld [vmem:[%s6 + $0x8] sm:$0xf]
    %v1755 = vld [vmem:[%s6 + $0xc] sm:$0xf]
    %v1756 = vld [vmem:[%s6 + $0x10] sm:$0xf]
    %v1757 = vld [vmem:[%s6 + $0x14] sm:$0xf]
    %v1758 = vld [vmem:[%s6 + $0x18] sm:$0xf]
    %v1759 = vld [vmem:[%s6 + $0x1c] sm:$0xf]
    %v1760 = vlaneseq
    %v1761 = vshrl.u32 %v1760, 7
    %v1762 = vsub.s32 6, %v1761
    %v1763 = vrot.slane %v200, %v1762
    %v1772 = vunpack.c.l.b16 %v1752
    %v1773 = vunpack.c.l.b16 %v1753
    %v1774 = vunpack.c.l.b16 %v1754
    %v1775 = vunpack.c.l.b16 %v1755
    %v1776 = vunpack.c.l.b16 %v1756
    %v1777 = vunpack.c.l.b16 %v1757
    %v1778 = vunpack.c.l.b16 %v1758
    %v1779 = vunpack.c.l.b16 %v1759
    %v1780 = vpack.c.b16 %v1773, %v1772
    %v1781 = vpack.c.b16 %v1775, %v1774
    %v1782 = vpack.c.b16 %v1777, %v1776
    %v1783 = vpack.c.b16 %v1779, %v1778
    %v1789 = vsel %vm201, %v1750, 0
    %v1792 = vsel %vm201, %v1751, 0
    %1794 = vmatprep.subr.bf16.mxu0 0
    %1795 = vmatpush1.bf16.msra.mxu0 %v1780
    %1796 = vmatprep.subr.bf16.mxu0 0
    %1797 = vmatpush1.bf16.msra.mxu0 %v1781
    %1798 = vmatprep.subr.bf16.mxu0 0
    %1799 = vmatpush1.bf16.msra.mxu0 %v1782
    %1800 = vmatprep.subr.bf16.mxu0 0
    %1801 = vmatpush1.bf16.msra.mxu0 %v1783
    %1802 = vmatprep.subr.bf16.mxu0 0
    %1803 = vmatpush1.bf16.msra.mxu0 0
    %1804 = vmatprep.subr.bf16.mxu0 0
    %1805 = vmatpush1.bf16.msra.mxu0 0
    %1806 = vmatprep.subr.bf16.mxu0 0
    %1807 = vmatpush1.bf16.msra.mxu0 0
    %1808 = vmatprep.subr.bf16.mxu0 0
    %1809 = vmatpush1.bf16.msra.mxu0 0
    %1810 = vmatprep.subr.bf16.mxu0 0
    %1811 = vmatpush1.bf16.msra.mxu0 0
    %1812 = vmatprep.subr.bf16.mxu0 0
    %1813 = vmatpush1.bf16.msra.mxu0 0
    %1814 = vmatprep.subr.bf16.mxu0 0
    %1815 = vmatpush1.bf16.msra.mxu0 0
    %1816 = vmatprep.subr.bf16.mxu0 0
    %1817 = vmatpush1.bf16.msra.mxu0 0
    %1818 = vmatprep.subr.bf16.mxu0 0
    %1819 = vmatpush1.bf16.msra.mxu0 0
    %1820 = vmatprep.subr.bf16.mxu0 0
    %1821 = vmatpush1.bf16.msra.mxu0 0
    %1822 = vmatprep.subr.bf16.mxu0 0
    %1823 = vmatpush1.bf16.msra.mxu0 0
    %1824 = vmatprep.subr.bf16.mxu0 0
    %1825 = vmatpush1.bf16.msra.mxu0 0
    %1826 = vmatprep.mubr.bf16.mxu0 0
    %1827 = vmatmul.mubr.bf16.gmra.mrb[0].mxu0 %v1789
    %v1828 = vpop.f32.mrb[0].mxu0
    %v1829 = vadd.f32 %v1763, %v1828
    %v1830 = vpop.f32.mrb[0].mxu0
    %v1831 = vpop.f32.mrb[0].mxu0
    %v1832 = vadd.f32 %v1763, %v1831
    %v1833 = vpop.f32.mrb[0].mxu0
    %1834 = vmatprep.mubr.bf16.mxu0 0
    %1835 = vmatmul.mubr.bf16.gmra.mrb[0].mxu0 %v1792
    %v1836 = vpop.f32.mrb[0].mxu0
    %v1837 = vadd.f32 %v1763, %v1836
    %v1838 = vpop.f32.mrb[0].mxu0
    %v1839 = vpop.f32.mrb[0].mxu0
    %v1840 = vadd.f32 %v1763, %v1839
    %v1841 = vpop.f32.mrb[0].mxu0
    %1842 = vdwg.mxu0
    %v1843 = vmul.f32 %v1829, %v1829
    %v1844 = vmul.f32 %v1832, %v1832
    %v1845 = vmul.f32 %v1837, %v1837
    %v1846 = vmul.f32 %v1840, %v1840
    %v1847 = vmul.f32 %v1829, %v1843
    %v1848 = vmul.f32 %v1832, %v1844
    %v1849 = vmul.f32 %v1837, %v1845
    %v1850 = vmul.f32 %v1840, %v1846
    %v1851 = vmul.f32 %v1847, 0.044715
    %v1852 = vmul.f32 %v1848, 0.044715
    %v1853 = vmul.f32 %v1849, 0.044715
    %v1854 = vmul.f32 %v1850, 0.044715
    %v1855 = vadd.f32 %v1829, %v1851
    %v1856 = vadd.f32 %v1832, %v1852
    %v1857 = vadd.f32 %v1837, %v1853
    %v1858 = vadd.f32 %v1840, %v1854
    %v1859 = vmul.f32 %v1855, 0.7978846
    %v1860 = vmul.f32 %v1856, 0.7978846
    %v1861 = vmul.f32 %v1857, 0.7978846
    %v1862 = vmul.f32 %v1858, 0.7978846
    %v1863 = vtanh.pop %v1859
    %v1864 = vtanh.pop %v1860
    %v1865 = vtanh.pop %v1861
    %v1866 = vtanh.pop %v1862
    %v1867 = vadd.f32 %v1863, 1.0
    %v1868 = vadd.f32 %v1864, 1.0
    %v1869 = vadd.f32 %v1865, 1.0
    %v1870 = vadd.f32 %v1866, 1.0
    %v1871 = vmul.f32 %v1867, 0.5
    %v1872 = vmul.f32 %v1868, 0.5
    %v1873 = vmul.f32 %v1869, 0.5
    %v1874 = vmul.f32 %v1870, 0.5
    %v1875 = vmul.f32 %v1829, %v1871
    %v1876 = vmul.f32 %v1832, %v1872
    %v1877 = vmul.f32 %v1837, %v1873
    %v1878 = vmul.f32 %v1840, %v1874
    %v1879 = vpack.c.bf16 %v1876, %v1875
    %v1880 = vpack.c.bf16 %v1878, %v1877
    %v1881 = vld [vmem:[%s7] sm:$0xf]
    %v1882 = vld [vmem:[%s7 + $0x4] sm:$0xf]
    %v1883 = vld [vmem:[%s7 + $0x8] sm:$0xf]
    %v1884 = vld [vmem:[%s7 + $0xc] sm:$0xf]
    %v1885 = vld [vmem:[%s7 + $0x10] sm:$0xf]
    %v1886 = vld [vmem:[%s7 + $0x14] sm:$0xf]
    %v1887 = vld [vmem:[%s7 + $0x18] sm:$0xf]
    %v1888 = vld [vmem:[%s7 + $0x1c] sm:$0xf]
    %v1889 = vld [vmem:[%s7 + $0x20] sm:$0xf]
    %v1890 = vld [vmem:[%s7 + $0x24] sm:$0xf]
    %v1891 = vld [vmem:[%s7 + $0x28] sm:$0xf]
    %v1892 = vld [vmem:[%s7 + $0x2c] sm:$0xf]
    %v1893 = vld [vmem:[%s7 + $0x30] sm:$0xf]
    %v1894 = vld [vmem:[%s7 + $0x34] sm:$0xf]
    %v1895 = vld [vmem:[%s7 + $0x38] sm:$0xf]
    %v1896 = vld [vmem:[%s7 + $0x3c] sm:$0xf]
    %v1897 = vlaneseq
    %v1898 = vshrl.u32 %v1897, 7
    %v1899 = vsub.s32 5, %v1898
    %v1900 = vrot.slane %v200, %v1899
    %v1917 = vunpack.c.l.b16 %v1881
    %v1918 = vunpack.c.l.b16 %v1882
    %v1919 = vunpack.c.l.b16 %v1883
    %v1920 = vunpack.c.l.b16 %v1884
    %v1921 = vunpack.c.l.b16 %v1885
    %v1922 = vunpack.c.l.b16 %v1886
    %v1923 = vunpack.c.l.b16 %v1887
    %v1924 = vunpack.c.l.b16 %v1888
    %v1925 = vunpack.c.l.b16 %v1889
    %v1926 = vunpack.c.l.b16 %v1890
    %v1927 = vunpack.c.l.b16 %v1891
    %v1928 = vunpack.c.l.b16 %v1892
    %v1929 = vunpack.c.l.b16 %v1893
    %v1930 = vunpack.c.l.b16 %v1894
    %v1931 = vunpack.c.l.b16 %v1895
    %v1932 = vunpack.c.l.b16 %v1896
    %v1933 = vpack.c.b16 %v1918, %v1917
    %v1934 = vpack.c.b16 %v1920, %v1919
    %v1935 = vpack.c.b16 %v1922, %v1921
    %v1936 = vpack.c.b16 %v1924, %v1923
    %v1937 = vpack.c.b16 %v1926, %v1925
    %v1938 = vpack.c.b16 %v1928, %v1927
    %v1939 = vpack.c.b16 %v1930, %v1929
    %v1940 = vpack.c.b16 %v1932, %v1931
    %1949 = vmatprep.subr.bf16.mxu0 0
    %1950 = vmatpush1.bf16.msra.mxu0 %v1933
    %1951 = vmatprep.subr.bf16.mxu0 0
    %1952 = vmatpush1.bf16.msra.mxu0 %v1934
    %1953 = vmatprep.subr.bf16.mxu0 0
    %1954 = vmatpush1.bf16.msra.mxu0 %v1935
    %1955 = vmatprep.subr.bf16.mxu0 0
    %1956 = vmatpush1.bf16.msra.mxu0 %v1936
    %1957 = vmatprep.subr.bf16.mxu0 0
    %1958 = vmatpush1.bf16.msra.mxu0 %v1937
    %1959 = vmatprep.subr.bf16.mxu0 0
    %1960 = vmatpush1.bf16.msra.mxu0 %v1938
    %1961 = vmatprep.subr.bf16.mxu0 0
    %1962 = vmatpush1.bf16.msra.mxu0 %v1939
    %1963 = vmatprep.subr.bf16.mxu0 0
    %1964 = vmatpush1.bf16.msra.mxu0 %v1940
    %1965 = vmatprep.subr.bf16.mxu0 0
    %1966 = vmatpush1.bf16.msra.mxu0 0
    %1967 = vmatprep.subr.bf16.mxu0 0
    %1968 = vmatpush1.bf16.msra.mxu0 0
    %1969 = vmatprep.subr.bf16.mxu0 0
    %1970 = vmatpush1.bf16.msra.mxu0 0
    %1971 = vmatprep.subr.bf16.mxu0 0
    %1972 = vmatpush1.bf16.msra.mxu0 0
    %1973 = vmatprep.subr.bf16.mxu0 0
    %1974 = vmatpush1.bf16.msra.mxu0 0
    %1975 = vmatprep.subr.bf16.mxu0 0
    %1976 = vmatpush1.bf16.msra.mxu0 0
    %1977 = vmatprep.subr.bf16.mxu0 0
    %1978 = vmatpush1.bf16.msra.mxu0 0
    %1979 = vmatprep.subr.bf16.mxu0 0
    %1980 = vmatpush1.bf16.msra.mxu0 0
    %1981 = vmatprep.mubr.bf16.mxu0 0
    %1982 = vmatmul.mubr.bf16.gmra.mrb[0].mxu0 %v1879
    %v1983 = vpop.f32.mrb[0].mxu0
    %v1984 = vadd.f32 %v1900, %v1983
    %v1985 = vpop.f32.mrb[0].mxu0
    %v1986 = vpop.f32.mrb[0].mxu0
    %v1987 = vadd.f32 %v1900, %v1986
    %v1988 = vpop.f32.mrb[0].mxu0
    %1989 = vmatprep.mubr.bf16.mxu0 0
    %1990 = vmatmul.mubr.bf16.gmra.mrb[0].mxu0 %v1880
    %v1991 = vpop.f32.mrb[0].mxu0
    %v1992 = vadd.f32 %v1900, %v1991
    %v1993 = vpop.f32.mrb[0].mxu0
    %v1994 = vpop.f32.mrb[0].mxu0
    %v1995 = vadd.f32 %v1900, %v1994
    %v1996 = vpop.f32.mrb[0].mxu0
    %1997 = vdwg.mxu0
    %v1998 = vadd.f32 %v1666, %v1984
    %v1999 = vadd.f32 %v1667, %v1987
    %v2000 = vadd.f32 %v1668, %v1992
    %v2001 = vadd.f32 %v1669, %v1995
    %s2002 = scalar_lea.vmem %s8, 8
    %v2003 = vld [vmem:[%s2002] sm:$0x7f]
    %v2004 = vsel %vm201, %v1998, 0.0
    %2005 = vadd.xlane.f32.xlu0 %v2004
    %v2006 = vpop.xlane.xlu0 %2005
    %v2007 = vsel %vm201, %v1999, 0.0
    %2008 = vadd.xlane.f32.xlu0 %v2007
    %v2009 = vpop.xlane.xlu0 %2008
    %v2010 = vsel %vm201, %v2000, 0.0
    %2011 = vadd.xlane.f32.xlu0 %v2010
    %v2012 = vpop.xlane.xlu0 %2011
    %v2013 = vsel %vm201, %v2001, 0.0
    %2014 = vadd.xlane.f32.xlu0 %v2013
    %v2015 = vpop.xlane.xlu0 %2014
    %v2016 = vmul.f32 %v1998, %v1998
    %v2017 = vmul.f32 %v1999, %v1999
    %v2018 = vmul.f32 %v2000, %v2000
    %v2019 = vmul.f32 %v2001, %v2001
    %v2020 = vsel %vm201, %v2016, 0.0
    %2021 = vadd.xlane.f32.xlu0 %v2020
    %v2022 = vpop.xlane.xlu0 %2021
    %v2023 = vsel %vm201, %v2017, 0.0
    %2024 = vadd.xlane.f32.xlu0 %v2023
    %v2025 = vpop.xlane.xlu0 %2024
    %v2026 = vsel %vm201, %v2018, 0.0
    %2027 = vadd.xlane.f32.xlu0 %v2026
    %v2028 = vpop.xlane.xlu0 %2027
    %v2029 = vsel %vm201, %v2019, 0.0
    %2030 = vadd.xlane.f32.xlu0 %v2029
    %v2031 = vpop.xlane.xlu0 %2030
    %v2032 = vmul.f32 %v2006, 0.015625
    %v2033 = vmul.f32 %v2009, 0.015625
    %v2034 = vmul.f32 %v2012, 0.015625
    %v2035 = vmul.f32 %v2015, 0.015625
    %v2036 = vmul.f32 %v2022, 0.015625
    %v2037 = vmul.f32 %v2025, 0.015625
    %v2038 = vmul.f32 %v2028, 0.015625
    %v2039 = vmul.f32 %v2031, 0.015625
    %v2040 = vmul.f32 %v2032, %v2032
    %v2041 = vmul.f32 %v2033, %v2033
    %v2042 = vmul.f32 %v2034, %v2034
    %v2043 = vmul.f32 %v2035, %v2035
    %v2044 = vsub.f32 %v2036, %v2040
    %v2045 = vsub.f32 %v2037, %v2041
    %v2046 = vsub.f32 %v2038, %v2042
    %v2047 = vsub.f32 %v2039, %v2043
    %v2048 = vmax.f32 %v2044, 0.0
    %v2049 = vmax.f32 %v2045, 0.0
    %v2050 = vmax.f32 %v2046, 0.0
    %v2051 = vmax.f32 %v2047, 0.0
    %v2052 = vsub.f32 %v1998, %v2032
    %v2053 = vsub.f32 %v1999, %v2033
    %v2054 = vsub.f32 %v2000, %v2034
    %v2055 = vsub.f32 %v2001, %v2035
    %v2056 = vadd.f32 %v2048, 1e-06
    %v2057 = vadd.f32 %v2049, 1e-06
    %v2058 = vadd.f32 %v2050, 1e-06
    %v2059 = vadd.f32 %v2051, 1e-06
    %v2060 = vrsqrt.pop %v2056
    %v2061 = vrsqrt.pop %v2057
    %v2062 = vrsqrt.pop %v2058
    %v2063 = vrsqrt.pop %v2059
    %v2064 = vmul.f32 %v2052, %v2060
    %v2065 = vmul.f32 %v2053, %v2061
    %v2066 = vmul.f32 %v2054, %v2062
    %v2067 = vmul.f32 %v2055, %v2063
    %v2068 = vlaneseq
    %v2069 = vshrl.u32 %v2068, 7
    %v2070 = vsub.s32 0, %v2069
    %v2071 = vrot.slane %v2003, %v2070
    %v2072 = vmul.f32 %v2064, %v2071
    %v2073 = vmul.f32 %v2065, %v2071
    %v2074 = vmul.f32 %v2066, %v2071
    %v2075 = vmul.f32 %v2067, %v2071
    %v2076 = vlaneseq
    %v2077 = vshrl.u32 %v2076, 7
    %v2078 = vsub.s32 1, %v2077
    %v2079 = vrot.slane %v2003, %v2078
    %v2080 = vadd.f32 %v2072, %v2079
    %v2081 = vadd.f32 %v2073, %v2079
    %v2082 = vadd.f32 %v2074, %v2079
    %v2083 = vadd.f32 %v2075, %v2079
    %v2084 = vpack.c.bf16 %v2081, %v2080
    %v2085 = vpack.c.bf16 %v2083, %v2082
    %s2086 = scalar_lea.vmem %s3, 64
    %v2087 = vld [vmem:[%s2086] sm:$0xff]
    %v2088 = vld [vmem:[%s2086 + $0x8] sm:$0xff]
    %v2089 = vld [vmem:[%s2086 + $0x10] sm:$0xff]
    %v2090 = vld [vmem:[%s2086 + $0x18] sm:$0xff]
    %v2091 = vld [vmem:[%s2086 + $0x20] sm:$0xff]
    %v2092 = vld [vmem:[%s2086 + $0x28] sm:$0xff]
    %v2093 = vld [vmem:[%s2086 + $0x30] sm:$0xff]
    %v2094 = vld [vmem:[%s2086 + $0x38] sm:$0xff]
    %s2095 = scalar_lea.vmem %s4, 2
    %v2096 = vld [vmem:[%s2095] sm:$0x3]
    %v2098 = vlaneseq
    %v2099 = vshrl.u32 %v2098, 7
    %v2100 = vsub.s32 0, %v2099
    %v2101 = vrot.slane %v2096, %v2100
    %v2102 = vlaneseq
    %v2103 = vshrl.u32 %v2102, 7
    %v2104 = vsub.s32 1, %v2103
    %v2105 = vrot.slane %v2096, %v2104
    %v2116 = vunpack.c.l.b16 %v2087
    %v2117 = vunpack.c.h.b16 %v2087
    %v2118 = vunpack.c.l.b16 %v2088
    %v2119 = vunpack.c.h.b16 %v2088
    %v2120 = vunpack.c.l.b16 %v2089
    %v2121 = vunpack.c.h.b16 %v2089
    %v2122 = vunpack.c.l.b16 %v2090
    %v2123 = vunpack.c.h.b16 %v2090
    %v2124 = vunpack.c.l.b16 %v2091
    %v2125 = vunpack.c.h.b16 %v2091
    %v2126 = vunpack.c.l.b16 %v2092
    %v2127 = vunpack.c.h.b16 %v2092
    %v2128 = vunpack.c.l.b16 %v2093
    %v2129 = vunpack.c.h.b16 %v2093
    %v2130 = vunpack.c.l.b16 %v2094
    %v2131 = vunpack.c.h.b16 %v2094
    %v2132 = vpack.c.b16 %v2118, %v2116
    %v2133 = vpack.c.b16 %v2119, %v2117
    %v2134 = vpack.c.b16 %v2122, %v2120
    %v2135 = vpack.c.b16 %v2123, %v2121
    %v2136 = vpack.c.b16 %v2126, %v2124
    %v2137 = vpack.c.b16 %v2127, %v2125
    %v2138 = vpack.c.b16 %v2130, %v2128
    %v2139 = vpack.c.b16 %v2131, %v2129
    %v2149 = vsel %vm201, %v2084, 0
    %v2152 = vsel %vm201, %v2085, 0
    %2154 = vmatprep.subr.bf16.mxu0 %v2133
    %2155 = vmatpush1.bf16.msra.mxu0 %v2132
    %2156 = vmatprep.subr.bf16.mxu0 %v2135
    %2157 = vmatpush1.bf16.msra.mxu0 %v2134
    %2158 = vmatprep.subr.bf16.mxu0 %v2137
    %2159 = vmatpush1.bf16.msra.mxu0 %v2136
    %2160 = vmatprep.subr.bf16.mxu0 %v2139
    %2161 = vmatpush1.bf16.msra.mxu0 %v2138
    %2162 = vmatprep.subr.bf16.mxu0 0
    %2163 = vmatpush1.bf16.msra.mxu0 0
    %2164 = vmatprep.subr.bf16.mxu0 0
    %2165 = vmatpush1.bf16.msra.mxu0 0
    %2166 = vmatprep.subr.bf16.mxu0 0
    %2167 = vmatpush1.bf16.msra.mxu0 0
    %2168 = vmatprep.subr.bf16.mxu0 0
    %2169 = vmatpush1.bf16.msra.mxu0 0
    %2170 = vmatprep.subr.bf16.mxu0 0
    %2171 = vmatpush1.bf16.msra.mxu0 0
    %2172 = vmatprep.subr.bf16.mxu0 0
    %2173 = vmatpush1.bf16.msra.mxu0 0
    %2174 = vmatprep.subr.bf16.mxu0 0
    %2175 = vmatpush1.bf16.msra.mxu0 0
    %2176 = vmatprep.subr.bf16.mxu0 0
    %2177 = vmatpush1.bf16.msra.mxu0 0
    %2178 = vmatprep.subr.bf16.mxu0 0
    %2179 = vmatpush1.bf16.msra.mxu0 0
    %2180 = vmatprep.subr.bf16.mxu0 0
    %2181 = vmatpush1.bf16.msra.mxu0 0
    %2182 = vmatprep.subr.bf16.mxu0 0
    %2183 = vmatpush1.bf16.msra.mxu0 0
    %2184 = vmatprep.subr.bf16.mxu0 0
    %2185 = vmatpush1.bf16.msra.mxu0 0
    %2186 = vmatprep.mubr.bf16.mxu0 0
    %2187 = vmatmul.mubr.bf16.gmra.mrb[0].mxu0 %v2149
    %v2188 = vpop.f32.mrb[0].mxu0
    %v2189 = vadd.f32 %v2101, %v2188
    %v2190 = vpop.f32.mrb[0].mxu0
    %v2191 = vadd.f32 %v2105, %v2190
    %v2192 = vpop.f32.mrb[0].mxu0
    %v2193 = vadd.f32 %v2101, %v2192
    %v2194 = vpop.f32.mrb[0].mxu0
    %v2195 = vadd.f32 %v2105, %v2194
    %2196 = vmatprep.mubr.bf16.mxu0 0
    %2197 = vmatmul.mubr.bf16.gmra.mrb[0].mxu0 %v2152
    %v2198 = vpop.f32.mrb[0].mxu0
    %v2199 = vadd.f32 %v2101, %v2198
    %v2200 = vpop.f32.mrb[0].mxu0
    %v2201 = vadd.f32 %v2105, %v2200
    %v2202 = vpop.f32.mrb[0].mxu0
    %v2203 = vadd.f32 %v2101, %v2202
    %v2204 = vpop.f32.mrb[0].mxu0
    %v2205 = vadd.f32 %v2105, %v2204
    %2206 = vdwg.mxu0
    %v2207 = vpack.c.bf16 %v2193, %v2189
    %v2208 = vpack.c.bf16 %v2195, %v2191
    %v2209 = vpack.c.bf16 %v2203, %v2199
    %v2210 = vpack.c.bf16 %v2205, %v2201
    %2213 = vrot.lane.b32.xlu0 %v2207, 112
    %v2214 = vpop.permute.xlu0 %2213
    %2215 = vrot.lane.b32.xlu0 %v2209, 112
    %v2216 = vpop.permute.xlu0 %2215
    %2217 = vrot.lane.b32.xlu0 %v2207, 96
    %v2218 = vpop.permute.xlu0 %2217
    %2219 = vrot.lane.b32.xlu0 %v2209, 96
    %v2220 = vpop.permute.xlu0 %2219
    %2221 = vrot.lane.b32.xlu0 %v2207, 80
    %v2222 = vpop.permute.xlu0 %2221
    %2223 = vrot.lane.b32.xlu0 %v2209, 80
    %v2224 = vpop.permute.xlu0 %2223
    %2227 = vrot.lane.b32.xlu0 %v2208, 112
    %v2228 = vpop.permute.xlu0 %2227
    %2229 = vrot.lane.b32.xlu0 %v2210, 112
    %v2230 = vpop.permute.xlu0 %2229
    %2233 = vrot.lane.b32.xlu0 %v2208, 96
    %v2234 = vpop.permute.xlu0 %2233
    %2235 = vrot.lane.b32.xlu0 %v2210, 96
    %v2236 = vpop.permute.xlu0 %2235
    %2239 = vrot.lane.b32.xlu0 %v2208, 80
    %v2240 = vpop.permute.xlu0 %2239
    %2241 = vrot.lane.b32.xlu0 %v2210, 80
    %v2242 = vpop.permute.xlu0 %2241
    %2245 = vrot.lane.b32.xlu0 %v2207, 64
    %v2246 = vpop.permute.xlu0 %2245
    %v2248 = vsel %vm443, %v2207, 0
    %v2251 = vsel %vm443, %v2246, 0
    %2253 = vmatprep.subr.bf16.mxu0 0
    %2254 = vmatpush1.bf16.xpose.msra.mxu0 %v2251
    %2255 = vmatprep.subr.bf16.mxu0 0
    %2256 = vmatpush1.bf16.xpose.msra.mxu0 0
    %2257 = vmatprep.subr.bf16.mxu0 0
    %2258 = vmatpush1.bf16.xpose.msra.mxu0 0
    %2259 = vmatprep.subr.bf16.mxu0 0
    %2260 = vmatpush1.bf16.xpose.msra.mxu0 0
    %2261 = vmatprep.subr.bf16.mxu0 0
    %2262 = vmatpush1.bf16.xpose.msra.mxu0 0
    %2263 = vmatprep.subr.bf16.mxu0 0
    %2264 = vmatpush1.bf16.xpose.msra.mxu0 0
    %2265 = vmatprep.subr.bf16.mxu0 0
    %2266 = vmatpush1.bf16.xpose.msra.mxu0 0
    %2267 = vmatprep.subr.bf16.mxu0 0
    %2268 = vmatpush1.bf16.xpose.msra.mxu0 0
    %2269 = vmatprep.subr.bf16.mxu0 0
    %2270 = vmatpush1.bf16.xpose.msra.mxu0 0
    %2271 = vmatprep.subr.bf16.mxu0 0
    %2272 = vmatpush1.bf16.xpose.msra.mxu0 0
    %2273 = vmatprep.subr.bf16.mxu0 0
    %2274 = vmatpush1.bf16.xpose.msra.mxu0 0
    %2275 = vmatprep.subr.bf16.mxu0 0
    %2276 = vmatpush1.bf16.xpose.msra.mxu0 0
    %2277 = vmatprep.subr.bf16.mxu0 0
    %2278 = vmatpush1.bf16.xpose.msra.mxu0 0
    %2279 = vmatprep.subr.bf16.mxu0 0
    %2280 = vmatpush1.bf16.xpose.msra.mxu0 0
    %2281 = vmatprep.subr.bf16.mxu0 0
    %2282 = vmatpush1.bf16.xpose.msra.mxu0 0
    %2283 = vmatprep.subr.bf16.mxu0 0
    %2284 = vmatpush1.bf16.xpose.msra.mxu0 0
    %2285 = vmatprep.mubr.bf16.mxu0 0
    %2286 = vmatmul.mubr.bf16.gmra.mrb[0].mxu0 %v2248
    %v2287 = vpop.f32.mrb[0].mxu0
    %v2288 = vadd.f32 0.0, %v2287
    %v2289 = vpop.f32.mrb[0].mxu0
    %v2290 = vpop.f32.mrb[0].mxu0
    %v2291 = vadd.f32 0.0, %v2290
    %v2292 = vpop.f32.mrb[0].mxu0
    %2293 = vdwg.mxu0
    %2294 = vrot.lane.b32.xlu0 %v2209, 64
    %v2295 = vpop.permute.xlu0 %2294
    %v2297 = vsel %vm443, %v2209, 0
    %v2300 = vsel %vm443, %v2295, 0
    %2302 = vmatprep.subr.bf16.mxu0 0
    %2303 = vmatpush1.bf16.xpose.msra.mxu0 %v2300
    %2304 = vmatprep.subr.bf16.mxu0 0
    %2305 = vmatpush1.bf16.xpose.msra.mxu0 0
    %2306 = vmatprep.subr.bf16.mxu0 0
    %2307 = vmatpush1.bf16.xpose.msra.mxu0 0
    %2308 = vmatprep.subr.bf16.mxu0 0
    %2309 = vmatpush1.bf16.xpose.msra.mxu0 0
    %2310 = vmatprep.subr.bf16.mxu0 0
    %2311 = vmatpush1.bf16.xpose.msra.mxu0 0
    %2312 = vmatprep.subr.bf16.mxu0 0
    %2313 = vmatpush1.bf16.xpose.msra.mxu0 0
    %2314 = vmatprep.subr.bf16.mxu0 0
    %2315 = vmatpush1.bf16.xpose.msra.mxu0 0
    %2316 = vmatprep.subr.bf16.mxu0 0
    %2317 = vmatpush1.bf16.xpose.msra.mxu0 0
    %2318 = vmatprep.subr.bf16.mxu0 0
    %2319 = vmatpush1.bf16.xpose.msra.mxu0 0
    %2320 = vmatprep.subr.bf16.mxu0 0
    %2321 = vmatpush1.bf16.xpose.msra.mxu0 0
    %2322 = vmatprep.subr.bf16.mxu0 0
    %2323 = vmatpush1.bf16.xpose.msra.mxu0 0
    %2324 = vmatprep.subr.bf16.mxu0 0
    %2325 = vmatpush1.bf16.xpose.msra.mxu0 0
    %2326 = vmatprep.subr.bf16.mxu0 0
    %2327 = vmatpush1.bf16.xpose.msra.mxu0 0
    %2328 = vmatprep.subr.bf16.mxu0 0
    %2329 = vmatpush1.bf16.xpose.msra.mxu0 0
    %2330 = vmatprep.subr.bf16.mxu0 0
    %2331 = vmatpush1.bf16.xpose.msra.mxu0 0
    %2332 = vmatprep.subr.bf16.mxu0 0
    %2333 = vmatpush1.bf16.xpose.msra.mxu0 0
    %2334 = vmatprep.mubr.bf16.mxu0 0
    %2335 = vmatmul.mubr.bf16.gmra.mrb[0].mxu0 %v2297
    %v2336 = vpop.f32.mrb[0].mxu0
    %v2337 = vadd.f32 0.0, %v2336
    %v2338 = vpop.f32.mrb[0].mxu0
    %v2339 = vpop.f32.mrb[0].mxu0
    %v2340 = vadd.f32 0.0, %v2339
    %v2341 = vpop.f32.mrb[0].mxu0
    %2342 = vdwg.mxu0
    %2343 = vrot.lane.b32.xlu0 %v2214, 64
    %v2344 = vpop.permute.xlu0 %2343
    %v2346 = vsel %vm443, %v2214, 0
    %v2349 = vsel %vm443, %v2344, 0
    %2351 = vmatprep.subr.bf16.mxu0 0
    %2352 = vmatpush1.bf16.xpose.msra.mxu0 %v2349
    %2353 = vmatprep.subr.bf16.mxu0 0
    %2354 = vmatpush1.bf16.xpose.msra.mxu0 0
    %2355 = vmatprep.subr.bf16.mxu0 0
    %2356 = vmatpush1.bf16.xpose.msra.mxu0 0
    %2357 = vmatprep.subr.bf16.mxu0 0
    %2358 = vmatpush1.bf16.xpose.msra.mxu0 0
    %2359 = vmatprep.subr.bf16.mxu0 0
    %2360 = vmatpush1.bf16.xpose.msra.mxu0 0
    %2361 = vmatprep.subr.bf16.mxu0 0
    %2362 = vmatpush1.bf16.xpose.msra.mxu0 0
    %2363 = vmatprep.subr.bf16.mxu0 0
    %2364 = vmatpush1.bf16.xpose.msra.mxu0 0
    %2365 = vmatprep.subr.bf16.mxu0 0
    %2366 = vmatpush1.bf16.xpose.msra.mxu0 0
    %2367 = vmatprep.subr.bf16.mxu0 0
    %2368 = vmatpush1.bf16.xpose.msra.mxu0 0
    %2369 = vmatprep.subr.bf16.mxu0 0
    %2370 = vmatpush1.bf16.xpose.msra.mxu0 0
    %2371 = vmatprep.subr.bf16.mxu0 0
    %2372 = vmatpush1.bf16.xpose.msra.mxu0 0
    %2373 = vmatprep.subr.bf16.mxu0 0
    %2374 = vmatpush1.bf16.xpose.msra.mxu0 0
    %2375 = vmatprep.subr.bf16.mxu0 0
    %2376 = vmatpush1.bf16.xpose.msra.mxu0 0
    %2377 = vmatprep.subr.bf16.mxu0 0
    %2378 = vmatpush1.bf16.xpose.msra.mxu0 0
    %2379 = vmatprep.subr.bf16.mxu0 0
    %2380 = vmatpush1.bf16.xpose.msra.mxu0 0
    %2381 = vmatprep.subr.bf16.mxu0 0
    %2382 = vmatpush1.bf16.xpose.msra.mxu0 0
    %2383 = vmatprep.mubr.bf16.mxu0 0
    %2384 = vmatmul.mubr.bf16.gmra.mrb[0].mxu0 %v2346
    %v2385 = vpop.f32.mrb[0].mxu0
    %v2386 = vadd.f32 0.0, %v2385
    %v2387 = vpop.f32.mrb[0].mxu0
    %v2388 = vpop.f32.mrb[0].mxu0
    %v2389 = vadd.f32 0.0, %v2388
    %v2390 = vpop.f32.mrb[0].mxu0
    %2391 = vdwg.mxu0
    %2392 = vrot.lane.b32.xlu0 %v2216, 64
    %v2393 = vpop.permute.xlu0 %2392
    %v2395 = vsel %vm443, %v2216, 0
    %v2398 = vsel %vm443, %v2393, 0
    %2400 = vmatprep.subr.bf16.mxu0 0
    %2401 = vmatpush1.bf16.xpose.msra.mxu0 %v2398
    %2402 = vmatprep.subr.bf16.mxu0 0
    %2403 = vmatpush1.bf16.xpose.msra.mxu0 0
    %2404 = vmatprep.subr.bf16.mxu0 0
    %2405 = vmatpush1.bf16.xpose.msra.mxu0 0
    %2406 = vmatprep.subr.bf16.mxu0 0
    %2407 = vmatpush1.bf16.xpose.msra.mxu0 0
    %2408 = vmatprep.subr.bf16.mxu0 0
    %2409 = vmatpush1.bf16.xpose.msra.mxu0 0
    %2410 = vmatprep.subr.bf16.mxu0 0
    %2411 = vmatpush1.bf16.xpose.msra.mxu0 0
    %2412 = vmatprep.subr.bf16.mxu0 0
    %2413 = vmatpush1.bf16.xpose.msra.mxu0 0
    %2414 = vmatprep.subr.bf16.mxu0 0
    %2415 = vmatpush1.bf16.xpose.msra.mxu0 0
    %2416 = vmatprep.subr.bf16.mxu0 0
    %2417 = vmatpush1.bf16.xpose.msra.mxu0 0
    %2418 = vmatprep.subr.bf16.mxu0 0
    %2419 = vmatpush1.bf16.xpose.msra.mxu0 0
    %2420 = vmatprep.subr.bf16.mxu0 0
    %2421 = vmatpush1.bf16.xpose.msra.mxu0 0
    %2422 = vmatprep.subr.bf16.mxu0 0
    %2423 = vmatpush1.bf16.xpose.msra.mxu0 0
    %2424 = vmatprep.subr.bf16.mxu0 0
    %2425 = vmatpush1.bf16.xpose.msra.mxu0 0
    %2426 = vmatprep.subr.bf16.mxu0 0
    %2427 = vmatpush1.bf16.xpose.msra.mxu0 0
    %2428 = vmatprep.subr.bf16.mxu0 0
    %2429 = vmatpush1.bf16.xpose.msra.mxu0 0
    %2430 = vmatprep.subr.bf16.mxu0 0
    %2431 = vmatpush1.bf16.xpose.msra.mxu0 0
    %2432 = vmatprep.mubr.bf16.mxu0 0
    %2433 = vmatmul.mubr.bf16.gmra.mrb[0].mxu0 %v2395
    %v2434 = vpop.f32.mrb[0].mxu0
    %v2435 = vadd.f32 0.0, %v2434
    %v2436 = vpop.f32.mrb[0].mxu0
    %v2437 = vpop.f32.mrb[0].mxu0
    %v2438 = vadd.f32 0.0, %v2437
    %v2439 = vpop.f32.mrb[0].mxu0
    %2440 = vdwg.mxu0
    %2441 = vrot.lane.b32.xlu0 %v2218, 64
    %v2442 = vpop.permute.xlu0 %2441
    %v2444 = vsel %vm443, %v2218, 0
    %v2447 = vsel %vm443, %v2442, 0
    %2449 = vmatprep.subr.bf16.mxu0 0
    %2450 = vmatpush1.bf16.xpose.msra.mxu0 %v2447
    %2451 = vmatprep.subr.bf16.mxu0 0
    %2452 = vmatpush1.bf16.xpose.msra.mxu0 0
    %2453 = vmatprep.subr.bf16.mxu0 0
    %2454 = vmatpush1.bf16.xpose.msra.mxu0 0
    %2455 = vmatprep.subr.bf16.mxu0 0
    %2456 = vmatpush1.bf16.xpose.msra.mxu0 0
    %2457 = vmatprep.subr.bf16.mxu0 0
    %2458 = vmatpush1.bf16.xpose.msra.mxu0 0
    %2459 = vmatprep.subr.bf16.mxu0 0
    %2460 = vmatpush1.bf16.xpose.msra.mxu0 0
    %2461 = vmatprep.subr.bf16.mxu0 0
    %2462 = vmatpush1.bf16.xpose.msra.mxu0 0
    %2463 = vmatprep.subr.bf16.mxu0 0
    %2464 = vmatpush1.bf16.xpose.msra.mxu0 0
    %2465 = vmatprep.subr.bf16.mxu0 0
    %2466 = vmatpush1.bf16.xpose.msra.mxu0 0
    %2467 = vmatprep.subr.bf16.mxu0 0
    %2468 = vmatpush1.bf16.xpose.msra.mxu0 0
    %2469 = vmatprep.subr.bf16.mxu0 0
    %2470 = vmatpush1.bf16.xpose.msra.mxu0 0
    %2471 = vmatprep.subr.bf16.mxu0 0
    %2472 = vmatpush1.bf16.xpose.msra.mxu0 0
    %2473 = vmatprep.subr.bf16.mxu0 0
    %2474 = vmatpush1.bf16.xpose.msra.mxu0 0
    %2475 = vmatprep.subr.bf16.mxu0 0
    %2476 = vmatpush1.bf16.xpose.msra.mxu0 0
    %2477 = vmatprep.subr.bf16.mxu0 0
    %2478 = vmatpush1.bf16.xpose.msra.mxu0 0
    %2479 = vmatprep.subr.bf16.mxu0 0
    %2480 = vmatpush1.bf16.xpose.msra.mxu0 0
    %2481 = vmatprep.mubr.bf16.mxu0 0
    %2482 = vmatmul.mubr.bf16.gmra.mrb[0].mxu0 %v2444
    %v2483 = vpop.f32.mrb[0].mxu0
    %v2484 = vadd.f32 0.0, %v2483
    %v2485 = vpop.f32.mrb[0].mxu0
    %v2486 = vpop.f32.mrb[0].mxu0
    %v2487 = vadd.f32 0.0, %v2486
    %v2488 = vpop.f32.mrb[0].mxu0
    %2489 = vdwg.mxu0
    %2490 = vrot.lane.b32.xlu0 %v2220, 64
    %v2491 = vpop.permute.xlu0 %2490
    %v2493 = vsel %vm443, %v2220, 0
    %v2496 = vsel %vm443, %v2491, 0
    %2498 = vmatprep.subr.bf16.mxu0 0
    %2499 = vmatpush1.bf16.xpose.msra.mxu0 %v2496
    %2500 = vmatprep.subr.bf16.mxu0 0
    %2501 = vmatpush1.bf16.xpose.msra.mxu0 0
    %2502 = vmatprep.subr.bf16.mxu0 0
    %2503 = vmatpush1.bf16.xpose.msra.mxu0 0
    %2504 = vmatprep.subr.bf16.mxu0 0
    %2505 = vmatpush1.bf16.xpose.msra.mxu0 0
    %2506 = vmatprep.subr.bf16.mxu0 0
    %2507 = vmatpush1.bf16.xpose.msra.mxu0 0
    %2508 = vmatprep.subr.bf16.mxu0 0
    %2509 = vmatpush1.bf16.xpose.msra.mxu0 0
    %2510 = vmatprep.subr.bf16.mxu0 0
    %2511 = vmatpush1.bf16.xpose.msra.mxu0 0
    %2512 = vmatprep.subr.bf16.mxu0 0
    %2513 = vmatpush1.bf16.xpose.msra.mxu0 0
    %2514 = vmatprep.subr.bf16.mxu0 0
    %2515 = vmatpush1.bf16.xpose.msra.mxu0 0
    %2516 = vmatprep.subr.bf16.mxu0 0
    %2517 = vmatpush1.bf16.xpose.msra.mxu0 0
    %2518 = vmatprep.subr.bf16.mxu0 0
    %2519 = vmatpush1.bf16.xpose.msra.mxu0 0
    %2520 = vmatprep.subr.bf16.mxu0 0
    %2521 = vmatpush1.bf16.xpose.msra.mxu0 0
    %2522 = vmatprep.subr.bf16.mxu0 0
    %2523 = vmatpush1.bf16.xpose.msra.mxu0 0
    %2524 = vmatprep.subr.bf16.mxu0 0
    %2525 = vmatpush1.bf16.xpose.msra.mxu0 0
    %2526 = vmatprep.subr.bf16.mxu0 0
    %2527 = vmatpush1.bf16.xpose.msra.mxu0 0
    %2528 = vmatprep.subr.bf16.mxu0 0
    %2529 = vmatpush1.bf16.xpose.msra.mxu0 0
    %2530 = vmatprep.mubr.bf16.mxu0 0
    %2531 = vmatmul.mubr.bf16.gmra.mrb[0].mxu0 %v2493
    %v2532 = vpop.f32.mrb[0].mxu0
    %v2533 = vadd.f32 0.0, %v2532
    %v2534 = vpop.f32.mrb[0].mxu0
    %v2535 = vpop.f32.mrb[0].mxu0
    %v2536 = vadd.f32 0.0, %v2535
    %v2537 = vpop.f32.mrb[0].mxu0
    %2538 = vdwg.mxu0
    %2539 = vrot.lane.b32.xlu0 %v2222, 64
    %v2540 = vpop.permute.xlu0 %2539
    %v2542 = vsel %vm443, %v2222, 0
    %v2545 = vsel %vm443, %v2540, 0
    %2547 = vmatprep.subr.bf16.mxu0 0
    %2548 = vmatpush1.bf16.xpose.msra.mxu0 %v2545
    %2549 = vmatprep.subr.bf16.mxu0 0
    %2550 = vmatpush1.bf16.xpose.msra.mxu0 0
    %2551 = vmatprep.subr.bf16.mxu0 0
    %2552 = vmatpush1.bf16.xpose.msra.mxu0 0
    %2553 = vmatprep.subr.bf16.mxu0 0
    %2554 = vmatpush1.bf16.xpose.msra.mxu0 0
    %2555 = vmatprep.subr.bf16.mxu0 0
    %2556 = vmatpush1.bf16.xpose.msra.mxu0 0
    %2557 = vmatprep.subr.bf16.mxu0 0
    %2558 = vmatpush1.bf16.xpose.msra.mxu0 0
    %2559 = vmatprep.subr.bf16.mxu0 0
    %2560 = vmatpush1.bf16.xpose.msra.mxu0 0
    %2561 = vmatprep.subr.bf16.mxu0 0
    %2562 = vmatpush1.bf16.xpose.msra.mxu0 0
    %2563 = vmatprep.subr.bf16.mxu0 0
    %2564 = vmatpush1.bf16.xpose.msra.mxu0 0
    %2565 = vmatprep.subr.bf16.mxu0 0
    %2566 = vmatpush1.bf16.xpose.msra.mxu0 0
    %2567 = vmatprep.subr.bf16.mxu0 0
    %2568 = vmatpush1.bf16.xpose.msra.mxu0 0
    %2569 = vmatprep.subr.bf16.mxu0 0
    %2570 = vmatpush1.bf16.xpose.msra.mxu0 0
    %2571 = vmatprep.subr.bf16.mxu0 0
    %2572 = vmatpush1.bf16.xpose.msra.mxu0 0
    %2573 = vmatprep.subr.bf16.mxu0 0
    %2574 = vmatpush1.bf16.xpose.msra.mxu0 0
    %2575 = vmatprep.subr.bf16.mxu0 0
    %2576 = vmatpush1.bf16.xpose.msra.mxu0 0
    %2577 = vmatprep.subr.bf16.mxu0 0
    %2578 = vmatpush1.bf16.xpose.msra.mxu0 0
    %2579 = vmatprep.mubr.bf16.mxu0 0
    %2580 = vmatmul.mubr.bf16.gmra.mrb[0].mxu0 %v2542
    %v2581 = vpop.f32.mrb[0].mxu0
    %v2582 = vadd.f32 0.0, %v2581
    %v2583 = vpop.f32.mrb[0].mxu0
    %v2584 = vpop.f32.mrb[0].mxu0
    %v2585 = vadd.f32 0.0, %v2584
    %v2586 = vpop.f32.mrb[0].mxu0
    %2587 = vdwg.mxu0
    %2588 = vrot.lane.b32.xlu0 %v2224, 64
    %v2589 = vpop.permute.xlu0 %2588
    %v2591 = vsel %vm443, %v2224, 0
    %v2594 = vsel %vm443, %v2589, 0
    %2596 = vmatprep.subr.bf16.mxu0 0
    %2597 = vmatpush1.bf16.xpose.msra.mxu0 %v2594
    %2598 = vmatprep.subr.bf16.mxu0 0
    %2599 = vmatpush1.bf16.xpose.msra.mxu0 0
    %2600 = vmatprep.subr.bf16.mxu0 0
    %2601 = vmatpush1.bf16.xpose.msra.mxu0 0
    %2602 = vmatprep.subr.bf16.mxu0 0
    %2603 = vmatpush1.bf16.xpose.msra.mxu0 0
    %2604 = vmatprep.subr.bf16.mxu0 0
    %2605 = vmatpush1.bf16.xpose.msra.mxu0 0
    %2606 = vmatprep.subr.bf16.mxu0 0
    %2607 = vmatpush1.bf16.xpose.msra.mxu0 0
    %2608 = vmatprep.subr.bf16.mxu0 0
    %2609 = vmatpush1.bf16.xpose.msra.mxu0 0
    %2610 = vmatprep.subr.bf16.mxu0 0
    %2611 = vmatpush1.bf16.xpose.msra.mxu0 0
    %2612 = vmatprep.subr.bf16.mxu0 0
    %2613 = vmatpush1.bf16.xpose.msra.mxu0 0
    %2614 = vmatprep.subr.bf16.mxu0 0
    %2615 = vmatpush1.bf16.xpose.msra.mxu0 0
    %2616 = vmatprep.subr.bf16.mxu0 0
    %2617 = vmatpush1.bf16.xpose.msra.mxu0 0
    %2618 = vmatprep.subr.bf16.mxu0 0
    %2619 = vmatpush1.bf16.xpose.msra.mxu0 0
    %2620 = vmatprep.subr.bf16.mxu0 0
    %2621 = vmatpush1.bf16.xpose.msra.mxu0 0
    %2622 = vmatprep.subr.bf16.mxu0 0
    %2623 = vmatpush1.bf16.xpose.msra.mxu0 0
    %2624 = vmatprep.subr.bf16.mxu0 0
    %2625 = vmatpush1.bf16.xpose.msra.mxu0 0
    %2626 = vmatprep.subr.bf16.mxu0 0
    %2627 = vmatpush1.bf16.xpose.msra.mxu0 0
    %2628 = vmatprep.mubr.bf16.mxu0 0
    %2629 = vmatmul.mubr.bf16.gmra.mrb[0].mxu0 %v2591
    %v2630 = vpop.f32.mrb[0].mxu0
    %v2631 = vadd.f32 0.0, %v2630
    %v2632 = vpop.f32.mrb[0].mxu0
    %v2633 = vpop.f32.mrb[0].mxu0
    %v2634 = vadd.f32 0.0, %v2633
    %v2635 = vpop.f32.mrb[0].mxu0
    %2636 = vdwg.mxu0
    %v2637 = vsel %vm443, %v2288, -inf
    %2638 = vmax.xlane.f32.xlu0 %v2637
    %v2639 = vpop.xlane.xlu0 %2638
    %v2640 = vsel %vm443, %v2291, -inf
    %2641 = vmax.xlane.f32.xlu0 %v2640
    %v2642 = vpop.xlane.xlu0 %2641
    %v2643 = vsel %vm443, %v2337, -inf
    %2644 = vmax.xlane.f32.xlu0 %v2643
    %v2645 = vpop.xlane.xlu0 %2644
    %v2646 = vsel %vm443, %v2340, -inf
    %2647 = vmax.xlane.f32.xlu0 %v2646
    %v2648 = vpop.xlane.xlu0 %2647
    %v2649 = vsel %vm443, %v2386, -inf
    %2650 = vmax.xlane.f32.xlu0 %v2649
    %v2651 = vpop.xlane.xlu0 %2650
    %v2652 = vsel %vm443, %v2389, -inf
    %2653 = vmax.xlane.f32.xlu0 %v2652
    %v2654 = vpop.xlane.xlu0 %2653
    %v2655 = vsel %vm443, %v2435, -inf
    %2656 = vmax.xlane.f32.xlu0 %v2655
    %v2657 = vpop.xlane.xlu0 %2656
    %v2658 = vsel %vm443, %v2438, -inf
    %2659 = vmax.xlane.f32.xlu0 %v2658
    %v2660 = vpop.xlane.xlu0 %2659
    %v2661 = vsel %vm443, %v2484, -inf
    %2662 = vmax.xlane.f32.xlu0 %v2661
    %v2663 = vpop.xlane.xlu0 %2662
    %v2664 = vsel %vm443, %v2487, -inf
    %2665 = vmax.xlane.f32.xlu0 %v2664
    %v2666 = vpop.xlane.xlu0 %2665
    %v2667 = vsel %vm443, %v2533, -inf
    %2668 = vmax.xlane.f32.xlu0 %v2667
    %v2669 = vpop.xlane.xlu0 %2668
    %v2670 = vsel %vm443, %v2536, -inf
    %2671 = vmax.xlane.f32.xlu0 %v2670
    %v2672 = vpop.xlane.xlu0 %2671
    %v2673 = vsel %vm443, %v2582, -inf
    %2674 = vmax.xlane.f32.xlu0 %v2673
    %v2675 = vpop.xlane.xlu0 %2674
    %v2676 = vsel %vm443, %v2585, -inf
    %2677 = vmax.xlane.f32.xlu0 %v2676
    %v2678 = vpop.xlane.xlu0 %2677
    %v2679 = vsel %vm443, %v2631, -inf
    %2680 = vmax.xlane.f32.xlu0 %v2679
    %v2681 = vpop.xlane.xlu0 %2680
    %v2682 = vsel %vm443, %v2634, -inf
    %2683 = vmax.xlane.f32.xlu0 %v2682
    %v2684 = vpop.xlane.xlu0 %2683
    %v2685 = vsub.f32 %v2288, %v2639
    %v2686 = vsub.f32 %v2291, %v2642
    %v2687 = vsub.f32 %v2337, %v2645
    %v2688 = vsub.f32 %v2340, %v2648
    %v2689 = vsub.f32 %v2386, %v2651
    %v2690 = vsub.f32 %v2389, %v2654
    %v2691 = vsub.f32 %v2435, %v2657
    %v2692 = vsub.f32 %v2438, %v2660
    %v2693 = vsub.f32 %v2484, %v2663
    %v2694 = vsub.f32 %v2487, %v2666
    %v2695 = vsub.f32 %v2533, %v2669
    %v2696 = vsub.f32 %v2536, %v2672
    %v2697 = vsub.f32 %v2582, %v2675
    %v2698 = vsub.f32 %v2585, %v2678
    %v2699 = vsub.f32 %v2631, %v2681
    %v2700 = vsub.f32 %v2634, %v2684
    %v2701 = vmul.f32 %v2685, 1.442695
    %v2702 = vpow.pop %v2701
    %v2703 = vmul.f32 %v2686, 1.442695
    %v2704 = vpow.pop %v2703
    %v2705 = vmul.f32 %v2687, 1.442695
    %v2706 = vpow.pop %v2705
    %v2707 = vmul.f32 %v2688, 1.442695
    %v2708 = vpow.pop %v2707
    %v2709 = vmul.f32 %v2689, 1.442695
    %v2710 = vpow.pop %v2709
    %v2711 = vmul.f32 %v2690, 1.442695
    %v2712 = vpow.pop %v2711
    %v2713 = vmul.f32 %v2691, 1.442695
    %v2714 = vpow.pop %v2713
    %v2715 = vmul.f32 %v2692, 1.442695
    %v2716 = vpow.pop %v2715
    %v2717 = vmul.f32 %v2693, 1.442695
    %v2718 = vpow.pop %v2717
    %v2719 = vmul.f32 %v2694, 1.442695
    %v2720 = vpow.pop %v2719
    %v2721 = vmul.f32 %v2695, 1.442695
    %v2722 = vpow.pop %v2721
    %v2723 = vmul.f32 %v2696, 1.442695
    %v2724 = vpow.pop %v2723
    %v2725 = vmul.f32 %v2697, 1.442695
    %v2726 = vpow.pop %v2725
    %v2727 = vmul.f32 %v2698, 1.442695
    %v2728 = vpow.pop %v2727
    %v2729 = vmul.f32 %v2699, 1.442695
    %v2730 = vpow.pop %v2729
    %v2731 = vmul.f32 %v2700, 1.442695
    %v2732 = vpow.pop %v2731
    %v2733 = vsel %vm443, %v2702, 0.0
    %2734 = vadd.xlane.f32.xlu0 %v2733
    %v2735 = vpop.xlane.xlu0 %2734
    %v2736 = vsel %vm443, %v2704, 0.0
    %2737 = vadd.xlane.f32.xlu0 %v2736
    %v2738 = vpop.xlane.xlu0 %2737
    %v2739 = vsel %vm443, %v2706, 0.0
    %2740 = vadd.xlane.f32.xlu0 %v2739
    %v2741 = vpop.xlane.xlu0 %2740
    %v2742 = vsel %vm443, %v2708, 0.0
    %2743 = vadd.xlane.f32.xlu0 %v2742
    %v2744 = vpop.xlane.xlu0 %2743
    %v2745 = vsel %vm443, %v2710, 0.0
    %2746 = vadd.xlane.f32.xlu0 %v2745
    %v2747 = vpop.xlane.xlu0 %2746
    %v2748 = vsel %vm443, %v2712, 0.0
    %2749 = vadd.xlane.f32.xlu0 %v2748
    %v2750 = vpop.xlane.xlu0 %2749
    %v2751 = vsel %vm443, %v2714, 0.0
    %2752 = vadd.xlane.f32.xlu0 %v2751
    %v2753 = vpop.xlane.xlu0 %2752
    %v2754 = vsel %vm443, %v2716, 0.0
    %2755 = vadd.xlane.f32.xlu0 %v2754
    %v2756 = vpop.xlane.xlu0 %2755
    %v2757 = vsel %vm443, %v2718, 0.0
    %2758 = vadd.xlane.f32.xlu0 %v2757
    %v2759 = vpop.xlane.xlu0 %2758
    %v2760 = vsel %vm443, %v2720, 0.0
    %2761 = vadd.xlane.f32.xlu0 %v2760
    %v2762 = vpop.xlane.xlu0 %2761
    %v2763 = vsel %vm443, %v2722, 0.0
    %2764 = vadd.xlane.f32.xlu0 %v2763
    %v2765 = vpop.xlane.xlu0 %2764
    %v2766 = vsel %vm443, %v2724, 0.0
    %2767 = vadd.xlane.f32.xlu0 %v2766
    %v2768 = vpop.xlane.xlu0 %2767
    %v2769 = vsel %vm443, %v2726, 0.0
    %2770 = vadd.xlane.f32.xlu0 %v2769
    %v2771 = vpop.xlane.xlu0 %2770
    %v2772 = vsel %vm443, %v2728, 0.0
    %2773 = vadd.xlane.f32.xlu0 %v2772
    %v2774 = vpop.xlane.xlu0 %2773
    %v2775 = vsel %vm443, %v2730, 0.0
    %2776 = vadd.xlane.f32.xlu0 %v2775
    %v2777 = vpop.xlane.xlu0 %2776
    %v2778 = vsel %vm443, %v2732, 0.0
    %2779 = vadd.xlane.f32.xlu0 %v2778
    %v2780 = vpop.xlane.xlu0 %2779
    %v2781 = vrcp.pop %v2735
    %v2782 = vrcp.pop %v2738
    %v2783 = vrcp.pop %v2741
    %v2784 = vrcp.pop %v2744
    %v2785 = vrcp.pop %v2747
    %v2786 = vrcp.pop %v2750
    %v2787 = vrcp.pop %v2753
    %v2788 = vrcp.pop %v2756
    %v2789 = vrcp.pop %v2759
    %v2790 = vrcp.pop %v2762
    %v2791 = vrcp.pop %v2765
    %v2792 = vrcp.pop %v2768
    %v2793 = vrcp.pop %v2771
    %v2794 = vrcp.pop %v2774
    %v2795 = vrcp.pop %v2777
    %v2796 = vrcp.pop %v2780
    %v2797 = vmul.f32 %v2702, %v2781
    %v2798 = vmul.f32 %v2704, %v2782
    %v2799 = vmul.f32 %v2706, %v2783
    %v2800 = vmul.f32 %v2708, %v2784
    %v2801 = vmul.f32 %v2710, %v2785
    %v2802 = vmul.f32 %v2712, %v2786
    %v2803 = vmul.f32 %v2714, %v2787
    %v2804 = vmul.f32 %v2716, %v2788
    %v2805 = vmul.f32 %v2718, %v2789
    %v2806 = vmul.f32 %v2720, %v2790
    %v2807 = vmul.f32 %v2722, %v2791
    %v2808 = vmul.f32 %v2724, %v2792
    %v2809 = vmul.f32 %v2726, %v2793
    %v2810 = vmul.f32 %v2728, %v2794
    %v2811 = vmul.f32 %v2730, %v2795
    %v2812 = vmul.f32 %v2732, %v2796
    %v2813 = vpack.c.bf16 %v2798, %v2797
    %v2814 = vpack.c.bf16 %v2800, %v2799
    %v2815 = vpack.c.bf16 %v2802, %v2801
    %v2816 = vpack.c.bf16 %v2804, %v2803
    %v2817 = vpack.c.bf16 %v2806, %v2805
    %v2818 = vpack.c.bf16 %v2808, %v2807
    %v2819 = vpack.c.bf16 %v2810, %v2809
    %v2820 = vpack.c.bf16 %v2812, %v2811
    %v2822 = vsel %vm443, %v2813, 0
    %2824 = vmatprep.subr.bf16.mxu0 0
    %2825 = vmatpush1.bf16.msra.mxu0 %v2208
    %2826 = vmatprep.subr.bf16.mxu0 0
    %2827 = vmatpush1.bf16.msra.mxu0 0
    %2828 = vmatprep.subr.bf16.mxu0 0
    %2829 = vmatpush1.bf16.msra.mxu0 0
    %2830 = vmatprep.subr.bf16.mxu0 0
    %2831 = vmatpush1.bf16.msra.mxu0 0
    %2832 = vmatprep.subr.bf16.mxu0 0
    %2833 = vmatpush1.bf16.msra.mxu0 0
    %2834 = vmatprep.subr.bf16.mxu0 0
    %2835 = vmatpush1.bf16.msra.mxu0 0
    %2836 = vmatprep.subr.bf16.mxu0 0
    %2837 = vmatpush1.bf16.msra.mxu0 0
    %2838 = vmatprep.subr.bf16.mxu0 0
    %2839 = vmatpush1.bf16.msra.mxu0 0
    %2840 = vmatprep.subr.bf16.mxu0 0
    %2841 = vmatpush1.bf16.msra.mxu0 0
    %2842 = vmatprep.subr.bf16.mxu0 0
    %2843 = vmatpush1.bf16.msra.mxu0 0
    %2844 = vmatprep.subr.bf16.mxu0 0
    %2845 = vmatpush1.bf16.msra.mxu0 0
    %2846 = vmatprep.subr.bf16.mxu0 0
    %2847 = vmatpush1.bf16.msra.mxu0 0
    %2848 = vmatprep.subr.bf16.mxu0 0
    %2849 = vmatpush1.bf16.msra.mxu0 0
    %2850 = vmatprep.subr.bf16.mxu0 0
    %2851 = vmatpush1.bf16.msra.mxu0 0
    %2852 = vmatprep.subr.bf16.mxu0 0
    %2853 = vmatpush1.bf16.msra.mxu0 0
    %2854 = vmatprep.subr.bf16.mxu0 0
    %2855 = vmatpush1.bf16.msra.mxu0 0
    %2856 = vmatprep.mubr.bf16.mxu0 0
    %2857 = vmatmul.mubr.bf16.gmra.mrb[0].mxu0 %v2822
    %v2858 = vpop.f32.mrb[0].mxu0
    %v2859 = vadd.f32 0.0, %v2858
    %v2860 = vpop.f32.mrb[0].mxu0
    %v2861 = vpop.f32.mrb[0].mxu0
    %v2862 = vadd.f32 0.0, %v2861
    %v2863 = vpop.f32.mrb[0].mxu0
    %2864 = vdwg.mxu0
    %v2866 = vsel %vm443, %v2814, 0
    %2868 = vmatprep.subr.bf16.mxu0 0
    %2869 = vmatpush1.bf16.msra.mxu0 %v2210
    %2870 = vmatprep.subr.bf16.mxu0 0
    %2871 = vmatpush1.bf16.msra.mxu0 0
    %2872 = vmatprep.subr.bf16.mxu0 0
    %2873 = vmatpush1.bf16.msra.mxu0 0
    %2874 = vmatprep.subr.bf16.mxu0 0
    %2875 = vmatpush1.bf16.msra.mxu0 0
    %2876 = vmatprep.subr.bf16.mxu0 0
    %2877 = vmatpush1.bf16.msra.mxu0 0
    %2878 = vmatprep.subr.bf16.mxu0 0
    %2879 = vmatpush1.bf16.msra.mxu0 0
    %2880 = vmatprep.subr.bf16.mxu0 0
    %2881 = vmatpush1.bf16.msra.mxu0 0
    %2882 = vmatprep.subr.bf16.mxu0 0
    %2883 = vmatpush1.bf16.msra.mxu0 0
    %2884 = vmatprep.subr.bf16.mxu0 0
    %2885 = vmatpush1.bf16.msra.mxu0 0
    %2886 = vmatprep.subr.bf16.mxu0 0
    %2887 = vmatpush1.bf16.msra.mxu0 0
    %2888 = vmatprep.subr.bf16.mxu0 0
    %2889 = vmatpush1.bf16.msra.mxu0 0
    %2890 = vmatprep.subr.bf16.mxu0 0
    %2891 = vmatpush1.bf16.msra.mxu0 0
    %2892 = vmatprep.subr.bf16.mxu0 0
    %2893 = vmatpush1.bf16.msra.mxu0 0
    %2894 = vmatprep.subr.bf16.mxu0 0
    %2895 = vmatpush1.bf16.msra.mxu0 0
    %2896 = vmatprep.subr.bf16.mxu0 0
    %2897 = vmatpush1.bf16.msra.mxu0 0
    %2898 = vmatprep.subr.bf16.mxu0 0
    %2899 = vmatpush1.bf16.msra.mxu0 0
    %2900 = vmatprep.mubr.bf16.mxu0 0
    %2901 = vmatmul.mubr.bf16.gmra.mrb[0].mxu0 %v2866
    %v2902 = vpop.f32.mrb[0].mxu0
    %v2903 = vadd.f32 0.0, %v2902
    %v2904 = vpop.f32.mrb[0].mxu0
    %v2905 = vpop.f32.mrb[0].mxu0
    %v2906 = vadd.f32 0.0, %v2905
    %v2907 = vpop.f32.mrb[0].mxu0
    %2908 = vdwg.mxu0
    %v2910 = vsel %vm443, %v2815, 0
    %2912 = vmatprep.subr.bf16.mxu0 0
    %2913 = vmatpush1.bf16.msra.mxu0 %v2228
    %2914 = vmatprep.subr.bf16.mxu0 0
    %2915 = vmatpush1.bf16.msra.mxu0 0
    %2916 = vmatprep.subr.bf16.mxu0 0
    %2917 = vmatpush1.bf16.msra.mxu0 0
    %2918 = vmatprep.subr.bf16.mxu0 0
    %2919 = vmatpush1.bf16.msra.mxu0 0
    %2920 = vmatprep.subr.bf16.mxu0 0
    %2921 = vmatpush1.bf16.msra.mxu0 0
    %2922 = vmatprep.subr.bf16.mxu0 0
    %2923 = vmatpush1.bf16.msra.mxu0 0
    %2924 = vmatprep.subr.bf16.mxu0 0
    %2925 = vmatpush1.bf16.msra.mxu0 0
    %2926 = vmatprep.subr.bf16.mxu0 0
    %2927 = vmatpush1.bf16.msra.mxu0 0
    %2928 = vmatprep.subr.bf16.mxu0 0
    %2929 = vmatpush1.bf16.msra.mxu0 0
    %2930 = vmatprep.subr.bf16.mxu0 0
    %2931 = vmatpush1.bf16.msra.mxu0 0
    %2932 = vmatprep.subr.bf16.mxu0 0
    %2933 = vmatpush1.bf16.msra.mxu0 0
    %2934 = vmatprep.subr.bf16.mxu0 0
    %2935 = vmatpush1.bf16.msra.mxu0 0
    %2936 = vmatprep.subr.bf16.mxu0 0
    %2937 = vmatpush1.bf16.msra.mxu0 0
    %2938 = vmatprep.subr.bf16.mxu0 0
    %2939 = vmatpush1.bf16.msra.mxu0 0
    %2940 = vmatprep.subr.bf16.mxu0 0
    %2941 = vmatpush1.bf16.msra.mxu0 0
    %2942 = vmatprep.subr.bf16.mxu0 0
    %2943 = vmatpush1.bf16.msra.mxu0 0
    %2944 = vmatprep.mubr.bf16.mxu0 0
    %2945 = vmatmul.mubr.bf16.gmra.mrb[0].mxu0 %v2910
    %v2946 = vpop.f32.mrb[0].mxu0
    %v2947 = vadd.f32 0.0, %v2946
    %v2948 = vpop.f32.mrb[0].mxu0
    %v2949 = vpop.f32.mrb[0].mxu0
    %v2950 = vadd.f32 0.0, %v2949
    %v2951 = vpop.f32.mrb[0].mxu0
    %2952 = vdwg.mxu0
    %v2954 = vsel %vm443, %v2816, 0
    %2956 = vmatprep.subr.bf16.mxu0 0
    %2957 = vmatpush1.bf16.msra.mxu0 %v2230
    %2958 = vmatprep.subr.bf16.mxu0 0
    %2959 = vmatpush1.bf16.msra.mxu0 0
    %2960 = vmatprep.subr.bf16.mxu0 0
    %2961 = vmatpush1.bf16.msra.mxu0 0
    %2962 = vmatprep.subr.bf16.mxu0 0
    %2963 = vmatpush1.bf16.msra.mxu0 0
    %2964 = vmatprep.subr.bf16.mxu0 0
    %2965 = vmatpush1.bf16.msra.mxu0 0
    %2966 = vmatprep.subr.bf16.mxu0 0
    %2967 = vmatpush1.bf16.msra.mxu0 0
    %2968 = vmatprep.subr.bf16.mxu0 0
    %2969 = vmatpush1.bf16.msra.mxu0 0
    %2970 = vmatprep.subr.bf16.mxu0 0
    %2971 = vmatpush1.bf16.msra.mxu0 0
    %2972 = vmatprep.subr.bf16.mxu0 0
    %2973 = vmatpush1.bf16.msra.mxu0 0
    %2974 = vmatprep.subr.bf16.mxu0 0
    %2975 = vmatpush1.bf16.msra.mxu0 0
    %2976 = vmatprep.subr.bf16.mxu0 0
    %2977 = vmatpush1.bf16.msra.mxu0 0
    %2978 = vmatprep.subr.bf16.mxu0 0
    %2979 = vmatpush1.bf16.msra.mxu0 0
    %2980 = vmatprep.subr.bf16.mxu0 0
    %2981 = vmatpush1.bf16.msra.mxu0 0
    %2982 = vmatprep.subr.bf16.mxu0 0
    %2983 = vmatpush1.bf16.msra.mxu0 0
    %2984 = vmatprep.subr.bf16.mxu0 0
    %2985 = vmatpush1.bf16.msra.mxu0 0
    %2986 = vmatprep.subr.bf16.mxu0 0
    %2987 = vmatpush1.bf16.msra.mxu0 0
    %2988 = vmatprep.mubr.bf16.mxu0 0
    %2989 = vmatmul.mubr.bf16.gmra.mrb[0].mxu0 %v2954
    %v2990 = vpop.f32.mrb[0].mxu0
    %v2991 = vadd.f32 0.0, %v2990
    %v2992 = vpop.f32.mrb[0].mxu0
    %v2993 = vpop.f32.mrb[0].mxu0
    %v2994 = vadd.f32 0.0, %v2993
    %v2995 = vpop.f32.mrb[0].mxu0
    %2996 = vdwg.mxu0
    %v2998 = vsel %vm443, %v2817, 0
    %3000 = vmatprep.subr.bf16.mxu0 0
    %3001 = vmatpush1.bf16.msra.mxu0 %v2234
    %3002 = vmatprep.subr.bf16.mxu0 0
    %3003 = vmatpush1.bf16.msra.mxu0 0
    %3004 = vmatprep.subr.bf16.mxu0 0
    %3005 = vmatpush1.bf16.msra.mxu0 0
    %3006 = vmatprep.subr.bf16.mxu0 0
    %3007 = vmatpush1.bf16.msra.mxu0 0
    %3008 = vmatprep.subr.bf16.mxu0 0
    %3009 = vmatpush1.bf16.msra.mxu0 0
    %3010 = vmatprep.subr.bf16.mxu0 0
    %3011 = vmatpush1.bf16.msra.mxu0 0
    %3012 = vmatprep.subr.bf16.mxu0 0
    %3013 = vmatpush1.bf16.msra.mxu0 0
    %3014 = vmatprep.subr.bf16.mxu0 0
    %3015 = vmatpush1.bf16.msra.mxu0 0
    %3016 = vmatprep.subr.bf16.mxu0 0
    %3017 = vmatpush1.bf16.msra.mxu0 0
    %3018 = vmatprep.subr.bf16.mxu0 0
    %3019 = vmatpush1.bf16.msra.mxu0 0
    %3020 = vmatprep.subr.bf16.mxu0 0
    %3021 = vmatpush1.bf16.msra.mxu0 0
    %3022 = vmatprep.subr.bf16.mxu0 0
    %3023 = vmatpush1.bf16.msra.mxu0 0
    %3024 = vmatprep.subr.bf16.mxu0 0
    %3025 = vmatpush1.bf16.msra.mxu0 0
    %3026 = vmatprep.subr.bf16.mxu0 0
    %3027 = vmatpush1.bf16.msra.mxu0 0
    %3028 = vmatprep.subr.bf16.mxu0 0
    %3029 = vmatpush1.bf16.msra.mxu0 0
    %3030 = vmatprep.subr.bf16.mxu0 0
    %3031 = vmatpush1.bf16.msra.mxu0 0
    %3032 = vmatprep.mubr.bf16.mxu0 0
    %3033 = vmatmul.mubr.bf16.gmra.mrb[0].mxu0 %v2998
    %v3034 = vpop.f32.mrb[0].mxu0
    %v3035 = vadd.f32 0.0, %v3034
    %v3036 = vpop.f32.mrb[0].mxu0
    %v3037 = vpop.f32.mrb[0].mxu0
    %v3038 = vadd.f32 0.0, %v3037
    %v3039 = vpop.f32.mrb[0].mxu0
    %3040 = vdwg.mxu0
    %v3042 = vsel %vm443, %v2818, 0
    %3044 = vmatprep.subr.bf16.mxu0 0
    %3045 = vmatpush1.bf16.msra.mxu0 %v2236
    %3046 = vmatprep.subr.bf16.mxu0 0
    %3047 = vmatpush1.bf16.msra.mxu0 0
    %3048 = vmatprep.subr.bf16.mxu0 0
    %3049 = vmatpush1.bf16.msra.mxu0 0
    %3050 = vmatprep.subr.bf16.mxu0 0
    %3051 = vmatpush1.bf16.msra.mxu0 0
    %3052 = vmatprep.subr.bf16.mxu0 0
    %3053 = vmatpush1.bf16.msra.mxu0 0
    %3054 = vmatprep.subr.bf16.mxu0 0
    %3055 = vmatpush1.bf16.msra.mxu0 0
    %3056 = vmatprep.subr.bf16.mxu0 0
    %3057 = vmatpush1.bf16.msra.mxu0 0
    %3058 = vmatprep.subr.bf16.mxu0 0
    %3059 = vmatpush1.bf16.msra.mxu0 0
    %3060 = vmatprep.subr.bf16.mxu0 0
    %3061 = vmatpush1.bf16.msra.mxu0 0
    %3062 = vmatprep.subr.bf16.mxu0 0
    %3063 = vmatpush1.bf16.msra.mxu0 0
    %3064 = vmatprep.subr.bf16.mxu0 0
    %3065 = vmatpush1.bf16.msra.mxu0 0
    %3066 = vmatprep.subr.bf16.mxu0 0
    %3067 = vmatpush1.bf16.msra.mxu0 0
    %3068 = vmatprep.subr.bf16.mxu0 0
    %3069 = vmatpush1.bf16.msra.mxu0 0
    %3070 = vmatprep.subr.bf16.mxu0 0
    %3071 = vmatpush1.bf16.msra.mxu0 0
    %3072 = vmatprep.subr.bf16.mxu0 0
    %3073 = vmatpush1.bf16.msra.mxu0 0
    %3074 = vmatprep.subr.bf16.mxu0 0
    %3075 = vmatpush1.bf16.msra.mxu0 0
    %3076 = vmatprep.mubr.bf16.mxu0 0
    %3077 = vmatmul.mubr.bf16.gmra.mrb[0].mxu0 %v3042
    %v3078 = vpop.f32.mrb[0].mxu0
    %v3079 = vadd.f32 0.0, %v3078
    %v3080 = vpop.f32.mrb[0].mxu0
    %v3081 = vpop.f32.mrb[0].mxu0
    %v3082 = vadd.f32 0.0, %v3081
    %v3083 = vpop.f32.mrb[0].mxu0
    %3084 = vdwg.mxu0
    %v3086 = vsel %vm443, %v2819, 0
    %3088 = vmatprep.subr.bf16.mxu0 0
    %3089 = vmatpush1.bf16.msra.mxu0 %v2240
    %3090 = vmatprep.subr.bf16.mxu0 0
    %3091 = vmatpush1.bf16.msra.mxu0 0
    %3092 = vmatprep.subr.bf16.mxu0 0
    %3093 = vmatpush1.bf16.msra.mxu0 0
    %3094 = vmatprep.subr.bf16.mxu0 0
    %3095 = vmatpush1.bf16.msra.mxu0 0
    %3096 = vmatprep.subr.bf16.mxu0 0
    %3097 = vmatpush1.bf16.msra.mxu0 0
    %3098 = vmatprep.subr.bf16.mxu0 0
    %3099 = vmatpush1.bf16.msra.mxu0 0
    %3100 = vmatprep.subr.bf16.mxu0 0
    %3101 = vmatpush1.bf16.msra.mxu0 0
    %3102 = vmatprep.subr.bf16.mxu0 0
    %3103 = vmatpush1.bf16.msra.mxu0 0
    %3104 = vmatprep.subr.bf16.mxu0 0
    %3105 = vmatpush1.bf16.msra.mxu0 0
    %3106 = vmatprep.subr.bf16.mxu0 0
    %3107 = vmatpush1.bf16.msra.mxu0 0
    %3108 = vmatprep.subr.bf16.mxu0 0
    %3109 = vmatpush1.bf16.msra.mxu0 0
    %3110 = vmatprep.subr.bf16.mxu0 0
    %3111 = vmatpush1.bf16.msra.mxu0 0
    %3112 = vmatprep.subr.bf16.mxu0 0
    %3113 = vmatpush1.bf16.msra.mxu0 0
    %3114 = vmatprep.subr.bf16.mxu0 0
    %3115 = vmatpush1.bf16.msra.mxu0 0
    %3116 = vmatprep.subr.bf16.mxu0 0
    %3117 = vmatpush1.bf16.msra.mxu0 0
    %3118 = vmatprep.subr.bf16.mxu0 0
    %3119 = vmatpush1.bf16.msra.mxu0 0
    %3120 = vmatprep.mubr.bf16.mxu0 0
    %3121 = vmatmul.mubr.bf16.gmra.mrb[0].mxu0 %v3086
    %v3122 = vpop.f32.mrb[0].mxu0
    %v3123 = vadd.f32 0.0, %v3122
    %v3124 = vpop.f32.mrb[0].mxu0
    %v3125 = vpop.f32.mrb[0].mxu0
    %v3126 = vadd.f32 0.0, %v3125
    %v3127 = vpop.f32.mrb[0].mxu0
    %3128 = vdwg.mxu0
    %v3130 = vsel %vm443, %v2820, 0
    %3132 = vmatprep.subr.bf16.mxu0 0
    %3133 = vmatpush1.bf16.msra.mxu0 %v2242
    %3134 = vmatprep.subr.bf16.mxu0 0
    %3135 = vmatpush1.bf16.msra.mxu0 0
    %3136 = vmatprep.subr.bf16.mxu0 0
    %3137 = vmatpush1.bf16.msra.mxu0 0
    %3138 = vmatprep.subr.bf16.mxu0 0
    %3139 = vmatpush1.bf16.msra.mxu0 0
    %3140 = vmatprep.subr.bf16.mxu0 0
    %3141 = vmatpush1.bf16.msra.mxu0 0
    %3142 = vmatprep.subr.bf16.mxu0 0
    %3143 = vmatpush1.bf16.msra.mxu0 0
    %3144 = vmatprep.subr.bf16.mxu0 0
    %3145 = vmatpush1.bf16.msra.mxu0 0
    %3146 = vmatprep.subr.bf16.mxu0 0
    %3147 = vmatpush1.bf16.msra.mxu0 0
    %3148 = vmatprep.subr.bf16.mxu0 0
    %3149 = vmatpush1.bf16.msra.mxu0 0
    %3150 = vmatprep.subr.bf16.mxu0 0
    %3151 = vmatpush1.bf16.msra.mxu0 0
    %3152 = vmatprep.subr.bf16.mxu0 0
    %3153 = vmatpush1.bf16.msra.mxu0 0
    %3154 = vmatprep.subr.bf16.mxu0 0
    %3155 = vmatpush1.bf16.msra.mxu0 0
    %3156 = vmatprep.subr.bf16.mxu0 0
    %3157 = vmatpush1.bf16.msra.mxu0 0
    %3158 = vmatprep.subr.bf16.mxu0 0
    %3159 = vmatpush1.bf16.msra.mxu0 0
    %3160 = vmatprep.subr.bf16.mxu0 0
    %3161 = vmatpush1.bf16.msra.mxu0 0
    %3162 = vmatprep.subr.bf16.mxu0 0
    %3163 = vmatpush1.bf16.msra.mxu0 0
    %3164 = vmatprep.mubr.bf16.mxu0 0
    %3165 = vmatmul.mubr.bf16.gmra.mrb[0].mxu0 %v3130
    %v3166 = vpop.f32.mrb[0].mxu0
    %v3167 = vadd.f32 0.0, %v3166
    %v3168 = vpop.f32.mrb[0].mxu0
    %v3169 = vpop.f32.mrb[0].mxu0
    %v3170 = vadd.f32 0.0, %v3169
    %v3171 = vpop.f32.mrb[0].mxu0
    %3172 = vdwg.mxu0
    %v3173 = vpack.c.bf16 %v2862, %v2859
    %v3174 = vpack.c.bf16 %v2906, %v2903
    %v3175 = vpack.c.bf16 %v2950, %v2947
    %v3176 = vpack.c.bf16 %v2994, %v2991
    %v3177 = vpack.c.bf16 %v3038, %v3035
    %v3178 = vpack.c.bf16 %v3082, %v3079
    %v3179 = vpack.c.bf16 %v3126, %v3123
    %v3180 = vpack.c.bf16 %v3170, %v3167
    %s3181 = scalar_lea.vmem %s5, 32
    %v3182 = vld [vmem:[%s3181] sm:$0xf]
    %v3183 = vld [vmem:[%s3181 + $0x4] sm:$0xf]
    %v3184 = vld [vmem:[%s3181 + $0x8] sm:$0xf]
    %v3185 = vld [vmem:[%s3181 + $0xc] sm:$0xf]
    %v3186 = vld [vmem:[%s3181 + $0x10] sm:$0xf]
    %v3187 = vld [vmem:[%s3181 + $0x14] sm:$0xf]
    %v3188 = vld [vmem:[%s3181 + $0x18] sm:$0xf]
    %v3189 = vld [vmem:[%s3181 + $0x1c] sm:$0xf]
    %v3192 = vunpack.c.l.b16 %v3182
    %v3193 = vunpack.c.l.b16 %v3183
    %v3194 = vpack.c.b16 %v3193, %v3192
    %v3197 = vsel %vm443, %v3173, 0
    %v3200 = vsel %vm443, %v3174, 0
    %3202 = vmatprep.subr.bf16.mxu0 0
    %3203 = vmatpush1.bf16.msra.mxu0 %v3194
    %3204 = vmatprep.subr.bf16.mxu0 0
    %3205 = vmatpush1.bf16.msra.mxu0 0
    %3206 = vmatprep.subr.bf16.mxu0 0
    %3207 = vmatpush1.bf16.msra.mxu0 0
    %3208 = vmatprep.subr.bf16.mxu0 0
    %3209 = vmatpush1.bf16.msra.mxu0 0
    %3210 = vmatprep.subr.bf16.mxu0 0
    %3211 = vmatpush1.bf16.msra.mxu0 0
    %3212 = vmatprep.subr.bf16.mxu0 0
    %3213 = vmatpush1.bf16.msra.mxu0 0
    %3214 = vmatprep.subr.bf16.mxu0 0
    %3215 = vmatpush1.bf16.msra.mxu0 0
    %3216 = vmatprep.subr.bf16.mxu0 0
    %3217 = vmatpush1.bf16.msra.mxu0 0
    %3218 = vmatprep.subr.bf16.mxu0 0
    %3219 = vmatpush1.bf16.msra.mxu0 0
    %3220 = vmatprep.subr.bf16.mxu0 0
    %3221 = vmatpush1.bf16.msra.mxu0 0
    %3222 = vmatprep.subr.bf16.mxu0 0
    %3223 = vmatpush1.bf16.msra.mxu0 0
    %3224 = vmatprep.subr.bf16.mxu0 0
    %3225 = vmatpush1.bf16.msra.mxu0 0
    %3226 = vmatprep.subr.bf16.mxu0 0
    %3227 = vmatpush1.bf16.msra.mxu0 0
    %3228 = vmatprep.subr.bf16.mxu0 0
    %3229 = vmatpush1.bf16.msra.mxu0 0
    %3230 = vmatprep.subr.bf16.mxu0 0
    %3231 = vmatpush1.bf16.msra.mxu0 0
    %3232 = vmatprep.subr.bf16.mxu0 0
    %3233 = vmatpush1.bf16.msra.mxu0 0
    %3234 = vmatprep.mubr.bf16.mxu0 0
    %3235 = vmatmul.mubr.bf16.gmra.mrb[0].mxu0 %v3197
    %v3236 = vpop.f32.mrb[0].mxu0
    %v3237 = vadd.f32 0.0, %v3236
    %v3238 = vpop.f32.mrb[0].mxu0
    %v3239 = vpop.f32.mrb[0].mxu0
    %v3240 = vadd.f32 0.0, %v3239
    %v3241 = vpop.f32.mrb[0].mxu0
    %3242 = vmatprep.mubr.bf16.mxu0 0
    %3243 = vmatmul.mubr.bf16.gmra.mrb[0].mxu0 %v3200
    %v3244 = vpop.f32.mrb[0].mxu0
    %v3245 = vadd.f32 0.0, %v3244
    %v3246 = vpop.f32.mrb[0].mxu0
    %v3247 = vpop.f32.mrb[0].mxu0
    %v3248 = vadd.f32 0.0, %v3247
    %v3249 = vpop.f32.mrb[0].mxu0
    %3250 = vdwg.mxu0
    %v3253 = vunpack.c.l.b16 %v3184
    %v3254 = vunpack.c.l.b16 %v3185
    %v3255 = vpack.c.b16 %v3254, %v3253
    %v3258 = vsel %vm443, %v3175, 0
    %v3261 = vsel %vm443, %v3176, 0
    %3263 = vmatprep.subr.bf16.mxu0 0
    %3264 = vmatpush1.bf16.msra.mxu0 %v3255
    %3265 = vmatprep.subr.bf16.mxu0 0
    %3266 = vmatpush1.bf16.msra.mxu0 0
    %3267 = vmatprep.subr.bf16.mxu0 0
    %3268 = vmatpush1.bf16.msra.mxu0 0
    %3269 = vmatprep.subr.bf16.mxu0 0
    %3270 = vmatpush1.bf16.msra.mxu0 0
    %3271 = vmatprep.subr.bf16.mxu0 0
    %3272 = vmatpush1.bf16.msra.mxu0 0
    %3273 = vmatprep.subr.bf16.mxu0 0
    %3274 = vmatpush1.bf16.msra.mxu0 0
    %3275 = vmatprep.subr.bf16.mxu0 0
    %3276 = vmatpush1.bf16.msra.mxu0 0
    %3277 = vmatprep.subr.bf16.mxu0 0
    %3278 = vmatpush1.bf16.msra.mxu0 0
    %3279 = vmatprep.subr.bf16.mxu0 0
    %3280 = vmatpush1.bf16.msra.mxu0 0
    %3281 = vmatprep.subr.bf16.mxu0 0
    %3282 = vmatpush1.bf16.msra.mxu0 0
    %3283 = vmatprep.subr.bf16.mxu0 0
    %3284 = vmatpush1.bf16.msra.mxu0 0
    %3285 = vmatprep.subr.bf16.mxu0 0
    %3286 = vmatpush1.bf16.msra.mxu0 0
    %3287 = vmatprep.subr.bf16.mxu0 0
    %3288 = vmatpush1.bf16.msra.mxu0 0
    %3289 = vmatprep.subr.bf16.mxu0 0
    %3290 = vmatpush1.bf16.msra.mxu0 0
    %3291 = vmatprep.subr.bf16.mxu0 0
    %3292 = vmatpush1.bf16.msra.mxu0 0
    %3293 = vmatprep.subr.bf16.mxu0 0
    %3294 = vmatpush1.bf16.msra.mxu0 0
    %3295 = vmatprep.mubr.bf16.mxu0 0
    %3296 = vmatmul.mubr.bf16.gmra.mrb[0].mxu0 %v3258
    %v3297 = vpop.f32.mrb[0].mxu0
    %v3298 = vadd.f32 0.0, %v3297
    %v3299 = vpop.f32.mrb[0].mxu0
    %v3300 = vpop.f32.mrb[0].mxu0
    %v3301 = vadd.f32 0.0, %v3300
    %v3302 = vpop.f32.mrb[0].mxu0
    %3303 = vmatprep.mubr.bf16.mxu0 0
    %3304 = vmatmul.mubr.bf16.gmra.mrb[0].mxu0 %v3261
    %v3305 = vpop.f32.mrb[0].mxu0
    %v3306 = vadd.f32 0.0, %v3305
    %v3307 = vpop.f32.mrb[0].mxu0
    %v3308 = vpop.f32.mrb[0].mxu0
    %v3309 = vadd.f32 0.0, %v3308
    %v3310 = vpop.f32.mrb[0].mxu0
    %3311 = vdwg.mxu0
    %v3314 = vunpack.c.l.b16 %v3186
    %v3315 = vunpack.c.l.b16 %v3187
    %v3316 = vpack.c.b16 %v3315, %v3314
    %v3319 = vsel %vm443, %v3177, 0
    %v3322 = vsel %vm443, %v3178, 0
    %3324 = vmatprep.subr.bf16.mxu0 0
    %3325 = vmatpush1.bf16.msra.mxu0 %v3316
    %3326 = vmatprep.subr.bf16.mxu0 0
    %3327 = vmatpush1.bf16.msra.mxu0 0
    %3328 = vmatprep.subr.bf16.mxu0 0
    %3329 = vmatpush1.bf16.msra.mxu0 0
    %3330 = vmatprep.subr.bf16.mxu0 0
    %3331 = vmatpush1.bf16.msra.mxu0 0
    %3332 = vmatprep.subr.bf16.mxu0 0
    %3333 = vmatpush1.bf16.msra.mxu0 0
    %3334 = vmatprep.subr.bf16.mxu0 0
    %3335 = vmatpush1.bf16.msra.mxu0 0
    %3336 = vmatprep.subr.bf16.mxu0 0
    %3337 = vmatpush1.bf16.msra.mxu0 0
    %3338 = vmatprep.subr.bf16.mxu0 0
    %3339 = vmatpush1.bf16.msra.mxu0 0
    %3340 = vmatprep.subr.bf16.mxu0 0
    %3341 = vmatpush1.bf16.msra.mxu0 0
    %3342 = vmatprep.subr.bf16.mxu0 0
    %3343 = vmatpush1.bf16.msra.mxu0 0
    %3344 = vmatprep.subr.bf16.mxu0 0
    %3345 = vmatpush1.bf16.msra.mxu0 0
    %3346 = vmatprep.subr.bf16.mxu0 0
    %3347 = vmatpush1.bf16.msra.mxu0 0
    %3348 = vmatprep.subr.bf16.mxu0 0
    %3349 = vmatpush1.bf16.msra.mxu0 0
    %3350 = vmatprep.subr.bf16.mxu0 0
    %3351 = vmatpush1.bf16.msra.mxu0 0
    %3352 = vmatprep.subr.bf16.mxu0 0
    %3353 = vmatpush1.bf16.msra.mxu0 0
    %3354 = vmatprep.subr.bf16.mxu0 0
    %3355 = vmatpush1.bf16.msra.mxu0 0
    %3356 = vmatprep.mubr.bf16.mxu0 0
    %3357 = vmatmul.mubr.bf16.gmra.mrb[0].mxu0 %v3319
    %v3358 = vpop.f32.mrb[0].mxu0
    %v3359 = vadd.f32 0.0, %v3358
    %v3360 = vpop.f32.mrb[0].mxu0
    %v3361 = vpop.f32.mrb[0].mxu0
    %v3362 = vadd.f32 0.0, %v3361
    %v3363 = vpop.f32.mrb[0].mxu0
    %3364 = vmatprep.mubr.bf16.mxu0 0
    %3365 = vmatmul.mubr.bf16.gmra.mrb[0].mxu0 %v3322
    %v3366 = vpop.f32.mrb[0].mxu0
    %v3367 = vadd.f32 0.0, %v3366
    %v3368 = vpop.f32.mrb[0].mxu0
    %v3369 = vpop.f32.mrb[0].mxu0
    %v3370 = vadd.f32 0.0, %v3369
    %v3371 = vpop.f32.mrb[0].mxu0
    %3372 = vdwg.mxu0
    %v3375 = vunpack.c.l.b16 %v3188
    %v3376 = vunpack.c.l.b16 %v3189
    %v3377 = vpack.c.b16 %v3376, %v3375
    %v3380 = vsel %vm443, %v3179, 0
    %v3383 = vsel %vm443, %v3180, 0
    %3385 = vmatprep.subr.bf16.mxu0 0
    %3386 = vmatpush1.bf16.msra.mxu0 %v3377
    %3387 = vmatprep.subr.bf16.mxu0 0
    %3388 = vmatpush1.bf16.msra.mxu0 0
    %3389 = vmatprep.subr.bf16.mxu0 0
    %3390 = vmatpush1.bf16.msra.mxu0 0
    %3391 = vmatprep.subr.bf16.mxu0 0
    %3392 = vmatpush1.bf16.msra.mxu0 0
    %3393 = vmatprep.subr.bf16.mxu0 0
    %3394 = vmatpush1.bf16.msra.mxu0 0
    %3395 = vmatprep.subr.bf16.mxu0 0
    %3396 = vmatpush1.bf16.msra.mxu0 0
    %3397 = vmatprep.subr.bf16.mxu0 0
    %3398 = vmatpush1.bf16.msra.mxu0 0
    %3399 = vmatprep.subr.bf16.mxu0 0
    %3400 = vmatpush1.bf16.msra.mxu0 0
    %3401 = vmatprep.subr.bf16.mxu0 0
    %3402 = vmatpush1.bf16.msra.mxu0 0
    %3403 = vmatprep.subr.bf16.mxu0 0
    %3404 = vmatpush1.bf16.msra.mxu0 0
    %3405 = vmatprep.subr.bf16.mxu0 0
    %3406 = vmatpush1.bf16.msra.mxu0 0
    %3407 = vmatprep.subr.bf16.mxu0 0
    %3408 = vmatpush1.bf16.msra.mxu0 0
    %3409 = vmatprep.subr.bf16.mxu0 0
    %3410 = vmatpush1.bf16.msra.mxu0 0
    %3411 = vmatprep.subr.bf16.mxu0 0
    %3412 = vmatpush1.bf16.msra.mxu0 0
    %3413 = vmatprep.subr.bf16.mxu0 0
    %3414 = vmatpush1.bf16.msra.mxu0 0
    %3415 = vmatprep.subr.bf16.mxu0 0
    %3416 = vmatpush1.bf16.msra.mxu0 0
    %3417 = vmatprep.mubr.bf16.mxu0 0
    %3418 = vmatmul.mubr.bf16.gmra.mrb[0].mxu0 %v3380
    %v3419 = vpop.f32.mrb[0].mxu0
    %v3420 = vadd.f32 0.0, %v3419
    %v3421 = vpop.f32.mrb[0].mxu0
    %v3422 = vpop.f32.mrb[0].mxu0
    %v3423 = vadd.f32 0.0, %v3422
    %v3424 = vpop.f32.mrb[0].mxu0
    %3425 = vmatprep.mubr.bf16.mxu0 0
    %3426 = vmatmul.mubr.bf16.gmra.mrb[0].mxu0 %v3383
    %v3427 = vpop.f32.mrb[0].mxu0
    %v3428 = vadd.f32 0.0, %v3427
    %v3429 = vpop.f32.mrb[0].mxu0
    %v3430 = vpop.f32.mrb[0].mxu0
    %v3431 = vadd.f32 0.0, %v3430
    %v3432 = vpop.f32.mrb[0].mxu0
    %3433 = vdwg.mxu0
    %v3434 = vsel %vm201, %v3237, 0.0
    %v3435 = vsel %vm201, %v3298, 0.0
    %v3436 = vadd.f32 %v3434, %v3435
    %v3437 = vsel %vm201, %v3359, 0.0
    %v3438 = vadd.f32 %v3436, %v3437
    %v3439 = vsel %vm201, %v3420, 0.0
    %v3440 = vadd.f32 %v3438, %v3439
    %v3441 = vsel %vm201, %v3240, 0.0
    %v3442 = vsel %vm201, %v3301, 0.0
    %v3443 = vadd.f32 %v3441, %v3442
    %v3444 = vsel %vm201, %v3362, 0.0
    %v3445 = vadd.f32 %v3443, %v3444
    %v3446 = vsel %vm201, %v3423, 0.0
    %v3447 = vadd.f32 %v3445, %v3446
    %v3448 = vsel %vm201, %v3245, 0.0
    %v3449 = vsel %vm201, %v3306, 0.0
    %v3450 = vadd.f32 %v3448, %v3449
    %v3451 = vsel %vm201, %v3367, 0.0
    %v3452 = vadd.f32 %v3450, %v3451
    %v3453 = vsel %vm201, %v3428, 0.0
    %v3454 = vadd.f32 %v3452, %v3453
    %v3455 = vsel %vm201, %v3248, 0.0
    %v3456 = vsel %vm201, %v3309, 0.0
    %v3457 = vadd.f32 %v3455, %v3456
    %v3458 = vsel %vm201, %v3370, 0.0
    %v3459 = vadd.f32 %v3457, %v3458
    %v3460 = vsel %vm201, %v3431, 0.0
    %v3461 = vadd.f32 %v3459, %v3460
    %v3462 = vadd.f32 %v1998, %v3440
    %v3463 = vadd.f32 %v1999, %v3447
    %v3464 = vadd.f32 %v2000, %v3454
    %v3465 = vadd.f32 %v2001, %v3461
    %v3466 = vlaneseq
    %v3467 = vshrl.u32 %v3466, 7
    %v3468 = vsub.s32 4, %v3467
    %v3469 = vrot.slane %v2003, %v3468
    %v3470 = vadd.f32 %v3462, %v3469
    %v3471 = vadd.f32 %v3463, %v3469
    %v3472 = vadd.f32 %v3464, %v3469
    %v3473 = vadd.f32 %v3465, %v3469
    %v3474 = vsel %vm201, %v3470, 0.0
    %3475 = vadd.xlane.f32.xlu0 %v3474
    %v3476 = vpop.xlane.xlu0 %3475
    %v3477 = vsel %vm201, %v3471, 0.0
    %3478 = vadd.xlane.f32.xlu0 %v3477
    %v3479 = vpop.xlane.xlu0 %3478
    %v3480 = vsel %vm201, %v3472, 0.0
    %3481 = vadd.xlane.f32.xlu0 %v3480
    %v3482 = vpop.xlane.xlu0 %3481
    %v3483 = vsel %vm201, %v3473, 0.0
    %3484 = vadd.xlane.f32.xlu0 %v3483
    %v3485 = vpop.xlane.xlu0 %3484
    %v3486 = vmul.f32 %v3470, %v3470
    %v3487 = vmul.f32 %v3471, %v3471
    %v3488 = vmul.f32 %v3472, %v3472
    %v3489 = vmul.f32 %v3473, %v3473
    %v3490 = vsel %vm201, %v3486, 0.0
    %3491 = vadd.xlane.f32.xlu0 %v3490
    %v3492 = vpop.xlane.xlu0 %3491
    %v3493 = vsel %vm201, %v3487, 0.0
    %3494 = vadd.xlane.f32.xlu0 %v3493
    %v3495 = vpop.xlane.xlu0 %3494
    %v3496 = vsel %vm201, %v3488, 0.0
    %3497 = vadd.xlane.f32.xlu0 %v3496
    %v3498 = vpop.xlane.xlu0 %3497
    %v3499 = vsel %vm201, %v3489, 0.0
    %3500 = vadd.xlane.f32.xlu0 %v3499
    %v3501 = vpop.xlane.xlu0 %3500
    %v3502 = vmul.f32 %v3476, 0.015625
    %v3503 = vmul.f32 %v3479, 0.015625
    %v3504 = vmul.f32 %v3482, 0.015625
    %v3505 = vmul.f32 %v3485, 0.015625
    %v3506 = vmul.f32 %v3492, 0.015625
    %v3507 = vmul.f32 %v3495, 0.015625
    %v3508 = vmul.f32 %v3498, 0.015625
    %v3509 = vmul.f32 %v3501, 0.015625
    %v3510 = vmul.f32 %v3502, %v3502
    %v3511 = vmul.f32 %v3503, %v3503
    %v3512 = vmul.f32 %v3504, %v3504
    %v3513 = vmul.f32 %v3505, %v3505
    %v3514 = vsub.f32 %v3506, %v3510
    %v3515 = vsub.f32 %v3507, %v3511
    %v3516 = vsub.f32 %v3508, %v3512
    %v3517 = vsub.f32 %v3509, %v3513
    %v3518 = vmax.f32 %v3514, 0.0
    %v3519 = vmax.f32 %v3515, 0.0
    %v3520 = vmax.f32 %v3516, 0.0
    %v3521 = vmax.f32 %v3517, 0.0
    %v3522 = vsub.f32 %v3470, %v3502
    %v3523 = vsub.f32 %v3471, %v3503
    %v3524 = vsub.f32 %v3472, %v3504
    %v3525 = vsub.f32 %v3473, %v3505
    %v3526 = vadd.f32 %v3518, 1e-06
    %v3527 = vadd.f32 %v3519, 1e-06
    %v3528 = vadd.f32 %v3520, 1e-06
    %v3529 = vadd.f32 %v3521, 1e-06
    %v3530 = vrsqrt.pop %v3526
    %v3531 = vrsqrt.pop %v3527
    %v3532 = vrsqrt.pop %v3528
    %v3533 = vrsqrt.pop %v3529
    %v3534 = vmul.f32 %v3522, %v3530
    %v3535 = vmul.f32 %v3523, %v3531
    %v3536 = vmul.f32 %v3524, %v3532
    %v3537 = vmul.f32 %v3525, %v3533
    %v3538 = vlaneseq
    %v3539 = vshrl.u32 %v3538, 7
    %v3540 = vsub.s32 2, %v3539
    %v3541 = vrot.slane %v2003, %v3540
    %v3542 = vmul.f32 %v3534, %v3541
    %v3543 = vmul.f32 %v3535, %v3541
    %v3544 = vmul.f32 %v3536, %v3541
    %v3545 = vmul.f32 %v3537, %v3541
    %v3546 = vlaneseq
    %v3547 = vshrl.u32 %v3546, 7
    %v3548 = vsub.s32 3, %v3547
    %v3549 = vrot.slane %v2003, %v3548
    %v3550 = vadd.f32 %v3542, %v3549
    %v3551 = vadd.f32 %v3543, %v3549
    %v3552 = vadd.f32 %v3544, %v3549
    %v3553 = vadd.f32 %v3545, %v3549
    %v3554 = vpack.c.bf16 %v3551, %v3550
    %v3555 = vpack.c.bf16 %v3553, %v3552
    %s3556 = scalar_lea.vmem %s6, 32
    %v3557 = vld [vmem:[%s3556] sm:$0xf]
    %v3558 = vld [vmem:[%s3556 + $0x4] sm:$0xf]
    %v3559 = vld [vmem:[%s3556 + $0x8] sm:$0xf]
    %v3560 = vld [vmem:[%s3556 + $0xc] sm:$0xf]
    %v3561 = vld [vmem:[%s3556 + $0x10] sm:$0xf]
    %v3562 = vld [vmem:[%s3556 + $0x14] sm:$0xf]
    %v3563 = vld [vmem:[%s3556 + $0x18] sm:$0xf]
    %v3564 = vld [vmem:[%s3556 + $0x1c] sm:$0xf]
    %v3565 = vlaneseq
    %v3566 = vshrl.u32 %v3565, 7
    %v3567 = vsub.s32 6, %v3566
    %v3568 = vrot.slane %v2003, %v3567
    %v3577 = vunpack.c.l.b16 %v3557
    %v3578 = vunpack.c.l.b16 %v3558
    %v3579 = vunpack.c.l.b16 %v3559
    %v3580 = vunpack.c.l.b16 %v3560
    %v3581 = vunpack.c.l.b16 %v3561
    %v3582 = vunpack.c.l.b16 %v3562
    %v3583 = vunpack.c.l.b16 %v3563
    %v3584 = vunpack.c.l.b16 %v3564
    %v3585 = vpack.c.b16 %v3578, %v3577
    %v3586 = vpack.c.b16 %v3580, %v3579
    %v3587 = vpack.c.b16 %v3582, %v3581
    %v3588 = vpack.c.b16 %v3584, %v3583
    %v3594 = vsel %vm201, %v3554, 0
    %v3597 = vsel %vm201, %v3555, 0
    %3599 = vmatprep.subr.bf16.mxu0 0
    %3600 = vmatpush1.bf16.msra.mxu0 %v3585
    %3601 = vmatprep.subr.bf16.mxu0 0
    %3602 = vmatpush1.bf16.msra.mxu0 %v3586
    %3603 = vmatprep.subr.bf16.mxu0 0
    %3604 = vmatpush1.bf16.msra.mxu0 %v3587
    %3605 = vmatprep.subr.bf16.mxu0 0
    %3606 = vmatpush1.bf16.msra.mxu0 %v3588
    %3607 = vmatprep.subr.bf16.mxu0 0
    %3608 = vmatpush1.bf16.msra.mxu0 0
    %3609 = vmatprep.subr.bf16.mxu0 0
    %3610 = vmatpush1.bf16.msra.mxu0 0
    %3611 = vmatprep.subr.bf16.mxu0 0
    %3612 = vmatpush1.bf16.msra.mxu0 0
    %3613 = vmatprep.subr.bf16.mxu0 0
    %3614 = vmatpush1.bf16.msra.mxu0 0
    %3615 = vmatprep.subr.bf16.mxu0 0
    %3616 = vmatpush1.bf16.msra.mxu0 0
    %3617 = vmatprep.subr.bf16.mxu0 0
    %3618 = vmatpush1.bf16.msra.mxu0 0
    %3619 = vmatprep.subr.bf16.mxu0 0
    %3620 = vmatpush1.bf16.msra.mxu0 0
    %3621 = vmatprep.subr.bf16.mxu0 0
    %3622 = vmatpush1.bf16.msra.mxu0 0
    %3623 = vmatprep.subr.bf16.mxu0 0
    %3624 = vmatpush1.bf16.msra.mxu0 0
    %3625 = vmatprep.subr.bf16.mxu0 0
    %3626 = vmatpush1.bf16.msra.mxu0 0
    %3627 = vmatprep.subr.bf16.mxu0 0
    %3628 = vmatpush1.bf16.msra.mxu0 0
    %3629 = vmatprep.subr.bf16.mxu0 0
    %3630 = vmatpush1.bf16.msra.mxu0 0
    %3631 = vmatprep.mubr.bf16.mxu0 0
    %3632 = vmatmul.mubr.bf16.gmra.mrb[0].mxu0 %v3594
    %v3633 = vpop.f32.mrb[0].mxu0
    %v3634 = vadd.f32 %v3568, %v3633
    %v3635 = vpop.f32.mrb[0].mxu0
    %v3636 = vpop.f32.mrb[0].mxu0
    %v3637 = vadd.f32 %v3568, %v3636
    %v3638 = vpop.f32.mrb[0].mxu0
    %3639 = vmatprep.mubr.bf16.mxu0 0
    %3640 = vmatmul.mubr.bf16.gmra.mrb[0].mxu0 %v3597
    %v3641 = vpop.f32.mrb[0].mxu0
    %v3642 = vadd.f32 %v3568, %v3641
    %v3643 = vpop.f32.mrb[0].mxu0
    %v3644 = vpop.f32.mrb[0].mxu0
    %v3645 = vadd.f32 %v3568, %v3644
    %v3646 = vpop.f32.mrb[0].mxu0
    %3647 = vdwg.mxu0
    %v3648 = vmul.f32 %v3634, %v3634
    %v3649 = vmul.f32 %v3637, %v3637
    %v3650 = vmul.f32 %v3642, %v3642
    %v3651 = vmul.f32 %v3645, %v3645
    %v3652 = vmul.f32 %v3634, %v3648
    %v3653 = vmul.f32 %v3637, %v3649
    %v3654 = vmul.f32 %v3642, %v3650
    %v3655 = vmul.f32 %v3645, %v3651
    %v3656 = vmul.f32 %v3652, 0.044715
    %v3657 = vmul.f32 %v3653, 0.044715
    %v3658 = vmul.f32 %v3654, 0.044715
    %v3659 = vmul.f32 %v3655, 0.044715
    %v3660 = vadd.f32 %v3634, %v3656
    %v3661 = vadd.f32 %v3637, %v3657
    %v3662 = vadd.f32 %v3642, %v3658
    %v3663 = vadd.f32 %v3645, %v3659
    %v3664 = vmul.f32 %v3660, 0.7978846
    %v3665 = vmul.f32 %v3661, 0.7978846
    %v3666 = vmul.f32 %v3662, 0.7978846
    %v3667 = vmul.f32 %v3663, 0.7978846
    %v3668 = vtanh.pop %v3664
    %v3669 = vtanh.pop %v3665
    %v3670 = vtanh.pop %v3666
    %v3671 = vtanh.pop %v3667
    %v3672 = vadd.f32 %v3668, 1.0
    %v3673 = vadd.f32 %v3669, 1.0
    %v3674 = vadd.f32 %v3670, 1.0
    %v3675 = vadd.f32 %v3671, 1.0
    %v3676 = vmul.f32 %v3672, 0.5
    %v3677 = vmul.f32 %v3673, 0.5
    %v3678 = vmul.f32 %v3674, 0.5
    %v3679 = vmul.f32 %v3675, 0.5
    %v3680 = vmul.f32 %v3634, %v3676
    %v3681 = vmul.f32 %v3637, %v3677
    %v3682 = vmul.f32 %v3642, %v3678
    %v3683 = vmul.f32 %v3645, %v3679
    %v3684 = vpack.c.bf16 %v3681, %v3680
    %v3685 = vpack.c.bf16 %v3683, %v3682
    %s3686 = scalar_lea.vmem %s7, 64
    %v3687 = vld [vmem:[%s3686] sm:$0xf]
    %v3688 = vld [vmem:[%s3686 + $0x4] sm:$0xf]
    %v3689 = vld [vmem:[%s3686 + $0x8] sm:$0xf]
    %v3690 = vld [vmem:[%s3686 + $0xc] sm:$0xf]
    %v3691 = vld [vmem:[%s3686 + $0x10] sm:$0xf]
    %v3692 = vld [vmem:[%s3686 + $0x14] sm:$0xf]
    %v3693 = vld [vmem:[%s3686 + $0x18] sm:$0xf]
    %v3694 = vld [vmem:[%s3686 + $0x1c] sm:$0xf]
    %v3695 = vld [vmem:[%s3686 + $0x20] sm:$0xf]
    %v3696 = vld [vmem:[%s3686 + $0x24] sm:$0xf]
    %v3697 = vld [vmem:[%s3686 + $0x28] sm:$0xf]
    %v3698 = vld [vmem:[%s3686 + $0x2c] sm:$0xf]
    %v3699 = vld [vmem:[%s3686 + $0x30] sm:$0xf]
    %v3700 = vld [vmem:[%s3686 + $0x34] sm:$0xf]
    %v3701 = vld [vmem:[%s3686 + $0x38] sm:$0xf]
    %v3702 = vld [vmem:[%s3686 + $0x3c] sm:$0xf]
    %v3703 = vlaneseq
    %v3704 = vshrl.u32 %v3703, 7
    %v3705 = vsub.s32 5, %v3704
    %v3706 = vrot.slane %v2003, %v3705
    %v3723 = vunpack.c.l.b16 %v3687
    %v3724 = vunpack.c.l.b16 %v3688
    %v3725 = vunpack.c.l.b16 %v3689
    %v3726 = vunpack.c.l.b16 %v3690
    %v3727 = vunpack.c.l.b16 %v3691
    %v3728 = vunpack.c.l.b16 %v3692
    %v3729 = vunpack.c.l.b16 %v3693
    %v3730 = vunpack.c.l.b16 %v3694
    %v3731 = vunpack.c.l.b16 %v3695
    %v3732 = vunpack.c.l.b16 %v3696
    %v3733 = vunpack.c.l.b16 %v3697
    %v3734 = vunpack.c.l.b16 %v3698
    %v3735 = vunpack.c.l.b16 %v3699
    %v3736 = vunpack.c.l.b16 %v3700
    %v3737 = vunpack.c.l.b16 %v3701
    %v3738 = vunpack.c.l.b16 %v3702
    %v3739 = vpack.c.b16 %v3724, %v3723
    %v3740 = vpack.c.b16 %v3726, %v3725
    %v3741 = vpack.c.b16 %v3728, %v3727
    %v3742 = vpack.c.b16 %v3730, %v3729
    %v3743 = vpack.c.b16 %v3732, %v3731
    %v3744 = vpack.c.b16 %v3734, %v3733
    %v3745 = vpack.c.b16 %v3736, %v3735
    %v3746 = vpack.c.b16 %v3738, %v3737
    %3755 = vmatprep.subr.bf16.mxu0 0
    %3756 = vmatpush1.bf16.msra.mxu0 %v3739
    %3757 = vmatprep.subr.bf16.mxu0 0
    %3758 = vmatpush1.bf16.msra.mxu0 %v3740
    %3759 = vmatprep.subr.bf16.mxu0 0
    %3760 = vmatpush1.bf16.msra.mxu0 %v3741
    %3761 = vmatprep.subr.bf16.mxu0 0
    %3762 = vmatpush1.bf16.msra.mxu0 %v3742
    %3763 = vmatprep.subr.bf16.mxu0 0
    %3764 = vmatpush1.bf16.msra.mxu0 %v3743
    %3765 = vmatprep.subr.bf16.mxu0 0
    %3766 = vmatpush1.bf16.msra.mxu0 %v3744
    %3767 = vmatprep.subr.bf16.mxu0 0
    %3768 = vmatpush1.bf16.msra.mxu0 %v3745
    %3769 = vmatprep.subr.bf16.mxu0 0
    %3770 = vmatpush1.bf16.msra.mxu0 %v3746
    %3771 = vmatprep.subr.bf16.mxu0 0
    %3772 = vmatpush1.bf16.msra.mxu0 0
    %3773 = vmatprep.subr.bf16.mxu0 0
    %3774 = vmatpush1.bf16.msra.mxu0 0
    %3775 = vmatprep.subr.bf16.mxu0 0
    %3776 = vmatpush1.bf16.msra.mxu0 0
    %3777 = vmatprep.subr.bf16.mxu0 0
    %3778 = vmatpush1.bf16.msra.mxu0 0
    %3779 = vmatprep.subr.bf16.mxu0 0
    %3780 = vmatpush1.bf16.msra.mxu0 0
    %3781 = vmatprep.subr.bf16.mxu0 0
    %3782 = vmatpush1.bf16.msra.mxu0 0
    %3783 = vmatprep.subr.bf16.mxu0 0
    %3784 = vmatpush1.bf16.msra.mxu0 0
    %3785 = vmatprep.subr.bf16.mxu0 0
    %3786 = vmatpush1.bf16.msra.mxu0 0
    %3787 = vmatprep.mubr.bf16.mxu0 0
    %3788 = vmatmul.mubr.bf16.gmra.mrb[0].mxu0 %v3684
    %v3789 = vpop.f32.mrb[0].mxu0
    %v3790 = vadd.f32 %v3706, %v3789
    %v3791 = vpop.f32.mrb[0].mxu0
    %v3792 = vpop.f32.mrb[0].mxu0
    %v3793 = vadd.f32 %v3706, %v3792
    %v3794 = vpop.f32.mrb[0].mxu0
    %3795 = vmatprep.mubr.bf16.mxu0 0
    %3796 = vmatmul.mubr.bf16.gmra.mrb[0].mxu0 %v3685
    %v3797 = vpop.f32.mrb[0].mxu0
    %v3798 = vadd.f32 %v3706, %v3797
    %v3799 = vpop.f32.mrb[0].mxu0
    %v3800 = vpop.f32.mrb[0].mxu0
    %v3801 = vadd.f32 %v3706, %v3800
    %v3802 = vpop.f32.mrb[0].mxu0
    %3803 = vdwg.mxu0
    %v3804 = vadd.f32 %v3470, %v3790
    %v3805 = vadd.f32 %v3471, %v3793
    %v3806 = vadd.f32 %v3472, %v3798
    %v3807 = vadd.f32 %v3473, %v3801
    %v3808 = vld [vmem:[%s9] sm:$0x1]
    %v3809 = vld [vmem:[%s9 + $0x1] sm:$0x1]
    %v3810 = vsel %vm201, %v3804, 0.0
    %3811 = vadd.xlane.f32.xlu0 %v3810
    %v3812 = vpop.xlane.xlu0 %3811
    %v3813 = vsel %vm201, %v3805, 0.0
    %3814 = vadd.xlane.f32.xlu0 %v3813
    %v3815 = vpop.xlane.xlu0 %3814
    %v3816 = vsel %vm201, %v3806, 0.0
    %3817 = vadd.xlane.f32.xlu0 %v3816
    %v3818 = vpop.xlane.xlu0 %3817
    %v3819 = vsel %vm201, %v3807, 0.0
    %3820 = vadd.xlane.f32.xlu0 %v3819
    %v3821 = vpop.xlane.xlu0 %3820
    %v3822 = vmul.f32 %v3804, %v3804
    %v3823 = vmul.f32 %v3805, %v3805
    %v3824 = vmul.f32 %v3806, %v3806
    %v3825 = vmul.f32 %v3807, %v3807
    %v3826 = vsel %vm201, %v3822, 0.0
    %3827 = vadd.xlane.f32.xlu0 %v3826
    %v3828 = vpop.xlane.xlu0 %3827
    %v3829 = vsel %vm201, %v3823, 0.0
    %3830 = vadd.xlane.f32.xlu0 %v3829
    %v3831 = vpop.xlane.xlu0 %3830
    %v3832 = vsel %vm201, %v3824, 0.0
    %3833 = vadd.xlane.f32.xlu0 %v3832
    %v3834 = vpop.xlane.xlu0 %3833
    %v3835 = vsel %vm201, %v3825, 0.0
    %3836 = vadd.xlane.f32.xlu0 %v3835
    %v3837 = vpop.xlane.xlu0 %3836
    %v3838 = vmul.f32 %v3812, 0.015625
    %v3839 = vmul.f32 %v3815, 0.015625
    %v3840 = vmul.f32 %v3818, 0.015625
    %v3841 = vmul.f32 %v3821, 0.015625
    %v3842 = vmul.f32 %v3828, 0.015625
    %v3843 = vmul.f32 %v3831, 0.015625
    %v3844 = vmul.f32 %v3834, 0.015625
    %v3845 = vmul.f32 %v3837, 0.015625
    %v3846 = vmul.f32 %v3838, %v3838
    %v3847 = vmul.f32 %v3839, %v3839
    %v3848 = vmul.f32 %v3840, %v3840
    %v3849 = vmul.f32 %v3841, %v3841
    %v3850 = vsub.f32 %v3842, %v3846
    %v3851 = vsub.f32 %v3843, %v3847
    %v3852 = vsub.f32 %v3844, %v3848
    %v3853 = vsub.f32 %v3845, %v3849
    %v3854 = vmax.f32 %v3850, 0.0
    %v3855 = vmax.f32 %v3851, 0.0
    %v3856 = vmax.f32 %v3852, 0.0
    %v3857 = vmax.f32 %v3853, 0.0
    %v3858 = vsub.f32 %v3804, %v3838
    %v3859 = vsub.f32 %v3805, %v3839
    %v3860 = vsub.f32 %v3806, %v3840
    %v3861 = vsub.f32 %v3807, %v3841
    %v3862 = vadd.f32 %v3854, 1e-06
    %v3863 = vadd.f32 %v3855, 1e-06
    %v3864 = vadd.f32 %v3856, 1e-06
    %v3865 = vadd.f32 %v3857, 1e-06
    %v3866 = vrsqrt.pop %v3862
    %v3867 = vrsqrt.pop %v3863
    %v3868 = vrsqrt.pop %v3864
    %v3869 = vrsqrt.pop %v3865
    %v3870 = vmul.f32 %v3858, %v3866
    %v3871 = vmul.f32 %v3859, %v3867
    %v3872 = vmul.f32 %v3860, %v3868
    %v3873 = vmul.f32 %v3861, %v3869
    %v3874 = vlaneseq
    %v3875 = vshrl.u32 %v3874, 7
    %v3876 = vsub.s32 0, %v3875
    %v3877 = vrot.slane %v3808, %v3876
    %v3878 = vmul.f32 %v3870, %v3877
    %v3879 = vmul.f32 %v3871, %v3877
    %v3880 = vmul.f32 %v3872, %v3877
    %v3881 = vmul.f32 %v3873, %v3877
    %v3882 = vlaneseq
    %v3883 = vshrl.u32 %v3882, 7
    %v3884 = vsub.s32 0, %v3883
    %v3885 = vrot.slane %v3809, %v3884
    %v3886 = vadd.f32 %v3878, %v3885
    %v3887 = vadd.f32 %v3879, %v3885
    %v3888 = vadd.f32 %v3880, %v3885
    %v3889 = vadd.f32 %v3881, %v3885
    %3890 = vst.msk [vmem:[#allocation7] sm:$0xff] %vm201, %v3886
    %3891 = vst.msk [vmem:[#allocation7 + $0x8] sm:$0xff] %vm201, %v3887
    %3892 = vst.msk [vmem:[#allocation7 + $0x10] sm:$0xff] %vm201, %v3888
    %3893 = vst.msk [vmem:[#allocation7 + $0x18] sm:$0xff] %vm201, %v3889
    // Predicated region
    $region50: #{tpu_custom_call.1} parent=1 // pred_check
      _
    $region51: #{tpu_custom_call.1} parent=1 // pred_check_branch
      %3895 = sbr.rel (0) target = $region53
    $region52: #{tpu_custom_call.1} parent=1 // pred_region
      %s3897 = ssub.s32 512, 512
      %3898 = vsyncadd [#allocation4], %s3897
      %s3899 = sshll.u32 [#allocation7], 4
      %s3900 = int_to_ptr.vmem [resolvable:$true] %s3899
      %3905 = dma.vmem_to_hbm [thread:$0]  %s3900, 512, %s10, [#allocation4], 128, 128, 8
    $region53: #{tpu_custom_call.1} parent=1 // pred_fallthru
      _
    // Predicated region
    $region54: #{tpu_custom_call.1} parent=1 // pred_check
      _
    $region55: #{tpu_custom_call.1} parent=1 // pred_check_branch
      %3907 = sbr.rel (0) target = $region57
    $region56: #{tpu_custom_call.1} parent=1 // pred_region
      %3908 = dma.done [#allocation4], 512
    $region57: #{tpu_custom_call.1} parent=1 // pred_fallthru
      _
    %3909 = vsyncpa [#allocation3], 1
    %3910 = vsyncpa [#allocation6], 1
    %3911 = vsyncpa [#allocation4], 1

// kernel: tpu_custom_call.1
$region0: #{tpu_custom_call.1}
  #allocation0 [shape = 'u32[]', space=smem, size = 0x4, offset = 0x4, fixed_abs, tag = 'smem constant byte address 0x4 - core index']
  #allocation1 [shape = 'u32[144,128]{1,0:T(1,128)}', space=vmem, size = 0x12000, scoped, tag = 'internal scratch']
  %s0 = inlined_call_operand.hbm [shape: bf16[2,16,128], index: 0, kind: input, shape index: {}]
  %s1 = inlined_call_operand.vmem [shape: bf16[128,64], index: 1, kind: input, shape index: {}]
  %s2 = inlined_call_operand.hbm [shape: f32[16,64], index: 2, kind: input, shape index: {}]
  %s3 = inlined_call_operand.vmem [shape: bf16[2,64,192], index: 3, kind: input, shape index: {}]
  %s4 = inlined_call_operand.vmem [shape: f32[2,1,192], index: 4, kind: input, shape index: {}]
  %s5 = inlined_call_operand.vmem [shape: bf16[2,4,16,64], index: 5, kind: input, shape index: {}]
  %s6 = inlined_call_operand.vmem [shape: bf16[2,64,128], index: 6, kind: input, shape index: {}]
  %s7 = inlined_call_operand.vmem [shape: bf16[2,128,64], index: 7, kind: input, shape index: {}]
  %s8 = inlined_call_operand.vmem [shape: f32[2,7,128], index: 8, kind: input, shape index: {}]
  %s9 = inlined_call_operand.vmem [shape: f32[2,64], index: 9, kind: input, shape index: {}]
  %s10 = inlined_call_operand.hbm [shape: f32[2,16,64], index: 10, kind: output, shape index: {}]
  %s11 = sld [smem:[#allocation0]]
  $region58: #{tpu_custom_call.1} parent=0
    _
  %s13 = ssub.s32 1, %s11
  %s14 = scalar_select 0, %s13, %s11
  $region1: #{tpu_custom_call.1} parent=0
    #allocation2 [shape = 'u8[8192]{0}', space=vmem, size = 0x2000, scoped, tag = 'input window, operand 0, single buffered']
    #allocation3 [shape = 's32[1]{0}', space=sflag, size = 0x4, scoped, tag = 'scoped memory for tpu_custom_call.1']
    #allocation4 [shape = 's32[1]{0}', space=sflag, size = 0x4, scoped, tag = 'scoped memory for tpu_custom_call.1']
    #allocation5 [shape = 'u8[8192]{0}', space=vmem, size = 0x2000, scoped, tag = 'input window, operand 2, single buffered']
    #allocation6 [shape = 's32[1]{0}', space=sflag, size = 0x4, scoped, tag = 'scoped memory for tpu_custom_call.1']
    #allocation7 [shape = 'u8[16384]{0}', space=vmem, size = 0x4000, scoped, tag = 'output window, operand 0, single buffered']
    %15 = vsyncpa [#allocation3], 0
    %16 = vsyncpa [#allocation6], 0
    %17 = vsyncpa [#allocation4], 0
    // Predicated region
    $region2: #{tpu_custom_call.1} parent=1 // pred_check
      _
    $region3: #{tpu_custom_call.1} parent=1 // pred_check_branch
      %19 = sbr.rel (0) target = $region5
    $region4: #{tpu_custom_call.1} parent=1 // pred_region
      %s21 = ssub.s32 256, 256
      %22 = vsyncadd [#allocation3], %s21
      %s23 = sshll.u32 [#allocation2], 4
      %s24 = int_to_ptr.vmem [resolvable:$true] %s23
      %29 = dma.hbm_to_vmem [thread:$0]  %s0, 256, %s24, [#allocation3], 64, 64, 4
    $region5: #{tpu_custom_call.1} parent=1 // pred_fallthru
      _
    // Predicated region
    $region6: #{tpu_custom_call.1} parent=1 // pred_check
      _
    $region7: #{tpu_custom_call.1} parent=1 // pred_check_branch
      %31 = sbr.rel (0) target = $region9
    $region8: #{tpu_custom_call.1} parent=1 // pred_region
      _
    $region9: #{tpu_custom_call.1} parent=1 // pred_fallthru
      _
    // Predicated region
    $region10: #{tpu_custom_call.1} parent=1 // pred_check
      _
    $region11: #{tpu_custom_call.1} parent=1 // pred_check_branch
      %33 = sbr.rel (0) target = $region13
    $region12: #{tpu_custom_call.1} parent=1 // pred_region
      %s35 = ssub.s32 256, 256
      %36 = vsyncadd [#allocation6], %s35
      %s37 = sshll.u32 [#allocation5], 4
      %s38 = int_to_ptr.vmem [resolvable:$true] %s37
      %43 = dma.hbm_to_vmem [thread:$0]  %s2, 256, %s38, [#allocation6], 128, 128, 8
    $region13: #{tpu_custom_call.1} parent=1 // pred_fallthru
      _
    // Predicated region
    $region14: #{tpu_custom_call.1} parent=1 // pred_check
      _
    $region15: #{tpu_custom_call.1} parent=1 // pred_check_branch
      %45 = sbr.rel (0) target = $region17
    $region16: #{tpu_custom_call.1} parent=1 // pred_region
      _
    $region17: #{tpu_custom_call.1} parent=1 // pred_fallthru
      _
    // Predicated region
    $region18: #{tpu_custom_call.1} parent=1 // pred_check
      _
    $region19: #{tpu_custom_call.1} parent=1 // pred_check_branch
      %47 = sbr.rel (0) target = $region21
    $region20: #{tpu_custom_call.1} parent=1 // pred_region
      _
    $region21: #{tpu_custom_call.1} parent=1 // pred_fallthru
      _
    // Predicated region
    $region22: #{tpu_custom_call.1} parent=1 // pred_check
      _
    $region23: #{tpu_custom_call.1} parent=1 // pred_check_branch
      %49 = sbr.rel (0) target = $region25
    $region24: #{tpu_custom_call.1} parent=1 // pred_region
      _
    $region25: #{tpu_custom_call.1} parent=1 // pred_fallthru
      _
    // Predicated region
    $region26: #{tpu_custom_call.1} parent=1 // pred_check
      _
    $region27: #{tpu_custom_call.1} parent=1 // pred_check_branch
      %51 = sbr.rel (0) target = $region29
    $region28: #{tpu_custom_call.1} parent=1 // pred_region
      _
    $region29: #{tpu_custom_call.1} parent=1 // pred_fallthru
      _
    // Predicated region
    $region30: #{tpu_custom_call.1} parent=1 // pred_check
      _
    $region31: #{tpu_custom_call.1} parent=1 // pred_check_branch
      %53 = sbr.rel (0) target = $region33
    $region32: #{tpu_custom_call.1} parent=1 // pred_region
      _
    $region33: #{tpu_custom_call.1} parent=1 // pred_fallthru
      _
    // Predicated region
    $region34: #{tpu_custom_call.1} parent=1 // pred_check
      _
    $region35: #{tpu_custom_call.1} parent=1 // pred_check_branch
      %55 = sbr.rel (0) target = $region37
    $region36: #{tpu_custom_call.1} parent=1 // pred_region
      _
    $region37: #{tpu_custom_call.1} parent=1 // pred_fallthru
      _
    // Predicated region
    $region38: #{tpu_custom_call.1} parent=1 // pred_check
      _
    $region39: #{tpu_custom_call.1} parent=1 // pred_check_branch
      %57 = sbr.rel (0) target = $region41
    $region40: #{tpu_custom_call.1} parent=1 // pred_region
      _
    $region41: #{tpu_custom_call.1} parent=1 // pred_fallthru
      _
    // Predicated region
    $region42: #{tpu_custom_call.1} parent=1 // pred_check
      _
    $region43: #{tpu_custom_call.1} parent=1 // pred_check_branch
      %59 = sbr.rel (0) target = $region45
    $region44: #{tpu_custom_call.1} parent=1 // pred_region
      %60 = dma.done [#allocation3], 256
    $region45: #{tpu_custom_call.1} parent=1 // pred_fallthru
      _
    // Predicated region
    $region46: #{tpu_custom_call.1} parent=1 // pred_check
      _
    $region47: #{tpu_custom_call.1} parent=1 // pred_check_branch
      %62 = sbr.rel (0) target = $region49
    $region48: #{tpu_custom_call.1} parent=1 // pred_region
      %63 = dma.done [#allocation6], 256
    $region49: #{tpu_custom_call.1} parent=1 // pred_fallthru
      _
    %v65 = vld [vmem:[#allocation2] sm:$0xf]
    %v66 = vld [vmem:[#allocation2 + $0x4] sm:$0xf]
    %v67 = vld [vmem:[#allocation2 + $0x8] sm:$0xf]
    %v68 = vld [vmem:[#allocation2 + $0xc] sm:$0xf]
    %v69 = vld [vmem:[%s1] sm:$0xf]
    %v70 = vld [vmem:[%s1 + $0x4] sm:$0xf]
    %v71 = vld [vmem:[%s1 + $0x8] sm:$0xf]
    %v72 = vld [vmem:[%s1 + $0xc] sm:$0xf]
    %v73 = vld [vmem:[%s1 + $0x10] sm:$0xf]
    %v74 = vld [vmem:[%s1 + $0x14] sm:$0xf]
    %v75 = vld [vmem:[%s1 + $0x18] sm:$0xf]
    %v76 = vld [vmem:[%s1 + $0x1c] sm:$0xf]
    %v77 = vld [vmem:[%s1 + $0x20] sm:$0xf]
    %v78 = vld [vmem:[%s1 + $0x24] sm:$0xf]
    %v79 = vld [vmem:[%s1 + $0x28] sm:$0xf]
    %v80 = vld [vmem:[%s1 + $0x2c] sm:$0xf]
    %v81 = vld [vmem:[%s1 + $0x30] sm:$0xf]
    %v82 = vld [vmem:[%s1 + $0x34] sm:$0xf]
    %v83 = vld [vmem:[%s1 + $0x38] sm:$0xf]
    %v84 = vld [vmem:[%s1 + $0x3c] sm:$0xf]
    %v89 = vunpack.c.l.b16 %v65
    %v90 = vunpack.c.l.b16 %v66
    %v91 = vunpack.c.l.b16 %v67
    %v92 = vunpack.c.l.b16 %v68
    %v93 = vpack.c.b16 %v90, %v89
    %v94 = vpack.c.b16 %v92, %v91
    %v113 = vunpack.c.l.b16 %v69
    %v114 = vunpack.c.l.b16 %v70
    %v115 = vunpack.c.l.b16 %v71
    %v116 = vunpack.c.l.b16 %v72
    %v117 = vunpack.c.l.b16 %v73
    %v118 = vunpack.c.l.b16 %v74
    %v119 = vunpack.c.l.b16 %v75
    %v120 = vunpack.c.l.b16 %v76
    %v121 = vunpack.c.l.b16 %v77
    %v122 = vunpack.c.l.b16 %v78
    %v123 = vunpack.c.l.b16 %v79
    %v124 = vunpack.c.l.b16 %v80
    %v125 = vunpack.c.l.b16 %v81
    %v126 = vunpack.c.l.b16 %v82
    %v127 = vunpack.c.l.b16 %v83
    %v128 = vunpack.c.l.b16 %v84
    %v129 = vpack.c.b16 %v114, %v113
    %v130 = vpack.c.b16 %v116, %v115
    %v131 = vpack.c.b16 %v118, %v117
    %v132 = vpack.c.b16 %v120, %v119
    %v133 = vpack.c.b16 %v122, %v121
    %v134 = vpack.c.b16 %v124, %v123
    %v135 = vpack.c.b16 %v126, %v125
    %v136 = vpack.c.b16 %v128, %v127
    %145 = vmatprep.subr.bf16.mxu0 0
    %146 = vmatpush1.bf16.msra.mxu0 %v129
    %147 = vmatprep.subr.bf16.mxu0 0
    %148 = vmatpush1.bf16.msra.mxu0 %v130
    %149 = vmatprep.subr.bf16.mxu0 0
    %150 = vmatpush1.bf16.msra.mxu0 %v131
    %151 = vmatprep.subr.bf16.mxu0 0
    %152 = vmatpush1.bf16.msra.mxu0 %v132
    %153 = vmatprep.subr.bf16.mxu0 0
    %154 = vmatpush1.bf16.msra.mxu0 %v133
    %155 = vmatprep.subr.bf16.mxu0 0
    %156 = vmatpush1.bf16.msra.mxu0 %v134
    %157 = vmatprep.subr.bf16.mxu0 0
    %158 = vmatpush1.bf16.msra.mxu0 %v135
    %159 = vmatprep.subr.bf16.mxu0 0
    %160 = vmatpush1.bf16.msra.mxu0 %v136
    %161 = vmatprep.subr.bf16.mxu0 0
    %162 = vmatpush1.bf16.msra.mxu0 0
    %163 = vmatprep.subr.bf16.mxu0 0
    %164 = vmatpush1.bf16.msra.mxu0 0
    %165 = vmatprep.subr.bf16.mxu0 0
    %166 = vmatpush1.bf16.msra.mxu0 0
    %167 = vmatprep.subr.bf16.mxu0 0
    %168 = vmatpush1.bf16.msra.mxu0 0
    %169 = vmatprep.subr.bf16.mxu0 0
    %170 = vmatpush1.bf16.msra.mxu0 0
    %171 = vmatprep.subr.bf16.mxu0 0
    %172 = vmatpush1.bf16.msra.mxu0 0
    %173 = vmatprep.subr.bf16.mxu0 0
    %174 = vmatpush1.bf16.msra.mxu0 0
    %175 = vmatprep.subr.bf16.mxu0 0
    %176 = vmatpush1.bf16.msra.mxu0 0
    %177 = vmatprep.mubr.bf16.mxu0 0
    %178 = vmatmul.mubr.bf16.gmra.mrb[0].mxu0 %v93
    %v179 = vpop.f32.mrb[0].mxu0
    %v180 = vadd.f32 0.0, %v179
    %v181 = vpop.f32.mrb[0].mxu0
    %v182 = vpop.f32.mrb[0].mxu0
    %v183 = vadd.f32 0.0, %v182
    %v184 = vpop.f32.mrb[0].mxu0
    %185 = vmatprep.mubr.bf16.mxu0 0
    %186 = vmatmul.mubr.bf16.gmra.mrb[0].mxu0 %v94
    %v187 = vpop.f32.mrb[0].mxu0
    %v188 = vadd.f32 0.0, %v187
    %v189 = vpop.f32.mrb[0].mxu0
    %v190 = vpop.f32.mrb[0].mxu0
    %v191 = vadd.f32 0.0, %v190
    %v192 = vpop.f32.mrb[0].mxu0
    %193 = vdwg.mxu0
    %v194 = vld [vmem:[#allocation5] sm:$0xff]
    %v195 = vld [vmem:[#allocation5 + $0x8] sm:$0xff]
    %v196 = vadd.f32 %v180, %v194
    %v197 = vadd.f32 %v183, %v195
    %v198 = vadd.f32 %v188, %v194
    %v199 = vadd.f32 %v191, %v195
    %v200 = vld [vmem:[%s8] sm:$0x7f]
    %vm201 = vcmask 523264
    %v202 = vsel %vm201, %v196, 0.0
    %203 = vadd.xlane.f32.xlu0 %v202
    %v204 = vpop.xlane.xlu0 %203
    %v205 = vsel %vm201, %v197, 0.0
    %206 = vadd.xlane.f32.xlu0 %v205
    %v207 = vpop.xlane.xlu0 %206
    %v208 = vsel %vm201, %v198, 0.0
    %209 = vadd.xlane.f32.xlu0 %v208
    %v210 = vpop.xlane.xlu0 %209
    %v211 = vsel %vm201, %v199, 0.0
    %212 = vadd.xlane.f32.xlu0 %v211
    %v213 = vpop.xlane.xlu0 %212
    %v214 = vmul.f32 %v196, %v196
    %v215 = vmul.f32 %v197, %v197
    %v216 = vmul.f32 %v198, %v198
    %v217 = vmul.f32 %v199, %v199
    %v218 = vsel %vm201, %v214, 0.0
    %219 = vadd.xlane.f32.xlu0 %v218
    %v220 = vpop.xlane.xlu0 %219
    %v221 = vsel %vm201, %v215, 0.0
    %222 = vadd.xlane.f32.xlu0 %v221
    %v223 = vpop.xlane.xlu0 %222
    %v224 = vsel %vm201, %v216, 0.0
    %225 = vadd.xlane.f32.xlu0 %v224
    %v226 = vpop.xlane.xlu0 %225
    %v227 = vsel %vm201, %v217, 0.0
    %228 = vadd.xlane.f32.xlu0 %v227
    %v229 = vpop.xlane.xlu0 %228
    %v230 = vmul.f32 %v204, 0.015625
    %v231 = vmul.f32 %v207, 0.015625
    %v232 = vmul.f32 %v210, 0.015625
    %v233 = vmul.f32 %v213, 0.015625
    %v234 = vmul.f32 %v220, 0.015625
    %v235 = vmul.f32 %v223, 0.015625
    %v236 = vmul.f32 %v226, 0.015625
    %v237 = vmul.f32 %v229, 0.015625
    %v238 = vmul.f32 %v230, %v230
    %v239 = vmul.f32 %v231, %v231
    %v240 = vmul.f32 %v232, %v232
    %v241 = vmul.f32 %v233, %v233
    %v242 = vsub.f32 %v234, %v238
    %v243 = vsub.f32 %v235, %v239
    %v244 = vsub.f32 %v236, %v240
    %v245 = vsub.f32 %v237, %v241
    %v246 = vmax.f32 %v242, 0.0
    %v247 = vmax.f32 %v243, 0.0
    %v248 = vmax.f32 %v244, 0.0
    %v249 = vmax.f32 %v245, 0.0
    %v250 = vsub.f32 %v196, %v230
    %v251 = vsub.f32 %v197, %v231
    %v252 = vsub.f32 %v198, %v232
    %v253 = vsub.f32 %v199, %v233
    %v254 = vadd.f32 %v246, 1e-06
    %v255 = vadd.f32 %v247, 1e-06
    %v256 = vadd.f32 %v248, 1e-06
    %v257 = vadd.f32 %v249, 1e-06
    %v258 = vrsqrt.pop %v254
    %v259 = vrsqrt.pop %v255
    %v260 = vrsqrt.pop %v256
    %v261 = vrsqrt.pop %v257
    %v262 = vmul.f32 %v250, %v258
    %v263 = vmul.f32 %v251, %v259
    %v264 = vmul.f32 %v252, %v260
    %v265 = vmul.f32 %v253, %v261
    %v266 = vlaneseq
    %v267 = vshrl.u32 %v266, 7
    %v268 = vsub.s32 0, %v267
    %v269 = vrot.slane %v200, %v268
    %v270 = vmul.f32 %v262, %v269
    %v271 = vmul.f32 %v263, %v269
    %v272 = vmul.f32 %v264, %v269
    %v273 = vmul.f32 %v265, %v269
    %v274 = vlaneseq
    %v275 = vshrl.u32 %v274, 7
    %v276 = vsub.s32 1, %v275
    %v277 = vrot.slane %v200, %v276
    %v278 = vadd.f32 %v270, %v277
    %v279 = vadd.f32 %v271, %v277
    %v280 = vadd.f32 %v272, %v277
    %v281 = vadd.f32 %v273, %v277
    %v282 = vpack.c.bf16 %v279, %v278
    %v283 = vpack.c.bf16 %v281, %v280
    %v284 = vld [vmem:[%s3] sm:$0xff]
    %v285 = vld [vmem:[%s3 + $0x8] sm:$0xff]
    %v286 = vld [vmem:[%s3 + $0x10] sm:$0xff]
    %v287 = vld [vmem:[%s3 + $0x18] sm:$0xff]
    %v288 = vld [vmem:[%s3 + $0x20] sm:$0xff]
    %v289 = vld [vmem:[%s3 + $0x28] sm:$0xff]
    %v290 = vld [vmem:[%s3 + $0x30] sm:$0xff]
    %v291 = vld [vmem:[%s3 + $0x38] sm:$0xff]
    %v292 = vld [vmem:[%s4] sm:$0x3]
    %v294 = vlaneseq
    %v295 = vshrl.u32 %v294, 7
    %v296 = vsub.s32 0, %v295
    %v297 = vrot.slane %v292, %v296
    %v298 = vlaneseq
    %v299 = vshrl.u32 %v298, 7
    %v300 = vsub.s32 1, %v299
    %v301 = vrot.slane %v292, %v300
    %v312 = vunpack.c.l.b16 %v284
    %v313 = vunpack.c.h.b16 %v284
    %v314 = vunpack.c.l.b16 %v285
    %v315 = vunpack.c.h.b16 %v285
    %v316 = vunpack.c.l.b16 %v286
    %v317 = vunpack.c.h.b16 %v286
    %v318 = vunpack.c.l.b16 %v287
    %v319 = vunpack.c.h.b16 %v287
    %v320 = vunpack.c.l.b16 %v288
    %v321 = vunpack.c.h.b16 %v288
    %v322 = vunpack.c.l.b16 %v289
    %v323 = vunpack.c.h.b16 %v289
    %v324 = vunpack.c.l.b16 %v290
    %v325 = vunpack.c.h.b16 %v290
    %v326 = vunpack.c.l.b16 %v291
    %v327 = vunpack.c.h.b16 %v291
    %v328 = vpack.c.b16 %v314, %v312
    %v329 = vpack.c.b16 %v315, %v313
    %v330 = vpack.c.b16 %v318, %v316
    %v331 = vpack.c.b16 %v319, %v317
    %v332 = vpack.c.b16 %v322, %v320
    %v333 = vpack.c.b16 %v323, %v321
    %v334 = vpack.c.b16 %v326, %v324
    %v335 = vpack.c.b16 %v327, %v325
    %v345 = vsel %vm201, %v282, 0
    %v348 = vsel %vm201, %v283, 0
    %350 = vmatprep.subr.bf16.mxu0 %v329
    %351 = vmatpush1.bf16.msra.mxu0 %v328
    %352 = vmatprep.subr.bf16.mxu0 %v331
    %353 = vmatpush1.bf16.msra.mxu0 %v330
    %354 = vmatprep.subr.bf16.mxu0 %v333
    %355 = vmatpush1.bf16.msra.mxu0 %v332
    %356 = vmatprep.subr.bf16.mxu0 %v335
    %357 = vmatpush1.bf16.msra.mxu0 %v334
    %358 = vmatprep.subr.bf16.mxu0 0
    %359 = vmatpush1.bf16.msra.mxu0 0
    %360 = vmatprep.subr.bf16.mxu0 0
    %361 = vmatpush1.bf16.msra.mxu0 0
    %362 = vmatprep.subr.bf16.mxu0 0
    %363 = vmatpush1.bf16.msra.mxu0 0
    %364 = vmatprep.subr.bf16.mxu0 0
    %365 = vmatpush1.bf16.msra.mxu0 0
    %366 = vmatprep.subr.bf16.mxu0 0
    %367 = vmatpush1.bf16.msra.mxu0 0
    %368 = vmatprep.subr.bf16.mxu0 0
    %369 = vmatpush1.bf16.msra.mxu0 0
    %370 = vmatprep.subr.bf16.mxu0 0
    %371 = vmatpush1.bf16.msra.mxu0 0
    %372 = vmatprep.subr.bf16.mxu0 0
    %373 = vmatpush1.bf16.msra.mxu0 0
    %374 = vmatprep.subr.bf16.mxu0 0
    %375 = vmatpush1.bf16.msra.mxu0 0
    %376 = vmatprep.subr.bf16.mxu0 0
    %377 = vmatpush1.bf16.msra.mxu0 0
    %378 = vmatprep.subr.bf16.mxu0 0
    %379 = vmatpush1.bf16.msra.mxu0 0
    %380 = vmatprep.subr.bf16.mxu0 0
    %381 = vmatpush1.bf16.msra.mxu0 0
    %382 = vmatprep.mubr.bf16.mxu0 0
    %383 = vmatmul.mubr.bf16.gmra.mrb[0].mxu0 %v345
    %v384 = vpop.f32.mrb[0].mxu0
    %v385 = vadd.f32 %v297, %v384
    %v386 = vpop.f32.mrb[0].mxu0
    %v387 = vadd.f32 %v301, %v386
    %v388 = vpop.f32.mrb[0].mxu0
    %v389 = vadd.f32 %v297, %v388
    %v390 = vpop.f32.mrb[0].mxu0
    %v391 = vadd.f32 %v301, %v390
    %392 = vmatprep.mubr.bf16.mxu0 0
    %393 = vmatmul.mubr.bf16.gmra.mrb[0].mxu0 %v348
    %v394 = vpop.f32.mrb[0].mxu0
    %v395 = vadd.f32 %v297, %v394
    %v396 = vpop.f32.mrb[0].mxu0
    %v397 = vadd.f32 %v301, %v396
    %v398 = vpop.f32.mrb[0].mxu0
    %v399 = vadd.f32 %v297, %v398
    %v400 = vpop.f32.mrb[0].mxu0
    %v401 = vadd.f32 %v301, %v400
    %402 = vdwg.mxu0
    %v403 = vpack.c.bf16 %v389, %v385
    %v404 = vpack.c.bf16 %v391, %v387
    %v405 = vpack.c.bf16 %v399, %v395
    %v406 = vpack.c.bf16 %v401, %v397
    %409 = vrot.lane.b32.xlu0 %v403, 112
    %v410 = vpop.permute.xlu0 %409
    %411 = vrot.lane.b32.xlu0 %v405, 112
    %v412 = vpop.permute.xlu0 %411
    %413 = vrot.lane.b32.xlu0 %v403, 96
    %v414 = vpop.permute.xlu0 %413
    %415 = vrot.lane.b32.xlu0 %v405, 96
    %v416 = vpop.permute.xlu0 %415
    %417 = vrot.lane.b32.xlu0 %v403, 80
    %v418 = vpop.permute.xlu0 %417
    %419 = vrot.lane.b32.xlu0 %v405, 80
    %v420 = vpop.permute.xlu0 %419
    %423 = vrot.lane.b32.xlu0 %v404, 112
    %v424 = vpop.permute.xlu0 %423
    %425 = vrot.lane.b32.xlu0 %v406, 112
    %v426 = vpop.permute.xlu0 %425
    %429 = vrot.lane.b32.xlu0 %v404, 96
    %v430 = vpop.permute.xlu0 %429
    %431 = vrot.lane.b32.xlu0 %v406, 96
    %v432 = vpop.permute.xlu0 %431
    %435 = vrot.lane.b32.xlu0 %v404, 80
    %v436 = vpop.permute.xlu0 %435
    %437 = vrot.lane.b32.xlu0 %v406, 80
    %v438 = vpop.permute.xlu0 %437
    %441 = vrot.lane.b32.xlu0 %v403, 64
    %v442 = vpop.permute.xlu0 %441
    %vm443 = vcmask 130048
    %v445 = vsel %vm443, %v403, 0
    %v448 = vsel %vm443, %v442, 0
    %450 = vmatprep.subr.bf16.mxu0 0
    %451 = vmatpush1.bf16.xpose.msra.mxu0 %v448
    %452 = vmatprep.subr.bf16.mxu0 0
    %453 = vmatpush1.bf16.xpose.msra.mxu0 0
    %454 = vmatprep.subr.bf16.mxu0 0
    %455 = vmatpush1.bf16.xpose.msra.mxu0 0
    %456 = vmatprep.subr.bf16.mxu0 0
    %457 = vmatpush1.bf16.xpose.msra.mxu0 0
    %458 = vmatprep.subr.bf16.mxu0 0
    %459 = vmatpush1.bf16.xpose.msra.mxu0 0
    %460 = vmatprep.subr.bf16.mxu0 0
    %461 = vmatpush1.bf16.xpose.msra.mxu0 0
    %462 = vmatprep.subr.bf16.mxu0 0
    %463 = vmatpush1.bf16.xpose.msra.mxu0 0
    %464 = vmatprep.subr.bf16.mxu0 0
    %465 = vmatpush1.bf16.xpose.msra.mxu0 0
    %466 = vmatprep.subr.bf16.mxu0 0
    %467 = vmatpush1.bf16.xpose.msra.mxu0 0
    %468 = vmatprep.subr.bf16.mxu0 0
    %469 = vmatpush1.bf16.xpose.msra.mxu0 0
    %470 = vmatprep.subr.bf16.mxu0 0
    %471 = vmatpush1.bf16.xpose.msra.mxu0 0
    %472 = vmatprep.subr.bf16.mxu0 0
    %473 = vmatpush1.bf16.xpose.msra.mxu0 0
    %474 = vmatprep.subr.bf16.mxu0 0
    %475 = vmatpush1.bf16.xpose.msra.mxu0 0
    %476 = vmatprep.subr.bf16.mxu0 0
    %477 = vmatpush1.bf16.xpose.msra.mxu0 0
    %478 = vmatprep.subr.bf16.mxu0 0
    %479 = vmatpush1.bf16.xpose.msra.mxu0 0
    %480 = vmatprep.subr.bf16.mxu0 0
    %481 = vmatpush1.bf16.xpose.msra.mxu0 0
    %482 = vmatprep.mubr.bf16.mxu0 0
    %483 = vmatmul.mubr.bf16.gmra.mrb[0].mxu0 %v445
    %v484 = vpop.f32.mrb[0].mxu0
    %v485 = vadd.f32 0.0, %v484
    %v486 = vpop.f32.mrb[0].mxu0
    %v487 = vpop.f32.mrb[0].mxu0
    %v488 = vadd.f32 0.0, %v487
    %v489 = vpop.f32.mrb[0].mxu0
    %490 = vdwg.mxu0
    %491 = vrot.lane.b32.xlu0 %v405, 64
    %v492 = vpop.permute.xlu0 %491
    %v494 = vsel %vm443, %v405, 0
    %v497 = vsel %vm443, %v492, 0
    %499 = vmatprep.subr.bf16.mxu0 0
    %500 = vmatpush1.bf16.xpose.msra.mxu0 %v497
    %501 = vmatprep.subr.bf16.mxu0 0
    %502 = vmatpush1.bf16.xpose.msra.mxu0 0
    %503 = vmatprep.subr.bf16.mxu0 0
    %504 = vmatpush1.bf16.xpose.msra.mxu0 0
    %505 = vmatprep.subr.bf16.mxu0 0
    %506 = vmatpush1.bf16.xpose.msra.mxu0 0
    %507 = vmatprep.subr.bf16.mxu0 0
    %508 = vmatpush1.bf16.xpose.msra.mxu0 0
    %509 = vmatprep.subr.bf16.mxu0 0
    %510 = vmatpush1.bf16.xpose.msra.mxu0 0
    %511 = vmatprep.subr.bf16.mxu0 0
    %512 = vmatpush1.bf16.xpose.msra.mxu0 0
    %513 = vmatprep.subr.bf16.mxu0 0
    %514 = vmatpush1.bf16.xpose.msra.mxu0 0
    %515 = vmatprep.subr.bf16.mxu0 0
    %516 = vmatpush1.bf16.xpose.msra.mxu0 0
    %517 = vmatprep.subr.bf16.mxu0 0
    %518 = vmatpush1.bf16.xpose.msra.mxu0 0
    %519 = vmatprep.subr.bf16.mxu0 0
    %520 = vmatpush1.bf16.xpose.msra.mxu0 0
    %521 = vmatprep.subr.bf16.mxu0 0
    %522 = vmatpush1.bf16.xpose.msra.mxu0 0
    %523 = vmatprep.subr.bf16.mxu0 0
    %524 = vmatpush1.bf16.xpose.msra.mxu0 0
    %525 = vmatprep.subr.bf16.mxu0 0
    %526 = vmatpush1.bf16.xpose.msra.mxu0 0
    %527 = vmatprep.subr.bf16.mxu0 0
    %528 = vmatpush1.bf16.xpose.msra.mxu0 0
    %529 = vmatprep.subr.bf16.mxu0 0
    %530 = vmatpush1.bf16.xpose.msra.mxu0 0
    %531 = vmatprep.mubr.bf16.mxu0 0
    %532 = vmatmul.mubr.bf16.gmra.mrb[0].mxu0 %v494
    %v533 = vpop.f32.mrb[0].mxu0
    %v534 = vadd.f32 0.0, %v533
    %v535 = vpop.f32.mrb[0].mxu0
    %v536 = vpop.f32.mrb[0].mxu0
    %v537 = vadd.f32 0.0, %v536
    %v538 = vpop.f32.mrb[0].mxu0
    %539 = vdwg.mxu0
    %540 = vrot.lane.b32.xlu0 %v410, 64
    %v541 = vpop.permute.xlu0 %540
    %v543 = vsel %vm443, %v410, 0
    %v546 = vsel %vm443, %v541, 0
    %548 = vmatprep.subr.bf16.mxu0 0
    %549 = vmatpush1.bf16.xpose.msra.mxu0 %v546
    %550 = vmatprep.subr.bf16.mxu0 0
    %551 = vmatpush1.bf16.xpose.msra.mxu0 0
    %552 = vmatprep.subr.bf16.mxu0 0
    %553 = vmatpush1.bf16.xpose.msra.mxu0 0
    %554 = vmatprep.subr.bf16.mxu0 0
    %555 = vmatpush1.bf16.xpose.msra.mxu0 0
    %556 = vmatprep.subr.bf16.mxu0 0
    %557 = vmatpush1.bf16.xpose.msra.mxu0 0
    %558 = vmatprep.subr.bf16.mxu0 0
    %559 = vmatpush1.bf16.xpose.msra.mxu0 0
    %560 = vmatprep.subr.bf16.mxu0 0
    %561 = vmatpush1.bf16.xpose.msra.mxu0 0
    %562 = vmatprep.subr.bf16.mxu0 0
    %563 = vmatpush1.bf16.xpose.msra.mxu0 0
    %564 = vmatprep.subr.bf16.mxu0 0
    %565 = vmatpush1.bf16.xpose.msra.mxu0 0
    %566 = vmatprep.subr.bf16.mxu0 0
    %567 = vmatpush1.bf16.xpose.msra.mxu0 0
    %568 = vmatprep.subr.bf16.mxu0 0
    %569 = vmatpush1.bf16.xpose.msra.mxu0 0
    %570 = vmatprep.subr.bf16.mxu0 0
    %571 = vmatpush1.bf16.xpose.msra.mxu0 0
    %572 = vmatprep.subr.bf16.mxu0 0
    %573 = vmatpush1.bf16.xpose.msra.mxu0 0
    %574 = vmatprep.subr.bf16.mxu0 0
    %575 = vmatpush1.bf16.xpose.msra.mxu0 0
    %576 = vmatprep.subr.bf16.mxu0 0
    %577 = vmatpush1.bf16.xpose.msra.mxu0 0
    %578 = vmatprep.subr.bf16.mxu0 0
    %579 = vmatpush1.bf16.xpose.msra.mxu0 0
    %580 = vmatprep.mubr.bf16.mxu0 0
    %581 = vmatmul.mubr.bf16.gmra.mrb[0].mxu0 %v543
    %v582 = vpop.f32.mrb[0].mxu0
    %v583 = vadd.f32 0.0, %v582
    %v584 = vpop.f32.mrb[0].mxu0
    %v585 = vpop.f32.mrb[0].mxu0
    %v586 = vadd.f32 0.0, %v585
    %v587 = vpop.f32.mrb[0].mxu0
    %588 = vdwg.mxu0
    %589 = vrot.lane.b32.xlu0 %v412, 64
    %v590 = vpop.permute.xlu0 %589
    %v592 = vsel %vm443, %v412, 0
    %v595 = vsel %vm443, %v590, 0
    %597 = vmatprep.subr.bf16.mxu0 0
    %598 = vmatpush1.bf16.xpose.msra.mxu0 %v595
    %599 = vmatprep.subr.bf16.mxu0 0
    %600 = vmatpush1.bf16.xpose.msra.mxu0 0
    %601 = vmatprep.subr.bf16.mxu0 0
    %602 = vmatpush1.bf16.xpose.msra.mxu0 0
    %603 = vmatprep.subr.bf16.mxu0 0
    %604 = vmatpush1.bf16.xpose.msra.mxu0 0
    %605 = vmatprep.subr.bf16.mxu0 0
    %606 = vmatpush1.bf16.xpose.msra.mxu0 0
    %607 = vmatprep.subr.bf16.mxu0 0
    %608 = vmatpush1.bf16.xpose.msra.mxu0 0
    %609 = vmatprep.subr.bf16.mxu0 0
    %610 = vmatpush1.bf16.xpose.msra.mxu0 0
    %611 = vmatprep.subr.bf16.mxu0 0
    %612 = vmatpush1.bf16.xpose.msra.mxu0 0
    %613 = vmatprep.subr.bf16.mxu0 0
    %614 = vmatpush1.bf16.xpose.msra.mxu0 0
    %615 = vmatprep.subr.bf16.mxu0 0
    %616 = vmatpush1.bf16.xpose.msra.mxu0 0
    %617 = vmatprep.subr.bf16.mxu0 0
    %618 = vmatpush1.bf16.xpose.msra.mxu0 0
    %619 = vmatprep.subr.bf16.mxu0 0
    %620 = vmatpush1.bf16.xpose.msra.mxu0 0
    %621 = vmatprep.subr.bf16.mxu0 0
    %622 = vmatpush1.bf16.xpose.msra.mxu0 0
    %623 = vmatprep.subr.bf16.mxu0 0
    %624 = vmatpush1.bf16.xpose.msra.mxu0 0
    %625 = vmatprep.subr.bf16.mxu0 0
    %626 = vmatpush1.bf16.xpose.msra.mxu0 0
    %627 = vmatprep.subr.bf16.mxu0 0
    %628 = vmatpush1.bf16.xpose.msra.mxu0 0
    %629 = vmatprep.mubr.bf16.mxu0 0
    %630 = vmatmul.mubr.bf16.gmra.mrb[0].mxu0 %v592
    %v631 = vpop.f32.mrb[0].mxu0
    %v632 = vadd.f32 0.0, %v631
    %v633 = vpop.f32.mrb[0].mxu0
    %v634 = vpop.f32.mrb[0].mxu0
    %v635 = vadd.f32 0.0, %v634
    %v636 = vpop.f32.mrb[0].mxu0
    %637 = vdwg.mxu0
    %638 = vrot.lane.b32.xlu0 %v414, 64
    %v639 = vpop.permute.xlu0 %638
    %v641 = vsel %vm443, %v414, 0
    %v644 = vsel %vm443, %v639, 0
    %646 = vmatprep.subr.bf16.mxu0 0
    %647 = vmatpush1.bf16.xpose.msra.mxu0 %v644
    %648 = vmatprep.subr.bf16.mxu0 0
    %649 = vmatpush1.bf16.xpose.msra.mxu0 0
    %650 = vmatprep.subr.bf16.mxu0 0
    %651 = vmatpush1.bf16.xpose.msra.mxu0 0
    %652 = vmatprep.subr.bf16.mxu0 0
    %653 = vmatpush1.bf16.xpose.msra.mxu0 0
    %654 = vmatprep.subr.bf16.mxu0 0
    %655 = vmatpush1.bf16.xpose.msra.mxu0 0
    %656 = vmatprep.subr.bf16.mxu0 0
    %657 = vmatpush1.bf16.xpose.msra.mxu0 0
    %658 = vmatprep.subr.bf16.mxu0 0
    %659 = vmatpush1.bf16.xpose.msra.mxu0 0
    %660 = vmatprep.subr.bf16.mxu0 0
    %661 = vmatpush1.bf16.xpose.msra.mxu0 0
    %662 = vmatprep.subr.bf16.mxu0 0
    %663 = vmatpush1.bf16.xpose.msra.mxu0 0
    %664 = vmatprep.subr.bf16.mxu0 0
    %665 = vmatpush1.bf16.xpose.msra.mxu0 0
    %666 = vmatprep.subr.bf16.mxu0 0
    %667 = vmatpush1.bf16.xpose.msra.mxu0 0
    %668 = vmatprep.subr.bf16.mxu0 0
    %669 = vmatpush1.bf16.xpose.msra.mxu0 0
    %670 = vmatprep.subr.bf16.mxu0 0
    %671 = vmatpush1.bf16.xpose.msra.mxu0 0
    %672 = vmatprep.subr.bf16.mxu0 0
    %673 = vmatpush1.bf16.xpose.msra.mxu0 0
    %674 = vmatprep.subr.bf16.mxu0 0
    %675 = vmatpush1.bf16.xpose.msra.mxu0 0
    %676 = vmatprep.subr.bf16.mxu0 0
    %677 = vmatpush1.bf16.xpose.msra.mxu0 0
    %678 = vmatprep.mubr.bf16.mxu0 0
    %679 = vmatmul.mubr.bf16.gmra.mrb[0].mxu0 %v641
    %v680 = vpop.f32.mrb[0].mxu0
    %v681 = vadd.f32 0.0, %v680
    %v682 = vpop.f32.mrb[0].mxu0
    %v683 = vpop.f32.mrb[0].mxu0
    %v684 = vadd.f32 0.0, %v683
    %v685 = vpop.f32.mrb[0].mxu0
    %686 = vdwg.mxu0
    %687 = vrot.lane.b32.xlu0 %v416, 64
    %v688 = vpop.permute.xlu0 %687
    %v690 = vsel %vm443, %v416, 0
    %v693 = vsel %vm443, %v688, 0
    %695 = vmatprep.subr.bf16.mxu0 0
    %696 = vmatpush1.bf16.xpose.msra.mxu0 %v693
    %697 = vmatprep.subr.bf16.mxu0 0
    %698 = vmatpush1.bf16.xpose.msra.mxu0 0
    %699 = vmatprep.subr.bf16.mxu0 0
    %700 = vmatpush1.bf16.xpose.msra.mxu0 0
    %701 = vmatprep.subr.bf16.mxu0 0
    %702 = vmatpush1.bf16.xpose.msra.mxu0 0
    %703 = vmatprep.subr.bf16.mxu0 0
    %704 = vmatpush1.bf16.xpose.msra.mxu0 0
    %705 = vmatprep.subr.bf16.mxu0 0
    %706 = vmatpush1.bf16.xpose.msra.mxu0 0
    %707 = vmatprep.subr.bf16.mxu0 0
    %708 = vmatpush1.bf16.xpose.msra.mxu0 0
    %709 = vmatprep.subr.bf16.mxu0 0
    %710 = vmatpush1.bf16.xpose.msra.mxu0 0
    %711 = vmatprep.subr.bf16.mxu0 0
    %712 = vmatpush1.bf16.xpose.msra.mxu0 0
    %713 = vmatprep.subr.bf16.mxu0 0
    %714 = vmatpush1.bf16.xpose.msra.mxu0 0
    %715 = vmatprep.subr.bf16.mxu0 0
    %716 = vmatpush1.bf16.xpose.msra.mxu0 0
    %717 = vmatprep.subr.bf16.mxu0 0
    %718 = vmatpush1.bf16.xpose.msra.mxu0 0
    %719 = vmatprep.subr.bf16.mxu0 0
    %720 = vmatpush1.bf16.xpose.msra.mxu0 0
    %721 = vmatprep.subr.bf16.mxu0 0
    %722 = vmatpush1.bf16.xpose.msra.mxu0 0
    %723 = vmatprep.subr.bf16.mxu0 0
    %724 = vmatpush1.bf16.xpose.msra.mxu0 0
    %725 = vmatprep.subr.bf16.mxu0 0
    %726 = vmatpush1.bf16.xpose.msra.mxu0 0
    %727 = vmatprep.mubr.bf16.mxu0 0
    %728 = vmatmul.mubr.bf16.gmra.mrb[0].mxu0 %v690
    %v729 = vpop.f32.mrb[0].mxu0
    %v730 = vadd.f32 0.0, %v729
    %v731 = vpop.f32.mrb[0].mxu0
    %v732 = vpop.f32.mrb[0].mxu0
    %v733 = vadd.f32 0.0, %v732
    %v734 = vpop.f32.mrb[0].mxu0
    %735 = vdwg.mxu0
    %736 = vrot.lane.b32.xlu0 %v418, 64
    %v737 = vpop.permute.xlu0 %736
    %v739 = vsel %vm443, %v418, 0
    %v742 = vsel %vm443, %v737, 0
    %744 = vmatprep.subr.bf16.mxu0 0
    %745 = vmatpush1.bf16.xpose.msra.mxu0 %v742
    %746 = vmatprep.subr.bf16.mxu0 0
    %747 = vmatpush1.bf16.xpose.msra.mxu0 0
    %748 = vmatprep.subr.bf16.mxu0 0
    %749 = vmatpush1.bf16.xpose.msra.mxu0 0
    %750 = vmatprep.subr.bf16.mxu0 0
    %751 = vmatpush1.bf16.xpose.msra.mxu0 0
    %752 = vmatprep.subr.bf16.mxu0 0
    %753 = vmatpush1.bf16.xpose.msra.mxu0 0
    %754 = vmatprep.subr.bf16.mxu0 0
    %755 = vmatpush1.bf16.xpose.msra.mxu0 0
    %756 = vmatprep.subr.bf16.mxu0 0
    %757 = vmatpush1.bf16.xpose.msra.mxu0 0
    %758 = vmatprep.subr.bf16.mxu0 0
    %759 = vmatpush1.bf16.xpose.msra.mxu0 0
    %760 = vmatprep.subr.bf16.mxu0 0
    %761 = vmatpush1.bf16.xpose.msra.mxu0 0
    %762 = vmatprep.subr.bf16.mxu0 0
    %763 = vmatpush1.bf16.xpose.msra.mxu0 0
    %764 = vmatprep.subr.bf16.mxu0 0
    %765 = vmatpush1.bf16.xpose.msra.mxu0 0
    %766 = vmatprep.subr.bf16.mxu0 0
    %767 = vmatpush1.bf16.xpose.msra.mxu0 0
    %768 = vmatprep.subr.bf16.mxu0 0
    %769 = vmatpush1.bf16.xpose.msra.mxu0 0
    %770 = vmatprep.subr.bf16.mxu0 0
    %771 = vmatpush1.bf16.xpose.msra.mxu0 0
    %772 = vmatprep.subr.bf16.mxu0 0
    %773 = vmatpush1.bf16.xpose.msra.mxu0 0
    %774 = vmatprep.subr.bf16.mxu0 0
    %775 = vmatpush1.bf16.xpose.msra.mxu0 0
    %776 = vmatprep.mubr.bf16.mxu0 0
    %777 = vmatmul.mubr.bf16.gmra.mrb[0].mxu0 %v739
    %v778 = vpop.f32.mrb[0].mxu0
    %v779 = vadd.f32 0.0, %v778
    %v780 = vpop.f32.mrb[0].mxu0
    %v781 = vpop.f32.mrb[0].mxu0
    %v782 = vadd.f32 0.0, %v781
    %v783 = vpop.f32.mrb[0].mxu0
    %784 = vdwg.mxu0
    %785 = vrot.lane.b32.xlu0 %v420, 64
    %v786 = vpop.permute.xlu0 %785
    %v788 = vsel %vm443, %v420, 0
    %v791 = vsel %vm443, %v786, 0
    %793 = vmatprep.subr.bf16.mxu0 0
    %794 = vmatpush1.bf16.xpose.msra.mxu0 %v791
    %795 = vmatprep.subr.bf16.mxu0 0
    %796 = vmatpush1.bf16.xpose.msra.mxu0 0
    %797 = vmatprep.subr.bf16.mxu0 0
    %798 = vmatpush1.bf16.xpose.msra.mxu0 0
    %799 = vmatprep.subr.bf16.mxu0 0
    %800 = vmatpush1.bf16.xpose.msra.mxu0 0
    %801 = vmatprep.subr.bf16.mxu0 0
    %802 = vmatpush1.bf16.xpose.msra.mxu0 0
    %803 = vmatprep.subr.bf16.mxu0 0
    %804 = vmatpush1.bf16.xpose.msra.mxu0 0
    %805 = vmatprep.subr.bf16.mxu0 0
    %806 = vmatpush1.bf16.xpose.msra.mxu0 0
    %807 = vmatprep.subr.bf16.mxu0 0
    %808 = vmatpush1.bf16.xpose.msra.mxu0 0
    %809 = vmatprep.subr.bf16.mxu0 0
    %810 = vmatpush1.bf16.xpose.msra.mxu0 0
    %811 = vmatprep.subr.bf16.mxu0 0
    %812 = vmatpush1.bf16.xpose.msra.mxu0 0
    %813 = vmatprep.subr.bf16.mxu0 0
    %814 = vmatpush1.bf16.xpose.msra.mxu0 0
    %815 = vmatprep.subr.bf16.mxu0 0
    %816 = vmatpush1.bf16.xpose.msra.mxu0 0
    %817 = vmatprep.subr.bf16.mxu0 0
    %818 = vmatpush1.bf16.xpose.msra.mxu0 0
    %819 = vmatprep.subr.bf16.mxu0 0
    %820 = vmatpush1.bf16.xpose.msra.mxu0 0
    %821 = vmatprep.subr.bf16.mxu0 0
    %822 = vmatpush1.bf16.xpose.msra.mxu0 0
    %823 = vmatprep.subr.bf16.mxu0 0
    %824 = vmatpush1.bf16.xpose.msra.mxu0 0
    %825 = vmatprep.mubr.bf16.mxu0 0
    %826 = vmatmul.mubr.bf16.gmra.mrb[0].mxu0 %v788
    %v827 = vpop.f32.mrb[0].mxu0
    %v828 = vadd.f32 0.0, %v827
    %v829 = vpop.f32.mrb[0].mxu0
    %v830 = vpop.f32.mrb[0].mxu0
    %v831 = vadd.f32 0.0, %v830
    %v832 = vpop.f32.mrb[0].mxu0
    %833 = vdwg.mxu0
    %v834 = vsel %vm443, %v485, -inf
    %835 = vmax.xlane.f32.xlu0 %v834
    %v836 = vpop.xlane.xlu0 %835
    %v837 = vsel %vm443, %v488, -inf
    %838 = vmax.xlane.f32.xlu0 %v837
    %v839 = vpop.xlane.xlu0 %838
    %v840 = vsel %vm443, %v534, -inf
    %841 = vmax.xlane.f32.xlu0 %v840
    %v842 = vpop.xlane.xlu0 %841
    %v843 = vsel %vm443, %v537, -inf
    %844 = vmax.xlane.f32.xlu0 %v843
    %v845 = vpop.xlane.xlu0 %844
    %v846 = vsel %vm443, %v583, -inf
    %847 = vmax.xlane.f32.xlu0 %v846
    %v848 = vpop.xlane.xlu0 %847
    %v849 = vsel %vm443, %v586, -inf
    %850 = vmax.xlane.f32.xlu0 %v849
    %v851 = vpop.xlane.xlu0 %850
    %v852 = vsel %vm443, %v632, -inf
    %853 = vmax.xlane.f32.xlu0 %v852
    %v854 = vpop.xlane.xlu0 %853
    %v855 = vsel %vm443, %v635, -inf
    %856 = vmax.xlane.f32.xlu0 %v855
    %v857 = vpop.xlane.xlu0 %856
    %v858 = vsel %vm443, %v681, -inf
    %859 = vmax.xlane.f32.xlu0 %v858
    %v860 = vpop.xlane.xlu0 %859
    %v861 = vsel %vm443, %v684, -inf
    %862 = vmax.xlane.f32.xlu0 %v861
    %v863 = vpop.xlane.xlu0 %862
    %v864 = vsel %vm443, %v730, -inf
    %865 = vmax.xlane.f32.xlu0 %v864
    %v866 = vpop.xlane.xlu0 %865
    %v867 = vsel %vm443, %v733, -inf
    %868 = vmax.xlane.f32.xlu0 %v867
    %v869 = vpop.xlane.xlu0 %868
    %v870 = vsel %vm443, %v779, -inf
    %871 = vmax.xlane.f32.xlu0 %v870
    %v872 = vpop.xlane.xlu0 %871
    %v873 = vsel %vm443, %v782, -inf
    %874 = vmax.xlane.f32.xlu0 %v873
    %v875 = vpop.xlane.xlu0 %874
    %v876 = vsel %vm443, %v828, -inf
    %877 = vmax.xlane.f32.xlu0 %v876
    %v878 = vpop.xlane.xlu0 %877
    %v879 = vsel %vm443, %v831, -inf
    %880 = vmax.xlane.f32.xlu0 %v879
    %v881 = vpop.xlane.xlu0 %880
    %v882 = vsub.f32 %v485, %v836
    %v883 = vsub.f32 %v488, %v839
    %v884 = vsub.f32 %v534, %v842
    %v885 = vsub.f32 %v537, %v845
    %v886 = vsub.f32 %v583, %v848
    %v887 = vsub.f32 %v586, %v851
    %v888 = vsub.f32 %v632, %v854
    %v889 = vsub.f32 %v635, %v857
    %v890 = vsub.f32 %v681, %v860
    %v891 = vsub.f32 %v684, %v863
    %v892 = vsub.f32 %v730, %v866
    %v893 = vsub.f32 %v733, %v869
    %v894 = vsub.f32 %v779, %v872
    %v895 = vsub.f32 %v782, %v875
    %v896 = vsub.f32 %v828, %v878
    %v897 = vsub.f32 %v831, %v881
    %v898 = vmul.f32 %v882, 1.442695
    %v899 = vpow.pop %v898
    %v900 = vmul.f32 %v883, 1.442695
    %v901 = vpow.pop %v900
    %v902 = vmul.f32 %v884, 1.442695
    %v903 = vpow.pop %v902
    %v904 = vmul.f32 %v885, 1.442695
    %v905 = vpow.pop %v904
    %v906 = vmul.f32 %v886, 1.442695
    %v907 = vpow.pop %v906
    %v908 = vmul.f32 %v887, 1.442695
    %v909 = vpow.pop %v908
    %v910 = vmul.f32 %v888, 1.442695
    %v911 = vpow.pop %v910
    %v912 = vmul.f32 %v889, 1.442695
    %v913 = vpow.pop %v912
    %v914 = vmul.f32 %v890, 1.442695
    %v915 = vpow.pop %v914
    %v916 = vmul.f32 %v891, 1.442695
    %v917 = vpow.pop %v916
    %v918 = vmul.f32 %v892, 1.442695
    %v919 = vpow.pop %v918
    %v920 = vmul.f32 %v893, 1.442695
    %v921 = vpow.pop %v920
    %v922 = vmul.f32 %v894, 1.442695
    %v923 = vpow.pop %v922
    %v924 = vmul.f32 %v895, 1.442695
    %v925 = vpow.pop %v924
    %v926 = vmul.f32 %v896, 1.442695
    %v927 = vpow.pop %v926
    %v928 = vmul.f32 %v897, 1.442695
    %v929 = vpow.pop %v928
    %v930 = vsel %vm443, %v899, 0.0
    %931 = vadd.xlane.f32.xlu0 %v930
    %v932 = vpop.xlane.xlu0 %931
    %v933 = vsel %vm443, %v901, 0.0
    %934 = vadd.xlane.f32.xlu0 %v933
    %v935 = vpop.xlane.xlu0 %934
    %v936 = vsel %vm443, %v903, 0.0
    %937 = vadd.xlane.f32.xlu0 %v936
    %v938 = vpop.xlane.xlu0 %937
    %v939 = vsel %vm443, %v905, 0.0
    %940 = vadd.xlane.f32.xlu0 %v939
    %v941 = vpop.xlane.xlu0 %940
    %v942 = vsel %vm443, %v907, 0.0
    %943 = vadd.xlane.f32.xlu0 %v942
    %v944 = vpop.xlane.xlu0 %943
    %v945 = vsel %vm443, %v909, 0.0
    %946 = vadd.xlane.f32.xlu0 %v945
    %v947 = vpop.xlane.xlu0 %946
    %v948 = vsel %vm443, %v911, 0.0
    %949 = vadd.xlane.f32.xlu0 %v948
    %v950 = vpop.xlane.xlu0 %949
    %v951 = vsel %vm443, %v913, 0.0
    %952 = vadd.xlane.f32.xlu0 %v951
    %v953 = vpop.xlane.xlu0 %952
    %v954 = vsel %vm443, %v915, 0.0
    %955 = vadd.xlane.f32.xlu0 %v954
    %v956 = vpop.xlane.xlu0 %955
    %v957 = vsel %vm443, %v917, 0.0
    %958 = vadd.xlane.f32.xlu0 %v957
    %v959 = vpop.xlane.xlu0 %958
    %v960 = vsel %vm443, %v919, 0.0
    %961 = vadd.xlane.f32.xlu0 %v960
    %v962 = vpop.xlane.xlu0 %961
    %v963 = vsel %vm443, %v921, 0.0
    %964 = vadd.xlane.f32.xlu0 %v963
    %v965 = vpop.xlane.xlu0 %964
    %v966 = vsel %vm443, %v923, 0.0
    %967 = vadd.xlane.f32.xlu0 %v966
    %v968 = vpop.xlane.xlu0 %967
    %v969 = vsel %vm443, %v925, 0.0
    %970 = vadd.xlane.f32.xlu0 %v969
    %v971 = vpop.xlane.xlu0 %970
    %v972 = vsel %vm443, %v927, 0.0
    %973 = vadd.xlane.f32.xlu0 %v972
    %v974 = vpop.xlane.xlu0 %973
    %v975 = vsel %vm443, %v929, 0.0
    %976 = vadd.xlane.f32.xlu0 %v975
    %v977 = vpop.xlane.xlu0 %976
    %v978 = vrcp.pop %v932
    %v979 = vrcp.pop %v935
    %v980 = vrcp.pop %v938
    %v981 = vrcp.pop %v941
    %v982 = vrcp.pop %v944
    %v983 = vrcp.pop %v947
    %v984 = vrcp.pop %v950
    %v985 = vrcp.pop %v953
    %v986 = vrcp.pop %v956
    %v987 = vrcp.pop %v959
    %v988 = vrcp.pop %v962
    %v989 = vrcp.pop %v965
    %v990 = vrcp.pop %v968
    %v991 = vrcp.pop %v971
    %v992 = vrcp.pop %v974
    %v993 = vrcp.pop %v977
    %v994 = vmul.f32 %v899, %v978
    %v995 = vmul.f32 %v901, %v979
    %v996 = vmul.f32 %v903, %v980
    %v997 = vmul.f32 %v905, %v981
    %v998 = vmul.f32 %v907, %v982
    %v999 = vmul.f32 %v909, %v983
    %v1000 = vmul.f32 %v911, %v984
    %v1001 = vmul.f32 %v913, %v985
    %v1002 = vmul.f32 %v915, %v986
    %v1003 = vmul.f32 %v917, %v987
    %v1004 = vmul.f32 %v919, %v988
    %v1005 = vmul.f32 %v921, %v989
    %v1006 = vmul.f32 %v923, %v990
    %v1007 = vmul.f32 %v925, %v991
    %v1008 = vmul.f32 %v927, %v992
    %v1009 = vmul.f32 %v929, %v993
    %v1010 = vpack.c.bf16 %v995, %v994
    %v1011 = vpack.c.bf16 %v997, %v996
    %v1012 = vpack.c.bf16 %v999, %v998
    %v1013 = vpack.c.bf16 %v1001, %v1000
    %v1014 = vpack.c.bf16 %v1003, %v1002
    %v1015 = vpack.c.bf16 %v1005, %v1004
    %v1016 = vpack.c.bf16 %v1007, %v1006
    %v1017 = vpack.c.bf16 %v1009, %v1008
    %v1019 = vsel %vm443, %v1010, 0
    %1021 = vmatprep.subr.bf16.mxu0 0
    %1022 = vmatpush1.bf16.msra.mxu0 %v404
    %1023 = vmatprep.subr.bf16.mxu0 0
    %1024 = vmatpush1.bf16.msra.mxu0 0
    %1025 = vmatprep.subr.bf16.mxu0 0
    %1026 = vmatpush1.bf16.msra.mxu0 0
    %1027 = vmatprep.subr.bf16.mxu0 0
    %1028 = vmatpush1.bf16.msra.mxu0 0
    %1029 = vmatprep.subr.bf16.mxu0 0
    %1030 = vmatpush1.bf16.msra.mxu0 0
    %1031 = vmatprep.subr.bf16.mxu0 0
    %1032 = vmatpush1.bf16.msra.mxu0 0
    %1033 = vmatprep.subr.bf16.mxu0 0
    %1034 = vmatpush1.bf16.msra.mxu0 0
    %1035 = vmatprep.subr.bf16.mxu0 0
    %1036 = vmatpush1.bf16.msra.mxu0 0
    %1037 = vmatprep.subr.bf16.mxu0 0
    %1038 = vmatpush1.bf16.msra.mxu0 0
    %1039 = vmatprep.subr.bf16.mxu0 0
    %1040 = vmatpush1.bf16.msra.mxu0 0
    %1041 = vmatprep.subr.bf16.mxu0 0
    %1042 = vmatpush1.bf16.msra.mxu0 0
    %1043 = vmatprep.subr.bf16.mxu0 0
    %1044 = vmatpush1.bf16.msra.mxu0 0
    %1045 = vmatprep.subr.bf16.mxu0 0
    %1046 = vmatpush1.bf16.msra.mxu0 0
    %1047 = vmatprep.subr.bf16.mxu0 0
    %1048 = vmatpush1.bf16.msra.mxu0 0
    %1049 = vmatprep.subr.bf16.mxu0 0
    %1050 = vmatpush1.bf16.msra.mxu0 0
    %1051 = vmatprep.subr.bf16.mxu0 0
    %1052 = vmatpush1.bf16.msra.mxu0 0
    %1053 = vmatprep.mubr.bf16.mxu0 0
    %1054 = vmatmul.mubr.bf16.gmra.mrb[0].mxu0 %v1019
    %v1055 = vpop.f32.mrb[0].mxu0
    %v1056 = vadd.f32 0.0, %v1055
    %v1057 = vpop.f32.mrb[0].mxu0
    %v1058 = vpop.f32.mrb[0].mxu0
    %v1059 = vadd.f32 0.0, %v1058
    %v1060 = vpop.f32.mrb[0].mxu0
    %1061 = vdwg.mxu0
    %v1063 = vsel %vm443, %v1011, 0
    %1065 = vmatprep.subr.bf16.mxu0 0
    %1066 = vmatpush1.bf16.msra.mxu0 %v406
    %1067 = vmatprep.subr.bf16.mxu0 0
    %1068 = vmatpush1.bf16.msra.mxu0 0
    %1069 = vmatprep.subr.bf16.mxu0 0
    %1070 = vmatpush1.bf16.msra.mxu0 0
    %1071 = vmatprep.subr.bf16.mxu0 0
    %1072 = vmatpush1.bf16.msra.mxu0 0
    %1073 = vmatprep.subr.bf16.mxu0 0
    %1074 = vmatpush1.bf16.msra.mxu0 0
    %1075 = vmatprep.subr.bf16.mxu0 0
    %1076 = vmatpush1.bf16.msra.mxu0 0
    %1077 = vmatprep.subr.bf16.mxu0 0
    %1078 = vmatpush1.bf16.msra.mxu0 0
    %1079 = vmatprep.subr.bf16.mxu0 0
    %1080 = vmatpush1.bf16.msra.mxu0 0
    %1081 = vmatprep.subr.bf16.mxu0 0
    %1082 = vmatpush1.bf16.msra.mxu0 0
    %1083 = vmatprep.subr.bf16.mxu0 0
    %1084 = vmatpush1.bf16.msra.mxu0 0
    %1085 = vmatprep.subr.bf16.mxu0 0
    %1086 = vmatpush1.bf16.msra.mxu0 0
    %1087 = vmatprep.subr.bf16.mxu0 0
    %1088 = vmatpush1.bf16.msra.mxu0 0
    %1089 = vmatprep.subr.bf16.mxu0 0
    %1090 = vmatpush1.bf16.msra.mxu0 0
    %1091 = vmatprep.subr.bf16.mxu0 0
    %1092 = vmatpush1.bf16.msra.mxu0 0
    %1093 = vmatprep.subr.bf16.mxu0 0
    %1094 = vmatpush1.bf16.msra.mxu0 0
    %1095 = vmatprep.subr.bf16.mxu0 0
    %1096 = vmatpush1.bf16.msra.mxu0 0
    %1097 = vmatprep.mubr.bf16.mxu0 0
    %1098 = vmatmul.mubr.bf16.gmra.mrb[0].mxu0 %v1063
    %v1099 = vpop.f32.mrb[0].mxu0
    %v1100 = vadd.f32 0.0, %v1099
    %v1101 = vpop.f32.mrb[0].mxu0
    %v1102 = vpop.f32.mrb[0].mxu0
    %v1103 = vadd.f32 0.0, %v1102
    %v1104 = vpop.f32.mrb[0].mxu0
    %1105 = vdwg.mxu0
    %v1107 = vsel %vm443, %v1012, 0
    %1109 = vmatprep.subr.bf16.mxu0 0
    %1110 = vmatpush1.bf16.msra.mxu0 %v424
    %1111 = vmatprep.subr.bf16.mxu0 0
    %1112 = vmatpush1.bf16.msra.mxu0 0
    %1113 = vmatprep.subr.bf16.mxu0 0
    %1114 = vmatpush1.bf16.msra.mxu0 0
    %1115 = vmatprep.subr.bf16.mxu0 0
    %1116 = vmatpush1.bf16.msra.mxu0 0
    %1117 = vmatprep.subr.bf16.mxu0 0
    %1118 = vmatpush1.bf16.msra.mxu0 0
    %1119 = vmatprep.subr.bf16.mxu0 0
    %1120 = vmatpush1.bf16.msra.mxu0 0
    %1121 = vmatprep.subr.bf16.mxu0 0
    %1122 = vmatpush1.bf16.msra.mxu0 0
    %1123 = vmatprep.subr.bf16.mxu0 0
    %1124 = vmatpush1.bf16.msra.mxu0 0
    %1125 = vmatprep.subr.bf16.mxu0 0
    %1126 = vmatpush1.bf16.msra.mxu0 0
    %1127 = vmatprep.subr.bf16.mxu0 0
    %1128 = vmatpush1.bf16.msra.mxu0 0
    %1129 = vmatprep.subr.bf16.mxu0 0
    %1130 = vmatpush1.bf16.msra.mxu0 0
    %1131 = vmatprep.subr.bf16.mxu0 0
    %1132 = vmatpush1.bf16.msra.mxu0 0
    %1133 = vmatprep.subr.bf16.mxu0 0
    %1134 = vmatpush1.bf16.msra.mxu0 0
    %1135 = vmatprep.subr.bf16.mxu0 0
    %1136 = vmatpush1.bf16.msra.mxu0 0
    %1137 = vmatprep.subr.bf16.mxu0 0
    %1138 = vmatpush1.bf16.msra.mxu0 0
    %1139 = vmatprep.subr.bf16.mxu0 0
    %1140 = vmatpush1.bf16.msra.mxu0 0
    %1141 = vmatprep.mubr.bf16.mxu0 0
    %1142 = vmatmul.mubr.bf16.gmra.mrb[0].mxu0 %v1107
    %v1143 = vpop.f32.mrb[0].mxu0
    %v1144 = vadd.f32 0.0, %v1143
    %v1145 = vpop.f32.mrb[0].mxu0
    %v1146 = vpop.f32.mrb[0].mxu0
    %v1147 = vadd.f32 0.0, %v1146
    %v1148 = vpop.f32.mrb[0].mxu0
    %1149 = vdwg.mxu0
    %v1151 = vsel %vm443, %v1013, 0
    %1153 = vmatprep.subr.bf16.mxu0 0
    %1154 = vmatpush1.bf16.msra.mxu0 %v426
    %1155 = vmatprep.subr.bf16.mxu0 0
    %1156 = vmatpush1.bf16.msra.mxu0 0
    %1157 = vmatprep.subr.bf16.mxu0 0
    %1158 = vmatpush1.bf16.msra.mxu0 0
    %1159 = vmatprep.subr.bf16.mxu0 0
    %1160 = vmatpush1.bf16.msra.mxu0 0
    %1161 = vmatprep.subr.bf16.mxu0 0
    %1162 = vmatpush1.bf16.msra.mxu0 0
    %1163 = vmatprep.subr.bf16.mxu0 0
    %1164 = vmatpush1.bf16.msra.mxu0 0
    %1165 = vmatprep.subr.bf16.mxu0 0
    %1166 = vmatpush1.bf16.msra.mxu0 0
    %1167 = vmatprep.subr.bf16.mxu0 0
    %1168 = vmatpush1.bf16.msra.mxu0 0
    %1169 = vmatprep.subr.bf16.mxu0 0
    %1170 = vmatpush1.bf16.msra.mxu0 0
    %1171 = vmatprep.subr.bf16.mxu0 0
    %1172 = vmatpush1.bf16.msra.mxu0 0
    %1173 = vmatprep.subr.bf16.mxu0 0
    %1174 = vmatpush1.bf16.msra.mxu0 0
    %1175 = vmatprep.subr.bf16.mxu0 0
    %1176 = vmatpush1.bf16.msra.mxu0 0
    %1177 = vmatprep.subr.bf16.mxu0 0
    %1178 = vmatpush1.bf16.msra.mxu0 0
    %1179 = vmatprep.subr.bf16.mxu0 0
    %1180 = vmatpush1.bf16.msra.mxu0 0
    %1181 = vmatprep.subr.bf16.mxu0 0
    %1182 = vmatpush1.bf16.msra.mxu0 0
    %1183 = vmatprep.subr.bf16.mxu0 0
    %1184 = vmatpush1.bf16.msra.mxu0 0
    %1185 = vmatprep.mubr.bf16.mxu0 0
    %1186 = vmatmul.mubr.bf16.gmra.mrb[0].mxu0 %v1151
    %v1187 = vpop.f32.mrb[0].mxu0
    %v1188 = vadd.f32 0.0, %v1187
    %v1189 = vpop.f32.mrb[0].mxu0
    %v1190 = vpop.f32.mrb[0].mxu0
    %v1191 = vadd.f32 0.0, %v1190
    %v1192 = vpop.f32.mrb[0].mxu0
    %1193 = vdwg.mxu0
    %v1195 = vsel %vm443, %v1014, 0
    %1197 = vmatprep.subr.bf16.mxu0 0
    %1198 = vmatpush1.bf16.msra.mxu0 %v430
    %1199 = vmatprep.subr.bf16.mxu0 0
    %1200 = vmatpush1.bf16.msra.mxu0 0
    %1201 = vmatprep.subr.bf16.mxu0 0
    %1202 = vmatpush1.bf16.msra.mxu0 0
    %1203 = vmatprep.subr.bf16.mxu0 0
    %1204 = vmatpush1.bf16.msra.mxu0 0
    %1205 = vmatprep.subr.bf16.mxu0 0
    %1206 = vmatpush1.bf16.msra.mxu0 0
    %1207 = vmatprep.subr.bf16.mxu0 0
    %1208 = vmatpush1.bf16.msra.mxu0 0
    %1209 = vmatprep.subr.bf16.mxu0 0
    %1210 = vmatpush1.bf16.msra.mxu0 0
    %1211 = vmatprep.subr.bf16.mxu0 0
    %1212 = vmatpush1.bf16.msra.mxu0 0
    %1213 = vmatprep.subr.bf16.mxu0 0
    %1214 = vmatpush1.bf16.msra.mxu0 0
    %1215 = vmatprep.subr.bf16.mxu0 0
    %1216 = vmatpush1.bf16.msra.mxu0 0
    %1217 = vmatprep.subr.bf16.mxu0 0
    %1218 = vmatpush1.bf16.msra.mxu0 0
    %1219 = vmatprep.subr.bf16.mxu0 0
    %1220 = vmatpush1.bf16.msra.mxu0 0
    %1221 = vmatprep.subr.bf16.mxu0 0
    %1222 = vmatpush1.bf16.msra.mxu0 0
    %1223 = vmatprep.subr.bf16.mxu0 0
    %1224 = vmatpush1.bf16.msra.mxu0 0
    %1225 = vmatprep.subr.bf16.mxu0 0
    %1226 = vmatpush1.bf16.msra.mxu0 0
    %1227 = vmatprep.subr.bf16.mxu0 0
    %1228 = vmatpush1.bf16.msra.mxu0 0
    %1229 = vmatprep.mubr.bf16.mxu0 0
    %1230 = vmatmul.mubr.bf16.gmra.mrb[0].mxu0 %v1195
    %v1231 = vpop.f32.mrb[0].mxu0
    %v1232 = vadd.f32 0.0, %v1231
    %v1233 = vpop.f32.mrb[0].mxu0
    %v1234 = vpop.f32.mrb[0].mxu0
    %v1235 = vadd.f32 0.0, %v1234
    %v1236 = vpop.f32.mrb[0].mxu0
    %1237 = vdwg.mxu0
    %v1239 = vsel %vm443, %v1015, 0
    %1241 = vmatprep.subr.bf16.mxu0 0
    %1242 = vmatpush1.bf16.msra.mxu0 %v432
    %1243 = vmatprep.subr.bf16.mxu0 0
    %1244 = vmatpush1.bf16.msra.mxu0 0
    %1245 = vmatprep.subr.bf16.mxu0 0
    %1246 = vmatpush1.bf16.msra.mxu0 0
    %1247 = vmatprep.subr.bf16.mxu0 0
    %1248 = vmatpush1.bf16.msra.mxu0 0
    %1249 = vmatprep.subr.bf16.mxu0 0
    %1250 = vmatpush1.bf16.msra.mxu0 0
    %1251 = vmatprep.subr.bf16.mxu0 0
    %1252 = vmatpush1.bf16.msra.mxu0 0
    %1253 = vmatprep.subr.bf16.mxu0 0
    %1254 = vmatpush1.bf16.msra.mxu0 0
    %1255 = vmatprep.subr.bf16.mxu0 0
    %1256 = vmatpush1.bf16.msra.mxu0 0
    %1257 = vmatprep.subr.bf16.mxu0 0
    %1258 = vmatpush1.bf16.msra.mxu0 0
    %1259 = vmatprep.subr.bf16.mxu0 0
    %1260 = vmatpush1.bf16.msra.mxu0 0
    %1261 = vmatprep.subr.bf16.mxu0 0
    %1262 = vmatpush1.bf16.msra.mxu0 0
    %1263 = vmatprep.subr.bf16.mxu0 0
    %1264 = vmatpush1.bf16.msra.mxu0 0
    %1265 = vmatprep.subr.bf16.mxu0 0
    %1266 = vmatpush1.bf16.msra.mxu0 0
    %1267 = vmatprep.subr.bf16.mxu0 0
    %1268 = vmatpush1.bf16.msra.mxu0 0
    %1269 = vmatprep.subr.bf16.mxu0 0
    %1270 = vmatpush1.bf16.msra.mxu0 0
    %1271 = vmatprep.subr.bf16.mxu0 0
    %1272 = vmatpush1.bf16.msra.mxu0 0
    %1273 = vmatprep.mubr.bf16.mxu0 0
    %1274 = vmatmul.mubr.bf16.gmra.mrb[0].mxu0 %v1239
    %v1275 = vpop.f32.mrb[0].mxu0
    %v1276 = vadd.f32 0.0, %v1275
    %v1277 = vpop.f32.mrb[0].mxu0
    %v1278 = vpop.f32.mrb[0].mxu0
    %v1279 = vadd.f32 0.0, %v1278
    %v1280 = vpop.f32.mrb[0].mxu0
    %1281 = vdwg.mxu0
    %v1283 = vsel %vm443, %v1016, 0
    %1285 = vmatprep.subr.bf16.mxu0 0
    %1286 = vmatpush1.bf16.msra.mxu0 %v436
    %1287 = vmatprep.subr.bf16.mxu0 0
    %1288 = vmatpush1.bf16.msra.mxu0 0
    %1289 = vmatprep.subr.bf16.mxu0 0
    %1290 = vmatpush1.bf16.msra.mxu0 0
    %1291 = vmatprep.subr.bf16.mxu0 0
    %1292 = vmatpush1.bf16.msra.mxu0 0
    %1293 = vmatprep.subr.bf16.mxu0 0
    %1294 = vmatpush1.bf16.msra.mxu0 0
    %1295 = vmatprep.subr.bf16.mxu0 0
    %1296 = vmatpush1.bf16.msra.mxu0 0
    %1297 = vmatprep.subr.bf16.mxu0 0
    %1298 = vmatpush1.bf16.msra.mxu0 0
    %1299 = vmatprep.subr.bf16.mxu0 0
    %1300 = vmatpush1.bf16.msra.mxu0 0
    %1301 = vmatprep.subr.bf16.mxu0 0
    %1302 = vmatpush1.bf16.msra.mxu0 0
    %1303 = vmatprep.subr.bf16.mxu0 0
    %1304 = vmatpush1.bf16.msra.mxu0 0
    %1305 = vmatprep.subr.bf16.mxu0 0
    %1306 = vmatpush1.bf16.msra.mxu0 0
    %1307 = vmatprep.subr.bf16.mxu0 0
    %1308 = vmatpush1.bf16.msra.mxu0 0
    %1309 = vmatprep.subr.bf16.mxu0 0
    %1310 = vmatpush1.bf16.msra.mxu0 0
    %1311 = vmatprep.subr.bf16.mxu0 0
    %1312 = vmatpush1.bf16.msra.mxu0 0
    %1313 = vmatprep.subr.bf16.mxu0 0
    %1314 = vmatpush1.bf16.msra.mxu0 0
    %1315 = vmatprep.subr.bf16.mxu0 0
    %1316 = vmatpush1.bf16.msra.mxu0 0
    %1317 = vmatprep.mubr.bf16.mxu0 0
    %1318 = vmatmul.mubr.bf16.gmra.mrb[0].mxu0 %v1283
    %v1319 = vpop.f32.mrb[0].mxu0
    %v1320 = vadd.f32 0.0, %v1319
    %v1321 = vpop.f32.mrb[0].mxu0
    %v1322 = vpop.f32.mrb[0].mxu0
    %v1323 = vadd.f32 0.0, %v1322
    %v1324 = vpop.f32.mrb[0].mxu0
    %1325 = vdwg.mxu0
    %v1327 = vsel %vm443, %v1017, 0
    %1329 = vmatprep.subr.bf16.mxu0 0
    %1330 = vmatpush1.bf16.msra.mxu0 %v438
    %1331 = vmatprep.subr.bf16.mxu0 0
    %1332 = vmatpush1.bf16.msra.mxu0 0
    %1333 = vmatprep.subr.bf16.mxu0 0
    %1334 = vmatpush1.bf16.msra.mxu0 0
    %1335 = vmatprep.subr.bf16.mxu0 0
    %1336 = vmatpush1.bf16.msra.mxu0 0
    %1337 = vmatprep.subr.bf16.mxu0 0
    %1338 = vmatpush1.bf16.msra.mxu0 0
    %1339 = vmatprep.subr.bf16.mxu0 0
    %1340 = vmatpush1.bf16.msra.mxu0 0
    %1341 = vmatprep.subr.bf16.mxu0 0
    %1342 = vmatpush1.bf16.msra.mxu0 0
    %1343 = vmatprep.subr.bf16.mxu0 0
    %1344 = vmatpush1.bf16.msra.mxu0 0
    %1345 = vmatprep.subr.bf16.mxu0 0
    %1346 = vmatpush1.bf16.msra.mxu0 0
    %1347 = vmatprep.subr.bf16.mxu0 0
    %1348 = vmatpush1.bf16.msra.mxu0 0
    %1349 = vmatprep.subr.bf16.mxu0 0
    %1350 = vmatpush1.bf16.msra.mxu0 0
    %1351 = vmatprep.subr.bf16.mxu0 0
    %1352 = vmatpush1.bf16.msra.mxu0 0
    %1353 = vmatprep.subr.bf16.mxu0 0
    %1354 = vmatpush1.bf16.msra.mxu0 0
    %1355 = vmatprep.subr.bf16.mxu0 0
    %1356 = vmatpush1.bf16.msra.mxu0 0
    %1357 = vmatprep.subr.bf16.mxu0 0
    %1358 = vmatpush1.bf16.msra.mxu0 0
    %1359 = vmatprep.subr.bf16.mxu0 0
    %1360 = vmatpush1.bf16.msra.mxu0 0
    %1361 = vmatprep.mubr.bf16.mxu0 0
    %1362 = vmatmul.mubr.bf16.gmra.mrb[0].mxu0 %v1327
    %v1363 = vpop.f32.mrb[0].mxu0
    %v1364 = vadd.f32 0.0, %v1363
    %v1365 = vpop.f32.mrb[0].mxu0
    %v1366 = vpop.f32.mrb[0].mxu0
    %v1367 = vadd.f32 0.0, %v1366
    %v1368 = vpop.f32.mrb[0].mxu0
    %1369 = vdwg.mxu0
    %v1370 = vpack.c.bf16 %v1059, %v1056
    %v1371 = vpack.c.bf16 %v1103, %v1100
    %v1372 = vpack.c.bf16 %v1147, %v1144
    %v1373 = vpack.c.bf16 %v1191, %v1188
    %v1374 = vpack.c.bf16 %v1235, %v1232
    %v1375 = vpack.c.bf16 %v1279, %v1276
    %v1376 = vpack.c.bf16 %v1323, %v1320
    %v1377 = vpack.c.bf16 %v1367, %v1364
    %v1378 = vld [vmem:[%s5] sm:$0xf]
    %v1379 = vld [vmem:[%s5 + $0x4] sm:$0xf]
    %v1380 = vld [vmem:[%s5 + $0x8] sm:$0xf]
    %v1381 = vld [vmem:[%s5 + $0xc] sm:$0xf]
    %v1382 = vld [vmem:[%s5 + $0x10] sm:$0xf]
    %v1383 = vld [vmem:[%s5 + $0x14] sm:$0xf]
    %v1384 = vld [vmem:[%s5 + $0x18] sm:$0xf]
    %v1385 = vld [vmem:[%s5 + $0x1c] sm:$0xf]
    %v1388 = vunpack.c.l.b16 %v1378
    %v1389 = vunpack.c.l.b16 %v1379
    %v1390 = vpack.c.b16 %v1389, %v1388
    %v1393 = vsel %vm443, %v1370, 0
    %v1396 = vsel %vm443, %v1371, 0
    %1398 = vmatprep.subr.bf16.mxu0 0
    %1399 = vmatpush1.bf16.msra.mxu0 %v1390
    %1400 = vmatprep.subr.bf16.mxu0 0
    %1401 = vmatpush1.bf16.msra.mxu0 0
    %1402 = vmatprep.subr.bf16.mxu0 0
    %1403 = vmatpush1.bf16.msra.mxu0 0
    %1404 = vmatprep.subr.bf16.mxu0 0
    %1405 = vmatpush1.bf16.msra.mxu0 0
    %1406 = vmatprep.subr.bf16.mxu0 0
    %1407 = vmatpush1.bf16.msra.mxu0 0
    %1408 = vmatprep.subr.bf16.mxu0 0
    %1409 = vmatpush1.bf16.msra.mxu0 0
    %1410 = vmatprep.subr.bf16.mxu0 0
    %1411 = vmatpush1.bf16.msra.mxu0 0
    %1412 = vmatprep.subr.bf16.mxu0 0
    %1413 = vmatpush1.bf16.msra.mxu0 0
    %1414 = vmatprep.subr.bf16.mxu0 0
    %1415 = vmatpush1.bf16.msra.mxu0 0
    %1416 = vmatprep.subr.bf16.mxu0 0
    %1417 = vmatpush1.bf16.msra.mxu0 0
    %1418 = vmatprep.subr.bf16.mxu0 0
    %1419 = vmatpush1.bf16.msra.mxu0 0
    %1420 = vmatprep.subr.bf16.mxu0 0
    %1421 = vmatpush1.bf16.msra.mxu0 0
    %1422 = vmatprep.subr.bf16.mxu0 0
    %1423 = vmatpush1.bf16.msra.mxu0 0
    %1424 = vmatprep.subr.bf16.mxu0 0
    %1425 = vmatpush1.bf16.msra.mxu0 0
    %1426 = vmatprep.subr.bf16.mxu0 0
    %1427 = vmatpush1.bf16.msra.mxu0 0
    %1428 = vmatprep.subr.bf16.mxu0 0
    %1429 = vmatpush1.bf16.msra.mxu0 0
    %1430 = vmatprep.mubr.bf16.mxu0 0
    %1431 = vmatmul.mubr.bf16.gmra.mrb[0].mxu0 %v1393
    %v1432 = vpop.f32.mrb[0].mxu0
    %v1433 = vadd.f32 0.0, %v1432
    %v1434 = vpop.f32.mrb[0].mxu0
    %v1435 = vpop.f32.mrb[0].mxu0
    %v1436 = vadd.f32 0.0, %v1435
    %v1437 = vpop.f32.mrb[0].mxu0
    %1438 = vmatprep.mubr.bf16.mxu0 0
    %1439 = vmatmul.mubr.bf16.gmra.mrb[0].mxu0 %v1396
    %v1440 = vpop.f32.mrb[0].mxu0
    %v1441 = vadd.f32 0.0, %v1440
    %v1442 = vpop.f32.mrb[0].mxu0
    %v1443 = vpop.f32.mrb[0].mxu0
    %v1444 = vadd.f32 0.0, %v1443
    %v1445 = vpop.f32.mrb[0].mxu0
    %1446 = vdwg.mxu0
    %v1449 = vunpack.c.l.b16 %v1380
    %v1450 = vunpack.c.l.b16 %v1381
    %v1451 = vpack.c.b16 %v1450, %v1449
    %v1454 = vsel %vm443, %v1372, 0
    %v1457 = vsel %vm443, %v1373, 0
    %1459 = vmatprep.subr.bf16.mxu0 0
    %1460 = vmatpush1.bf16.msra.mxu0 %v1451
    %1461 = vmatprep.subr.bf16.mxu0 0
    %1462 = vmatpush1.bf16.msra.mxu0 0
    %1463 = vmatprep.subr.bf16.mxu0 0
    %1464 = vmatpush1.bf16.msra.mxu0 0
    %1465 = vmatprep.subr.bf16.mxu0 0
    %1466 = vmatpush1.bf16.msra.mxu0 0
    %1467 = vmatprep.subr.bf16.mxu0 0
    %1468 = vmatpush1.bf16.msra.mxu0 0
    %1469 = vmatprep.subr.bf16.mxu0 0
    %1470 = vmatpush1.bf16.msra.mxu0 0
    %1471 = vmatprep.subr.bf16.mxu0 0
    %1472 = vmatpush1.bf16.msra.mxu0 0
    %1473 = vmatprep.subr.bf16.mxu0 0
    %1474 = vmatpush1.bf16.msra.mxu0 0
    %1475 = vmatprep.subr.bf16.mxu0 0
    %1476 = vmatpush1.bf16.msra.mxu0 0
    %1477 = vmatprep.subr.bf16.mxu0 0
    %1478 = vmatpush1.bf16.msra.mxu0 0
    %1479 = vmatprep.subr.bf16.mxu0 0
    %1480 = vmatpush1.bf16.msra.mxu0 0
    %1481 = vmatprep.subr.bf16.mxu0 0
    %1482 = vmatpush1.bf16.msra.mxu0 0
    %1483 = vmatprep.subr.bf16.mxu0 0
    %1484 = vmatpush1.bf16.msra.mxu0 0
    %1485 = vmatprep.subr.bf16.mxu0 0
    %1486 = vmatpush1.bf16.msra.mxu0 0
    %1487 = vmatprep.subr.bf16.mxu0 0
    %1488 = vmatpush1.bf16.msra.mxu0 0
    %1489 = vmatprep.subr.bf16.mxu0 0
    %1490 = vmatpush1.bf16.msra.mxu0 0
    %1491 = vmatprep.mubr.bf16.mxu0 0
    %1492 = vmatmul.mubr.bf16.gmra.mrb[0].mxu0 %v1454
    %v1493 = vpop.f32.mrb[0].mxu0
    %v1494 = vadd.f32 0.0, %v1493
    %v1495 = vpop.f32.mrb[0].mxu0
    %v1496 = vpop.f32.mrb[0].mxu0
    %v1497 = vadd.f32 0.0, %v1496
    %v1498 = vpop.f32.mrb[0].mxu0
    %1499 = vmatprep.mubr.bf16.mxu0 0
    %1500 = vmatmul.mubr.bf16.gmra.mrb[0].mxu0 %v1457
    %v1501 = vpop.f32.mrb[0].mxu0
    %v1502 = vadd.f32 0.0, %v1501
    %v1503 = vpop.f32.mrb[0].mxu0
    %v1504 = vpop.f32.mrb[0].mxu0
    %v1505 = vadd.f32 0.0, %v1504
    %v1506 = vpop.f32.mrb[0].mxu0
    %1507 = vdwg.mxu0
    %v1510 = vunpack.c.l.b16 %v1382
    %v1511 = vunpack.c.l.b16 %v1383
    %v1512 = vpack.c.b16 %v1511, %v1510
    %v1515 = vsel %vm443, %v1374, 0
    %v1518 = vsel %vm443, %v1375, 0
    %1520 = vmatprep.subr.bf16.mxu0 0
    %1521 = vmatpush1.bf16.msra.mxu0 %v1512
    %1522 = vmatprep.subr.bf16.mxu0 0
    %1523 = vmatpush1.bf16.msra.mxu0 0
    %1524 = vmatprep.subr.bf16.mxu0 0
    %1525 = vmatpush1.bf16.msra.mxu0 0
    %1526 = vmatprep.subr.bf16.mxu0 0
    %1527 = vmatpush1.bf16.msra.mxu0 0
    %1528 = vmatprep.subr.bf16.mxu0 0
    %1529 = vmatpush1.bf16.msra.mxu0 0
    %1530 = vmatprep.subr.bf16.mxu0 0
    %1531 = vmatpush1.bf16.msra.mxu0 0
    %1532 = vmatprep.subr.bf16.mxu0 0
    %1533 = vmatpush1.bf16.msra.mxu0 0
    %1534 = vmatprep.subr.bf16.mxu0 0
    %1535 = vmatpush1.bf16.msra.mxu0 0
    %1536 = vmatprep.subr.bf16.mxu0 0
    %1537 = vmatpush1.bf16.msra.mxu0 0
    %1538 = vmatprep.subr.bf16.mxu0 0
    %1539 = vmatpush1.bf16.msra.mxu0 0
    %1540 = vmatprep.subr.bf16.mxu0 0
    %1541 = vmatpush1.bf16.msra.mxu0 0
    %1542 = vmatprep.subr.bf16.mxu0 0
    %1543 = vmatpush1.bf16.msra.mxu0 0
    %1544 = vmatprep.subr.bf16.mxu0 0
    %1545 = vmatpush1.bf16.msra.mxu0 0
    %1546 = vmatprep.subr.bf16.mxu0 0
    %1547 = vmatpush1.bf16.msra.mxu0 0
    %1548 = vmatprep.subr.bf16.mxu0 0
    %1549 = vmatpush1.bf16.msra.mxu0 0
    %1550 = vmatprep.subr.bf16.mxu0 0
    %1551 = vmatpush1.bf16.msra.mxu0 0
    %1552 = vmatprep.mubr.bf16.mxu0 0
    %1553 = vmatmul.mubr.bf16.gmra.mrb[0].mxu0 %v1515
    %v1554 = vpop.f32.mrb[0].mxu0
    %v1555 = vadd.f32 0.0, %v1554
    %v1556 = vpop.f32.mrb[0].mxu0
    %v1557 = vpop.f32.mrb[0].mxu0
    %v1558 = vadd.f32 0.0, %v1557
    %v1559 = vpop.f32.mrb[0].mxu0
    %1560 = vmatprep.mubr.bf16.mxu0 0
    %1561 = vmatmul.mubr.bf16.gmra.mrb[0].mxu0 %v1518
    %v1562 = vpop.f32.mrb[0].mxu0
    %v1563 = vadd.f32 0.0, %v1562
    %v1564 = vpop.f32.mrb[0].mxu0
    %v1565 = vpop.f32.mrb[0].mxu0
    %v1566 = vadd.f32 0.0, %v1565
    %v1567 = vpop.f32.mrb[0].mxu0
    %1568 = vdwg.mxu0
    %v1571 = vunpack.c.l.b16 %v1384
    %v1572 = vunpack.c.l.b16 %v1385
    %v1573 = vpack.c.b16 %v1572, %v1571
    %v1576 = vsel %vm443, %v1376, 0
    %v1579 = vsel %vm443, %v1377, 0
    %1581 = vmatprep.subr.bf16.mxu0 0
    %1582 = vmatpush1.bf16.msra.mxu0 %v1573
    %1583 = vmatprep.subr.bf16.mxu0 0
    %1584 = vmatpush1.bf16.msra.mxu0 0
    %1585 = vmatprep.subr.bf16.mxu0 0
    %1586 = vmatpush1.bf16.msra.mxu0 0
    %1587 = vmatprep.subr.bf16.mxu0 0
    %1588 = vmatpush1.bf16.msra.mxu0 0
    %1589 = vmatprep.subr.bf16.mxu0 0
    %1590 = vmatpush1.bf16.msra.mxu0 0
    %1591 = vmatprep.subr.bf16.mxu0 0
    %1592 = vmatpush1.bf16.msra.mxu0 0
    %1593 = vmatprep.subr.bf16.mxu0 0
    %1594 = vmatpush1.bf16.msra.mxu0 0
    %1595 = vmatprep.subr.bf16.mxu0 0
    %1596 = vmatpush1.bf16.msra.mxu0 0
    %1597 = vmatprep.subr.bf16.mxu0 0
    %1598 = vmatpush1.bf16.msra.mxu0 0
    %1599 = vmatprep.subr.bf16.mxu0 0
    %1600 = vmatpush1.bf16.msra.mxu0 0
    %1601 = vmatprep.subr.bf16.mxu0 0
    %1602 = vmatpush1.bf16.msra.mxu0 0
    %1603 = vmatprep.subr.bf16.mxu0 0
    %1604 = vmatpush1.bf16.msra.mxu0 0
    %1605 = vmatprep.subr.bf16.mxu0 0
    %1606 = vmatpush1.bf16.msra.mxu0 0
    %1607 = vmatprep.subr.bf16.mxu0 0
    %1608 = vmatpush1.bf16.msra.mxu0 0
    %1609 = vmatprep.subr.bf16.mxu0 0
    %1610 = vmatpush1.bf16.msra.mxu0 0
    %1611 = vmatprep.subr.bf16.mxu0 0
    %1612 = vmatpush1.bf16.msra.mxu0 0
    %1613 = vmatprep.mubr.bf16.mxu0 0
    %1614 = vmatmul.mubr.bf16.gmra.mrb[0].mxu0 %v1576
    %v1615 = vpop.f32.mrb[0].mxu0
    %v1616 = vadd.f32 0.0, %v1615
    %v1617 = vpop.f32.mrb[0].mxu0
    %v1618 = vpop.f32.mrb[0].mxu0
    %v1619 = vadd.f32 0.0, %v1618
    %v1620 = vpop.f32.mrb[0].mxu0
    %1621 = vmatprep.mubr.bf16.mxu0 0
    %1622 = vmatmul.mubr.bf16.gmra.mrb[0].mxu0 %v1579
    %v1623 = vpop.f32.mrb[0].mxu0
    %v1624 = vadd.f32 0.0, %v1623
    %v1625 = vpop.f32.mrb[0].mxu0
    %v1626 = vpop.f32.mrb[0].mxu0
    %v1627 = vadd.f32 0.0, %v1626
    %v1628 = vpop.f32.mrb[0].mxu0
    %1629 = vdwg.mxu0
    %v1630 = vsel %vm201, %v1433, 0.0
    %v1631 = vsel %vm201, %v1494, 0.0
    %v1632 = vadd.f32 %v1630, %v1631
    %v1633 = vsel %vm201, %v1555, 0.0
    %v1634 = vadd.f32 %v1632, %v1633
    %v1635 = vsel %vm201, %v1616, 0.0
    %v1636 = vadd.f32 %v1634, %v1635
    %v1637 = vsel %vm201, %v1436, 0.0
    %v1638 = vsel %vm201, %v1497, 0.0
    %v1639 = vadd.f32 %v1637, %v1638
    %v1640 = vsel %vm201, %v1558, 0.0
    %v1641 = vadd.f32 %v1639, %v1640
    %v1642 = vsel %vm201, %v1619, 0.0
    %v1643 = vadd.f32 %v1641, %v1642
    %v1644 = vsel %vm201, %v1441, 0.0
    %v1645 = vsel %vm201, %v1502, 0.0
    %v1646 = vadd.f32 %v1644, %v1645
    %v1647 = vsel %vm201, %v1563, 0.0
    %v1648 = vadd.f32 %v1646, %v1647
    %v1649 = vsel %vm201, %v1624, 0.0
    %v1650 = vadd.f32 %v1648, %v1649
    %v1651 = vsel %vm201, %v1444, 0.0
    %v1652 = vsel %vm201, %v1505, 0.0
    %v1653 = vadd.f32 %v1651, %v1652
    %v1654 = vsel %vm201, %v1566, 0.0
    %v1655 = vadd.f32 %v1653, %v1654
    %v1656 = vsel %vm201, %v1627, 0.0
    %v1657 = vadd.f32 %v1655, %v1656
    %v1658 = vadd.f32 %v196, %v1636
    %v1659 = vadd.f32 %v197, %v1643
    %v1660 = vadd.f32 %v198, %v1650
    %v1661 = vadd.f32 %v199, %v1657
    %v1662 = vlaneseq
    %v1663 = vshrl.u32 %v1662, 7
    %v1664 = vsub.s32 4, %v1663
    %v1665 = vrot.slane %v200, %v1664
    %v1666 = vadd.f32 %v1658, %v1665
    %v1667 = vadd.f32 %v1659, %v1665
    %v1668 = vadd.f32 %v1660, %v1665
    %v1669 = vadd.f32 %v1661, %v1665
    %v1670 = vsel %vm201, %v1666, 0.0
    %1671 = vadd.xlane.f32.xlu0 %v1670
    %v1672 = vpop.xlane.xlu0 %1671
    %v1673 = vsel %vm201, %v1667, 0.0
    %1674 = vadd.xlane.f32.xlu0 %v1673
    %v1675 = vpop.xlane.xlu0 %1674
    %v1676 = vsel %vm201, %v1668, 0.0
    %1677 = vadd.xlane.f32.xlu0 %v1676
    %v1678 = vpop.xlane.xlu0 %1677
    %v1679 = vsel %vm201, %v1669, 0.0
    %1680 = vadd.xlane.f32.xlu0 %v1679
    %v1681 = vpop.xlane.xlu0 %1680
    %v1682 = vmul.f32 %v1666, %v1666
    %v1683 = vmul.f32 %v1667, %v1667
    %v1684 = vmul.f32 %v1668, %v1668
    %v1685 = vmul.f32 %v1669, %v1669
    %v1686 = vsel %vm201, %v1682, 0.0
    %1687 = vadd.xlane.f32.xlu0 %v1686
    %v1688 = vpop.xlane.xlu0 %1687
    %v1689 = vsel %vm201, %v1683, 0.0
    %1690 = vadd.xlane.f32.xlu0 %v1689
    %v1691 = vpop.xlane.xlu0 %1690
    %v1692 = vsel %vm201, %v1684, 0.0
    %1693 = vadd.xlane.f32.xlu0 %v1692
    %v1694 = vpop.xlane.xlu0 %1693
    %v1695 = vsel %vm201, %v1685, 0.0
    %1696 = vadd.xlane.f32.xlu0 %v1695
    %v1697 = vpop.xlane.xlu0 %1696
    %v1698 = vmul.f32 %v1672, 0.015625
    %v1699 = vmul.f32 %v1675, 0.015625
    %v1700 = vmul.f32 %v1678, 0.015625
    %v1701 = vmul.f32 %v1681, 0.015625
    %v1702 = vmul.f32 %v1688, 0.015625
    %v1703 = vmul.f32 %v1691, 0.015625
    %v1704 = vmul.f32 %v1694, 0.015625
    %v1705 = vmul.f32 %v1697, 0.015625
    %v1706 = vmul.f32 %v1698, %v1698
    %v1707 = vmul.f32 %v1699, %v1699
    %v1708 = vmul.f32 %v1700, %v1700
    %v1709 = vmul.f32 %v1701, %v1701
    %v1710 = vsub.f32 %v1702, %v1706
    %v1711 = vsub.f32 %v1703, %v1707
    %v1712 = vsub.f32 %v1704, %v1708
    %v1713 = vsub.f32 %v1705, %v1709
    %v1714 = vmax.f32 %v1710, 0.0
    %v1715 = vmax.f32 %v1711, 0.0
    %v1716 = vmax.f32 %v1712, 0.0
    %v1717 = vmax.f32 %v1713, 0.0
    %v1718 = vsub.f32 %v1666, %v1698
    %v1719 = vsub.f32 %v1667, %v1699
    %v1720 = vsub.f32 %v1668, %v1700
    %v1721 = vsub.f32 %v1669, %v1701
    %v1722 = vadd.f32 %v1714, 1e-06
    %v1723 = vadd.f32 %v1715, 1e-06
    %v1724 = vadd.f32 %v1716, 1e-06
    %v1725 = vadd.f32 %v1717, 1e-06
    %v1726 = vrsqrt.pop %v1722
    %v1727 = vrsqrt.pop %v1723
    %v1728 = vrsqrt.pop %v1724
    %v1729 = vrsqrt.pop %v1725
    %v1730 = vmul.f32 %v1718, %v1726
    %v1731 = vmul.f32 %v1719, %v1727
    %v1732 = vmul.f32 %v1720, %v1728
    %v1733 = vmul.f32 %v1721, %v1729
    %v1734 = vlaneseq
    %v1735 = vshrl.u32 %v1734, 7
    %v1736 = vsub.s32 2, %v1735
    %v1737 = vrot.slane %v200, %v1736
    %v1738 = vmul.f32 %v1730, %v1737
    %v1739 = vmul.f32 %v1731, %v1737
    %v1740 = vmul.f32 %v1732, %v1737
    %v1741 = vmul.f32 %v1733, %v1737
    %v1742 = vlaneseq
    %v1743 = vshrl.u32 %v1742, 7
    %v1744 = vsub.s32 3, %v1743
    %v1745 = vrot.slane %v200, %v1744
    %v1746 = vadd.f32 %v1738, %v1745
    %v1747 = vadd.f32 %v1739, %v1745
    %v1748 = vadd.f32 %v1740, %v1745
    %v1749 = vadd.f32 %v1741, %v1745
    %v1750 = vpack.c.bf16 %v1747, %v1746
    %v1751 = vpack.c.bf16 %v1749, %v1748
    %v1752 = vld [vmem:[%s6] sm:$0xf]
    %v1753 = vld [vmem:[%s6 + $0x4] sm:$0xf]
    %v1754 = vld [vmem:[%s6 + $0x8] sm:$0xf]
    %v1755 = vld [vmem:[%s6 + $0xc] sm:$0xf]
    %v1756 = vld [vmem:[%s6 + $0x10] sm:$0xf]
    %v1757 = vld [vmem:[%s6 + $0x14] sm:$0xf]
    %v1758 = vld [vmem:[%s6 + $0x18] sm:$0xf]
    %v1759 = vld [vmem:[%s6 + $0x1c] sm:$0xf]
    %v1760 = vlaneseq
    %v1761 = vshrl.u32 %v1760, 7
    %v1762 = vsub.s32 6, %v1761
    %v1763 = vrot.slane %v200, %v1762
    %v1772 = vunpack.c.l.b16 %v1752
    %v1773 = vunpack.c.l.b16 %v1753
    %v1774 = vunpack.c.l.b16 %v1754
    %v1775 = vunpack.c.l.b16 %v1755
    %v1776 = vunpack.c.l.b16 %v1756
    %v1777 = vunpack.c.l.b16 %v1757
    %v1778 = vunpack.c.l.b16 %v1758
    %v1779 = vunpack.c.l.b16 %v1759
    %v1780 = vpack.c.b16 %v1773, %v1772
    %v1781 = vpack.c.b16 %v1775, %v1774
    %v1782 = vpack.c.b16 %v1777, %v1776
    %v1783 = vpack.c.b16 %v1779, %v1778
    %v1789 = vsel %vm201, %v1750, 0
    %v1792 = vsel %vm201, %v1751, 0
    %1794 = vmatprep.subr.bf16.mxu0 0
    %1795 = vmatpush1.bf16.msra.mxu0 %v1780
    %1796 = vmatprep.subr.bf16.mxu0 0
    %1797 = vmatpush1.bf16.msra.mxu0 %v1781
    %1798 = vmatprep.subr.bf16.mxu0 0
    %1799 = vmatpush1.bf16.msra.mxu0 %v1782
    %1800 = vmatprep.subr.bf16.mxu0 0
    %1801 = vmatpush1.bf16.msra.mxu0 %v1783
    %1802 = vmatprep.subr.bf16.mxu0 0
    %1803 = vmatpush1.bf16.msra.mxu0 0
    %1804 = vmatprep.subr.bf16.mxu0 0
    %1805 = vmatpush1.bf16.msra.mxu0 0
    %1806 = vmatprep.subr.bf16.mxu0 0
    %1807 = vmatpush1.bf16.msra.mxu0 0
    %1808 = vmatprep.subr.bf16.mxu0 0
    %1809 = vmatpush1.bf16.msra.mxu0 0
    %1810 = vmatprep.subr.bf16.mxu0 0
    %1811 = vmatpush1.bf16.msra.mxu0 0
    %1812 = vmatprep.subr.bf16.mxu0 0
    %1813 = vmatpush1.bf16.msra.mxu0 0
    %1814 = vmatprep.subr.bf16.mxu0 0
    %1815 = vmatpush1.bf16.msra.mxu0 0
    %1816 = vmatprep.subr.bf16.mxu0 0
    %1817 = vmatpush1.bf16.msra.mxu0 0
    %1818 = vmatprep.subr.bf16.mxu0 0
    %1819 = vmatpush1.bf16.msra.mxu0 0
    %1820 = vmatprep.subr.bf16.mxu0 0
    %1821 = vmatpush1.bf16.msra.mxu0 0
    %1822 = vmatprep.subr.bf16.mxu0 0
    %1823 = vmatpush1.bf16.msra.mxu0 0
    %1824 = vmatprep.subr.bf16.mxu0 0
    %1825 = vmatpush1.bf16.msra.mxu0 0
    %1826 = vmatprep.mubr.bf16.mxu0 0
    %1827 = vmatmul.mubr.bf16.gmra.mrb[0].mxu0 %v1789
    %v1828 = vpop.f32.mrb[0].mxu0
    %v1829 = vadd.f32 %v1763, %v1828
    %v1830 = vpop.f32.mrb[0].mxu0
    %v1831 = vpop.f32.mrb[0].mxu0
    %v1832 = vadd.f32 %v1763, %v1831
    %v1833 = vpop.f32.mrb[0].mxu0
    %1834 = vmatprep.mubr.bf16.mxu0 0
    %1835 = vmatmul.mubr.bf16.gmra.mrb[0].mxu0 %v1792
    %v1836 = vpop.f32.mrb[0].mxu0
    %v1837 = vadd.f32 %v1763, %v1836
    %v1838 = vpop.f32.mrb[0].mxu0
    %v1839 = vpop.f32.mrb[0].mxu0
    %v1840 = vadd.f32 %v1763, %v1839
    %v1841 = vpop.f32.mrb[0].mxu0
    %1842 = vdwg.mxu0
    %v1843 = vmul.f32 %v1829, %v1829
    %v1844 = vmul.f32 %v1832, %v1832
    %v1845 = vmul.f32 %v1837, %v1837
    %v1846 = vmul.f32 %v1840, %v1840
    %v1847 = vmul.f32 %v1829, %v1843
    %v1848 = vmul.f32 %v1832, %v1844
    %v1849 = vmul.f32 %v1837, %v1845
    %v1850 = vmul.f32 %v1840, %v1846
    %v1851 = vmul.f32 %v1847, 0.044715
    %v1852 = vmul.f32 %v1848, 0.044715
    %v1853 = vmul.f32 %v1849, 0.044715
    %v1854 = vmul.f32 %v1850, 0.044715
    %v1855 = vadd.f32 %v1829, %v1851
    %v1856 = vadd.f32 %v1832, %v1852
    %v1857 = vadd.f32 %v1837, %v1853
    %v1858 = vadd.f32 %v1840, %v1854
    %v1859 = vmul.f32 %v1855, 0.7978846
    %v1860 = vmul.f32 %v1856, 0.7978846
    %v1861 = vmul.f32 %v1857, 0.7978846
    %v1862 = vmul.f32 %v1858, 0.7978846
    %v1863 = vtanh.pop %v1859
    %v1864 = vtanh.pop %v1860
    %v1865 = vtanh.pop %v1861
    %v1866 = vtanh.pop %v1862
    %v1867 = vadd.f32 %v1863, 1.0
    %v1868 = vadd.f32 %v1864, 1.0
    %v1869 = vadd.f32 %v1865, 1.0
    %v1870 = vadd.f32 %v1866, 1.0
    %v1871 = vmul.f32 %v1867, 0.5
    %v1872 = vmul.f32 %v1868, 0.5
    %v1873 = vmul.f32 %v1869, 0.5
    %v1874 = vmul.f32 %v1870, 0.5
    %v1875 = vmul.f32 %v1829, %v1871
    %v1876 = vmul.f32 %v1832, %v1872
    %v1877 = vmul.f32 %v1837, %v1873
    %v1878 = vmul.f32 %v1840, %v1874
    %v1879 = vpack.c.bf16 %v1876, %v1875
    %v1880 = vpack.c.bf16 %v1878, %v1877
    %v1881 = vld [vmem:[%s7] sm:$0xf]
    %v1882 = vld [vmem:[%s7 + $0x4] sm:$0xf]
    %v1883 = vld [vmem:[%s7 + $0x8] sm:$0xf]
    %v1884 = vld [vmem:[%s7 + $0xc] sm:$0xf]
    %v1885 = vld [vmem:[%s7 + $0x10] sm:$0xf]
    %v1886 = vld [vmem:[%s7 + $0x14] sm:$0xf]
    %v1887 = vld [vmem:[%s7 + $0x18] sm:$0xf]
    %v1888 = vld [vmem:[%s7 + $0x1c] sm:$0xf]
    %v1889 = vld [vmem:[%s7 + $0x20] sm:$0xf]
    %v1890 = vld [vmem:[%s7 + $0x24] sm:$0xf]
    %v1891 = vld [vmem:[%s7 + $0x28] sm:$0xf]
    %v1892 = vld [vmem:[%s7 + $0x2c] sm:$0xf]
    %v1893 = vld [vmem:[%s7 + $0x30] sm:$0xf]
    %v1894 = vld [vmem:[%s7 + $0x34] sm:$0xf]
    %v1895 = vld [vmem:[%s7 + $0x38] sm:$0xf]
    %v1896 = vld [vmem:[%s7 + $0x3c] sm:$0xf]
    %v1897 = vlaneseq
    %v1898 = vshrl.u32 %v1897, 7
    %v1899 = vsub.s32 5, %v1898
    %v1900 = vrot.slane %v200, %v1899
    %v1917 = vunpack.c.l.b16 %v1881
    %v1918 = vunpack.c.l.b16 %v1882
    %v1919 = vunpack.c.l.b16 %v1883
    %v1920 = vunpack.c.l.b16 %v1884
    %v1921 = vunpack.c.l.b16 %v1885
    %v1922 = vunpack.c.l.b16 %v1886
    %v1923 = vunpack.c.l.b16 %v1887
    %v1924 = vunpack.c.l.b16 %v1888
    %v1925 = vunpack.c.l.b16 %v1889
    %v1926 = vunpack.c.l.b16 %v1890
    %v1927 = vunpack.c.l.b16 %v1891
    %v1928 = vunpack.c.l.b16 %v1892
    %v1929 = vunpack.c.l.b16 %v1893
    %v1930 = vunpack.c.l.b16 %v1894
    %v1931 = vunpack.c.l.b16 %v1895
    %v1932 = vunpack.c.l.b16 %v1896
    %v1933 = vpack.c.b16 %v1918, %v1917
    %v1934 = vpack.c.b16 %v1920, %v1919
    %v1935 = vpack.c.b16 %v1922, %v1921
    %v1936 = vpack.c.b16 %v1924, %v1923
    %v1937 = vpack.c.b16 %v1926, %v1925
    %v1938 = vpack.c.b16 %v1928, %v1927
    %v1939 = vpack.c.b16 %v1930, %v1929
    %v1940 = vpack.c.b16 %v1932, %v1931
    %1949 = vmatprep.subr.bf16.mxu0 0
    %1950 = vmatpush1.bf16.msra.mxu0 %v1933
    %1951 = vmatprep.subr.bf16.mxu0 0
    %1952 = vmatpush1.bf16.msra.mxu0 %v1934
    %1953 = vmatprep.subr.bf16.mxu0 0
    %1954 = vmatpush1.bf16.msra.mxu0 %v1935
    %1955 = vmatprep.subr.bf16.mxu0 0
    %1956 = vmatpush1.bf16.msra.mxu0 %v1936
    %1957 = vmatprep.subr.bf16.mxu0 0
    %1958 = vmatpush1.bf16.msra.mxu0 %v1937
    %1959 = vmatprep.subr.bf16.mxu0 0
    %1960 = vmatpush1.bf16.msra.mxu0 %v1938
    %1961 = vmatprep.subr.bf16.mxu0 0
    %1962 = vmatpush1.bf16.msra.mxu0 %v1939
    %1963 = vmatprep.subr.bf16.mxu0 0
    %1964 = vmatpush1.bf16.msra.mxu0 %v1940
    %1965 = vmatprep.subr.bf16.mxu0 0
    %1966 = vmatpush1.bf16.msra.mxu0 0
    %1967 = vmatprep.subr.bf16.mxu0 0
    %1968 = vmatpush1.bf16.msra.mxu0 0
    %1969 = vmatprep.subr.bf16.mxu0 0
    %1970 = vmatpush1.bf16.msra.mxu0 0
    %1971 = vmatprep.subr.bf16.mxu0 0
    %1972 = vmatpush1.bf16.msra.mxu0 0
    %1973 = vmatprep.subr.bf16.mxu0 0
    %1974 = vmatpush1.bf16.msra.mxu0 0
    %1975 = vmatprep.subr.bf16.mxu0 0
    %1976 = vmatpush1.bf16.msra.mxu0 0
    %1977 = vmatprep.subr.bf16.mxu0 0
    %1978 = vmatpush1.bf16.msra.mxu0 0
    %1979 = vmatprep.subr.bf16.mxu0 0
    %1980 = vmatpush1.bf16.msra.mxu0 0
    %1981 = vmatprep.mubr.bf16.mxu0 0
    %1982 = vmatmul.mubr.bf16.gmra.mrb[0].mxu0 %v1879
    %v1983 = vpop.f32.mrb[0].mxu0
    %v1984 = vadd.f32 %v1900, %v1983
    %v1985 = vpop.f32.mrb[0].mxu0
    %v1986 = vpop.f32.mrb[0].mxu0
    %v1987 = vadd.f32 %v1900, %v1986
    %v1988 = vpop.f32.mrb[0].mxu0
    %1989 = vmatprep.mubr.bf16.mxu0 0
    %1990 = vmatmul.mubr.bf16.gmra.mrb[0].mxu0 %v1880
    %v1991 = vpop.f32.mrb[0].mxu0
    %v1992 = vadd.f32 %v1900, %v1991
    %v1993 = vpop.f32.mrb[0].mxu0
    %v1994 = vpop.f32.mrb[0].mxu0
    %v1995 = vadd.f32 %v1900, %v1994
    %v1996 = vpop.f32.mrb[0].mxu0
    %1997 = vdwg.mxu0
    %v1998 = vadd.f32 %v1666, %v1984
    %v1999 = vadd.f32 %v1667, %v1987
    %v2000 = vadd.f32 %v1668, %v1992
    %v2001 = vadd.f32 %v1669, %v1995
    %s2002 = scalar_lea.vmem %s8, 8
    %v2003 = vld [vmem:[%s2002] sm:$0x7f]
    %v2004 = vsel %vm201, %v1998, 0.0
    %2005 = vadd.xlane.f32.xlu0 %v2004
    %v2006 = vpop.xlane.xlu0 %2005
    %v2007 = vsel %vm201, %v1999, 0.0
    %2008 = vadd.xlane.f32.xlu0 %v2007
    %v2009 = vpop.xlane.xlu0 %2008
    %v2010 = vsel %vm201, %v2000, 0.0
    %2011 = vadd.xlane.f32.xlu0 %v2010
    %v2012 = vpop.xlane.xlu0 %2011
    %v2013 = vsel %vm201, %v2001, 0.0
    %2014 = vadd.xlane.f32.xlu0 %v2013
    %v2015 = vpop.xlane.xlu0 %2014
    %v2016 = vmul.f32 %v1998, %v1998
    %v2017 = vmul.f32 %v1999, %v1999
    %v2018 = vmul.f32 %v2000, %v2000
    %v2019 = vmul.f32 %v2001, %v2001
    %v2020 = vsel %vm201, %v2016, 0.0
    %2021 = vadd.xlane.f32.xlu0 %v2020
    %v2022 = vpop.xlane.xlu0 %2021
    %v2023 = vsel %vm201, %v2017, 0.0
    %2024 = vadd.xlane.f32.xlu0 %v2023
    %v2025 = vpop.xlane.xlu0 %2024
    %v2026 = vsel %vm201, %v2018, 0.0
    %2027 = vadd.xlane.f32.xlu0 %v2026
    %v2028 = vpop.xlane.xlu0 %2027
    %v2029 = vsel %vm201, %v2019, 0.0
    %2030 = vadd.xlane.f32.xlu0 %v2029
    %v2031 = vpop.xlane.xlu0 %2030
    %v2032 = vmul.f32 %v2006, 0.015625
    %v2033 = vmul.f32 %v2009, 0.015625
    %v2034 = vmul.f32 %v2012, 0.015625
    %v2035 = vmul.f32 %v2015, 0.015625
    %v2036 = vmul.f32 %v2022, 0.015625
    %v2037 = vmul.f32 %v2025, 0.015625
    %v2038 = vmul.f32 %v2028, 0.015625
    %v2039 = vmul.f32 %v2031, 0.015625
    %v2040 = vmul.f32 %v2032, %v2032
    %v2041 = vmul.f32 %v2033, %v2033
    %v2042 = vmul.f32 %v2034, %v2034
    %v2043 = vmul.f32 %v2035, %v2035
    %v2044 = vsub.f32 %v2036, %v2040
    %v2045 = vsub.f32 %v2037, %v2041
    %v2046 = vsub.f32 %v2038, %v2042
    %v2047 = vsub.f32 %v2039, %v2043
    %v2048 = vmax.f32 %v2044, 0.0
    %v2049 = vmax.f32 %v2045, 0.0
    %v2050 = vmax.f32 %v2046, 0.0
    %v2051 = vmax.f32 %v2047, 0.0
    %v2052 = vsub.f32 %v1998, %v2032
    %v2053 = vsub.f32 %v1999, %v2033
    %v2054 = vsub.f32 %v2000, %v2034
    %v2055 = vsub.f32 %v2001, %v2035
    %v2056 = vadd.f32 %v2048, 1e-06
    %v2057 = vadd.f32 %v2049, 1e-06
    %v2058 = vadd.f32 %v2050, 1e-06
    %v2059 = vadd.f32 %v2051, 1e-06
    %v2060 = vrsqrt.pop %v2056
    %v2061 = vrsqrt.pop %v2057
    %v2062 = vrsqrt.pop %v2058
    %v2063 = vrsqrt.pop %v2059
    %v2064 = vmul.f32 %v2052, %v2060
    %v2065 = vmul.f32 %v2053, %v2061
    %v2066 = vmul.f32 %v2054, %v2062
    %v2067 = vmul.f32 %v2055, %v2063
    %v2068 = vlaneseq
    %v2069 = vshrl.u32 %v2068, 7
    %v2070 = vsub.s32 0, %v2069
    %v2071 = vrot.slane %v2003, %v2070
    %v2072 = vmul.f32 %v2064, %v2071
    %v2073 = vmul.f32 %v2065, %v2071
    %v2074 = vmul.f32 %v2066, %v2071
    %v2075 = vmul.f32 %v2067, %v2071
    %v2076 = vlaneseq
    %v2077 = vshrl.u32 %v2076, 7
    %v2078 = vsub.s32 1, %v2077
    %v2079 = vrot.slane %v2003, %v2078
    %v2080 = vadd.f32 %v2072, %v2079
    %v2081 = vadd.f32 %v2073, %v2079
    %v2082 = vadd.f32 %v2074, %v2079
    %v2083 = vadd.f32 %v2075, %v2079
    %v2084 = vpack.c.bf16 %v2081, %v2080
    %v2085 = vpack.c.bf16 %v2083, %v2082
    %s2086 = scalar_lea.vmem %s3, 64
    %v2087 = vld [vmem:[%s2086] sm:$0xff]
    %v2088 = vld [vmem:[%s2086 + $0x8] sm:$0xff]
    %v2089 = vld [vmem:[%s2086 + $0x10] sm:$0xff]
    %v2090 = vld [vmem:[%s2086 + $0x18] sm:$0xff]
    %v2091 = vld [vmem:[%s2086 + $0x20] sm:$0xff]
    %v2092 = vld [vmem:[%s2086 + $0x28] sm:$0xff]
    %v2093 = vld [vmem:[%s2086 + $0x30] sm:$0xff]
    %v2094 = vld [vmem:[%s2086 + $0x38] sm:$0xff]
    %s2095 = scalar_lea.vmem %s4, 2
    %v2096 = vld [vmem:[%s2095] sm:$0x3]
    %v2098 = vlaneseq
    %v2099 = vshrl.u32 %v2098, 7
    %v2100 = vsub.s32 0, %v2099
    %v2101 = vrot.slane %v2096, %v2100
    %v2102 = vlaneseq
    %v2103 = vshrl.u32 %v2102, 7
    %v2104 = vsub.s32 1, %v2103
    %v2105 = vrot.slane %v2096, %v2104
    %v2116 = vunpack.c.l.b16 %v2087
    %v2117 = vunpack.c.h.b16 %v2087
    %v2118 = vunpack.c.l.b16 %v2088
    %v2119 = vunpack.c.h.b16 %v2088
    %v2120 = vunpack.c.l.b16 %v2089
    %v2121 = vunpack.c.h.b16 %v2089
    %v2122 = vunpack.c.l.b16 %v2090
    %v2123 = vunpack.c.h.b16 %v2090
    %v2124 = vunpack.c.l.b16 %v2091
    %v2125 = vunpack.c.h.b16 %v2091
    %v2126 = vunpack.c.l.b16 %v2092
    %v2127 = vunpack.c.h.b16 %v2092
    %v2128 = vunpack.c.l.b16 %v2093
    %v2129 = vunpack.c.h.b16 %v2093
    %v2130 = vunpack.c.l.b16 %v2094
    %v2131 = vunpack.c.h.b16 %v2094
    %v2132 = vpack.c.b16 %v2118, %v2116
    %v2133 = vpack.c.b16 %v2119, %v2117
    %v2134 = vpack.c.b16 %v2122, %v2120
    %v2135 = vpack.c.b16 %v2123, %v2121
    %v2136 = vpack.c.b16 %v2126, %v2124
    %v2137 = vpack.c.b16 %v2127, %v2125
    %v2138 = vpack.c.b16 %v2130, %v2128
    %v2139 = vpack.c.b16 %v2131, %v2129
    %v2149 = vsel %vm201, %v2084, 0
    %v2152 = vsel %vm201, %v2085, 0
    %2154 = vmatprep.subr.bf16.mxu0 %v2133
    %2155 = vmatpush1.bf16.msra.mxu0 %v2132
    %2156 = vmatprep.subr.bf16.mxu0 %v2135
    %2157 = vmatpush1.bf16.msra.mxu0 %v2134
    %2158 = vmatprep.subr.bf16.mxu0 %v2137
    %2159 = vmatpush1.bf16.msra.mxu0 %v2136
    %2160 = vmatprep.subr.bf16.mxu0 %v2139
    %2161 = vmatpush1.bf16.msra.mxu0 %v2138
    %2162 = vmatprep.subr.bf16.mxu0 0
    %2163 = vmatpush1.bf16.msra.mxu0 0
    %2164 = vmatprep.subr.bf16.mxu0 0
    %2165 = vmatpush1.bf16.msra.mxu0 0
    %2166 = vmatprep.subr.bf16.mxu0 0
    %2167 = vmatpush1.bf16.msra.mxu0 0
    %2168 = vmatprep.subr.bf16.mxu0 0
    %2169 = vmatpush1.bf16.msra.mxu0 0
    %2170 = vmatprep.subr.bf16.mxu0 0
    %2171 = vmatpush1.bf16.msra.mxu0 0
    %2172 = vmatprep.subr.bf16.mxu0 0
    %2173 = vmatpush1.bf16.msra.mxu0 0
    %2174 = vmatprep.subr.bf16.mxu0 0
    %2175 = vmatpush1.bf16.msra.mxu0 0
    %2176 = vmatprep.subr.bf16.mxu0 0
    %2177 = vmatpush1.bf16.msra.mxu0 0
    %2178 = vmatprep.subr.bf16.mxu0 0
    %2179 = vmatpush1.bf16.msra.mxu0 0
    %2180 = vmatprep.subr.bf16.mxu0 0
    %2181 = vmatpush1.bf16.msra.mxu0 0
    %2182 = vmatprep.subr.bf16.mxu0 0
    %2183 = vmatpush1.bf16.msra.mxu0 0
    %2184 = vmatprep.subr.bf16.mxu0 0
    %2185 = vmatpush1.bf16.msra.mxu0 0
    %2186 = vmatprep.mubr.bf16.mxu0 0
    %2187 = vmatmul.mubr.bf16.gmra.mrb[0].mxu0 %v2149
    %v2188 = vpop.f32.mrb[0].mxu0
    %v2189 = vadd.f32 %v2101, %v2188
    %v2190 = vpop.f32.mrb[0].mxu0
    %v2191 = vadd.f32 %v2105, %v2190
    %v2192 = vpop.f32.mrb[0].mxu0
    %v2193 = vadd.f32 %v2101, %v2192
    %v2194 = vpop.f32.mrb[0].mxu0
    %v2195 = vadd.f32 %v2105, %v2194
    %2196 = vmatprep.mubr.bf16.mxu0 0
    %2197 = vmatmul.mubr.bf16.gmra.mrb[0].mxu0 %v2152
    %v2198 = vpop.f32.mrb[0].mxu0
    %v2199 = vadd.f32 %v2101, %v2198
    %v2200 = vpop.f32.mrb[0].mxu0
    %v2201 = vadd.f32 %v2105, %v2200
    %v2202 = vpop.f32.mrb[0].mxu0
    %v2203 = vadd.f32 %v2101, %v2202
    %v2204 = vpop.f32.mrb[0].mxu0
    %v2205 = vadd.f32 %v2105, %v2204
    %2206 = vdwg.mxu0
    %v2207 = vpack.c.bf16 %v2193, %v2189
    %v2208 = vpack.c.bf16 %v2195, %v2191
    %v2209 = vpack.c.bf16 %v2203, %v2199
    %v2210 = vpack.c.bf16 %v2205, %v2201
    %2213 = vrot.lane.b32.xlu0 %v2207, 112
    %v2214 = vpop.permute.xlu0 %2213
    %2215 = vrot.lane.b32.xlu0 %v2209, 112
    %v2216 = vpop.permute.xlu0 %2215
    %2217 = vrot.lane.b32.xlu0 %v2207, 96
    %v2218 = vpop.permute.xlu0 %2217
    %2219 = vrot.lane.b32.xlu0 %v2209, 96
    %v2220 = vpop.permute.xlu0 %2219
    %2221 = vrot.lane.b32.xlu0 %v2207, 80
    %v2222 = vpop.permute.xlu0 %2221
    %2223 = vrot.lane.b32.xlu0 %v2209, 80
    %v2224 = vpop.permute.xlu0 %2223
    %2227 = vrot.lane.b32.xlu0 %v2208, 112
    %v2228 = vpop.permute.xlu0 %2227
    %2229 = vrot.lane.b32.xlu0 %v2210, 112
    %v2230 = vpop.permute.xlu0 %2229
    %2233 = vrot.lane.b32.xlu0 %v2208, 96
    %v2234 = vpop.permute.xlu0 %2233
    %2235 = vrot.lane.b32.xlu0 %v2210, 96
    %v2236 = vpop.permute.xlu0 %2235
    %2239 = vrot.lane.b32.xlu0 %v2208, 80
    %v2240 = vpop.permute.xlu0 %2239
    %2241 = vrot.lane.b32.xlu0 %v2210, 80
    %v2242 = vpop.permute.xlu0 %2241
    %2245 = vrot.lane.b32.xlu0 %v2207, 64
    %v2246 = vpop.permute.xlu0 %2245
    %v2248 = vsel %vm443, %v2207, 0
    %v2251 = vsel %vm443, %v2246, 0
    %2253 = vmatprep.subr.bf16.mxu0 0
    %2254 = vmatpush1.bf16.xpose.msra.mxu0 %v2251
    %2255 = vmatprep.subr.bf16.mxu0 0
    %2256 = vmatpush1.bf16.xpose.msra.mxu0 0
    %2257 = vmatprep.subr.bf16.mxu0 0
    %2258 = vmatpush1.bf16.xpose.msra.mxu0 0
    %2259 = vmatprep.subr.bf16.mxu0 0
    %2260 = vmatpush1.bf16.xpose.msra.mxu0 0
    %2261 = vmatprep.subr.bf16.mxu0 0
    %2262 = vmatpush1.bf16.xpose.msra.mxu0 0
    %2263 = vmatprep.subr.bf16.mxu0 0
    %2264 = vmatpush1.bf16.xpose.msra.mxu0 0
    %2265 = vmatprep.subr.bf16.mxu0 0
    %2266 = vmatpush1.bf16.xpose.msra.mxu0 0
    %2267 = vmatprep.subr.bf16.mxu0 0
    %2268 = vmatpush1.bf16.xpose.msra.mxu0 0
    %2269 = vmatprep.subr.bf16.mxu0 0
    %2270 = vmatpush1.bf16.xpose.msra.mxu0 0
    %2271 = vmatprep.subr.bf16.mxu0 0
    %2272 = vmatpush1.bf16.xpose.msra.mxu0 0
    %2273 = vmatprep.subr.bf16.mxu0 0
    %2274 = vmatpush1.bf16.xpose.msra.mxu0 0
    %2275 = vmatprep.subr.bf16.mxu0 0
    %2276 = vmatpush1.bf16.xpose.msra.mxu0 0
    %2277 = vmatprep.subr.bf16.mxu0 0
    %2278 = vmatpush1.bf16.xpose.msra.mxu0 0
    %2279 = vmatprep.subr.bf16.mxu0 0
    %2280 = vmatpush1.bf16.xpose.msra.mxu0 0
    %2281 = vmatprep.subr.bf16.mxu0 0
    %2282 = vmatpush1.bf16.xpose.msra.mxu0 0
    %2283 = vmatprep.subr.bf16.mxu0 0
    %2284 = vmatpush1.bf16.xpose.msra.mxu0 0
    %2285 = vmatprep.mubr.bf16.mxu0 0
    %2286 = vmatmul.mubr.bf16.gmra.mrb[0].mxu0 %v2248
    %v2287 = vpop.f32.mrb[0].mxu0
    %v2288 = vadd.f32 0.0, %v2287
    %v2289 = vpop.f32.mrb[0].mxu0
    %v2290 = vpop.f32.mrb[0].mxu0
    %v2291 = vadd.f32 0.0, %v2290
    %v2292 = vpop.f32.mrb[0].mxu0
    %2293 = vdwg.mxu0
    %2294 = vrot.lane.b32.xlu0 %v2209, 64
    %v2295 = vpop.permute.xlu0 %2294
    %v2297 = vsel %vm443, %v2209, 0
    %v2300 = vsel %vm443, %v2295, 0
    %2302 = vmatprep.subr.bf16.mxu0 0
    %2303 = vmatpush1.bf16.xpose.msra.mxu0 %v2300
    %2304 = vmatprep.subr.bf16.mxu0 0
    %2305 = vmatpush1.bf16.xpose.msra.mxu0 0
    %2306 = vmatprep.subr.bf16.mxu0 0
    %2307 = vmatpush1.bf16.xpose.msra.mxu0 0
    %2308 = vmatprep.subr.bf16.mxu0 0
    %2309 = vmatpush1.bf16.xpose.msra.mxu0 0
    %2310 = vmatprep.subr.bf16.mxu0 0
    %2311 = vmatpush1.bf16.xpose.msra.mxu0 0
    %2312 = vmatprep.subr.bf16.mxu0 0
    %2313 = vmatpush1.bf16.xpose.msra.mxu0 0
    %2314 = vmatprep.subr.bf16.mxu0 0
    %2315 = vmatpush1.bf16.xpose.msra.mxu0 0
    %2316 = vmatprep.subr.bf16.mxu0 0
    %2317 = vmatpush1.bf16.xpose.msra.mxu0 0
    %2318 = vmatprep.subr.bf16.mxu0 0
    %2319 = vmatpush1.bf16.xpose.msra.mxu0 0
    %2320 = vmatprep.subr.bf16.mxu0 0
    %2321 = vmatpush1.bf16.xpose.msra.mxu0 0
    %2322 = vmatprep.subr.bf16.mxu0 0
    %2323 = vmatpush1.bf16.xpose.msra.mxu0 0
    %2324 = vmatprep.subr.bf16.mxu0 0
    %2325 = vmatpush1.bf16.xpose.msra.mxu0 0
    %2326 = vmatprep.subr.bf16.mxu0 0
    %2327 = vmatpush1.bf16.xpose.msra.mxu0 0
    %2328 = vmatprep.subr.bf16.mxu0 0
    %2329 = vmatpush1.bf16.xpose.msra.mxu0 0
    %2330 = vmatprep.subr.bf16.mxu0 0
    %2331 = vmatpush1.bf16.xpose.msra.mxu0 0
    %2332 = vmatprep.subr.bf16.mxu0 0
    %2333 = vmatpush1.bf16.xpose.msra.mxu0 0
    %2334 = vmatprep.mubr.bf16.mxu0 0
    %2335 = vmatmul.mubr.bf16.gmra.mrb[0].mxu0 %v2297
    %v2336 = vpop.f32.mrb[0].mxu0
    %v2337 = vadd.f32 0.0, %v2336
    %v2338 = vpop.f32.mrb[0].mxu0
    %v2339 = vpop.f32.mrb[0].mxu0
    %v2340 = vadd.f32 0.0, %v2339
    %v2341 = vpop.f32.mrb[0].mxu0
    %2342 = vdwg.mxu0
    %2343 = vrot.lane.b32.xlu0 %v2214, 64
    %v2344 = vpop.permute.xlu0 %2343
    %v2346 = vsel %vm443, %v2214, 0
    %v2349 = vsel %vm443, %v2344, 0
    %2351 = vmatprep.subr.bf16.mxu0 0
    %2352 = vmatpush1.bf16.xpose.msra.mxu0 %v2349
    %2353 = vmatprep.subr.bf16.mxu0 0
    %2354 = vmatpush1.bf16.xpose.msra.mxu0 0
    %2355 = vmatprep.subr.bf16.mxu0 0
    %2356 = vmatpush1.bf16.xpose.msra.mxu0 0
    %2357 = vmatprep.subr.bf16.mxu0 0
    %2358 = vmatpush1.bf16.xpose.msra.mxu0 0
    %2359 = vmatprep.subr.bf16.mxu0 0
    %2360 = vmatpush1.bf16.xpose.msra.mxu0 0
    %2361 = vmatprep.subr.bf16.mxu0 0
    %2362 = vmatpush1.bf16.xpose.msra.mxu0 0
    %2363 = vmatprep.subr.bf16.mxu0 0
    %2364 = vmatpush1.bf16.xpose.msra.mxu0 0
    %2365 = vmatprep.subr.bf16.mxu0 0
    %2366 = vmatpush1.bf16.xpose.msra.mxu0 0
    %2367 = vmatprep.subr.bf16.mxu0 0
    %2368 = vmatpush1.bf16.xpose.msra.mxu0 0
    %2369 = vmatprep.subr.bf16.mxu0 0
    %2370 = vmatpush1.bf16.xpose.msra.mxu0 0
    %2371 = vmatprep.subr.bf16.mxu0 0
    %2372 = vmatpush1.bf16.xpose.msra.mxu0 0
    %2373 = vmatprep.subr.bf16.mxu0 0
    %2374 = vmatpush1.bf16.xpose.msra.mxu0 0
    %2375 = vmatprep.subr.bf16.mxu0 0
    %2376 = vmatpush1.bf16.xpose.msra.mxu0 0
    %2377 = vmatprep.subr.bf16.mxu0 0
    %2378 = vmatpush1.bf16.xpose.msra.mxu0 0
    %2379 = vmatprep.subr.bf16.mxu0 0
    %2380 = vmatpush1.bf16.xpose.msra.mxu0 0
    %2381 = vmatprep.subr.bf16.mxu0 0
    %2382 = vmatpush1.bf16.xpose.msra.mxu0 0
    %2383 = vmatprep.mubr.bf16.mxu0 0
    %2384 = vmatmul.mubr.bf16.gmra.mrb[0].mxu0 %v2346
    %v2385 = vpop.f32.mrb[0].mxu0
    %v2386 = vadd.f32 0.0, %v2385
    %v2387 = vpop.f32.mrb[0].mxu0
    %v2388 = vpop.f32.mrb[0].mxu0
    %v2389 = vadd.f32 0.0, %v2388
    %v2390 = vpop.f32.mrb[0].mxu0
    %2391 = vdwg.mxu0
    %2392 = vrot.lane.b32.xlu0 %v2216, 64
    %v2393 = vpop.permute.xlu0 %2392
    %v2395 = vsel %vm443, %v2216, 0
    %v2398 = vsel %vm443, %v2393, 0
    %2400 = vmatprep.subr.bf16.mxu0 0
    %2401 = vmatpush1.bf16.xpose.msra.mxu0 %v2398
    %2402 = vmatprep.subr.bf16.mxu0 0
    %2403 = vmatpush1.bf16.xpose.msra.mxu0 0
    %2404 = vmatprep.subr.bf16.mxu0 0
    %2405 = vmatpush1.bf16.xpose.msra.mxu0 0
    %2406 = vmatprep.subr.bf16.mxu0 0
    %2407 = vmatpush1.bf16.xpose.msra.mxu0 0
    %2408 = vmatprep.subr.bf16.mxu0 0
    %2409 = vmatpush1.bf16.xpose.msra.mxu0 0
    %2410 = vmatprep.subr.bf16.mxu0 0
    %2411 = vmatpush1.bf16.xpose.msra.mxu0 0
    %2412 = vmatprep.subr.bf16.mxu0 0
    %2413 = vmatpush1.bf16.xpose.msra.mxu0 0
    %2414 = vmatprep.subr.bf16.mxu0 0
    %2415 = vmatpush1.bf16.xpose.msra.mxu0 0
    %2416 = vmatprep.subr.bf16.mxu0 0
    %2417 = vmatpush1.bf16.xpose.msra.mxu0 0
    %2418 = vmatprep.subr.bf16.mxu0 0
    %2419 = vmatpush1.bf16.xpose.msra.mxu0 0
    %2420 = vmatprep.subr.bf16.mxu0 0
    %2421 = vmatpush1.bf16.xpose.msra.mxu0 0
    %2422 = vmatprep.subr.bf16.mxu0 0
    %2423 = vmatpush1.bf16.xpose.msra.mxu0 0
    %2424 = vmatprep.subr.bf16.mxu0 0
    %2425 = vmatpush1.bf16.xpose.msra.mxu0 0
    %2426 = vmatprep.subr.bf16.mxu0 0
    %2427 = vmatpush1.bf16.xpose.msra.mxu0 0
    %2428 = vmatprep.subr.bf16.mxu0 0
    %2429 = vmatpush1.bf16.xpose.msra.mxu0 0
    %2430 = vmatprep.subr.bf16.mxu0 0
    %2431 = vmatpush1.bf16.xpose.msra.mxu0 0
    %2432 = vmatprep.mubr.bf16.mxu0 0
    %2433 = vmatmul.mubr.bf16.gmra.mrb[0].mxu0 %v2395
    %v2434 = vpop.f32.mrb[0].mxu0
    %v2435 = vadd.f32 0.0, %v2434
    %v2436 = vpop.f32.mrb[0].mxu0
    %v2437 = vpop.f32.mrb[0].mxu0
    %v2438 = vadd.f32 0.0, %v2437
    %v2439 = vpop.f32.mrb[0].mxu0
    %2440 = vdwg.mxu0
    %2441 = vrot.lane.b32.xlu0 %v2218, 64
    %v2442 = vpop.permute.xlu0 %2441
    %v2444 = vsel %vm443, %v2218, 0
    %v2447 = vsel %vm443, %v2442, 0
    %2449 = vmatprep.subr.bf16.mxu0 0
    %2450 = vmatpush1.bf16.xpose.msra.mxu0 %v2447
    %2451 = vmatprep.subr.bf16.mxu0 0
    %2452 = vmatpush1.bf16.xpose.msra.mxu0 0
    %2453 = vmatprep.subr.bf16.mxu0 0
    %2454 = vmatpush1.bf16.xpose.msra.mxu0 0
    %2455 = vmatprep.subr.bf16.mxu0 0
    %2456 = vmatpush1.bf16.xpose.msra.mxu0 0
    %2457 = vmatprep.subr.bf16.mxu0 0
    %2458 = vmatpush1.bf16.xpose.msra.mxu0 0
    %2459 = vmatprep.subr.bf16.mxu0 0
    %2460 = vmatpush1.bf16.xpose.msra.mxu0 0
    %2461 = vmatprep.subr.bf16.mxu0 0
    %2462 = vmatpush1.bf16.xpose.msra.mxu0 0
    %2463 = vmatprep.subr.bf16.mxu0 0
    %2464 = vmatpush1.bf16.xpose.msra.mxu0 0
    %2465 = vmatprep.subr.bf16.mxu0 0
    %2466 = vmatpush1.bf16.xpose.msra.mxu0 0
    %2467 = vmatprep.subr.bf16.mxu0 0
    %2468 = vmatpush1.bf16.xpose.msra.mxu0 0
    %2469 = vmatprep.subr.bf16.mxu0 0
    %2470 = vmatpush1.bf16.xpose.msra.mxu0 0
    %2471 = vmatprep.subr.bf16.mxu0 0
    %2472 = vmatpush1.bf16.xpose.msra.mxu0 0
    %2473 = vmatprep.subr.bf16.mxu0 0
    %2474 = vmatpush1.bf16.xpose.msra.mxu0 0
    %2475 = vmatprep.subr.bf16.mxu0 0
    %2476 = vmatpush1.bf16.xpose.msra.mxu0 0
    %2477 = vmatprep.subr.bf16.mxu0 0
    %2478 = vmatpush1.bf16.xpose.msra.mxu0 0
    %2479 = vmatprep.subr.bf16.mxu0 0
    %2480 = vmatpush1.bf16.xpose.msra.mxu0 0
    %2481 = vmatprep.mubr.bf16.mxu0 0
    %2482 = vmatmul.mubr.bf16.gmra.mrb[0].mxu0 %v2444
    %v2483 = vpop.f32.mrb[0].mxu0
    %v2484 = vadd.f32 0.0, %v2483
    %v2485 = vpop.f32.mrb[0].mxu0
    %v2486 = vpop.f32.mrb[0].mxu0
    %v2487 = vadd.f32 0.0, %v2486
    %v2488 = vpop.f32.mrb[0].mxu0
    %2489 = vdwg.mxu0
    %2490 = vrot.lane.b32.xlu0 %v2220, 64
    %v2491 = vpop.permute.xlu0 %2490
    %v2493 = vsel %vm443, %v2220, 0
    %v2496 = vsel %vm443, %v2491, 0
    %2498 = vmatprep.subr.bf16.mxu0 0
    %2499 = vmatpush1.bf16.xpose.msra.mxu0 %v2496
    %2500 = vmatprep.subr.bf16.mxu0 0
    %2501 = vmatpush1.bf16.xpose.msra.mxu0 0
    %2502 = vmatprep.subr.bf16.mxu0 0
    %2503 = vmatpush1.bf16.xpose.msra.mxu0 0
    %2504 = vmatprep.subr.bf16.mxu0 0
    %2505 = vmatpush1.bf16.xpose.msra.mxu0 0
    %2506 = vmatprep.subr.bf16.mxu0 0
    %2507 = vmatpush1.bf16.xpose.msra.mxu0 0
    %2508 = vmatprep.subr.bf16.mxu0 0
    %2509 = vmatpush1.bf16.xpose.msra.mxu0 0
    %2510 = vmatprep.subr.bf16.mxu0 0
    %2511 = vmatpush1.bf16.xpose.msra.mxu0 0
    %2512 = vmatprep.subr.bf16.mxu0 0
    %2513 = vmatpush1.bf16.xpose.msra.mxu0 0
    %2514 = vmatprep.subr.bf16.mxu0 0
    %2515 = vmatpush1.bf16.xpose.msra.mxu0 0
    %2516 = vmatprep.subr.bf16.mxu0 0
    %2517 = vmatpush1.bf16.xpose.msra.mxu0 0
    %2518 = vmatprep.subr.bf16.mxu0 0
    %2519 = vmatpush1.bf16.xpose.msra.mxu0 0
    %2520 = vmatprep.subr.bf16.mxu0 0
    %2521 = vmatpush1.bf16.xpose.msra.mxu0 0
    %2522 = vmatprep.subr.bf16.mxu0 0
    %2523 = vmatpush1.bf16.xpose.msra.mxu0 0
    %2524 = vmatprep.subr.bf16.mxu0 0
    %2525 = vmatpush1.bf16.xpose.msra.mxu0 0
    %2526 = vmatprep.subr.bf16.mxu0 0
    %2527 = vmatpush1.bf16.xpose.msra.mxu0 0
    %2528 = vmatprep.subr.bf16.mxu0 0
    %2529 = vmatpush1.bf16.xpose.msra.mxu0 0
    %2530 = vmatprep.mubr.bf16.mxu0 0
    %2531 = vmatmul.mubr.bf16.gmra.mrb[0].mxu0 %v2493
    %v2532 = vpop.f32.mrb[0].mxu0
    %v2533 = vadd.f32 0.0, %v2532
    %v2534 = vpop.f32.mrb[0].mxu0
    %v2535 = vpop.f32.mrb[0].mxu0
    %v2536 = vadd.f32 0.0, %v2535
    %v2537 = vpop.f32.mrb[0].mxu0
    %2538 = vdwg.mxu0
    %2539 = vrot.lane.b32.xlu0 %v2222, 64
    %v2540 = vpop.permute.xlu0 %2539
    %v2542 = vsel %vm443, %v2222, 0
    %v2545 = vsel %vm443, %v2540, 0
    %2547 = vmatprep.subr.bf16.mxu0 0
    %2548 = vmatpush1.bf16.xpose.msra.mxu0 %v2545
    %2549 = vmatprep.subr.bf16.mxu0 0
    %2550 = vmatpush1.bf16.xpose.msra.mxu0 0
    %2551 = vmatprep.subr.bf16.mxu0 0
    %2552 = vmatpush1.bf16.xpose.msra.mxu0 0
    %2553 = vmatprep.subr.bf16.mxu0 0
    %2554 = vmatpush1.bf16.xpose.msra.mxu0 0
    %2555 = vmatprep.subr.bf16.mxu0 0
    %2556 = vmatpush1.bf16.xpose.msra.mxu0 0
    %2557 = vmatprep.subr.bf16.mxu0 0
    %2558 = vmatpush1.bf16.xpose.msra.mxu0 0
    %2559 = vmatprep.subr.bf16.mxu0 0
    %2560 = vmatpush1.bf16.xpose.msra.mxu0 0
    %2561 = vmatprep.subr.bf16.mxu0 0
    %2562 = vmatpush1.bf16.xpose.msra.mxu0 0
    %2563 = vmatprep.subr.bf16.mxu0 0
    %2564 = vmatpush1.bf16.xpose.msra.mxu0 0
    %2565 = vmatprep.subr.bf16.mxu0 0
    %2566 = vmatpush1.bf16.xpose.msra.mxu0 0
    %2567 = vmatprep.subr.bf16.mxu0 0
    %2568 = vmatpush1.bf16.xpose.msra.mxu0 0
    %2569 = vmatprep.subr.bf16.mxu0 0
    %2570 = vmatpush1.bf16.xpose.msra.mxu0 0
    %2571 = vmatprep.subr.bf16.mxu0 0
    %2572 = vmatpush1.bf16.xpose.msra.mxu0 0
    %2573 = vmatprep.subr.bf16.mxu0 0
    %2574 = vmatpush1.bf16.xpose.msra.mxu0 0
    %2575 = vmatprep.subr.bf16.mxu0 0
    %2576 = vmatpush1.bf16.xpose.msra.mxu0 0
    %2577 = vmatprep.subr.bf16.mxu0 0
    %2578 = vmatpush1.bf16.xpose.msra.mxu0 0
    %2579 = vmatprep.mubr.bf16.mxu0 0
    %2580 = vmatmul.mubr.bf16.gmra.mrb[0].mxu0 %v2542
    %v2581 = vpop.f32.mrb[0].mxu0
    %v2582 = vadd.f32 0.0, %v2581
    %v2583 = vpop.f32.mrb[0].mxu0
    %v2584 = vpop.f32.mrb[0].mxu0
    %v2585 = vadd.f32 0.0, %v2584
    %v2586 = vpop.f32.mrb[0].mxu0
    %2587 = vdwg.mxu0
    %2588 = vrot.lane.b32.xlu0 %v2224, 64
    %v2589 = vpop.permute.xlu0 %2588
    %v2591 = vsel %vm443, %v2224, 0
    %v2594 = vsel %vm443, %v2589, 0
    %2596 = vmatprep.subr.bf16.mxu0 0
    %2597 = vmatpush1.bf16.xpose.msra.mxu0 %v2594
    %2598 = vmatprep.subr.bf16.mxu0 0
    %2599 = vmatpush1.bf16.xpose.msra.mxu0 0
    %2600 = vmatprep.subr.bf16.mxu0 0
    %2601 = vmatpush1.bf16.xpose.msra.mxu0 0
    %2602 = vmatprep.subr.bf16.mxu0 0
    %2603 = vmatpush1.bf16.xpose.msra.mxu0 0
    %2604 = vmatprep.subr.bf16.mxu0 0
    %2605 = vmatpush1.bf16.xpose.msra.mxu0 0
    %2606 = vmatprep.subr.bf16.mxu0 0
    %2607 = vmatpush1.bf16.xpose.msra.mxu0 0
    %2608 = vmatprep.subr.bf16.mxu0 0
    %2609 = vmatpush1.bf16.xpose.msra.mxu0 0
    %2610 = vmatprep.subr.bf16.mxu0 0
    %2611 = vmatpush1.bf16.xpose.msra.mxu0 0
    %2612 = vmatprep.subr.bf16.mxu0 0
    %2613 = vmatpush1.bf16.xpose.msra.mxu0 0
    %2614 = vmatprep.subr.bf16.mxu0 0
    %2615 = vmatpush1.bf16.xpose.msra.mxu0 0
    %2616 = vmatprep.subr.bf16.mxu0 0
    %2617 = vmatpush1.bf16.xpose.msra.mxu0 0
    %2618 = vmatprep.subr.bf16.mxu0 0
    %2619 = vmatpush1.bf16.xpose.msra.mxu0 0
    %2620 = vmatprep.subr.bf16.mxu0 0
    %2621 = vmatpush1.bf16.xpose.msra.mxu0 0
    %2622 = vmatprep.subr.bf16.mxu0 0
    %2623 = vmatpush1.bf16.xpose.msra.mxu0 0
    %2624 = vmatprep.subr.bf16.mxu0 0
    %2625 = vmatpush1.bf16.xpose.msra.mxu0 0
    %2626 = vmatprep.subr.bf16.mxu0 0
    %2627 = vmatpush1.bf16.xpose.msra.mxu0 0
    %2628 = vmatprep.mubr.bf16.mxu0 0
    %2629 = vmatmul.mubr.bf16.gmra.mrb[0].mxu0 %v2591
    %v2630 = vpop.f32.mrb[0].mxu0
    %v2631 = vadd.f32 0.0, %v2630
    %v2632 = vpop.f32.mrb[0].mxu0
    %v2633 = vpop.f32.mrb[0].mxu0
    %v2634 = vadd.f32 0.0, %v2633
    %v2635 = vpop.f32.mrb[0].mxu0
    %2636 = vdwg.mxu0
    %v2637 = vsel %vm443, %v2288, -inf
    %2638 = vmax.xlane.f32.xlu0 %v2637
    %v2639 = vpop.xlane.xlu0 %2638
    %v2640 = vsel %vm443, %v2291, -inf
    %2641 = vmax.xlane.f32.xlu0 %v2640
    %v2642 = vpop.xlane.xlu0 %2641
    %v2643 = vsel %vm443, %v2337, -inf
    %2644 = vmax.xlane.f32.xlu0 %v2643
    %v2645 = vpop.xlane.xlu0 %2644
    %v2646 = vsel %vm443, %v2340, -inf
    %2647 = vmax.xlane.f32.xlu0 %v2646
    %v2648 = vpop.xlane.xlu0 %2647
    %v2649 = vsel %vm443, %v2386, -inf
    %2650 = vmax.xlane.f32.xlu0 %v2649
    %v2651 = vpop.xlane.xlu0 %2650
    %v2652 = vsel %vm443, %v2389, -inf
    %2653 = vmax.xlane.f32.xlu0 %v2652
    %v2654 = vpop.xlane.xlu0 %2653
    %v2655 = vsel %vm443, %v2435, -inf
    %2656 = vmax.xlane.f32.xlu0 %v2655
    %v2657 = vpop.xlane.xlu0 %2656
    %v2658 = vsel %vm443, %v2438, -inf
    %2659 = vmax.xlane.f32.xlu0 %v2658
    %v2660 = vpop.xlane.xlu0 %2659
    %v2661 = vsel %vm443, %v2484, -inf
    %2662 = vmax.xlane.f32.xlu0 %v2661
    %v2663 = vpop.xlane.xlu0 %2662
    %v2664 = vsel %vm443, %v2487, -inf
    %2665 = vmax.xlane.f32.xlu0 %v2664
    %v2666 = vpop.xlane.xlu0 %2665
    %v2667 = vsel %vm443, %v2533, -inf
    %2668 = vmax.xlane.f32.xlu0 %v2667
    %v2669 = vpop.xlane.xlu0 %2668
    %v2670 = vsel %vm443, %v2536, -inf
    %2671 = vmax.xlane.f32.xlu0 %v2670
    %v2672 = vpop.xlane.xlu0 %2671
    %v2673 = vsel %vm443, %v2582, -inf
    %2674 = vmax.xlane.f32.xlu0 %v2673
    %v2675 = vpop.xlane.xlu0 %2674
    %v2676 = vsel %vm443, %v2585, -inf
    %2677 = vmax.xlane.f32.xlu0 %v2676
    %v2678 = vpop.xlane.xlu0 %2677
    %v2679 = vsel %vm443, %v2631, -inf
    %2680 = vmax.xlane.f32.xlu0 %v2679
    %v2681 = vpop.xlane.xlu0 %2680
    %v2682 = vsel %vm443, %v2634, -inf
    %2683 = vmax.xlane.f32.xlu0 %v2682
    %v2684 = vpop.xlane.xlu0 %2683
    %v2685 = vsub.f32 %v2288, %v2639
    %v2686 = vsub.f32 %v2291, %v2642
    %v2687 = vsub.f32 %v2337, %v2645
    %v2688 = vsub.f32 %v2340, %v2648
    %v2689 = vsub.f32 %v2386, %v2651
    %v2690 = vsub.f32 %v2389, %v2654
    %v2691 = vsub.f32 %v2435, %v2657
    %v2692 = vsub.f32 %v2438, %v2660
    %v2693 = vsub.f32 %v2484, %v2663
    %v2694 = vsub.f32 %v2487, %v2666
    %v2695 = vsub.f32 %v2533, %v2669
    %v2696 = vsub.f32 %v2536, %v2672
    %v2697 = vsub.f32 %v2582, %v2675
    %v2698 = vsub.f32 %v2585, %v2678
    %v2699 = vsub.f32 %v2631, %v2681
    %v2700 = vsub.f32 %v2634, %v2684
    %v2701 = vmul.f32 %v2685, 1.442695
    %v2702 = vpow.pop %v2701
    %v2703 = vmul.f32 %v2686, 1.442695
    %v2704 = vpow.pop %v2703
    %v2705 = vmul.f32 %v2687, 1.442695
    %v2706 = vpow.pop %v2705
    %v2707 = vmul.f32 %v2688, 1.442695
    %v2708 = vpow.pop %v2707
    %v2709 = vmul.f32 %v2689, 1.442695
    %v2710 = vpow.pop %v2709
    %v2711 = vmul.f32 %v2690, 1.442695
    %v2712 = vpow.pop %v2711
    %v2713 = vmul.f32 %v2691, 1.442695
    %v2714 = vpow.pop %v2713
    %v2715 = vmul.f32 %v2692, 1.442695
    %v2716 = vpow.pop %v2715
    %v2717 = vmul.f32 %v2693, 1.442695
    %v2718 = vpow.pop %v2717
    %v2719 = vmul.f32 %v2694, 1.442695
    %v2720 = vpow.pop %v2719
    %v2721 = vmul.f32 %v2695, 1.442695
    %v2722 = vpow.pop %v2721
    %v2723 = vmul.f32 %v2696, 1.442695
    %v2724 = vpow.pop %v2723
    %v2725 = vmul.f32 %v2697, 1.442695
    %v2726 = vpow.pop %v2725
    %v2727 = vmul.f32 %v2698, 1.442695
    %v2728 = vpow.pop %v2727
    %v2729 = vmul.f32 %v2699, 1.442695
    %v2730 = vpow.pop %v2729
    %v2731 = vmul.f32 %v2700, 1.442695
    %v2732 = vpow.pop %v2731
    %v2733 = vsel %vm443, %v2702, 0.0
    %2734 = vadd.xlane.f32.xlu0 %v2733
    %v2735 = vpop.xlane.xlu0 %2734
    %v2736 = vsel %vm443, %v2704, 0.0
    %2737 = vadd.xlane.f32.xlu0 %v2736
    %v2738 = vpop.xlane.xlu0 %2737
    %v2739 = vsel %vm443, %v2706, 0.0
    %2740 = vadd.xlane.f32.xlu0 %v2739
    %v2741 = vpop.xlane.xlu0 %2740
    %v2742 = vsel %vm443, %v2708, 0.0
    %2743 = vadd.xlane.f32.xlu0 %v2742
    %v2744 = vpop.xlane.xlu0 %2743
    %v2745 = vsel %vm443, %v2710, 0.0
    %2746 = vadd.xlane.f32.xlu0 %v2745
    %v2747 = vpop.xlane.xlu0 %2746
    %v2748 = vsel %vm443, %v2712, 0.0
    %2749 = vadd.xlane.f32.xlu0 %v2748
    %v2750 = vpop.xlane.xlu0 %2749
    %v2751 = vsel %vm443, %v2714, 0.0
    %2752 = vadd.xlane.f32.xlu0 %v2751
    %v2753 = vpop.xlane.xlu0 %2752
    %v2754 = vsel %vm443, %v2716, 0.0
    %2755 = vadd.xlane.f32.xlu0 %v2754
    %v2756 = vpop.xlane.xlu0 %2755
    %v2757 = vsel %vm443, %v2718, 0.0
    %2758 = vadd.xlane.f32.xlu0 %v2757
    %v2759 = vpop.xlane.xlu0 %2758
    %v2760 = vsel %vm443, %v2720, 0.0
    %2761 = vadd.xlane.f32.xlu0 %v2760
    %v2762 = vpop.xlane.xlu0 %2761
    %v2763 = vsel %vm443, %v2722, 0.0
    %2764 = vadd.xlane.f32.xlu0 %v2763
    %v2765 = vpop.xlane.xlu0 %2764
    %v2766 = vsel %vm443, %v2724, 0.0
    %2767 = vadd.xlane.f32.xlu0 %v2766
    %v2768 = vpop.xlane.xlu0 %2767
    %v2769 = vsel %vm443, %v2726, 0.0
    %2770 = vadd.xlane.f32.xlu0 %v2769
    %v2771 = vpop.xlane.xlu0 %2770
    %v2772 = vsel %vm443, %v2728, 0.0
    %2773 = vadd.xlane.f32.xlu0 %v2772
    %v2774 = vpop.xlane.xlu0 %2773
    %v2775 = vsel %vm443, %v2730, 0.0
    %2776 = vadd.xlane.f32.xlu0 %v2775
    %v2777 = vpop.xlane.xlu0 %2776
    %v2778 = vsel %vm443, %v2732, 0.0
    %2779 = vadd.xlane.f32.xlu0 %v2778
    %v2780 = vpop.xlane.xlu0 %2779
    %v2781 = vrcp.pop %v2735
    %v2782 = vrcp.pop %v2738
    %v2783 = vrcp.pop %v2741
    %v2784 = vrcp.pop %v2744
    %v2785 = vrcp.pop %v2747
    %v2786 = vrcp.pop %v2750
    %v2787 = vrcp.pop %v2753
    %v2788 = vrcp.pop %v2756
    %v2789 = vrcp.pop %v2759
    %v2790 = vrcp.pop %v2762
    %v2791 = vrcp.pop %v2765
    %v2792 = vrcp.pop %v2768
    %v2793 = vrcp.pop %v2771
    %v2794 = vrcp.pop %v2774
    %v2795 = vrcp.pop %v2777
    %v2796 = vrcp.pop %v2780
    %v2797 = vmul.f32 %v2702, %v2781
    %v2798 = vmul.f32 %v2704, %v2782
    %v2799 = vmul.f32 %v2706, %v2783
    %v2800 = vmul.f32 %v2708, %v2784
    %v2801 = vmul.f32 %v2710, %v2785
    %v2802 = vmul.f32 %v2712, %v2786
    %v2803 = vmul.f32 %v2714, %v2787
    %v2804 = vmul.f32 %v2716, %v2788
    %v2805 = vmul.f32 %v2718, %v2789
    %v2806 = vmul.f32 %v2720, %v2790
    %v2807 = vmul.f32 %v2722, %v2791
    %v2808 = vmul.f32 %v2724, %v2792
    %v2809 = vmul.f32 %v2726, %v2793
    %v2810 = vmul.f32 %v2728, %v2794
    %v2811 = vmul.f32 %v2730, %v2795
    %v2812 = vmul.f32 %v2732, %v2796
    %v2813 = vpack.c.bf16 %v2798, %v2797
    %v2814 = vpack.c.bf16 %v2800, %v2799
    %v2815 = vpack.c.bf16 %v2802, %v2801
    %v2816 = vpack.c.bf16 %v2804, %v2803
    %v2817 = vpack.c.bf16 %v2806, %v2805
    %v2818 = vpack.c.bf16 %v2808, %v2807
    %v2819 = vpack.c.bf16 %v2810, %v2809
    %v2820 = vpack.c.bf16 %v2812, %v2811
    %v2822 = vsel %vm443, %v2813, 0
    %2824 = vmatprep.subr.bf16.mxu0 0
    %2825 = vmatpush1.bf16.msra.mxu0 %v2208
    %2826 = vmatprep.subr.bf16.mxu0 0
    %2827 = vmatpush1.bf16.msra.mxu0 0
    %2828 = vmatprep.subr.bf16.mxu0 0
    %2829 = vmatpush1.bf16.msra.mxu0 0
    %2830 = vmatprep.subr.bf16.mxu0 0
    %2831 = vmatpush1.bf16.msra.mxu0 0
    %2832 = vmatprep.subr.bf16.mxu0 0
    %2833 = vmatpush1.bf16.msra.mxu0 0
    %2834 = vmatprep.subr.bf16.mxu0 0
    %2835 = vmatpush1.bf16.msra.mxu0 0
    %2836 = vmatprep.subr.bf16.mxu0 0
    %2837 = vmatpush1.bf16.msra.mxu0 0
    %2838 = vmatprep.subr.bf16.mxu0 0
    %2839 = vmatpush1.bf16.msra.mxu0 0
    %2840 = vmatprep.subr.bf16.mxu0 0
    %2841 = vmatpush1.bf16.msra.mxu0 0
    %2842 = vmatprep.subr.bf16.mxu0 0
    %2843 = vmatpush1.bf16.msra.mxu0 0
    %2844 = vmatprep.subr.bf16.mxu0 0
    %2845 = vmatpush1.bf16.msra.mxu0 0
    %2846 = vmatprep.subr.bf16.mxu0 0
    %2847 = vmatpush1.bf16.msra.mxu0 0
    %2848 = vmatprep.subr.bf16.mxu0 0
    %2849 = vmatpush1.bf16.msra.mxu0 0
    %2850 = vmatprep.subr.bf16.mxu0 0
    %2851 = vmatpush1.bf16.msra.mxu0 0
    %2852 = vmatprep.subr.bf16.mxu0 0
    %2853 = vmatpush1.bf16.msra.mxu0 0
    %2854 = vmatprep.subr.bf16.mxu0 0
    %2855 = vmatpush1.bf16.msra.mxu0 0
    %2856 = vmatprep.mubr.bf16.mxu0 0
    %2857 = vmatmul.mubr.bf16.gmra.mrb[0].mxu0 %v2822
    %v2858 = vpop.f32.mrb[0].mxu0
    %v2859 = vadd.f32 0.0, %v2858
    %v2860 = vpop.f32.mrb[0].mxu0
    %v2861 = vpop.f32.mrb[0].mxu0
    %v2862 = vadd.f32 0.0, %v2861
    %v2863 = vpop.f32.mrb[0].mxu0
    %2864 = vdwg.mxu0
    %v2866 = vsel %vm443, %v2814, 0
    %2868 = vmatprep.subr.bf16.mxu0 0
    %2869 = vmatpush1.bf16.msra.mxu0 %v2210
    %2870 = vmatprep.subr.bf16.mxu0 0
    %2871 = vmatpush1.bf16.msra.mxu0 0
    %2872 = vmatprep.subr.bf16.mxu0 0
    %2873 = vmatpush1.bf16.msra.mxu0 0
    %2874 = vmatprep.subr.bf16.mxu0 0
    %2875 = vmatpush1.bf16.msra.mxu0 0
    %2876 = vmatprep.subr.bf16.mxu0 0
    %2877 = vmatpush1.bf16.msra.mxu0 0
    %2878 = vmatprep.subr.bf16.mxu0 0
    %2879 = vmatpush1.bf16.msra.mxu0 0
    %2880 = vmatprep.subr.bf16.mxu0 0
    %2881 = vmatpush1.bf16.msra.mxu0 0
    %2882 = vmatprep.subr.bf16.mxu0 0
    %2883 = vmatpush1.bf16.msra.mxu0 0
    %2884 = vmatprep.subr.bf16.mxu0 0
    %2885 = vmatpush1.bf16.msra.mxu0 0
    %2886 = vmatprep.subr.bf16.mxu0 0
    %2887 = vmatpush1.bf16.msra.mxu0 0
    %2888 = vmatprep.subr.bf16.mxu0 0
    %2889 = vmatpush1.bf16.msra.mxu0 0
    %2890 = vmatprep.subr.bf16.mxu0 0
    %2891 = vmatpush1.bf16.msra.mxu0 0
    %2892 = vmatprep.subr.bf16.mxu0 0
    %2893 = vmatpush1.bf16.msra.mxu0 0
    %2894 = vmatprep.subr.bf16.mxu0 0
    %2895 = vmatpush1.bf16.msra.mxu0 0
    %2896 = vmatprep.subr.bf16.mxu0 0
    %2897 = vmatpush1.bf16.msra.mxu0 0
    %2898 = vmatprep.subr.bf16.mxu0 0
    %2899 = vmatpush1.bf16.msra.mxu0 0
    %2900 = vmatprep.mubr.bf16.mxu0 0
    %2901 = vmatmul.mubr.bf16.gmra.mrb[0].mxu0 %v2866
    %v2902 = vpop.f32.mrb[0].mxu0
    %v2903 = vadd.f32 0.0, %v2902
    %v2904 = vpop.f32.mrb[0].mxu0
    %v2905 = vpop.f32.mrb[0].mxu0
    %v2906 = vadd.f32 0.0, %v2905
    %v2907 = vpop.f32.mrb[0].mxu0
    %2908 = vdwg.mxu0
    %v2910 = vsel %vm443, %v2815, 0
    %2912 = vmatprep.subr.bf16.mxu0 0
    %2913 = vmatpush1.bf16.msra.mxu0 %v2228
    %2914 = vmatprep.subr.bf16.mxu0 0
    %2915 = vmatpush1.bf16.msra.mxu0 0
    %2916 = vmatprep.subr.bf16.mxu0 0
    %2917 = vmatpush1.bf16.msra.mxu0 0
    %2918 = vmatprep.subr.bf16.mxu0 0
    %2919 = vmatpush1.bf16.msra.mxu0 0
    %2920 = vmatprep.subr.bf16.mxu0 0
    %2921 = vmatpush1.bf16.msra.mxu0 0
    %2922 = vmatprep.subr.bf16.mxu0 0
    %2923 = vmatpush1.bf16.msra.mxu0 0
    %2924 = vmatprep.subr.bf16.mxu0 0
    %2925 = vmatpush1.bf16.msra.mxu0 0
    %2926 = vmatprep.subr.bf16.mxu0 0
    %2927 = vmatpush1.bf16.msra.mxu0 0
    %2928 = vmatprep.subr.bf16.mxu0 0
    %2929 = vmatpush1.bf16.msra.mxu0 0
    %2930 = vmatprep.subr.bf16.mxu0 0
    %2931 = vmatpush1.bf16.msra.mxu0 0
    %2932 = vmatprep.subr.bf16.mxu0 0
    %2933 = vmatpush1.bf16.msra.mxu0 0
    %2934 = vmatprep.subr.bf16.mxu0 0
    %2935 = vmatpush1.bf16.msra.mxu0 0
    %2936 = vmatprep.subr.bf16.mxu0 0
    %2937 = vmatpush1.bf16.msra.mxu0 0
    %2938 = vmatprep.subr.bf16.mxu0 0
    %2939 = vmatpush1.bf16.msra.mxu0 0
    %2940 = vmatprep.subr.bf16.mxu0 0
    %2941 = vmatpush1.bf16.msra.mxu0 0
    %2942 = vmatprep.subr.bf16.mxu0 0
    %2943 = vmatpush1.bf16.msra.mxu0 0
    %2944 = vmatprep.mubr.bf16.mxu0 0
    %2945 = vmatmul.mubr.bf16.gmra.mrb[0].mxu0 %v2910
    %v2946 = vpop.f32.mrb[0].mxu0
    %v2947 = vadd.f32 0.0, %v2946
    %v2948 = vpop.f32.mrb[0].mxu0
    %v2949 = vpop.f32.mrb[0].mxu0
    %v2950 = vadd.f32 0.0, %v2949
    %v2951 = vpop.f32.mrb[0].mxu0
    %2952 = vdwg.mxu0
    %v2954 = vsel %vm443, %v2816, 0
    %2956 = vmatprep.subr.bf16.mxu0 0
    %2957 = vmatpush1.bf16.msra.mxu0 %v2230
    %2958 = vmatprep.subr.bf16.mxu0 0
    %2959 = vmatpush1.bf16.msra.mxu0 0
    %2960 = vmatprep.subr.bf16.mxu0 0
    %2961 = vmatpush1.bf16.msra.mxu0 0
    %2962 = vmatprep.subr.bf16.mxu0 0
    %2963 = vmatpush1.bf16.msra.mxu0 0
    %2964 = vmatprep.subr.bf16.mxu0 0
    %2965 = vmatpush1.bf16.msra.mxu0 0
    %2966 = vmatprep.subr.bf16.mxu0 0
    %2967 = vmatpush1.bf16.msra.mxu0 0
    %2968 = vmatprep.subr.bf16.mxu0 0
    %2969 = vmatpush1.bf16.msra.mxu0 0
    %2970 = vmatprep.subr.bf16.mxu0 0
    %2971 = vmatpush1.bf16.msra.mxu0 0
    %2972 = vmatprep.subr.bf16.mxu0 0
    %2973 = vmatpush1.bf16.msra.mxu0 0
    %2974 = vmatprep.subr.bf16.mxu0 0
    %2975 = vmatpush1.bf16.msra.mxu0 0
    %2976 = vmatprep.subr.bf16.mxu0 0
    %2977 = vmatpush1.bf16.msra.mxu0 0
    %2978 = vmatprep.subr.bf16.mxu0 0
    %2979 = vmatpush1.bf16.msra.mxu0 0
    %2980 = vmatprep.subr.bf16.mxu0 0
    %2981 = vmatpush1.bf16.msra.mxu0 0
    %2982 = vmatprep.subr.bf16.mxu0 0
    %2983 = vmatpush1.bf16.msra.mxu0 0
    %2984 = vmatprep.subr.bf16.mxu0 0
    %2985 = vmatpush1.bf16.msra.mxu0 0
    %2986 = vmatprep.subr.bf16.mxu0 0
    %2987 = vmatpush1.bf16.msra.mxu0 0
    %2988 = vmatprep.mubr.bf16.mxu0 0
    %2989 = vmatmul.mubr.bf16.gmra.mrb[0].mxu0 %v2954
    %v2990 = vpop.f32.mrb[0].mxu0
    %v2991 = vadd.f32 0.0, %v2990
    %v2992 = vpop.f32.mrb[0].mxu0
    %v2993 = vpop.f32.mrb[0].mxu0
    %v2994 = vadd.f32 0.0, %v2993
    %v2995 = vpop.f32.mrb[0].mxu0
    %2996 = vdwg.mxu0
    %v2998 = vsel %vm443, %v2817, 0
    %3000 = vmatprep.subr.bf16.mxu0 0
    %3001 = vmatpush1.bf16.msra.mxu0 %v2234
    %3002 = vmatprep.subr.bf16.mxu0 0
    %3003 = vmatpush1.bf16.msra.mxu0 0
    %3004 = vmatprep.subr.bf16.mxu0 0
    %3005 = vmatpush1.bf16.msra.mxu0 0
    %3006 = vmatprep.subr.bf16.mxu0 0
    %3007 = vmatpush1.bf16.msra.mxu0 0
    %3008 = vmatprep.subr.bf16.mxu0 0
    %3009 = vmatpush1.bf16.msra.mxu0 0
    %3010 = vmatprep.subr.bf16.mxu0 0
    %3011 = vmatpush1.bf16.msra.mxu0 0
    %3012 = vmatprep.subr.bf16.mxu0 0
    %3013 = vmatpush1.bf16.msra.mxu0 0
    %3014 = vmatprep.subr.bf16.mxu0 0
    %3015 = vmatpush1.bf16.msra.mxu0 0
    %3016 = vmatprep.subr.bf16.mxu0 0
    %3017 = vmatpush1.bf16.msra.mxu0 0
    %3018 = vmatprep.subr.bf16.mxu0 0
    %3019 = vmatpush1.bf16.msra.mxu0 0
    %3020 = vmatprep.subr.bf16.mxu0 0
    %3021 = vmatpush1.bf16.msra.mxu0 0
    %3022 = vmatprep.subr.bf16.mxu0 0
    %3023 = vmatpush1.bf16.msra.mxu0 0
    %3024 = vmatprep.subr.bf16.mxu0 0
    %3025 = vmatpush1.bf16.msra.mxu0 0
    %3026 = vmatprep.subr.bf16.mxu0 0
    %3027 = vmatpush1.bf16.msra.mxu0 0
    %3028 = vmatprep.subr.bf16.mxu0 0
    %3029 = vmatpush1.bf16.msra.mxu0 0
    %3030 = vmatprep.subr.bf16.mxu0 0
    %3031 = vmatpush1.bf16.msra.mxu0 0
    %3032 = vmatprep.mubr.bf16.mxu0 0
    %3033 = vmatmul.mubr.bf16.gmra.mrb[0].mxu0 %v2998
    %v3034 = vpop.f32.mrb[0].mxu0
    %v3035 = vadd.f32 0.0, %v3034
    %v3036 = vpop.f32.mrb[0].mxu0
    %v3037 = vpop.f32.mrb[0].mxu0
    %v3038 = vadd.f32 0.0, %v3037
    %v3039 = vpop.f32.mrb[0].mxu0
    %3040 = vdwg.mxu0
    %v3042 = vsel %vm443, %v2818, 0
    %3044 = vmatprep.subr.bf16.mxu0 0
    %3045 = vmatpush1.bf16.msra.mxu0 %v2236
    %3046 = vmatprep.subr.bf16.mxu0 0
    %3047 = vmatpush1.bf16.msra.mxu0 0
    %3048 = vmatprep.subr.bf16.mxu0 0
    %3049 = vmatpush1.bf16.msra.mxu0 0
    %3050 = vmatprep.subr.bf16.mxu0 0
    %3051 = vmatpush1.bf16.msra.mxu0 0
    %3052 = vmatprep.subr.bf16.mxu0 0
    %3053 = vmatpush1.bf16.msra.mxu0 0
    %3054 = vmatprep.subr.bf16.mxu0 0
    %3055 = vmatpush1.bf16.msra.mxu0 0
    %3056 = vmatprep.subr.bf16.mxu0 0
    %3057 = vmatpush1.bf16.msra.mxu0 0
    %3058 = vmatprep.subr.bf16.mxu0 0
    %3059 = vmatpush1.bf16.msra.mxu0 0
    %3060 = vmatprep.subr.bf16.mxu0 0
    %3061 = vmatpush1.bf16.msra.mxu0 0
    %3062 = vmatprep.subr.bf16.mxu0 0
    %3063 = vmatpush1.bf16.msra.mxu0 0
    %3064 = vmatprep.subr.bf16.mxu0 0
    %3065 = vmatpush1.bf16.msra.mxu0 0
    %3066 = vmatprep.subr.bf16.mxu0 0
    %3067 = vmatpush1.bf16.msra.mxu0 0
    %3068 = vmatprep.subr.bf16.mxu0 0
    %3069 = vmatpush1.bf16.msra.mxu0 0
    %3070 = vmatprep.subr.bf16.mxu0 0
    %3071 = vmatpush1.bf16.msra.mxu0 0
    %3072 = vmatprep.subr.bf16.mxu0 0
    %3073 = vmatpush1.bf16.msra.mxu0 0
    %3074 = vmatprep.subr.bf16.mxu0 0
    %3075 = vmatpush1.bf16.msra.mxu0 0
    %3076 = vmatprep.mubr.bf16.mxu0 0
    %3077 = vmatmul.mubr.bf16.gmra.mrb[0].mxu0 %v3042
    %v3078 = vpop.f32.mrb[0].mxu0
    %v3079 = vadd.f32 0.0, %v3078
    %v3080 = vpop.f32.mrb[0].mxu0
    %v3081 = vpop.f32.mrb[0].mxu0
    %v3082 = vadd.f32 0.0, %v3081
    %v3083 = vpop.f32.mrb[0].mxu0
    %3084 = vdwg.mxu0
    %v3086 = vsel %vm443, %v2819, 0
    %3088 = vmatprep.subr.bf16.mxu0 0
    %3089 = vmatpush1.bf16.msra.mxu0 %v2240
    %3090 = vmatprep.subr.bf16.mxu0 0
    %3091 = vmatpush1.bf16.msra.mxu0 0
    %3092 = vmatprep.subr.bf16.mxu0 0
    %3093 = vmatpush1.bf16.msra.mxu0 0
    %3094 = vmatprep.subr.bf16.mxu0 0
    %3095 = vmatpush1.bf16.msra.mxu0 0
    %3096 = vmatprep.subr.bf16.mxu0 0
    %3097 = vmatpush1.bf16.msra.mxu0 0
    %3098 = vmatprep.subr.bf16.mxu0 0
    %3099 = vmatpush1.bf16.msra.mxu0 0
    %3100 = vmatprep.subr.bf16.mxu0 0
    %3101 = vmatpush1.bf16.msra.mxu0 0
    %3102 = vmatprep.subr.bf16.mxu0 0
    %3103 = vmatpush1.bf16.msra.mxu0 0
    %3104 = vmatprep.subr.bf16.mxu0 0
    %3105 = vmatpush1.bf16.msra.mxu0 0
    %3106 = vmatprep.subr.bf16.mxu0 0
    %3107 = vmatpush1.bf16.msra.mxu0 0
    %3108 = vmatprep.subr.bf16.mxu0 0
    %3109 = vmatpush1.bf16.msra.mxu0 0
    %3110 = vmatprep.subr.bf16.mxu0 0
    %3111 = vmatpush1.bf16.msra.mxu0 0
    %3112 = vmatprep.subr.bf16.mxu0 0
    %3113 = vmatpush1.bf16.msra.mxu0 0
    %3114 = vmatprep.subr.bf16.mxu0 0
    %3115 = vmatpush1.bf16.msra.mxu0 0
    %3116 = vmatprep.subr.bf16.mxu0 0
    %3117 = vmatpush1.bf16.msra.mxu0 0
    %3118 = vmatprep.subr.bf16.mxu0 0
    %3119 = vmatpush1.bf16.msra.mxu0 0
    %3120 = vmatprep.mubr.bf16.mxu0 0
    %3121 = vmatmul.mubr.bf16.gmra.mrb[0].mxu0 %v3086
    %v3122 = vpop.f32.mrb[0].mxu0
    %v3123 = vadd.f32 0.0, %v3122
    %v3124 = vpop.f32.mrb[0].mxu0
    %v3125 = vpop.f32.mrb[0].mxu0
    %v3126 = vadd.f32 0.0, %v3125
    %v3127 = vpop.f32.mrb[0].mxu0
    %3128 = vdwg.mxu0
    %v3130 = vsel %vm443, %v2820, 0
    %3132 = vmatprep.subr.bf16.mxu0 0
    %3133 = vmatpush1.bf16.msra.mxu0 %v2242
    %3134 = vmatprep.subr.bf16.mxu0 0
    %3135 = vmatpush1.bf16.msra.mxu0 0
    %3136 = vmatprep.subr.bf16.mxu0 0
    %3137 = vmatpush1.bf16.msra.mxu0 0
    %3138 = vmatprep.subr.bf16.mxu0 0
    %3139 = vmatpush1.bf16.msra.mxu0 0
    %3140 = vmatprep.subr.bf16.mxu0 0
    %3141 = vmatpush1.bf16.msra.mxu0 0
    %3142 = vmatprep.subr.bf16.mxu0 0
    %3143 = vmatpush1.bf16.msra.mxu0 0
    %3144 = vmatprep.subr.bf16.mxu0 0
    %3145 = vmatpush1.bf16.msra.mxu0 0
    %3146 = vmatprep.subr.bf16.mxu0 0
    %3147 = vmatpush1.bf16.msra.mxu0 0
    %3148 = vmatprep.subr.bf16.mxu0 0
    %3149 = vmatpush1.bf16.msra.mxu0 0
    %3150 = vmatprep.subr.bf16.mxu0 0
    %3151 = vmatpush1.bf16.msra.mxu0 0
    %3152 = vmatprep.subr.bf16.mxu0 0
    %3153 = vmatpush1.bf16.msra.mxu0 0
    %3154 = vmatprep.subr.bf16.mxu0 0
    %3155 = vmatpush1.bf16.msra.mxu0 0
    %3156 = vmatprep.subr.bf16.mxu0 0
    %3157 = vmatpush1.bf16.msra.mxu0 0
    %3158 = vmatprep.subr.bf16.mxu0 0
    %3159 = vmatpush1.bf16.msra.mxu0 0
    %3160 = vmatprep.subr.bf16.mxu0 0
    %3161 = vmatpush1.bf16.msra.mxu0 0
    %3162 = vmatprep.subr.bf16.mxu0 0
    %3163 = vmatpush1.bf16.msra.mxu0 0
    %3164 = vmatprep.mubr.bf16.mxu0 0
    %3165 = vmatmul.mubr.bf16.gmra.mrb[0].mxu0 %v3130
    %v3166 = vpop.f32.mrb[0].mxu0
    %v3167 = vadd.f32 0.0, %v3166
    %v3168 = vpop.f32.mrb[0].mxu0
    %v3169 = vpop.f32.mrb[0].mxu0
    %v3170 = vadd.f32 0.0, %v3169
    %v3171 = vpop.f32.mrb[0].mxu0
    %3172 = vdwg.mxu0
    %v3173 = vpack.c.bf16 %v2862, %v2859
    %v3174 = vpack.c.bf16 %v2906, %v2903
    %v3175 = vpack.c.bf16 %v2950, %v2947
    %v3176 = vpack.c.bf16 %v2994, %v2991
    %v3177 = vpack.c.bf16 %v3038, %v3035
    %v3178 = vpack.c.bf16 %v3082, %v3079
    %v3179 = vpack.c.bf16 %v3126, %v3123
    %v3180 = vpack.c.bf16 %v3170, %v3167
    %s3181 = scalar_lea.vmem %s5, 32
    %v3182 = vld [vmem:[%s3181] sm:$0xf]
    %v3183 = vld [vmem:[%s3181 + $0x4] sm:$0xf]
    %v3184 = vld [vmem:[%s3181 + $0x8] sm:$0xf]
    %v3185 = vld [vmem:[%s3181 + $0xc] sm:$0xf]
    %v3186 = vld [vmem:[%s3181 + $0x10] sm:$0xf]
    %v3187 = vld [vmem:[%s3181 + $0x14] sm:$0xf]
    %v3188 = vld [vmem:[%s3181 + $0x18] sm:$0xf]
    %v3189 = vld [vmem:[%s3181 + $0x1c] sm:$0xf]
    %v3192 = vunpack.c.l.b16 %v3182
    %v3193 = vunpack.c.l.b16 %v3183
    %v3194 = vpack.c.b16 %v3193, %v3192
    %v3197 = vsel %vm443, %v3173, 0
    %v3200 = vsel %vm443, %v3174, 0
    %3202 = vmatprep.subr.bf16.mxu0 0
    %3203 = vmatpush1.bf16.msra.mxu0 %v3194
    %3204 = vmatprep.subr.bf16.mxu0 0
    %3205 = vmatpush1.bf16.msra.mxu0 0
    %3206 = vmatprep.subr.bf16.mxu0 0
    %3207 = vmatpush1.bf16.msra.mxu0 0
    %3208 = vmatprep.subr.bf16.mxu0 0
    %3209 = vmatpush1.bf16.msra.mxu0 0
    %3210 = vmatprep.subr.bf16.mxu0 0
    %3211 = vmatpush1.bf16.msra.mxu0 0
    %3212 = vmatprep.subr.bf16.mxu0 0
    %3213 = vmatpush1.bf16.msra.mxu0 0
    %3214 = vmatprep.subr.bf16.mxu0 0
    %3215 = vmatpush1.bf16.msra.mxu0 0
    %3216 = vmatprep.subr.bf16.mxu0 0
    %3217 = vmatpush1.bf16.msra.mxu0 0
    %3218 = vmatprep.subr.bf16.mxu0 0
    %3219 = vmatpush1.bf16.msra.mxu0 0
    %3220 = vmatprep.subr.bf16.mxu0 0
    %3221 = vmatpush1.bf16.msra.mxu0 0
    %3222 = vmatprep.subr.bf16.mxu0 0
    %3223 = vmatpush1.bf16.msra.mxu0 0
    %3224 = vmatprep.subr.bf16.mxu0 0
    %3225 = vmatpush1.bf16.msra.mxu0 0
    %3226 = vmatprep.subr.bf16.mxu0 0
    %3227 = vmatpush1.bf16.msra.mxu0 0
    %3228 = vmatprep.subr.bf16.mxu0 0
    %3229 = vmatpush1.bf16.msra.mxu0 0
    %3230 = vmatprep.subr.bf16.mxu0 0
    %3231 = vmatpush1.bf16.msra.mxu0 0
    %3232 = vmatprep.subr.bf16.mxu0 0
    %3233 = vmatpush1.bf16.msra.mxu0 0
    %3234 = vmatprep.mubr.bf16.mxu0 0
    %3235 = vmatmul.mubr.bf16.gmra.mrb[0].mxu0 %v3197
    %v3236 = vpop.f32.mrb[0].mxu0
    %v3237 = vadd.f32 0.0, %v3236
    %v3238 = vpop.f32.mrb[0].mxu0
    %v3239 = vpop.f32.mrb[0].mxu0
    %v3240 = vadd.f32 0.0, %v3239
    %v3241 = vpop.f32.mrb[0].mxu0
    %3242 = vmatprep.mubr.bf16.mxu0 0
    %3243 = vmatmul.mubr.bf16.gmra.mrb[0].mxu0 %v3200
    %v3244 = vpop.f32.mrb[0].mxu0
    %v3245 = vadd.f32 0.0, %v3244
    %v3246 = vpop.f32.mrb[0].mxu0
    %v3247 = vpop.f32.mrb[0].mxu0
    %v3248 = vadd.f32 0.0, %v3247
    %v3249 = vpop.f32.mrb[0].mxu0
    %3250 = vdwg.mxu0
    %v3253 = vunpack.c.l.b16 %v3184
    %v3254 = vunpack.c.l.b16 %v3185
    %v3255 = vpack.c.b16 %v3254, %v3253
    %v3258 = vsel %vm443, %v3175, 0
    %v3261 = vsel %vm443, %v3176, 0
    %3263 = vmatprep.subr.bf16.mxu0 0
    %3264 = vmatpush1.bf16.msra.mxu0 %v3255
    %3265 = vmatprep.subr.bf16.mxu0 0
    %3266 = vmatpush1.bf16.msra.mxu0 0
    %3267 = vmatprep.subr.bf16.mxu0 0
    %3268 = vmatpush1.bf16.msra.mxu0 0
    %3269 = vmatprep.subr.bf16.mxu0 0
    %3270 = vmatpush1.bf16.msra.mxu0 0
    %3271 = vmatprep.subr.bf16.mxu0 0
    %3272 = vmatpush1.bf16.msra.mxu0 0
    %3273 = vmatprep.subr.bf16.mxu0 0
    %3274 = vmatpush1.bf16.msra.mxu0 0
    %3275 = vmatprep.subr.bf16.mxu0 0
    %3276 = vmatpush1.bf16.msra.mxu0 0
    %3277 = vmatprep.subr.bf16.mxu0 0
    %3278 = vmatpush1.bf16.msra.mxu0 0
    %3279 = vmatprep.subr.bf16.mxu0 0
    %3280 = vmatpush1.bf16.msra.mxu0 0
    %3281 = vmatprep.subr.bf16.mxu0 0
    %3282 = vmatpush1.bf16.msra.mxu0 0
    %3283 = vmatprep.subr.bf16.mxu0 0
    %3284 = vmatpush1.bf16.msra.mxu0 0
    %3285 = vmatprep.subr.bf16.mxu0 0
    %3286 = vmatpush1.bf16.msra.mxu0 0
    %3287 = vmatprep.subr.bf16.mxu0 0
    %3288 = vmatpush1.bf16.msra.mxu0 0
    %3289 = vmatprep.subr.bf16.mxu0 0
    %3290 = vmatpush1.bf16.msra.mxu0 0
    %3291 = vmatprep.subr.bf16.mxu0 0
    %3292 = vmatpush1.bf16.msra.mxu0 0
    %3293 = vmatprep.subr.bf16.mxu0 0
    %3294 = vmatpush1.bf16.msra.mxu0 0
    %3295 = vmatprep.mubr.bf16.mxu0 0
    %3296 = vmatmul.mubr.bf16.gmra.mrb[0].mxu0 %v3258
    %v3297 = vpop.f32.mrb[0].mxu0
    %v3298 = vadd.f32 0.0, %v3297
    %v3299 = vpop.f32.mrb[0].mxu0
    %v3300 = vpop.f32.mrb[0].mxu0
    %v3301 = vadd.f32 0.0, %v3300
    %v3302 = vpop.f32.mrb[0].mxu0
    %3303 = vmatprep.mubr.bf16.mxu0 0
    %3304 = vmatmul.mubr.bf16.gmra.mrb[0].mxu0 %v3261
    %v3305 = vpop.f32.mrb[0].mxu0
    %v3306 = vadd.f32 0.0, %v3305
    %v3307 = vpop.f32.mrb[0].mxu0
    %v3308 = vpop.f32.mrb[0].mxu0
    %v3309 = vadd.f32 0.0, %v3308
    %v3310 = vpop.f32.mrb[0].mxu0
    %3311 = vdwg.mxu0
    %v3314 = vunpack.c.l.b16 %v3186
    %v3315 = vunpack.c.l.b16 %v3187
    %v3316 = vpack.c.b16 %v3315, %v3314
    %v3319 = vsel %vm443, %v3177, 0
    %v3322 = vsel %vm443, %v3178, 0
    %3324 = vmatprep.subr.bf16.mxu0 0
    %3325 = vmatpush1.bf16.msra.mxu0 %v3316
    %3326 = vmatprep.subr.bf16.mxu0 0
    %3327 = vmatpush1.bf16.msra.mxu0 0
    %3328 = vmatprep.subr.bf16.mxu0 0
    %3329 = vmatpush1.bf16.msra.mxu0 0
    %3330 = vmatprep.subr.bf16.mxu0 0
    %3331 = vmatpush1.bf16.msra.mxu0 0
    %3332 = vmatprep.subr.bf16.mxu0 0
    %3333 = vmatpush1.bf16.msra.mxu0 0
    %3334 = vmatprep.subr.bf16.mxu0 0
    %3335 = vmatpush1.bf16.msra.mxu0 0
    %3336 = vmatprep.subr.bf16.mxu0 0
    %3337 = vmatpush1.bf16.msra.mxu0 0
    %3338 = vmatprep.subr.bf16.mxu0 0
    %3339 = vmatpush1.bf16.msra.mxu0 0
    %3340 = vmatprep.subr.bf16.mxu0 0
    %3341 = vmatpush1.bf16.msra.mxu0 0
    %3342 = vmatprep.subr.bf16.mxu0 0
    %3343 = vmatpush1.bf16.msra.mxu0 0
    %3344 = vmatprep.subr.bf16.mxu0 0
    %3345 = vmatpush1.bf16.msra.mxu0 0
    %3346 = vmatprep.subr.bf16.mxu0 0
    %3347 = vmatpush1.bf16.msra.mxu0 0
    %3348 = vmatprep.subr.bf16.mxu0 0
    %3349 = vmatpush1.bf16.msra.mxu0 0
    %3350 = vmatprep.subr.bf16.mxu0 0
    %3351 = vmatpush1.bf16.msra.mxu0 0
    %3352 = vmatprep.subr.bf16.mxu0 0
    %3353 = vmatpush1.bf16.msra.mxu0 0
    %3354 = vmatprep.subr.bf16.mxu0 0
    %3355 = vmatpush1.bf16.msra.mxu0 0
    %3356 = vmatprep.mubr.bf16.mxu0 0
    %3357 = vmatmul.mubr.bf16.gmra.mrb[0].mxu0 %v3319
    %v3358 = vpop.f32.mrb[0].mxu0
    %v3359 = vadd.f32 0.0, %v3358
    %v3360 = vpop.f32.mrb[0].mxu0
    %v3361 = vpop.f32.mrb[0].mxu0
    %v3362 = vadd.f32 0.0, %v3361
    %v3363 = vpop.f32.mrb[0].mxu0
    %3364 = vmatprep.mubr.bf16.mxu0 0
    %3365 = vmatmul.mubr.bf16.gmra.mrb[0].mxu0 %v3322
    %v3366 = vpop.f32.mrb[0].mxu0
    %v3367 = vadd.f32 0.0, %v3366
    %v3368 = vpop.f32.mrb[0].mxu0
    %v3369 = vpop.f32.mrb[0].mxu0
    %v3370 = vadd.f32 0.0, %v3369
    %v3371 = vpop.f32.mrb[0].mxu0
    %3372 = vdwg.mxu0
    %v3375 = vunpack.c.l.b16 %v3188
    %v3376 = vunpack.c.l.b16 %v3189
    %v3377 = vpack.c.b16 %v3376, %v3375
    %v3380 = vsel %vm443, %v3179, 0
    %v3383 = vsel %vm443, %v3180, 0
    %3385 = vmatprep.subr.bf16.mxu0 0
    %3386 = vmatpush1.bf16.msra.mxu0 %v3377
    %3387 = vmatprep.subr.bf16.mxu0 0
    %3388 = vmatpush1.bf16.msra.mxu0 0
    %3389 = vmatprep.subr.bf16.mxu0 0
    %3390 = vmatpush1.bf16.msra.mxu0 0
    %3391 = vmatprep.subr.bf16.mxu0 0
    %3392 = vmatpush1.bf16.msra.mxu0 0
    %3393 = vmatprep.subr.bf16.mxu0 0
    %3394 = vmatpush1.bf16.msra.mxu0 0
    %3395 = vmatprep.subr.bf16.mxu0 0
    %3396 = vmatpush1.bf16.msra.mxu0 0
    %3397 = vmatprep.subr.bf16.mxu0 0
    %3398 = vmatpush1.bf16.msra.mxu0 0
    %3399 = vmatprep.subr.bf16.mxu0 0
    %3400 = vmatpush1.bf16.msra.mxu0 0
    %3401 = vmatprep.subr.bf16.mxu0 0
    %3402 = vmatpush1.bf16.msra.mxu0 0
    %3403 = vmatprep.subr.bf16.mxu0 0
    %3404 = vmatpush1.bf16.msra.mxu0 0
    %3405 = vmatprep.subr.bf16.mxu0 0
    %3406 = vmatpush1.bf16.msra.mxu0 0
    %3407 = vmatprep.subr.bf16.mxu0 0
    %3408 = vmatpush1.bf16.msra.mxu0 0
    %3409 = vmatprep.subr.bf16.mxu0 0
    %3410 = vmatpush1.bf16.msra.mxu0 0
    %3411 = vmatprep.subr.bf16.mxu0 0
    %3412 = vmatpush1.bf16.msra.mxu0 0
    %3413 = vmatprep.subr.bf16.mxu0 0
    %3414 = vmatpush1.bf16.msra.mxu0 0
    %3415 = vmatprep.subr.bf16.mxu0 0
    %3416 = vmatpush1.bf16.msra.mxu0 0
    %3417 = vmatprep.mubr.bf16.mxu0 0
    %3418 = vmatmul.mubr.bf16.gmra.mrb[0].mxu0 %v3380
    %v3419 = vpop.f32.mrb[0].mxu0
    %v3420 = vadd.f32 0.0, %v3419
    %v3421 = vpop.f32.mrb[0].mxu0
    %v3422 = vpop.f32.mrb[0].mxu0
    %v3423 = vadd.f32 0.0, %v3422
    %v3424 = vpop.f32.mrb[0].mxu0
    %3425 = vmatprep.mubr.bf16.mxu0 0
    %3426 = vmatmul.mubr.bf16.gmra.mrb[0].mxu0 %v3383
    %v3427 = vpop.f32.mrb[0].mxu0
    %v3428 = vadd.f32 0.0, %v3427
    %v3429 = vpop.f32.mrb[0].mxu0
    %v3430 = vpop.f32.mrb[0].mxu0
    %v3431 = vadd.f32 0.0, %v3430
    %v3432 = vpop.f32.mrb[0].mxu0
    %3433 = vdwg.mxu0
    %v3434 = vsel %vm201, %v3237, 0.0
    %v3435 = vsel %vm201, %v3298, 0.0
    %v3436 = vadd.f32 %v3434, %v3435
    %v3437 = vsel %vm201, %v3359, 0.0
    %v3438 = vadd.f32 %v3436, %v3437
    %v3439 = vsel %vm201, %v3420, 0.0
    %v3440 = vadd.f32 %v3438, %v3439
    %v3441 = vsel %vm201, %v3240, 0.0
    %v3442 = vsel %vm201, %v3301, 0.0
    %v3443 = vadd.f32 %v3441, %v3442
    %v3444 = vsel %vm201, %v3362, 0.0
    %v3445 = vadd.f32 %v3443, %v3444
    %v3446 = vsel %vm201, %v3423, 0.0
    %v3447 = vadd.f32 %v3445, %v3446
    %v3448 = vsel %vm201, %v3245, 0.0
    %v3449 = vsel %vm201, %v3306, 0.0
    %v3450 = vadd.f32 %v3448, %v3449
    %v3451 = vsel %vm201, %v3367, 0.0
    %v3452 = vadd.f32 %v3450, %v3451
    %v3453 = vsel %vm201, %v3428, 0.0
    %v3454 = vadd.f32 %v3452, %v3453
    %v3455 = vsel %vm201, %v3248, 0.0
    %v3456 = vsel %vm201, %v3309, 0.0
    %v3457 = vadd.f32 %v3455, %v3456
    %v3458 = vsel %vm201, %v3370, 0.0
    %v3459 = vadd.f32 %v3457, %v3458
    %v3460 = vsel %vm201, %v3431, 0.0
    %v3461 = vadd.f32 %v3459, %v3460
    %v3462 = vadd.f32 %v1998, %v3440
    %v3463 = vadd.f32 %v1999, %v3447
    %v3464 = vadd.f32 %v2000, %v3454
    %v3465 = vadd.f32 %v2001, %v3461
    %v3466 = vlaneseq
    %v3467 = vshrl.u32 %v3466, 7
    %v3468 = vsub.s32 4, %v3467
    %v3469 = vrot.slane %v2003, %v3468
    %v3470 = vadd.f32 %v3462, %v3469
    %v3471 = vadd.f32 %v3463, %v3469
    %v3472 = vadd.f32 %v3464, %v3469
    %v3473 = vadd.f32 %v3465, %v3469
    %v3474 = vsel %vm201, %v3470, 0.0
    %3475 = vadd.xlane.f32.xlu0 %v3474
    %v3476 = vpop.xlane.xlu0 %3475
    %v3477 = vsel %vm201, %v3471, 0.0
    %3478 = vadd.xlane.f32.xlu0 %v3477
    %v3479 = vpop.xlane.xlu0 %3478
    %v3480 = vsel %vm201, %v3472, 0.0
    %3481 = vadd.xlane.f32.xlu0 %v3480
    %v3482 = vpop.xlane.xlu0 %3481
    %v3483 = vsel %vm201, %v3473, 0.0
    %3484 = vadd.xlane.f32.xlu0 %v3483
    %v3485 = vpop.xlane.xlu0 %3484
    %v3486 = vmul.f32 %v3470, %v3470
    %v3487 = vmul.f32 %v3471, %v3471
    %v3488 = vmul.f32 %v3472, %v3472
    %v3489 = vmul.f32 %v3473, %v3473
    %v3490 = vsel %vm201, %v3486, 0.0
    %3491 = vadd.xlane.f32.xlu0 %v3490
    %v3492 = vpop.xlane.xlu0 %3491
    %v3493 = vsel %vm201, %v3487, 0.0
    %3494 = vadd.xlane.f32.xlu0 %v3493
    %v3495 = vpop.xlane.xlu0 %3494
    %v3496 = vsel %vm201, %v3488, 0.0
    %3497 = vadd.xlane.f32.xlu0 %v3496
    %v3498 = vpop.xlane.xlu0 %3497
    %v3499 = vsel %vm201, %v3489, 0.0
    %3500 = vadd.xlane.f32.xlu0 %v3499
    %v3501 = vpop.xlane.xlu0 %3500
    %v3502 = vmul.f32 %v3476, 0.015625
    %v3503 = vmul.f32 %v3479, 0.015625
    %v3504 = vmul.f32 %v3482, 0.015625
    %v3505 = vmul.f32 %v3485, 0.015625
    %v3506 = vmul.f32 %v3492, 0.015625
    %v3507 = vmul.f32 %v3495, 0.015625
    %v3508 = vmul.f32 %v3498, 0.015625
    %v3509 = vmul.f32 %v3501, 0.015625
    %v3510 = vmul.f32 %v3502, %v3502
    %v3511 = vmul.f32 %v3503, %v3503
    %v3512 = vmul.f32 %v3504, %v3504
    %v3513 = vmul.f32 %v3505, %v3505
    %v3514 = vsub.f32 %v3506, %v3510
    %v3515 = vsub.f32 %v3507, %v3511
    %v3516 = vsub.f32 %v3508, %v3512
    %v3517 = vsub.f32 %v3509, %v3513
    %v3518 = vmax.f32 %v3514, 0.0
    %v3519 = vmax.f32 %v3515, 0.0
    %v3520 = vmax.f32 %v3516, 0.0
    %v3521 = vmax.f32 %v3517, 0.0
    %v3522 = vsub.f32 %v3470, %v3502
    %v3523 = vsub.f32 %v3471, %v3503
    %v3524 = vsub.f32 %v3472, %v3504
    %v3525 = vsub.f32 %v3473, %v3505
    %v3526 = vadd.f32 %v3518, 1e-06
    %v3527 = vadd.f32 %v3519, 1e-06
    %v3528 = vadd.f32 %v3520, 1e-06
    %v3529 = vadd.f32 %v3521, 1e-06
    %v3530 = vrsqrt.pop %v3526
    %v3531 = vrsqrt.pop %v3527
    %v3532 = vrsqrt.pop %v3528
    %v3533 = vrsqrt.pop %v3529
    %v3534 = vmul.f32 %v3522, %v3530
    %v3535 = vmul.f32 %v3523, %v3531
    %v3536 = vmul.f32 %v3524, %v3532
    %v3537 = vmul.f32 %v3525, %v3533
    %v3538 = vlaneseq
    %v3539 = vshrl.u32 %v3538, 7
    %v3540 = vsub.s32 2, %v3539
    %v3541 = vrot.slane %v2003, %v3540
    %v3542 = vmul.f32 %v3534, %v3541
    %v3543 = vmul.f32 %v3535, %v3541
    %v3544 = vmul.f32 %v3536, %v3541
    %v3545 = vmul.f32 %v3537, %v3541
    %v3546 = vlaneseq
    %v3547 = vshrl.u32 %v3546, 7
    %v3548 = vsub.s32 3, %v3547
    %v3549 = vrot.slane %v2003, %v3548
    %v3550 = vadd.f32 %v3542, %v3549
    %v3551 = vadd.f32 %v3543, %v3549
    %v3552 = vadd.f32 %v3544, %v3549
    %v3553 = vadd.f32 %v3545, %v3549
    %v3554 = vpack.c.bf16 %v3551, %v3550
    %v3555 = vpack.c.bf16 %v3553, %v3552
    %s3556 = scalar_lea.vmem %s6, 32
    %v3557 = vld [vmem:[%s3556] sm:$0xf]
    %v3558 = vld [vmem:[%s3556 + $0x4] sm:$0xf]
    %v3559 = vld [vmem:[%s3556 + $0x8] sm:$0xf]
    %v3560 = vld [vmem:[%s3556 + $0xc] sm:$0xf]
    %v3561 = vld [vmem:[%s3556 + $0x10] sm:$0xf]
    %v3562 = vld [vmem:[%s3556 + $0x14] sm:$0xf]
    %v3563 = vld [vmem:[%s3556 + $0x18] sm:$0xf]
    %v3564 = vld [vmem:[%s3556 + $0x1c] sm:$0xf]
    %v3565 = vlaneseq
    %v3566 = vshrl.u32 %v3565, 7
    %v3567 = vsub.s32 6, %v3566
    %v3568 = vrot.slane %v2003, %v3567
    %v3577 = vunpack.c.l.b16 %v3557
    %v3578 = vunpack.c.l.b16 %v3558
    %v3579 = vunpack.c.l.b16 %v3559
    %v3580 = vunpack.c.l.b16 %v3560
    %v3581 = vunpack.c.l.b16 %v3561
    %v3582 = vunpack.c.l.b16 %v3562
    %v3583 = vunpack.c.l.b16 %v3563
    %v3584 = vunpack.c.l.b16 %v3564
    %v3585 = vpack.c.b16 %v3578, %v3577
    %v3586 = vpack.c.b16 %v3580, %v3579
    %v3587 = vpack.c.b16 %v3582, %v3581
    %v3588 = vpack.c.b16 %v3584, %v3583
    %v3594 = vsel %vm201, %v3554, 0
    %v3597 = vsel %vm201, %v3555, 0
    %3599 = vmatprep.subr.bf16.mxu0 0
    %3600 = vmatpush1.bf16.msra.mxu0 %v3585
    %3601 = vmatprep.subr.bf16.mxu0 0
    %3602 = vmatpush1.bf16.msra.mxu0 %v3586
    %3603 = vmatprep.subr.bf16.mxu0 0
    %3604 = vmatpush1.bf16.msra.mxu0 %v3587
    %3605 = vmatprep.subr.bf16.mxu0 0
    %3606 = vmatpush1.bf16.msra.mxu0 %v3588
    %3607 = vmatprep.subr.bf16.mxu0 0
    %3608 = vmatpush1.bf16.msra.mxu0 0
    %3609 = vmatprep.subr.bf16.mxu0 0
    %3610 = vmatpush1.bf16.msra.mxu0 0
    %3611 = vmatprep.subr.bf16.mxu0 0
    %3612 = vmatpush1.bf16.msra.mxu0 0
    %3613 = vmatprep.subr.bf16.mxu0 0
    %3614 = vmatpush1.bf16.msra.mxu0 0
    %3615 = vmatprep.subr.bf16.mxu0 0
    %3616 = vmatpush1.bf16.msra.mxu0 0
    %3617 = vmatprep.subr.bf16.mxu0 0
    %3618 = vmatpush1.bf16.msra.mxu0 0
    %3619 = vmatprep.subr.bf16.mxu0 0
    %3620 = vmatpush1.bf16.msra.mxu0 0
    %3621 = vmatprep.subr.bf16.mxu0 0
    %3622 = vmatpush1.bf16.msra.mxu0 0
    %3623 = vmatprep.subr.bf16.mxu0 0
    %3624 = vmatpush1.bf16.msra.mxu0 0
    %3625 = vmatprep.subr.bf16.mxu0 0
    %3626 = vmatpush1.bf16.msra.mxu0 0
    %3627 = vmatprep.subr.bf16.mxu0 0
    %3628 = vmatpush1.bf16.msra.mxu0 0
    %3629 = vmatprep.subr.bf16.mxu0 0
    %3630 = vmatpush1.bf16.msra.mxu0 0
    %3631 = vmatprep.mubr.bf16.mxu0 0
    %3632 = vmatmul.mubr.bf16.gmra.mrb[0].mxu0 %v3594
    %v3633 = vpop.f32.mrb[0].mxu0
    %v3634 = vadd.f32 %v3568, %v3633
    %v3635 = vpop.f32.mrb[0].mxu0
    %v3636 = vpop.f32.mrb[0].mxu0
    %v3637 = vadd.f32 %v3568, %v3636
    %v3638 = vpop.f32.mrb[0].mxu0
    %3639 = vmatprep.mubr.bf16.mxu0 0
    %3640 = vmatmul.mubr.bf16.gmra.mrb[0].mxu0 %v3597
    %v3641 = vpop.f32.mrb[0].mxu0
    %v3642 = vadd.f32 %v3568, %v3641
    %v3643 = vpop.f32.mrb[0].mxu0
    %v3644 = vpop.f32.mrb[0].mxu0
    %v3645 = vadd.f32 %v3568, %v3644
    %v3646 = vpop.f32.mrb[0].mxu0
    %3647 = vdwg.mxu0
    %v3648 = vmul.f32 %v3634, %v3634
    %v3649 = vmul.f32 %v3637, %v3637
    %v3650 = vmul.f32 %v3642, %v3642
    %v3651 = vmul.f32 %v3645, %v3645
    %v3652 = vmul.f32 %v3634, %v3648
    %v3653 = vmul.f32 %v3637, %v3649
    %v3654 = vmul.f32 %v3642, %v3650
    %v3655 = vmul.f32 %v3645, %v3651
    %v3656 = vmul.f32 %v3652, 0.044715
    %v3657 = vmul.f32 %v3653, 0.044715
    %v3658 = vmul.f32 %v3654, 0.044715
    %v3659 = vmul.f32 %v3655, 0.044715
    %v3660 = vadd.f32 %v3634, %v3656
    %v3661 = vadd.f32 %v3637, %v3657
    %v3662 = vadd.f32 %v3642, %v3658
    %v3663 = vadd.f32 %v3645, %v3659
    %v3664 = vmul.f32 %v3660, 0.7978846
    %v3665 = vmul.f32 %v3661, 0.7978846
    %v3666 = vmul.f32 %v3662, 0.7978846
    %v3667 = vmul.f32 %v3663, 0.7978846
    %v3668 = vtanh.pop %v3664
    %v3669 = vtanh.pop %v3665
    %v3670 = vtanh.pop %v3666
    %v3671 = vtanh.pop %v3667
    %v3672 = vadd.f32 %v3668, 1.0
    %v3673 = vadd.f32 %v3669, 1.0
    %v3674 = vadd.f32 %v3670, 1.0
    %v3675 = vadd.f32 %v3671, 1.0
    %v3676 = vmul.f32 %v3672, 0.5
    %v3677 = vmul.f32 %v3673, 0.5
    %v3678 = vmul.f32 %v3674, 0.5
    %v3679 = vmul.f32 %v3675, 0.5
    %v3680 = vmul.f32 %v3634, %v3676
    %v3681 = vmul.f32 %v3637, %v3677
    %v3682 = vmul.f32 %v3642, %v3678
    %v3683 = vmul.f32 %v3645, %v3679
    %v3684 = vpack.c.bf16 %v3681, %v3680
    %v3685 = vpack.c.bf16 %v3683, %v3682
    %s3686 = scalar_lea.vmem %s7, 64
    %v3687 = vld [vmem:[%s3686] sm:$0xf]
    %v3688 = vld [vmem:[%s3686 + $0x4] sm:$0xf]
    %v3689 = vld [vmem:[%s3686 + $0x8] sm:$0xf]
    %v3690 = vld [vmem:[%s3686 + $0xc] sm:$0xf]
    %v3691 = vld [vmem:[%s3686 + $0x10] sm:$0xf]
    %v3692 = vld [vmem:[%s3686 + $0x14] sm:$0xf]
    %v3693 = vld [vmem:[%s3686 + $0x18] sm:$0xf]
    %v3694 = vld [vmem:[%s3686 + $0x1c] sm:$0xf]
    %v3695 = vld [vmem:[%s3686 + $0x20] sm:$0xf]
    %v3696 = vld [vmem:[%s3686 + $0x24] sm:$0xf]
    %v3697 = vld [vmem:[%s3686 + $0x28] sm:$0xf]
    %v3698 = vld [vmem:[%s3686 + $0x2c] sm:$0xf]
    %v3699 = vld [vmem:[%s3686 + $0x30] sm:$0xf]
    %v3700 = vld [vmem:[%s3686 + $0x34] sm:$0xf]
    %v3701 = vld [vmem:[%s3686 + $0x38] sm:$0xf]
    %v3702 = vld [vmem:[%s3686 + $0x3c] sm:$0xf]
    %v3703 = vlaneseq
    %v3704 = vshrl.u32 %v3703, 7
    %v3705 = vsub.s32 5, %v3704
    %v3706 = vrot.slane %v2003, %v3705
    %v3723 = vunpack.c.l.b16 %v3687
    %v3724 = vunpack.c.l.b16 %v3688
    %v3725 = vunpack.c.l.b16 %v3689
    %v3726 = vunpack.c.l.b16 %v3690
    %v3727 = vunpack.c.l.b16 %v3691
    %v3728 = vunpack.c.l.b16 %v3692
    %v3729 = vunpack.c.l.b16 %v3693
    %v3730 = vunpack.c.l.b16 %v3694
    %v3731 = vunpack.c.l.b16 %v3695
    %v3732 = vunpack.c.l.b16 %v3696
    %v3733 = vunpack.c.l.b16 %v3697
    %v3734 = vunpack.c.l.b16 %v3698
    %v3735 = vunpack.c.l.b16 %v3699
    %v3736 = vunpack.c.l.b16 %v3700
    %v3737 = vunpack.c.l.b16 %v3701
    %v3738 = vunpack.c.l.b16 %v3702
    %v3739 = vpack.c.b16 %v3724, %v3723
    %v3740 = vpack.c.b16 %v3726, %v3725
    %v3741 = vpack.c.b16 %v3728, %v3727
    %v3742 = vpack.c.b16 %v3730, %v3729
    %v3743 = vpack.c.b16 %v3732, %v3731
    %v3744 = vpack.c.b16 %v3734, %v3733
    %v3745 = vpack.c.b16 %v3736, %v3735
    %v3746 = vpack.c.b16 %v3738, %v3737
    %3755 = vmatprep.subr.bf16.mxu0 0
    %3756 = vmatpush1.bf16.msra.mxu0 %v3739
    %3757 = vmatprep.subr.bf16.mxu0 0
    %3758 = vmatpush1.bf16.msra.mxu0 %v3740
    %3759 = vmatprep.subr.bf16.mxu0 0
    %3760 = vmatpush1.bf16.msra.mxu0 %v3741
    %3761 = vmatprep.subr.bf16.mxu0 0
    %3762 = vmatpush1.bf16.msra.mxu0 %v3742
    %3763 = vmatprep.subr.bf16.mxu0 0
    %3764 = vmatpush1.bf16.msra.mxu0 %v3743
    %3765 = vmatprep.subr.bf16.mxu0 0
    %3766 = vmatpush1.bf16.msra.mxu0 %v3744
    %3767 = vmatprep.subr.bf16.mxu0 0
    %3768 = vmatpush1.bf16.msra.mxu0 %v3745
    %3769 = vmatprep.subr.bf16.mxu0 0
    %3770 = vmatpush1.bf16.msra.mxu0 %v3746
    %3771 = vmatprep.subr.bf16.mxu0 0
    %3772 = vmatpush1.bf16.msra.mxu0 0
    %3773 = vmatprep.subr.bf16.mxu0 0
    %3774 = vmatpush1.bf16.msra.mxu0 0
    %3775 = vmatprep.subr.bf16.mxu0 0
    %3776 = vmatpush1.bf16.msra.mxu0 0
    %3777 = vmatprep.subr.bf16.mxu0 0
    %3778 = vmatpush1.bf16.msra.mxu0 0
    %3779 = vmatprep.subr.bf16.mxu0 0
    %3780 = vmatpush1.bf16.msra.mxu0 0
    %3781 = vmatprep.subr.bf16.mxu0 0
    %3782 = vmatpush1.bf16.msra.mxu0 0
    %3783 = vmatprep.subr.bf16.mxu0 0
    %3784 = vmatpush1.bf16.msra.mxu0 0
    %3785 = vmatprep.subr.bf16.mxu0 0
    %3786 = vmatpush1.bf16.msra.mxu0 0
    %3787 = vmatprep.mubr.bf16.mxu0 0
    %3788 = vmatmul.mubr.bf16.gmra.mrb[0].mxu0 %v3684
    %v3789 = vpop.f32.mrb[0].mxu0
    %v3790 = vadd.f32 %v3706, %v3789
    %v3791 = vpop.f32.mrb[0].mxu0
    %v3792 = vpop.f32.mrb[0].mxu0
    %v3793 = vadd.f32 %v3706, %v3792
    %v3794 = vpop.f32.mrb[0].mxu0
    %3795 = vmatprep.mubr.bf16.mxu0 0
    %3796 = vmatmul.mubr.bf16.gmra.mrb[0].mxu0 %v3685
    %v3797 = vpop.f32.mrb[0].mxu0
    %v3798 = vadd.f32 %v3706, %v3797
    %v3799 = vpop.f32.mrb[0].mxu0
    %v3800 = vpop.f32.mrb[0].mxu0
    %v3801 = vadd.f32 %v3706, %v3800
    %v3802 = vpop.f32.mrb[0].mxu0
    %3803 = vdwg.mxu0
    %v3804 = vadd.f32 %v3470, %v3790
    %v3805 = vadd.f32 %v3471, %v3793
    %v3806 = vadd.f32 %v3472, %v3798
    %v3807 = vadd.f32 %v3473, %v3801
    %v3808 = vld [vmem:[%s9] sm:$0x1]
    %v3809 = vld [vmem:[%s9 + $0x1] sm:$0x1]
    %v3810 = vsel %vm201, %v3804, 0.0
    %3811 = vadd.xlane.f32.xlu0 %v3810
    %v3812 = vpop.xlane.xlu0 %3811
    %v3813 = vsel %vm201, %v3805, 0.0
    %3814 = vadd.xlane.f32.xlu0 %v3813
    %v3815 = vpop.xlane.xlu0 %3814
    %v3816 = vsel %vm201, %v3806, 0.0
    %3817 = vadd.xlane.f32.xlu0 %v3816
    %v3818 = vpop.xlane.xlu0 %3817
    %v3819 = vsel %vm201, %v3807, 0.0
    %3820 = vadd.xlane.f32.xlu0 %v3819
    %v3821 = vpop.xlane.xlu0 %3820
    %v3822 = vmul.f32 %v3804, %v3804
    %v3823 = vmul.f32 %v3805, %v3805
    %v3824 = vmul.f32 %v3806, %v3806
    %v3825 = vmul.f32 %v3807, %v3807
    %v3826 = vsel %vm201, %v3822, 0.0
    %3827 = vadd.xlane.f32.xlu0 %v3826
    %v3828 = vpop.xlane.xlu0 %3827
    %v3829 = vsel %vm201, %v3823, 0.0
    %3830 = vadd.xlane.f32.xlu0 %v3829
    %v3831 = vpop.xlane.xlu0 %3830
    %v3832 = vsel %vm201, %v3824, 0.0
    %3833 = vadd.xlane.f32.xlu0 %v3832
    %v3834 = vpop.xlane.xlu0 %3833
    %v3835 = vsel %vm201, %v3825, 0.0
    %3836 = vadd.xlane.f32.xlu0 %v3835
    %v3837 = vpop.xlane.xlu0 %3836
    %v3838 = vmul.f32 %v3812, 0.015625
    %v3839 = vmul.f32 %v3815, 0.015625
    %v3840 = vmul.f32 %v3818, 0.015625
    %v3841 = vmul.f32 %v3821, 0.015625
    %v3842 = vmul.f32 %v3828, 0.015625
    %v3843 = vmul.f32 %v3831, 0.015625
    %v3844 = vmul.f32 %v3834, 0.015625
    %v3845 = vmul.f32 %v3837, 0.015625
    %v3846 = vmul.f32 %v3838, %v3838
    %v3847 = vmul.f32 %v3839, %v3839
    %v3848 = vmul.f32 %v3840, %v3840
    %v3849 = vmul.f32 %v3841, %v3841
    %v3850 = vsub.f32 %v3842, %v3846
    %v3851 = vsub.f32 %v3843, %v3847
    %v3852 = vsub.f32 %v3844, %v3848
    %v3853 = vsub.f32 %v3845, %v3849
    %v3854 = vmax.f32 %v3850, 0.0
    %v3855 = vmax.f32 %v3851, 0.0
    %v3856 = vmax.f32 %v3852, 0.0
    %v3857 = vmax.f32 %v3853, 0.0
    %v3858 = vsub.f32 %v3804, %v3838
    %v3859 = vsub.f32 %v3805, %v3839
    %v3860 = vsub.f32 %v3806, %v3840
    %v3861 = vsub.f32 %v3807, %v3841
    %v3862 = vadd.f32 %v3854, 1e-06
    %v3863 = vadd.f32 %v3855, 1e-06
    %v3864 = vadd.f32 %v3856, 1e-06
    %v3865 = vadd.f32 %v3857, 1e-06
    %v3866 = vrsqrt.pop %v3862
    %v3867 = vrsqrt.pop %v3863
    %v3868 = vrsqrt.pop %v3864
    %v3869 = vrsqrt.pop %v3865
    %v3870 = vmul.f32 %v3858, %v3866
    %v3871 = vmul.f32 %v3859, %v3867
    %v3872 = vmul.f32 %v3860, %v3868
    %v3873 = vmul.f32 %v3861, %v3869
    %v3874 = vlaneseq
    %v3875 = vshrl.u32 %v3874, 7
    %v3876 = vsub.s32 0, %v3875
    %v3877 = vrot.slane %v3808, %v3876
    %v3878 = vmul.f32 %v3870, %v3877
    %v3879 = vmul.f32 %v3871, %v3877
    %v3880 = vmul.f32 %v3872, %v3877
    %v3881 = vmul.f32 %v3873, %v3877
    %v3882 = vlaneseq
    %v3883 = vshrl.u32 %v3882, 7
    %v3884 = vsub.s32 0, %v3883
    %v3885 = vrot.slane %v3809, %v3884
    %v3886 = vadd.f32 %v3878, %v3885
    %v3887 = vadd.f32 %v3879, %v3885
    %v3888 = vadd.f32 %v3880, %v3885
    %v3889 = vadd.f32 %v3881, %v3885
    %3890 = vst.msk [vmem:[#allocation7] sm:$0xff] %vm201, %v3886
    %3891 = vst.msk [vmem:[#allocation7 + $0x8] sm:$0xff] %vm201, %v3887
    %3892 = vst.msk [vmem:[#allocation7 + $0x10] sm:$0xff] %vm201, %v3888
    %3893 = vst.msk [vmem:[#allocation7 + $0x18] sm:$0xff] %vm201, %v3889
    // Predicated region
    $region50: #{tpu_custom_call.1} parent=1 // pred_check
      _
    $region51: #{tpu_custom_call.1} parent=1 // pred_check_branch
      %3895 = sbr.rel (0) target = $region53
    $region52: #{tpu_custom_call.1} parent=1 // pred_region
      %s3897 = ssub.s32 512, 512
      %3898 = vsyncadd [#allocation4], %s3897
      %s3899 = sshll.u32 [#allocation7], 4
      %s3900 = int_to_ptr.vmem [resolvable:$true] %s3899
      %3905 = dma.vmem_to_hbm [thread:$0]  %s3900, 512, %s10, [#allocation4], 128, 128, 8
    $region53: #{tpu_custom_call.1} parent=1 // pred_fallthru
      _
    // Predicated region
    $region54: #{tpu_custom_call.1} parent=1 // pred_check
      _
    $region55: #{tpu_custom_call.1} parent=1 // pred_check_branch
      %3907 = sbr.rel (0) target = $region57
    $region56: #{tpu_custom_call.1} parent=1 // pred_region
      %3908 = dma.done [#allocation4], 512
    $region57: #{tpu_custom_call.1} parent=1 // pred_fallthru
      _
    %3909 = vsyncpa [#allocation3], 1
    %3910 = vsyncpa [#allocation6], 1
    %3911 = vsyncpa [#allocation4], 1

</llo_original>
